<compile_context>
chip_gen: v7x
topology: tpu7x:2x2x1
jax: 0.10.0
libtpu: 0.0.40
codegen_flags: <defaults>
</compile_context>

<pallas_src>
import functools

import jax
import jax.numpy as jnp
from jax.experimental import pallas as pl
from jax.experimental.pallas import tpu as pltpu


def _tanh_sq(g):
    """(sigmoid(g) * 2 - 1) ** 2  ==  tanh(0.5 * g) ** 2  (cheaper, no overflow)."""
    t = jnp.tanh(0.5 * g)
    return t * t


def _pool_matrix(n_out, n_in, dtype):
    """(n_out, n_in) matrix M with M[m, 2m] = M[m, 2m+1] = 0.5 (else 0).

    M @ x averages consecutive row pairs; x @ M.T averages column pairs.
    Inputs past row/col 2*n_out - 1 get zero weight -> same floor semantics as
    torch.nn.AvgPool2d(2, stride=2) on odd sizes.
    """
    m = jnp.arange(n_out)[:, None]
    r = jnp.arange(n_in)[None, :]
    return jnp.where((r == 2 * m) | (r == 2 * m + 1), 0.5, 0.0).astype(dtype)


def _avg_pool_slab(slab, ph, pw, out_dtype):
    """2x2 average pool of one (h, w) slab via two small MXU matmuls: PH @ x @ PW."""
    # Default MXU f32 precision may use bf16 passes; the loss tolerance in the
    # check below accounts for that (pyramid levels >= 1 only).
    t = jnp.dot(slab, pw, preferred_element_type=jnp.float32).astype(ph.dtype)
    return jnp.dot(ph, t, preferred_element_type=jnp.float32).astype(out_dtype)


def _exclusion_kernel(level, bblk, compute_dtype, img1_ref, img2_ref, *rest):
    """One grid step = `bblk` batch elements, ALL pyramid levels.

    img1_ref / img2_ref : (bblk, 3, H, W) VMEM blocks.
    rest[:-1]           : 2*(level-1) resident pool-matrix refs (PH_l, PW_l).
    rest[-1]            : (B, level*18) f32 SMEM result array (whole array
                          resident); row b holds
                          [lvl0: 9 gradx sums, 9 grady sums, lvl1: ..., ...].
    """
    sums_ref = rest[-1]
    pool_mats = [r[...] for r in rest[:-1]]  # loaded once per grid step
    b0 = pl.program_id(0) * bblk

    for bi in range(bblk):
        # Per-channel 2D slabs; cast once per slab to the compute dtype.
        a_ch = [img1_ref[bi, c, :, :].astype(compute_dtype) for c in range(3)]
        b_ch = [img2_ref[bi, c, :, :].astype(compute_dtype) for c in range(3)]

        for lvl in range(level):
            base = lvl * 18

            # ---- x direction first; its 6 squared-gradient slabs die before
            # ---- the y-direction slabs are built (lower peak VMEM/vregs).
            ax2 = [_tanh_sq(s[1:, :] - s[:-1, :]) for s in a_ch]   # (h-1, w)
            bx2 = [_tanh_sq(s[1:, :] - s[:-1, :]) for s in b_ch]
            for i in range(3):
                for j in range(3):
                    # One VPU product + one cross-lane reduction per pair,
                    # accumulated in f32 regardless of compute dtype.
                    sums_ref[b0 + bi, base + i * 3 + j] = jnp.sum(
                        (ax2[j] * bx2[i]).astype(jnp.float32))

            # ---- y direction.
            ay2 = [_tanh_sq(s[:, 1:] - s[:, :-1]) for s in a_ch]   # (h, w-1)
            by2 = [_tanh_sq(s[:, 1:] - s[:, :-1]) for s in b_ch]
            for i in range(3):
                for j in range(3):
                    sums_ref[b0 + bi, base + 9 + i * 3 + j] = jnp.sum(
                        (ay2[j] * by2[i]).astype(jnp.float32))

            if lvl + 1 < level:
                # In-kernel 2x2 average pool on the otherwise-idle MXU, using
                # the precomputed resident matrices (shared by all 6 slabs).
                ph = pool_mats[2 * lvl]
                pw = pool_mats[2 * lvl + 1]
                a_ch = [_avg_pool_slab(s, ph, pw, compute_dtype) for s in a_ch]
                b_ch = [_avg_pool_slab(s, ph, pw, compute_dtype) for s in b_ch]


def _pick_batch_block(B, H, W, in_itemsize, compute_itemsize):
    """Batch elements per grid step.

    Small images (W < 128 lanes) have tiny per-step compute, so the per-grid-
    step overhead dominates; pack several batch elements per step as long as
    the double-buffered inputs + live intermediates stay well inside VMEM.
    Large, lane-filled images keep one element per step.
    """
    per_b = 2 * 2 * 3 * H * W * in_itemsize + 14 * H * W * compute_itemsize
    if W >= 128 and per_b >= (4 << 20):
        return 1
    budget = 24 << 20
    best = 1
    for cand in range(2, min(B, 8) + 1):
        if B % cand == 0 and cand * per_b <= budget:
            best = cand
    return best


def _vmem_limit_bytes(need_bytes):
    """Scoped-VMEM request: >= 32 MiB, <= ~85% of physical VMEM.

    v5e/v6e have 128 MiB physical (large images get up to ~100 MiB instead of
    a conservative 32 MiB cap); v7x has 64 MiB, so the cap lands near ~54 MiB.
    """
    try:
        phys = int(pltpu.get_tpu_info().vmem_capacity_bytes)
    except Exception:
        phys = 64 << 20  # conservative fallback (v7x floor)
    cap = max(min(int(phys * 0.85), 100 << 20), 32 << 20)
    return int(min(max(need_bytes, 32 << 20), cap))


def exclusion_loss(img1, img2, level=3):
    """Matches ExclusionLoss(level).forward(img1, img2) (NCHW, alphax=alphay=1)."""
    assert img1.shape == img2.shape, "img1/img2 must have identical shapes"
    B, C, H, W = img1.shape
    assert C >= 3, "ExclusionLoss uses the first 3 channels"
    assert (H >> (level - 1)) >= 2 and (W >> (level - 1)) >= 2, (
        "spatial size too small for the requested number of pyramid levels")

    if C > 3:  # don't DMA / hold unused channels in VMEM
        img1 = img1[:, :3]
        img2 = img2[:, :3]

    # bf16 inputs keep the dominant diff/tanh/product work in bf16 on v6e/v7x;
    # anything else computes in f32 (v5e has no bf16 VPU/EUP).
    compute_dtype = jnp.bfloat16 if img1.dtype == jnp.bfloat16 else jnp.float32
    compute_itemsize = jnp.dtype(compute_dtype).itemsize

    bblk = _pick_batch_block(B, H, W, img1.dtype.itemsize, compute_itemsize)

    # Constant pool matrices, built once here (constant-folded by XLA) and kept
    # resident across the whole grid via a constant index_map.
    pool_mats, pool_specs = [], []
    h, w = H, W
    for _ in range(level - 1):
        ph = _pool_matrix(h // 2, h, compute_dtype)        # (h//2, h)
        pw = _pool_matrix(w // 2, w, compute_dtype).T      # (w,   w//2)
        for m in (ph, pw):
            pool_mats.append(m)
            pool_specs.append(pl.BlockSpec(m.shape, lambda b: (0, 0)))
        h, w = h // 2, w // 2

    img_spec = pl.BlockSpec((bblk, 3, H, W), lambda b: (b, 0, 0, 0))

    in_bytes = 2 * 2 * bblk * 3 * H * W * img1.dtype.itemsize   # double-buffered
    inter_bytes = bblk * 14 * H * W * compute_itemsize
    pool_bytes = sum(int(m.size) * m.dtype.itemsize for m in pool_mats)
    vmem_limit = _vmem_limit_bytes(in_bytes + inter_bytes + 2 * pool_bytes + (4 << 20))

    kernel = functools.partial(_exclusion_kernel, level, bblk, compute_dtype)
    sums = pl.pallas_call(
        kernel,
        out_shape=jax.ShapeDtypeStruct((B, level * 18), jnp.float32),
        grid=(B // bblk,),
        in_specs=[img_spec, img_spec] + pool_specs,
        # The whole (B, level*18) result lives in SMEM; each grid step fills
        # its own rows of the resident block.
        out_specs=pl.BlockSpec(memory_space=pltpu.MemorySpace.SMEM),
        compiler_params=pltpu.CompilerParams(
            # Shared resident SMEM result block is written across grid steps,
            # so the batch axis must stay sequential ("arbitrary").
            dimension_semantics=("arbitrary",),
            vmem_limit_bytes=vmem_limit,
        ),
    )(img1, img2, *pool_mats)

    # Tiny epilogue in plain JAX: batch-sum -> mean -> **0.25 -> average.
    sums = sums.sum(axis=0).reshape(level, 2, 9)
    hl, wl = H, W
    loss_x = jnp.float32(0.0)
    loss_y = jnp.float32(0.0)
    for lvl in range(level):
        nx = jnp.float32(B * (hl - 1) * wl)   # elements per gradx pair product
        ny = jnp.float32(B * hl * (wl - 1))   # elements per grady pair product
        loss_x = loss_x + jnp.sum((sums[lvl, 0] / nx) ** 0.25)
        loss_y = loss_y + jnp.sum((sums[lvl, 1] / ny) ** 0.25)
        hl, wl = hl // 2, wl // 2
    denom = jnp.float32(level * 9)
    return (loss_x / denom + loss_y / denom) / 2.0


# ---------------------------------------------------------------------------
# Pure-JAX reference (mirrors the PyTorch module) for a correctness check.
# ---------------------------------------------------------------------------
def _avg_pool_2x2(x):
    B, C, H, W = x.shape
    Ho, Wo = H // 2, W // 2
    x = x[:, :, : Ho * 2, : Wo * 2]
    return x.reshape(B, C, Ho, 2, Wo, 2).mean(axis=(3, 5))


def _reference_exclusion_loss(img1, img2, level=3):
    def sig(x):
        return 1.0 / (1.0 + jnp.exp(-x))

    gradx_loss, grady_loss = [], []
    for _ in range(level):
        gax = img1[:, :, 1:, :] - img1[:, :, :-1, :]
        gay = img1[:, :, :, 1:] - img1[:, :, :, :-1]
        gbx = img2[:, :, 1:, :] - img2[:, :, :-1, :]
        gby = img2[:, :, :, 1:] - img2[:, :, :, :-1]
        sax = sig(gax) * 2 - 1
        say = sig(gay) * 2 - 1
        sbx = sig(gbx) * 2 - 1
        sby = sig(gby) * 2 - 1
        for i in range(3):
            for j in range(3):
                gradx_loss.append(jnp.mean(sax[:, j] ** 2 * sbx[:, i] ** 2) ** 0.25)
                grady_loss.append(jnp.mean(say[:, j] ** 2 * sby[:, i] ** 2) ** 0.25)
        img1 = _avg_pool_2x2(img1)
        img2 = _avg_pool_2x2(img2)
    loss = sum(gradx_loss) / (level * 9) + sum(grady_loss) / (level * 9)
    return loss / 2.0


if __name__ == "__main__":
    key = jax.random.PRNGKey(0)
    k1, k2 = jax.random.split(key)
    # B=2, C=4 (loss uses only the first 3 channels), H=W=16 (even through all
    # 3 pyramid levels: 16 -> 8 -> 4).
    img1 = jax.random.normal(k1, (2, 4, 16, 16), dtype=jnp.float32)
    img2 = jax.random.normal(k2, (2, 4, 16, 16), dtype=jnp.float32)

    loss_fn = jax.jit(functools.partial(exclusion_loss, level=3))
    loss = jax.block_until_ready(loss_fn(img1, img2))

    ref = _reference_exclusion_loss(img1, img2, level=3)
    # The in-kernel 2x2 pool runs on the MXU at default f32 precision (may use
    # bf16 passes on v5e/v6e) -> pyramid levels >= 1 are not bit-exact.
    assert jnp.allclose(loss, ref, rtol=3e-3, atol=1e-4), (float(loss), float(ref))

    print("KERNEL_OK")
</pallas_src>

<mosaic_0001>
module attributes {stable_mosaic.version = 11 : i64} {
  func.func @_exclusion_kernel(%arg0: i32, %arg1: memref<2x3x16x16xf32, #tpu.memory_space<vmem>>, %arg2: memref<2x3x16x16xf32, #tpu.memory_space<vmem>>, %arg3: memref<8x16xf32, #tpu.memory_space<vmem>>, %arg4: memref<16x8xf32, #tpu.memory_space<vmem>>, %arg5: memref<4x8xf32, #tpu.memory_space<vmem>>, %arg6: memref<8x4xf32, #tpu.memory_space<vmem>>, %arg7: memref<2x54xf32, #tpu.memory_space<smem>>) attributes {dimension_semantics = [#tpu.dimension_semantics<arbitrary>], iteration_bounds = array<i64: 1>, scalar_prefetch = 0 : i64, scratch_operands = 0 : i64, tpu.core_type = #tpu.core_type<tc>, window_params = [{transform_indices = @transform_0, window_bounds = array<i64: 2, 3, 16, 16>}, {transform_indices = @transform_1, window_bounds = array<i64: 2, 3, 16, 16>}, {pipeline_mode = #tpu.pipeline_mode<synchronous>, transform_indices = @transform_2, window_bounds = array<i64: 8, 16>}, {pipeline_mode = #tpu.pipeline_mode<synchronous>, transform_indices = @transform_3, window_bounds = array<i64: 16, 8>}, {pipeline_mode = #tpu.pipeline_mode<synchronous>, transform_indices = @transform_4, window_bounds = array<i64: 4, 8>}, {pipeline_mode = #tpu.pipeline_mode<synchronous>, transform_indices = @transform_5, window_bounds = array<i64: 8, 4>}, {transform_indices = @transform_6, window_bounds = array<i64: 2, 54>}]} {
    %c0 = arith.constant 0 : index
    %c0_0 = arith.constant 0 : index
    %0 = vector.load %arg3[%c0, %c0_0] : memref<8x16xf32, #tpu.memory_space<vmem>>, vector<8x16xf32>
    %c0_1 = arith.constant 0 : index
    %c0_2 = arith.constant 0 : index
    %1 = vector.load %arg4[%c0_1, %c0_2] : memref<16x8xf32, #tpu.memory_space<vmem>>, vector<16x8xf32>
    %c0_3 = arith.constant 0 : index
    %c0_4 = arith.constant 0 : index
    %2 = vector.load %arg5[%c0_3, %c0_4] : memref<4x8xf32, #tpu.memory_space<vmem>>, vector<4x8xf32>
    %c0_5 = arith.constant 0 : index
    %c0_6 = arith.constant 0 : index
    %3 = vector.load %arg6[%c0_5, %c0_6] : memref<8x4xf32, #tpu.memory_space<vmem>>, vector<8x4xf32>
    %c2_i32 = arith.constant 2 : i32
    %4 = arith.muli %arg0, %c2_i32 : i32
    %c0_7 = arith.constant 0 : index
    %c0_8 = arith.constant 0 : index
    %c0_9 = arith.constant 0 : index
    %c0_10 = arith.constant 0 : index
    %5 = vector.load %arg1[%c0_7, %c0_8, %c0_9, %c0_10] : memref<2x3x16x16xf32, #tpu.memory_space<vmem>>, vector<1x1x16x16xf32>
    %6 = vector.shape_cast %5 : vector<1x1x16x16xf32> to vector<16x16xf32>
    %c0_11 = arith.constant 0 : index
    %c1 = arith.constant 1 : index
    %c0_12 = arith.constant 0 : index
    %c0_13 = arith.constant 0 : index
    %7 = vector.load %arg1[%c0_11, %c1, %c0_12, %c0_13] : memref<2x3x16x16xf32, #tpu.memory_space<vmem>>, vector<1x1x16x16xf32>
    %8 = vector.shape_cast %7 : vector<1x1x16x16xf32> to vector<16x16xf32>
    %c0_14 = arith.constant 0 : index
    %c2 = arith.constant 2 : index
    %c0_15 = arith.constant 0 : index
    %c0_16 = arith.constant 0 : index
    %9 = vector.load %arg1[%c0_14, %c2, %c0_15, %c0_16] : memref<2x3x16x16xf32, #tpu.memory_space<vmem>>, vector<1x1x16x16xf32>
    %10 = vector.shape_cast %9 : vector<1x1x16x16xf32> to vector<16x16xf32>
    %c0_17 = arith.constant 0 : index
    %c0_18 = arith.constant 0 : index
    %c0_19 = arith.constant 0 : index
    %c0_20 = arith.constant 0 : index
    %11 = vector.load %arg2[%c0_17, %c0_18, %c0_19, %c0_20] : memref<2x3x16x16xf32, #tpu.memory_space<vmem>>, vector<1x1x16x16xf32>
    %12 = vector.shape_cast %11 : vector<1x1x16x16xf32> to vector<16x16xf32>
    %c0_21 = arith.constant 0 : index
    %c1_22 = arith.constant 1 : index
    %c0_23 = arith.constant 0 : index
    %c0_24 = arith.constant 0 : index
    %13 = vector.load %arg2[%c0_21, %c1_22, %c0_23, %c0_24] : memref<2x3x16x16xf32, #tpu.memory_space<vmem>>, vector<1x1x16x16xf32>
    %14 = vector.shape_cast %13 : vector<1x1x16x16xf32> to vector<16x16xf32>
    %c0_25 = arith.constant 0 : index
    %c2_26 = arith.constant 2 : index
    %c0_27 = arith.constant 0 : index
    %c0_28 = arith.constant 0 : index
    %15 = vector.load %arg2[%c0_25, %c2_26, %c0_27, %c0_28] : memref<2x3x16x16xf32, #tpu.memory_space<vmem>>, vector<1x1x16x16xf32>
    %16 = vector.shape_cast %15 : vector<1x1x16x16xf32> to vector<16x16xf32>
    %17 = vector.extract_strided_slice %6 {offsets = [1, 0], sizes = [15, 16], strides = [1, 1]} : vector<16x16xf32> to vector<15x16xf32>
    %18 = vector.extract_strided_slice %6 {offsets = [0, 0], sizes = [15, 16], strides = [1, 1]} : vector<16x16xf32> to vector<15x16xf32>
    %19 = arith.subf %17, %18 : vector<15x16xf32>
    %cst = arith.constant 5.000000e-01 : f32
    %20 = vector.broadcast %cst : f32 to vector<15x16xf32>
    %21 = arith.mulf %20, %19 : vector<15x16xf32>
    %22 = math.tanh %21 : vector<15x16xf32>
    %23 = arith.mulf %22, %22 : vector<15x16xf32>
    %24 = vector.extract_strided_slice %8 {offsets = [1, 0], sizes = [15, 16], strides = [1, 1]} : vector<16x16xf32> to vector<15x16xf32>
    %25 = vector.extract_strided_slice %8 {offsets = [0, 0], sizes = [15, 16], strides = [1, 1]} : vector<16x16xf32> to vector<15x16xf32>
    %26 = arith.subf %24, %25 : vector<15x16xf32>
    %cst_29 = arith.constant 5.000000e-01 : f32
    %27 = vector.broadcast %cst_29 : f32 to vector<15x16xf32>
    %28 = arith.mulf %27, %26 : vector<15x16xf32>
    %29 = math.tanh %28 : vector<15x16xf32>
    %30 = arith.mulf %29, %29 : vector<15x16xf32>
    %31 = vector.extract_strided_slice %10 {offsets = [1, 0], sizes = [15, 16], strides = [1, 1]} : vector<16x16xf32> to vector<15x16xf32>
    %32 = vector.extract_strided_slice %10 {offsets = [0, 0], sizes = [15, 16], strides = [1, 1]} : vector<16x16xf32> to vector<15x16xf32>
    %33 = arith.subf %31, %32 : vector<15x16xf32>
    %cst_30 = arith.constant 5.000000e-01 : f32
    %34 = vector.broadcast %cst_30 : f32 to vector<15x16xf32>
    %35 = arith.mulf %34, %33 : vector<15x16xf32>
    %36 = math.tanh %35 : vector<15x16xf32>
    %37 = arith.mulf %36, %36 : vector<15x16xf32>
    %38 = vector.extract_strided_slice %12 {offsets = [1, 0], sizes = [15, 16], strides = [1, 1]} : vector<16x16xf32> to vector<15x16xf32>
    %39 = vector.extract_strided_slice %12 {offsets = [0, 0], sizes = [15, 16], strides = [1, 1]} : vector<16x16xf32> to vector<15x16xf32>
    %40 = arith.subf %38, %39 : vector<15x16xf32>
    %cst_31 = arith.constant 5.000000e-01 : f32
    %41 = vector.broadcast %cst_31 : f32 to vector<15x16xf32>
    %42 = arith.mulf %41, %40 : vector<15x16xf32>
    %43 = math.tanh %42 : vector<15x16xf32>
    %44 = arith.mulf %43, %43 : vector<15x16xf32>
    %45 = vector.extract_strided_slice %14 {offsets = [1, 0], sizes = [15, 16], strides = [1, 1]} : vector<16x16xf32> to vector<15x16xf32>
    %46 = vector.extract_strided_slice %14 {offsets = [0, 0], sizes = [15, 16], strides = [1, 1]} : vector<16x16xf32> to vector<15x16xf32>
    %47 = arith.subf %45, %46 : vector<15x16xf32>
    %cst_32 = arith.constant 5.000000e-01 : f32
    %48 = vector.broadcast %cst_32 : f32 to vector<15x16xf32>
    %49 = arith.mulf %48, %47 : vector<15x16xf32>
    %50 = math.tanh %49 : vector<15x16xf32>
    %51 = arith.mulf %50, %50 : vector<15x16xf32>
    %52 = vector.extract_strided_slice %16 {offsets = [1, 0], sizes = [15, 16], strides = [1, 1]} : vector<16x16xf32> to vector<15x16xf32>
    %53 = vector.extract_strided_slice %16 {offsets = [0, 0], sizes = [15, 16], strides = [1, 1]} : vector<16x16xf32> to vector<15x16xf32>
    %54 = arith.subf %52, %53 : vector<15x16xf32>
    %cst_33 = arith.constant 5.000000e-01 : f32
    %55 = vector.broadcast %cst_33 : f32 to vector<15x16xf32>
    %56 = arith.mulf %55, %54 : vector<15x16xf32>
    %57 = math.tanh %56 : vector<15x16xf32>
    %58 = arith.mulf %57, %57 : vector<15x16xf32>
    %59 = arith.mulf %23, %44 : vector<15x16xf32>
    %60 = vector.shape_cast %59 : vector<15x16xf32> to vector<1x15x16xf32>
    %cst_34 = arith.constant dense<0.000000e+00> : vector<1xf32>
    %61 = vector.multi_reduction <add>, %60, %cst_34 [1, 2] : vector<1x15x16xf32> to vector<1xf32>
    %62 = vector.shape_cast %61 : vector<1xf32> to vector<1x1x1xf32>
    %63 = vector.extract %62[0, 0, 0] : f32 from vector<1x1x1xf32>
    %c0_i32 = arith.constant 0 : i32
    %64 = arith.addi %4, %c0_i32 : i32
    %65 = arith.index_cast %64 : i32 to index
    %c0_35 = arith.constant 0 : index
    %66 = memref.load %arg7[%65, %c0_35] : memref<2x54xf32, #tpu.memory_space<smem>>
    memref.store %63, %arg7[%65, %c0_35] : memref<2x54xf32, #tpu.memory_space<smem>>
    %67 = arith.mulf %30, %44 : vector<15x16xf32>
    %68 = vector.shape_cast %67 : vector<15x16xf32> to vector<1x15x16xf32>
    %cst_36 = arith.constant dense<0.000000e+00> : vector<1xf32>
    %69 = vector.multi_reduction <add>, %68, %cst_36 [1, 2] : vector<1x15x16xf32> to vector<1xf32>
    %70 = vector.shape_cast %69 : vector<1xf32> to vector<1x1x1xf32>
    %71 = vector.extract %70[0, 0, 0] : f32 from vector<1x1x1xf32>
    %c0_i32_37 = arith.constant 0 : i32
    %72 = arith.addi %4, %c0_i32_37 : i32
    %73 = arith.index_cast %72 : i32 to index
    %c1_38 = arith.constant 1 : index
    %74 = memref.load %arg7[%73, %c1_38] : memref<2x54xf32, #tpu.memory_space<smem>>
    memref.store %71, %arg7[%73, %c1_38] : memref<2x54xf32, #tpu.memory_space<smem>>
    %75 = arith.mulf %37, %44 : vector<15x16xf32>
    %76 = vector.shape_cast %75 : vector<15x16xf32> to vector<1x15x16xf32>
    %cst_39 = arith.constant dense<0.000000e+00> : vector<1xf32>
    %77 = vector.multi_reduction <add>, %76, %cst_39 [1, 2] : vector<1x15x16xf32> to vector<1xf32>
    %78 = vector.shape_cast %77 : vector<1xf32> to vector<1x1x1xf32>
    %79 = vector.extract %78[0, 0, 0] : f32 from vector<1x1x1xf32>
    %c0_i32_40 = arith.constant 0 : i32
    %80 = arith.addi %4, %c0_i32_40 : i32
    %81 = arith.index_cast %80 : i32 to index
    %c2_41 = arith.constant 2 : index
    %82 = memref.load %arg7[%81, %c2_41] : memref<2x54xf32, #tpu.memory_space<smem>>
    memref.store %79, %arg7[%81, %c2_41] : memref<2x54xf32, #tpu.memory_space<smem>>
    %83 = arith.mulf %23, %51 : vector<15x16xf32>
    %84 = vector.shape_cast %83 : vector<15x16xf32> to vector<1x15x16xf32>
    %cst_42 = arith.constant dense<0.000000e+00> : vector<1xf32>
    %85 = vector.multi_reduction <add>, %84, %cst_42 [1, 2] : vector<1x15x16xf32> to vector<1xf32>
    %86 = vector.shape_cast %85 : vector<1xf32> to vector<1x1x1xf32>
    %87 = vector.extract %86[0, 0, 0] : f32 from vector<1x1x1xf32>
    %c0_i32_43 = arith.constant 0 : i32
    %88 = arith.addi %4, %c0_i32_43 : i32
    %89 = arith.index_cast %88 : i32 to index
    %c3 = arith.constant 3 : index
    %90 = memref.load %arg7[%89, %c3] : memref<2x54xf32, #tpu.memory_space<smem>>
    memref.store %87, %arg7[%89, %c3] : memref<2x54xf32, #tpu.memory_space<smem>>
    %91 = arith.mulf %30, %51 : vector<15x16xf32>
    %92 = vector.shape_cast %91 : vector<15x16xf32> to vector<1x15x16xf32>
    %cst_44 = arith.constant dense<0.000000e+00> : vector<1xf32>
    %93 = vector.multi_reduction <add>, %92, %cst_44 [1, 2] : vector<1x15x16xf32> to vector<1xf32>
    %94 = vector.shape_cast %93 : vector<1xf32> to vector<1x1x1xf32>
    %95 = vector.extract %94[0, 0, 0] : f32 from vector<1x1x1xf32>
    %c0_i32_45 = arith.constant 0 : i32
    %96 = arith.addi %4, %c0_i32_45 : i32
    %97 = arith.index_cast %96 : i32 to index
    %c4 = arith.constant 4 : index
    %98 = memref.load %arg7[%97, %c4] : memref<2x54xf32, #tpu.memory_space<smem>>
    memref.store %95, %arg7[%97, %c4] : memref<2x54xf32, #tpu.memory_space<smem>>
    %99 = arith.mulf %37, %51 : vector<15x16xf32>
    %100 = vector.shape_cast %99 : vector<15x16xf32> to vector<1x15x16xf32>
    %cst_46 = arith.constant dense<0.000000e+00> : vector<1xf32>
    %101 = vector.multi_reduction <add>, %100, %cst_46 [1, 2] : vector<1x15x16xf32> to vector<1xf32>
    %102 = vector.shape_cast %101 : vector<1xf32> to vector<1x1x1xf32>
    %103 = vector.extract %102[0, 0, 0] : f32 from vector<1x1x1xf32>
    %c0_i32_47 = arith.constant 0 : i32
    %104 = arith.addi %4, %c0_i32_47 : i32
    %105 = arith.index_cast %104 : i32 to index
    %c5 = arith.constant 5 : index
    %106 = memref.load %arg7[%105, %c5] : memref<2x54xf32, #tpu.memory_space<smem>>
    memref.store %103, %arg7[%105, %c5] : memref<2x54xf32, #tpu.memory_space<smem>>
    %107 = arith.mulf %23, %58 : vector<15x16xf32>
    %108 = vector.shape_cast %107 : vector<15x16xf32> to vector<1x15x16xf32>
    %cst_48 = arith.constant dense<0.000000e+00> : vector<1xf32>
    %109 = vector.multi_reduction <add>, %108, %cst_48 [1, 2] : vector<1x15x16xf32> to vector<1xf32>
    %110 = vector.shape_cast %109 : vector<1xf32> to vector<1x1x1xf32>
    %111 = vector.extract %110[0, 0, 0] : f32 from vector<1x1x1xf32>
    %c0_i32_49 = arith.constant 0 : i32
    %112 = arith.addi %4, %c0_i32_49 : i32
    %113 = arith.index_cast %112 : i32 to index
    %c6 = arith.constant 6 : index
    %114 = memref.load %arg7[%113, %c6] : memref<2x54xf32, #tpu.memory_space<smem>>
    memref.store %111, %arg7[%113, %c6] : memref<2x54xf32, #tpu.memory_space<smem>>
    %115 = arith.mulf %30, %58 : vector<15x16xf32>
    %116 = vector.shape_cast %115 : vector<15x16xf32> to vector<1x15x16xf32>
    %cst_50 = arith.constant dense<0.000000e+00> : vector<1xf32>
    %117 = vector.multi_reduction <add>, %116, %cst_50 [1, 2] : vector<1x15x16xf32> to vector<1xf32>
    %118 = vector.shape_cast %117 : vector<1xf32> to vector<1x1x1xf32>
    %119 = vector.extract %118[0, 0, 0] : f32 from vector<1x1x1xf32>
    %c0_i32_51 = arith.constant 0 : i32
    %120 = arith.addi %4, %c0_i32_51 : i32
    %121 = arith.index_cast %120 : i32 to index
    %c7 = arith.constant 7 : index
    %122 = memref.load %arg7[%121, %c7] : memref<2x54xf32, #tpu.memory_space<smem>>
    memref.store %119, %arg7[%121, %c7] : memref<2x54xf32, #tpu.memory_space<smem>>
    %123 = arith.mulf %37, %58 : vector<15x16xf32>
    %124 = vector.shape_cast %123 : vector<15x16xf32> to vector<1x15x16xf32>
    %cst_52 = arith.constant dense<0.000000e+00> : vector<1xf32>
    %125 = vector.multi_reduction <add>, %124, %cst_52 [1, 2] : vector<1x15x16xf32> to vector<1xf32>
    %126 = vector.shape_cast %125 : vector<1xf32> to vector<1x1x1xf32>
    %127 = vector.extract %126[0, 0, 0] : f32 from vector<1x1x1xf32>
    %c0_i32_53 = arith.constant 0 : i32
    %128 = arith.addi %4, %c0_i32_53 : i32
    %129 = arith.index_cast %128 : i32 to index
    %c8 = arith.constant 8 : index
    %130 = memref.load %arg7[%129, %c8] : memref<2x54xf32, #tpu.memory_space<smem>>
    memref.store %127, %arg7[%129, %c8] : memref<2x54xf32, #tpu.memory_space<smem>>
    %131 = vector.extract_strided_slice %6 {offsets = [0, 1], sizes = [16, 15], strides = [1, 1]} : vector<16x16xf32> to vector<16x15xf32>
    %132 = vector.extract_strided_slice %6 {offsets = [0, 0], sizes = [16, 15], strides = [1, 1]} : vector<16x16xf32> to vector<16x15xf32>
    %133 = arith.subf %131, %132 : vector<16x15xf32>
    %cst_54 = arith.constant 5.000000e-01 : f32
    %134 = vector.broadcast %cst_54 : f32 to vector<16x15xf32>
    %135 = arith.mulf %134, %133 : vector<16x15xf32>
    %136 = math.tanh %135 : vector<16x15xf32>
    %137 = arith.mulf %136, %136 : vector<16x15xf32>
    %138 = vector.extract_strided_slice %8 {offsets = [0, 1], sizes = [16, 15], strides = [1, 1]} : vector<16x16xf32> to vector<16x15xf32>
    %139 = vector.extract_strided_slice %8 {offsets = [0, 0], sizes = [16, 15], strides = [1, 1]} : vector<16x16xf32> to vector<16x15xf32>
    %140 = arith.subf %138, %139 : vector<16x15xf32>
    %cst_55 = arith.constant 5.000000e-01 : f32
    %141 = vector.broadcast %cst_55 : f32 to vector<16x15xf32>
    %142 = arith.mulf %141, %140 : vector<16x15xf32>
    %143 = math.tanh %142 : vector<16x15xf32>
    %144 = arith.mulf %143, %143 : vector<16x15xf32>
    %145 = vector.extract_strided_slice %10 {offsets = [0, 1], sizes = [16, 15], strides = [1, 1]} : vector<16x16xf32> to vector<16x15xf32>
    %146 = vector.extract_strided_slice %10 {offsets = [0, 0], sizes = [16, 15], strides = [1, 1]} : vector<16x16xf32> to vector<16x15xf32>
    %147 = arith.subf %145, %146 : vector<16x15xf32>
    %cst_56 = arith.constant 5.000000e-01 : f32
    %148 = vector.broadcast %cst_56 : f32 to vector<16x15xf32>
    %149 = arith.mulf %148, %147 : vector<16x15xf32>
    %150 = math.tanh %149 : vector<16x15xf32>
    %151 = arith.mulf %150, %150 : vector<16x15xf32>
    %152 = vector.extract_strided_slice %12 {offsets = [0, 1], sizes = [16, 15], strides = [1, 1]} : vector<16x16xf32> to vector<16x15xf32>
    %153 = vector.extract_strided_slice %12 {offsets = [0, 0], sizes = [16, 15], strides = [1, 1]} : vector<16x16xf32> to vector<16x15xf32>
    %154 = arith.subf %152, %153 : vector<16x15xf32>
    %cst_57 = arith.constant 5.000000e-01 : f32
    %155 = vector.broadcast %cst_57 : f32 to vector<16x15xf32>
    %156 = arith.mulf %155, %154 : vector<16x15xf32>
    %157 = math.tanh %156 : vector<16x15xf32>
    %158 = arith.mulf %157, %157 : vector<16x15xf32>
    %159 = vector.extract_strided_slice %14 {offsets = [0, 1], sizes = [16, 15], strides = [1, 1]} : vector<16x16xf32> to vector<16x15xf32>
    %160 = vector.extract_strided_slice %14 {offsets = [0, 0], sizes = [16, 15], strides = [1, 1]} : vector<16x16xf32> to vector<16x15xf32>
    %161 = arith.subf %159, %160 : vector<16x15xf32>
    %cst_58 = arith.constant 5.000000e-01 : f32
    %162 = vector.broadcast %cst_58 : f32 to vector<16x15xf32>
    %163 = arith.mulf %162, %161 : vector<16x15xf32>
    %164 = math.tanh %163 : vector<16x15xf32>
    %165 = arith.mulf %164, %164 : vector<16x15xf32>
    %166 = vector.extract_strided_slice %16 {offsets = [0, 1], sizes = [16, 15], strides = [1, 1]} : vector<16x16xf32> to vector<16x15xf32>
    %167 = vector.extract_strided_slice %16 {offsets = [0, 0], sizes = [16, 15], strides = [1, 1]} : vector<16x16xf32> to vector<16x15xf32>
    %168 = arith.subf %166, %167 : vector<16x15xf32>
    %cst_59 = arith.constant 5.000000e-01 : f32
    %169 = vector.broadcast %cst_59 : f32 to vector<16x15xf32>
    %170 = arith.mulf %169, %168 : vector<16x15xf32>
    %171 = math.tanh %170 : vector<16x15xf32>
    %172 = arith.mulf %171, %171 : vector<16x15xf32>
    %173 = arith.mulf %137, %158 : vector<16x15xf32>
    %174 = vector.shape_cast %173 : vector<16x15xf32> to vector<1x16x15xf32>
    %cst_60 = arith.constant dense<0.000000e+00> : vector<1xf32>
    %175 = vector.multi_reduction <add>, %174, %cst_60 [1, 2] : vector<1x16x15xf32> to vector<1xf32>
    %176 = vector.shape_cast %175 : vector<1xf32> to vector<1x1x1xf32>
    %177 = vector.extract %176[0, 0, 0] : f32 from vector<1x1x1xf32>
    %c0_i32_61 = arith.constant 0 : i32
    %178 = arith.addi %4, %c0_i32_61 : i32
    %179 = arith.index_cast %178 : i32 to index
    %c9 = arith.constant 9 : index
    %180 = memref.load %arg7[%179, %c9] : memref<2x54xf32, #tpu.memory_space<smem>>
    memref.store %177, %arg7[%179, %c9] : memref<2x54xf32, #tpu.memory_space<smem>>
    %181 = arith.mulf %144, %158 : vector<16x15xf32>
    %182 = vector.shape_cast %181 : vector<16x15xf32> to vector<1x16x15xf32>
    %cst_62 = arith.constant dense<0.000000e+00> : vector<1xf32>
    %183 = vector.multi_reduction <add>, %182, %cst_62 [1, 2] : vector<1x16x15xf32> to vector<1xf32>
    %184 = vector.shape_cast %183 : vector<1xf32> to vector<1x1x1xf32>
    %185 = vector.extract %184[0, 0, 0] : f32 from vector<1x1x1xf32>
    %c0_i32_63 = arith.constant 0 : i32
    %186 = arith.addi %4, %c0_i32_63 : i32
    %187 = arith.index_cast %186 : i32 to index
    %c10 = arith.constant 10 : index
    %188 = memref.load %arg7[%187, %c10] : memref<2x54xf32, #tpu.memory_space<smem>>
    memref.store %185, %arg7[%187, %c10] : memref<2x54xf32, #tpu.memory_space<smem>>
    %189 = arith.mulf %151, %158 : vector<16x15xf32>
    %190 = vector.shape_cast %189 : vector<16x15xf32> to vector<1x16x15xf32>
    %cst_64 = arith.constant dense<0.000000e+00> : vector<1xf32>
    %191 = vector.multi_reduction <add>, %190, %cst_64 [1, 2] : vector<1x16x15xf32> to vector<1xf32>
    %192 = vector.shape_cast %191 : vector<1xf32> to vector<1x1x1xf32>
    %193 = vector.extract %192[0, 0, 0] : f32 from vector<1x1x1xf32>
    %c0_i32_65 = arith.constant 0 : i32
    %194 = arith.addi %4, %c0_i32_65 : i32
    %195 = arith.index_cast %194 : i32 to index
    %c11 = arith.constant 11 : index
    %196 = memref.load %arg7[%195, %c11] : memref<2x54xf32, #tpu.memory_space<smem>>
    memref.store %193, %arg7[%195, %c11] : memref<2x54xf32, #tpu.memory_space<smem>>
    %197 = arith.mulf %137, %165 : vector<16x15xf32>
    %198 = vector.shape_cast %197 : vector<16x15xf32> to vector<1x16x15xf32>
    %cst_66 = arith.constant dense<0.000000e+00> : vector<1xf32>
    %199 = vector.multi_reduction <add>, %198, %cst_66 [1, 2] : vector<1x16x15xf32> to vector<1xf32>
    %200 = vector.shape_cast %199 : vector<1xf32> to vector<1x1x1xf32>
    %201 = vector.extract %200[0, 0, 0] : f32 from vector<1x1x1xf32>
    %c0_i32_67 = arith.constant 0 : i32
    %202 = arith.addi %4, %c0_i32_67 : i32
    %203 = arith.index_cast %202 : i32 to index
    %c12 = arith.constant 12 : index
    %204 = memref.load %arg7[%203, %c12] : memref<2x54xf32, #tpu.memory_space<smem>>
    memref.store %201, %arg7[%203, %c12] : memref<2x54xf32, #tpu.memory_space<smem>>
    %205 = arith.mulf %144, %165 : vector<16x15xf32>
    %206 = vector.shape_cast %205 : vector<16x15xf32> to vector<1x16x15xf32>
    %cst_68 = arith.constant dense<0.000000e+00> : vector<1xf32>
    %207 = vector.multi_reduction <add>, %206, %cst_68 [1, 2] : vector<1x16x15xf32> to vector<1xf32>
    %208 = vector.shape_cast %207 : vector<1xf32> to vector<1x1x1xf32>
    %209 = vector.extract %208[0, 0, 0] : f32 from vector<1x1x1xf32>
    %c0_i32_69 = arith.constant 0 : i32
    %210 = arith.addi %4, %c0_i32_69 : i32
    %211 = arith.index_cast %210 : i32 to index
    %c13 = arith.constant 13 : index
    %212 = memref.load %arg7[%211, %c13] : memref<2x54xf32, #tpu.memory_space<smem>>
    memref.store %209, %arg7[%211, %c13] : memref<2x54xf32, #tpu.memory_space<smem>>
    %213 = arith.mulf %151, %165 : vector<16x15xf32>
    %214 = vector.shape_cast %213 : vector<16x15xf32> to vector<1x16x15xf32>
    %cst_70 = arith.constant dense<0.000000e+00> : vector<1xf32>
    %215 = vector.multi_reduction <add>, %214, %cst_70 [1, 2] : vector<1x16x15xf32> to vector<1xf32>
    %216 = vector.shape_cast %215 : vector<1xf32> to vector<1x1x1xf32>
    %217 = vector.extract %216[0, 0, 0] : f32 from vector<1x1x1xf32>
    %c0_i32_71 = arith.constant 0 : i32
    %218 = arith.addi %4, %c0_i32_71 : i32
    %219 = arith.index_cast %218 : i32 to index
    %c14 = arith.constant 14 : index
    %220 = memref.load %arg7[%219, %c14] : memref<2x54xf32, #tpu.memory_space<smem>>
    memref.store %217, %arg7[%219, %c14] : memref<2x54xf32, #tpu.memory_space<smem>>
    %221 = arith.mulf %137, %172 : vector<16x15xf32>
    %222 = vector.shape_cast %221 : vector<16x15xf32> to vector<1x16x15xf32>
    %cst_72 = arith.constant dense<0.000000e+00> : vector<1xf32>
    %223 = vector.multi_reduction <add>, %222, %cst_72 [1, 2] : vector<1x16x15xf32> to vector<1xf32>
    %224 = vector.shape_cast %223 : vector<1xf32> to vector<1x1x1xf32>
    %225 = vector.extract %224[0, 0, 0] : f32 from vector<1x1x1xf32>
    %c0_i32_73 = arith.constant 0 : i32
    %226 = arith.addi %4, %c0_i32_73 : i32
    %227 = arith.index_cast %226 : i32 to index
    %c15 = arith.constant 15 : index
    %228 = memref.load %arg7[%227, %c15] : memref<2x54xf32, #tpu.memory_space<smem>>
    memref.store %225, %arg7[%227, %c15] : memref<2x54xf32, #tpu.memory_space<smem>>
    %229 = arith.mulf %144, %172 : vector<16x15xf32>
    %230 = vector.shape_cast %229 : vector<16x15xf32> to vector<1x16x15xf32>
    %cst_74 = arith.constant dense<0.000000e+00> : vector<1xf32>
    %231 = vector.multi_reduction <add>, %230, %cst_74 [1, 2] : vector<1x16x15xf32> to vector<1xf32>
    %232 = vector.shape_cast %231 : vector<1xf32> to vector<1x1x1xf32>
    %233 = vector.extract %232[0, 0, 0] : f32 from vector<1x1x1xf32>
    %c0_i32_75 = arith.constant 0 : i32
    %234 = arith.addi %4, %c0_i32_75 : i32
    %235 = arith.index_cast %234 : i32 to index
    %c16 = arith.constant 16 : index
    %236 = memref.load %arg7[%235, %c16] : memref<2x54xf32, #tpu.memory_space<smem>>
    memref.store %233, %arg7[%235, %c16] : memref<2x54xf32, #tpu.memory_space<smem>>
    %237 = arith.mulf %151, %172 : vector<16x15xf32>
    %238 = vector.shape_cast %237 : vector<16x15xf32> to vector<1x16x15xf32>
    %cst_76 = arith.constant dense<0.000000e+00> : vector<1xf32>
    %239 = vector.multi_reduction <add>, %238, %cst_76 [1, 2] : vector<1x16x15xf32> to vector<1xf32>
    %240 = vector.shape_cast %239 : vector<1xf32> to vector<1x1x1xf32>
    %241 = vector.extract %240[0, 0, 0] : f32 from vector<1x1x1xf32>
    %c0_i32_77 = arith.constant 0 : i32
    %242 = arith.addi %4, %c0_i32_77 : i32
    %243 = arith.index_cast %242 : i32 to index
    %c17 = arith.constant 17 : index
    %244 = memref.load %arg7[%243, %c17] : memref<2x54xf32, #tpu.memory_space<smem>>
    memref.store %241, %arg7[%243, %c17] : memref<2x54xf32, #tpu.memory_space<smem>>
    %cst_78 = arith.constant dense<0.000000e+00> : vector<16x8xf32>
    %245 = tpu.matmul %6, %1, %cst_78 {dimension_numbers = #tpu.dot_dimension_numbers<[1], [0], [0], [1], [0, 0, 1, 1], [], []>} : vector<16x16xf32>, vector<16x8xf32>, vector<16x8xf32> -> vector<16x8xf32>
    %cst_79 = arith.constant dense<0.000000e+00> : vector<8x8xf32>
    %246 = tpu.matmul %0, %245, %cst_79 {dimension_numbers = #tpu.dot_dimension_numbers<[1], [0], [0], [1], [0, 0, 1, 1], [], []>} : vector<8x16xf32>, vector<16x8xf32>, vector<8x8xf32> -> vector<8x8xf32>
    %cst_80 = arith.constant dense<0.000000e+00> : vector<16x8xf32>
    %247 = tpu.matmul %8, %1, %cst_80 {dimension_numbers = #tpu.dot_dimension_numbers<[1], [0], [0], [1], [0, 0, 1, 1], [], []>} : vector<16x16xf32>, vector<16x8xf32>, vector<16x8xf32> -> vector<16x8xf32>
    %cst_81 = arith.constant dense<0.000000e+00> : vector<8x8xf32>
    %248 = tpu.matmul %0, %247, %cst_81 {dimension_numbers = #tpu.dot_dimension_numbers<[1], [0], [0], [1], [0, 0, 1, 1], [], []>} : vector<8x16xf32>, vector<16x8xf32>, vector<8x8xf32> -> vector<8x8xf32>
    %cst_82 = arith.constant dense<0.000000e+00> : vector<16x8xf32>
    %249 = tpu.matmul %10, %1, %cst_82 {dimension_numbers = #tpu.dot_dimension_numbers<[1], [0], [0], [1], [0, 0, 1, 1], [], []>} : vector<16x16xf32>, vector<16x8xf32>, vector<16x8xf32> -> vector<16x8xf32>
    %cst_83 = arith.constant dense<0.000000e+00> : vector<8x8xf32>
    %250 = tpu.matmul %0, %249, %cst_83 {dimension_numbers = #tpu.dot_dimension_numbers<[1], [0], [0], [1], [0, 0, 1, 1], [], []>} : vector<8x16xf32>, vector<16x8xf32>, vector<8x8xf32> -> vector<8x8xf32>
    %cst_84 = arith.constant dense<0.000000e+00> : vector<16x8xf32>
    %251 = tpu.matmul %12, %1, %cst_84 {dimension_numbers = #tpu.dot_dimension_numbers<[1], [0], [0], [1], [0, 0, 1, 1], [], []>} : vector<16x16xf32>, vector<16x8xf32>, vector<16x8xf32> -> vector<16x8xf32>
    %cst_85 = arith.constant dense<0.000000e+00> : vector<8x8xf32>
    %252 = tpu.matmul %0, %251, %cst_85 {dimension_numbers = #tpu.dot_dimension_numbers<[1], [0], [0], [1], [0, 0, 1, 1], [], []>} : vector<8x16xf32>, vector<16x8xf32>, vector<8x8xf32> -> vector<8x8xf32>
    %cst_86 = arith.constant dense<0.000000e+00> : vector<16x8xf32>
    %253 = tpu.matmul %14, %1, %cst_86 {dimension_numbers = #tpu.dot_dimension_numbers<[1], [0], [0], [1], [0, 0, 1, 1], [], []>} : vector<16x16xf32>, vector<16x8xf32>, vector<16x8xf32> -> vector<16x8xf32>
    %cst_87 = arith.constant dense<0.000000e+00> : vector<8x8xf32>
    %254 = tpu.matmul %0, %253, %cst_87 {dimension_numbers = #tpu.dot_dimension_numbers<[1], [0], [0], [1], [0, 0, 1, 1], [], []>} : vector<8x16xf32>, vector<16x8xf32>, vector<8x8xf32> -> vector<8x8xf32>
    %cst_88 = arith.constant dense<0.000000e+00> : vector<16x8xf32>
    %255 = tpu.matmul %16, %1, %cst_88 {dimension_numbers = #tpu.dot_dimension_numbers<[1], [0], [0], [1], [0, 0, 1, 1], [], []>} : vector<16x16xf32>, vector<16x8xf32>, vector<16x8xf32> -> vector<16x8xf32>
    %cst_89 = arith.constant dense<0.000000e+00> : vector<8x8xf32>
    %256 = tpu.matmul %0, %255, %cst_89 {dimension_numbers = #tpu.dot_dimension_numbers<[1], [0], [0], [1], [0, 0, 1, 1], [], []>} : vector<8x16xf32>, vector<16x8xf32>, vector<8x8xf32> -> vector<8x8xf32>
    %257 = vector.extract_strided_slice %246 {offsets = [1, 0], sizes = [7, 8], strides = [1, 1]} : vector<8x8xf32> to vector<7x8xf32>
    %258 = vector.extract_strided_slice %246 {offsets = [0, 0], sizes = [7, 8], strides = [1, 1]} : vector<8x8xf32> to vector<7x8xf32>
    %259 = arith.subf %257, %258 : vector<7x8xf32>
    %cst_90 = arith.constant 5.000000e-01 : f32
    %260 = vector.broadcast %cst_90 : f32 to vector<7x8xf32>
    %261 = arith.mulf %260, %259 : vector<7x8xf32>
    %262 = math.tanh %261 : vector<7x8xf32>
    %263 = arith.mulf %262, %262 : vector<7x8xf32>
    %264 = vector.extract_strided_slice %248 {offsets = [1, 0], sizes = [7, 8], strides = [1, 1]} : vector<8x8xf32> to vector<7x8xf32>
    %265 = vector.extract_strided_slice %248 {offsets = [0, 0], sizes = [7, 8], strides = [1, 1]} : vector<8x8xf32> to vector<7x8xf32>
    %266 = arith.subf %264, %265 : vector<7x8xf32>
    %cst_91 = arith.constant 5.000000e-01 : f32
    %267 = vector.broadcast %cst_91 : f32 to vector<7x8xf32>
    %268 = arith.mulf %267, %266 : vector<7x8xf32>
    %269 = math.tanh %268 : vector<7x8xf32>
    %270 = arith.mulf %269, %269 : vector<7x8xf32>
    %271 = vector.extract_strided_slice %250 {offsets = [1, 0], sizes = [7, 8], strides = [1, 1]} : vector<8x8xf32> to vector<7x8xf32>
    %272 = vector.extract_strided_slice %250 {offsets = [0, 0], sizes = [7, 8], strides = [1, 1]} : vector<8x8xf32> to vector<7x8xf32>
    %273 = arith.subf %271, %272 : vector<7x8xf32>
    %cst_92 = arith.constant 5.000000e-01 : f32
    %274 = vector.broadcast %cst_92 : f32 to vector<7x8xf32>
    %275 = arith.mulf %274, %273 : vector<7x8xf32>
    %276 = math.tanh %275 : vector<7x8xf32>
    %277 = arith.mulf %276, %276 : vector<7x8xf32>
    %278 = vector.extract_strided_slice %252 {offsets = [1, 0], sizes = [7, 8], strides = [1, 1]} : vector<8x8xf32> to vector<7x8xf32>
    %279 = vector.extract_strided_slice %252 {offsets = [0, 0], sizes = [7, 8], strides = [1, 1]} : vector<8x8xf32> to vector<7x8xf32>
    %280 = arith.subf %278, %279 : vector<7x8xf32>
    %cst_93 = arith.constant 5.000000e-01 : f32
    %281 = vector.broadcast %cst_93 : f32 to vector<7x8xf32>
    %282 = arith.mulf %281, %280 : vector<7x8xf32>
    %283 = math.tanh %282 : vector<7x8xf32>
    %284 = arith.mulf %283, %283 : vector<7x8xf32>
    %285 = vector.extract_strided_slice %254 {offsets = [1, 0], sizes = [7, 8], strides = [1, 1]} : vector<8x8xf32> to vector<7x8xf32>
    %286 = vector.extract_strided_slice %254 {offsets = [0, 0], sizes = [7, 8], strides = [1, 1]} : vector<8x8xf32> to vector<7x8xf32>
    %287 = arith.subf %285, %286 : vector<7x8xf32>
    %cst_94 = arith.constant 5.000000e-01 : f32
    %288 = vector.broadcast %cst_94 : f32 to vector<7x8xf32>
    %289 = arith.mulf %288, %287 : vector<7x8xf32>
    %290 = math.tanh %289 : vector<7x8xf32>
    %291 = arith.mulf %290, %290 : vector<7x8xf32>
    %292 = vector.extract_strided_slice %256 {offsets = [1, 0], sizes = [7, 8], strides = [1, 1]} : vector<8x8xf32> to vector<7x8xf32>
    %293 = vector.extract_strided_slice %256 {offsets = [0, 0], sizes = [7, 8], strides = [1, 1]} : vector<8x8xf32> to vector<7x8xf32>
    %294 = arith.subf %292, %293 : vector<7x8xf32>
    %cst_95 = arith.constant 5.000000e-01 : f32
    %295 = vector.broadcast %cst_95 : f32 to vector<7x8xf32>
    %296 = arith.mulf %295, %294 : vector<7x8xf32>
    %297 = math.tanh %296 : vector<7x8xf32>
    %298 = arith.mulf %297, %297 : vector<7x8xf32>
    %299 = arith.mulf %263, %284 : vector<7x8xf32>
    %300 = vector.shape_cast %299 : vector<7x8xf32> to vector<1x7x8xf32>
    %cst_96 = arith.constant dense<0.000000e+00> : vector<1xf32>
    %301 = vector.multi_reduction <add>, %300, %cst_96 [1, 2] : vector<1x7x8xf32> to vector<1xf32>
    %302 = vector.shape_cast %301 : vector<1xf32> to vector<1x1x1xf32>
    %303 = vector.extract %302[0, 0, 0] : f32 from vector<1x1x1xf32>
    %c0_i32_97 = arith.constant 0 : i32
    %304 = arith.addi %4, %c0_i32_97 : i32
    %305 = arith.index_cast %304 : i32 to index
    %c18 = arith.constant 18 : index
    %306 = memref.load %arg7[%305, %c18] : memref<2x54xf32, #tpu.memory_space<smem>>
    memref.store %303, %arg7[%305, %c18] : memref<2x54xf32, #tpu.memory_space<smem>>
    %307 = arith.mulf %270, %284 : vector<7x8xf32>
    %308 = vector.shape_cast %307 : vector<7x8xf32> to vector<1x7x8xf32>
    %cst_98 = arith.constant dense<0.000000e+00> : vector<1xf32>
    %309 = vector.multi_reduction <add>, %308, %cst_98 [1, 2] : vector<1x7x8xf32> to vector<1xf32>
    %310 = vector.shape_cast %309 : vector<1xf32> to vector<1x1x1xf32>
    %311 = vector.extract %310[0, 0, 0] : f32 from vector<1x1x1xf32>
    %c0_i32_99 = arith.constant 0 : i32
    %312 = arith.addi %4, %c0_i32_99 : i32
    %313 = arith.index_cast %312 : i32 to index
    %c19 = arith.constant 19 : index
    %314 = memref.load %arg7[%313, %c19] : memref<2x54xf32, #tpu.memory_space<smem>>
    memref.store %311, %arg7[%313, %c19] : memref<2x54xf32, #tpu.memory_space<smem>>
    %315 = arith.mulf %277, %284 : vector<7x8xf32>
    %316 = vector.shape_cast %315 : vector<7x8xf32> to vector<1x7x8xf32>
    %cst_100 = arith.constant dense<0.000000e+00> : vector<1xf32>
    %317 = vector.multi_reduction <add>, %316, %cst_100 [1, 2] : vector<1x7x8xf32> to vector<1xf32>
    %318 = vector.shape_cast %317 : vector<1xf32> to vector<1x1x1xf32>
    %319 = vector.extract %318[0, 0, 0] : f32 from vector<1x1x1xf32>
    %c0_i32_101 = arith.constant 0 : i32
    %320 = arith.addi %4, %c0_i32_101 : i32
    %321 = arith.index_cast %320 : i32 to index
    %c20 = arith.constant 20 : index
    %322 = memref.load %arg7[%321, %c20] : memref<2x54xf32, #tpu.memory_space<smem>>
    memref.store %319, %arg7[%321, %c20] : memref<2x54xf32, #tpu.memory_space<smem>>
    %323 = arith.mulf %263, %291 : vector<7x8xf32>
    %324 = vector.shape_cast %323 : vector<7x8xf32> to vector<1x7x8xf32>
    %cst_102 = arith.constant dense<0.000000e+00> : vector<1xf32>
    %325 = vector.multi_reduction <add>, %324, %cst_102 [1, 2] : vector<1x7x8xf32> to vector<1xf32>
    %326 = vector.shape_cast %325 : vector<1xf32> to vector<1x1x1xf32>
    %327 = vector.extract %326[0, 0, 0] : f32 from vector<1x1x1xf32>
    %c0_i32_103 = arith.constant 0 : i32
    %328 = arith.addi %4, %c0_i32_103 : i32
    %329 = arith.index_cast %328 : i32 to index
    %c21 = arith.constant 21 : index
    %330 = memref.load %arg7[%329, %c21] : memref<2x54xf32, #tpu.memory_space<smem>>
    memref.store %327, %arg7[%329, %c21] : memref<2x54xf32, #tpu.memory_space<smem>>
    %331 = arith.mulf %270, %291 : vector<7x8xf32>
    %332 = vector.shape_cast %331 : vector<7x8xf32> to vector<1x7x8xf32>
    %cst_104 = arith.constant dense<0.000000e+00> : vector<1xf32>
    %333 = vector.multi_reduction <add>, %332, %cst_104 [1, 2] : vector<1x7x8xf32> to vector<1xf32>
    %334 = vector.shape_cast %333 : vector<1xf32> to vector<1x1x1xf32>
    %335 = vector.extract %334[0, 0, 0] : f32 from vector<1x1x1xf32>
    %c0_i32_105 = arith.constant 0 : i32
    %336 = arith.addi %4, %c0_i32_105 : i32
    %337 = arith.index_cast %336 : i32 to index
    %c22 = arith.constant 22 : index
    %338 = memref.load %arg7[%337, %c22] : memref<2x54xf32, #tpu.memory_space<smem>>
    memref.store %335, %arg7[%337, %c22] : memref<2x54xf32, #tpu.memory_space<smem>>
    %339 = arith.mulf %277, %291 : vector<7x8xf32>
    %340 = vector.shape_cast %339 : vector<7x8xf32> to vector<1x7x8xf32>
    %cst_106 = arith.constant dense<0.000000e+00> : vector<1xf32>
    %341 = vector.multi_reduction <add>, %340, %cst_106 [1, 2] : vector<1x7x8xf32> to vector<1xf32>
    %342 = vector.shape_cast %341 : vector<1xf32> to vector<1x1x1xf32>
    %343 = vector.extract %342[0, 0, 0] : f32 from vector<1x1x1xf32>
    %c0_i32_107 = arith.constant 0 : i32
    %344 = arith.addi %4, %c0_i32_107 : i32
    %345 = arith.index_cast %344 : i32 to index
    %c23 = arith.constant 23 : index
    %346 = memref.load %arg7[%345, %c23] : memref<2x54xf32, #tpu.memory_space<smem>>
    memref.store %343, %arg7[%345, %c23] : memref<2x54xf32, #tpu.memory_space<smem>>
    %347 = arith.mulf %263, %298 : vector<7x8xf32>
    %348 = vector.shape_cast %347 : vector<7x8xf32> to vector<1x7x8xf32>
    %cst_108 = arith.constant dense<0.000000e+00> : vector<1xf32>
    %349 = vector.multi_reduction <add>, %348, %cst_108 [1, 2] : vector<1x7x8xf32> to vector<1xf32>
    %350 = vector.shape_cast %349 : vector<1xf32> to vector<1x1x1xf32>
    %351 = vector.extract %350[0, 0, 0] : f32 from vector<1x1x1xf32>
    %c0_i32_109 = arith.constant 0 : i32
    %352 = arith.addi %4, %c0_i32_109 : i32
    %353 = arith.index_cast %352 : i32 to index
    %c24 = arith.constant 24 : index
    %354 = memref.load %arg7[%353, %c24] : memref<2x54xf32, #tpu.memory_space<smem>>
    memref.store %351, %arg7[%353, %c24] : memref<2x54xf32, #tpu.memory_space<smem>>
    %355 = arith.mulf %270, %298 : vector<7x8xf32>
    %356 = vector.shape_cast %355 : vector<7x8xf32> to vector<1x7x8xf32>
    %cst_110 = arith.constant dense<0.000000e+00> : vector<1xf32>
    %357 = vector.multi_reduction <add>, %356, %cst_110 [1, 2] : vector<1x7x8xf32> to vector<1xf32>
    %358 = vector.shape_cast %357 : vector<1xf32> to vector<1x1x1xf32>
    %359 = vector.extract %358[0, 0, 0] : f32 from vector<1x1x1xf32>
    %c0_i32_111 = arith.constant 0 : i32
    %360 = arith.addi %4, %c0_i32_111 : i32
    %361 = arith.index_cast %360 : i32 to index
    %c25 = arith.constant 25 : index
    %362 = memref.load %arg7[%361, %c25] : memref<2x54xf32, #tpu.memory_space<smem>>
    memref.store %359, %arg7[%361, %c25] : memref<2x54xf32, #tpu.memory_space<smem>>
    %363 = arith.mulf %277, %298 : vector<7x8xf32>
    %364 = vector.shape_cast %363 : vector<7x8xf32> to vector<1x7x8xf32>
    %cst_112 = arith.constant dense<0.000000e+00> : vector<1xf32>
    %365 = vector.multi_reduction <add>, %364, %cst_112 [1, 2] : vector<1x7x8xf32> to vector<1xf32>
    %366 = vector.shape_cast %365 : vector<1xf32> to vector<1x1x1xf32>
    %367 = vector.extract %366[0, 0, 0] : f32 from vector<1x1x1xf32>
    %c0_i32_113 = arith.constant 0 : i32
    %368 = arith.addi %4, %c0_i32_113 : i32
    %369 = arith.index_cast %368 : i32 to index
    %c26 = arith.constant 26 : index
    %370 = memref.load %arg7[%369, %c26] : memref<2x54xf32, #tpu.memory_space<smem>>
    memref.store %367, %arg7[%369, %c26] : memref<2x54xf32, #tpu.memory_space<smem>>
    %371 = vector.extract_strided_slice %246 {offsets = [0, 1], sizes = [8, 7], strides = [1, 1]} : vector<8x8xf32> to vector<8x7xf32>
    %372 = vector.extract_strided_slice %246 {offsets = [0, 0], sizes = [8, 7], strides = [1, 1]} : vector<8x8xf32> to vector<8x7xf32>
    %373 = arith.subf %371, %372 : vector<8x7xf32>
    %cst_114 = arith.constant 5.000000e-01 : f32
    %374 = vector.broadcast %cst_114 : f32 to vector<8x7xf32>
    %375 = arith.mulf %374, %373 : vector<8x7xf32>
    %376 = math.tanh %375 : vector<8x7xf32>
    %377 = arith.mulf %376, %376 : vector<8x7xf32>
    %378 = vector.extract_strided_slice %248 {offsets = [0, 1], sizes = [8, 7], strides = [1, 1]} : vector<8x8xf32> to vector<8x7xf32>
    %379 = vector.extract_strided_slice %248 {offsets = [0, 0], sizes = [8, 7], strides = [1, 1]} : vector<8x8xf32> to vector<8x7xf32>
    %380 = arith.subf %378, %379 : vector<8x7xf32>
    %cst_115 = arith.constant 5.000000e-01 : f32
    %381 = vector.broadcast %cst_115 : f32 to vector<8x7xf32>
    %382 = arith.mulf %381, %380 : vector<8x7xf32>
    %383 = math.tanh %382 : vector<8x7xf32>
    %384 = arith.mulf %383, %383 : vector<8x7xf32>
    %385 = vector.extract_strided_slice %250 {offsets = [0, 1], sizes = [8, 7], strides = [1, 1]} : vector<8x8xf32> to vector<8x7xf32>
    %386 = vector.extract_strided_slice %250 {offsets = [0, 0], sizes = [8, 7], strides = [1, 1]} : vector<8x8xf32> to vector<8x7xf32>
    %387 = arith.subf %385, %386 : vector<8x7xf32>
    %cst_116 = arith.constant 5.000000e-01 : f32
    %388 = vector.broadcast %cst_116 : f32 to vector<8x7xf32>
    %389 = arith.mulf %388, %387 : vector<8x7xf32>
    %390 = math.tanh %389 : vector<8x7xf32>
    %391 = arith.mulf %390, %390 : vector<8x7xf32>
    %392 = vector.extract_strided_slice %252 {offsets = [0, 1], sizes = [8, 7], strides = [1, 1]} : vector<8x8xf32> to vector<8x7xf32>
    %393 = vector.extract_strided_slice %252 {offsets = [0, 0], sizes = [8, 7], strides = [1, 1]} : vector<8x8xf32> to vector<8x7xf32>
    %394 = arith.subf %392, %393 : vector<8x7xf32>
    %cst_117 = arith.constant 5.000000e-01 : f32
    %395 = vector.broadcast %cst_117 : f32 to vector<8x7xf32>
    %396 = arith.mulf %395, %394 : vector<8x7xf32>
    %397 = math.tanh %396 : vector<8x7xf32>
    %398 = arith.mulf %397, %397 : vector<8x7xf32>
    %399 = vector.extract_strided_slice %254 {offsets = [0, 1], sizes = [8, 7], strides = [1, 1]} : vector<8x8xf32> to vector<8x7xf32>
    %400 = vector.extract_strided_slice %254 {offsets = [0, 0], sizes = [8, 7], strides = [1, 1]} : vector<8x8xf32> to vector<8x7xf32>
    %401 = arith.subf %399, %400 : vector<8x7xf32>
    %cst_118 = arith.constant 5.000000e-01 : f32
    %402 = vector.broadcast %cst_118 : f32 to vector<8x7xf32>
    %403 = arith.mulf %402, %401 : vector<8x7xf32>
    %404 = math.tanh %403 : vector<8x7xf32>
    %405 = arith.mulf %404, %404 : vector<8x7xf32>
    %406 = vector.extract_strided_slice %256 {offsets = [0, 1], sizes = [8, 7], strides = [1, 1]} : vector<8x8xf32> to vector<8x7xf32>
    %407 = vector.extract_strided_slice %256 {offsets = [0, 0], sizes = [8, 7], strides = [1, 1]} : vector<8x8xf32> to vector<8x7xf32>
    %408 = arith.subf %406, %407 : vector<8x7xf32>
    %cst_119 = arith.constant 5.000000e-01 : f32
    %409 = vector.broadcast %cst_119 : f32 to vector<8x7xf32>
    %410 = arith.mulf %409, %408 : vector<8x7xf32>
    %411 = math.tanh %410 : vector<8x7xf32>
    %412 = arith.mulf %411, %411 : vector<8x7xf32>
    %413 = arith.mulf %377, %398 : vector<8x7xf32>
    %414 = vector.shape_cast %413 : vector<8x7xf32> to vector<1x8x7xf32>
    %cst_120 = arith.constant dense<0.000000e+00> : vector<1xf32>
    %415 = vector.multi_reduction <add>, %414, %cst_120 [1, 2] : vector<1x8x7xf32> to vector<1xf32>
    %416 = vector.shape_cast %415 : vector<1xf32> to vector<1x1x1xf32>
    %417 = vector.extract %416[0, 0, 0] : f32 from vector<1x1x1xf32>
    %c0_i32_121 = arith.constant 0 : i32
    %418 = arith.addi %4, %c0_i32_121 : i32
    %419 = arith.index_cast %418 : i32 to index
    %c27 = arith.constant 27 : index
    %420 = memref.load %arg7[%419, %c27] : memref<2x54xf32, #tpu.memory_space<smem>>
    memref.store %417, %arg7[%419, %c27] : memref<2x54xf32, #tpu.memory_space<smem>>
    %421 = arith.mulf %384, %398 : vector<8x7xf32>
    %422 = vector.shape_cast %421 : vector<8x7xf32> to vector<1x8x7xf32>
    %cst_122 = arith.constant dense<0.000000e+00> : vector<1xf32>
    %423 = vector.multi_reduction <add>, %422, %cst_122 [1, 2] : vector<1x8x7xf32> to vector<1xf32>
    %424 = vector.shape_cast %423 : vector<1xf32> to vector<1x1x1xf32>
    %425 = vector.extract %424[0, 0, 0] : f32 from vector<1x1x1xf32>
    %c0_i32_123 = arith.constant 0 : i32
    %426 = arith.addi %4, %c0_i32_123 : i32
    %427 = arith.index_cast %426 : i32 to index
    %c28 = arith.constant 28 : index
    %428 = memref.load %arg7[%427, %c28] : memref<2x54xf32, #tpu.memory_space<smem>>
    memref.store %425, %arg7[%427, %c28] : memref<2x54xf32, #tpu.memory_space<smem>>
    %429 = arith.mulf %391, %398 : vector<8x7xf32>
    %430 = vector.shape_cast %429 : vector<8x7xf32> to vector<1x8x7xf32>
    %cst_124 = arith.constant dense<0.000000e+00> : vector<1xf32>
    %431 = vector.multi_reduction <add>, %430, %cst_124 [1, 2] : vector<1x8x7xf32> to vector<1xf32>
    %432 = vector.shape_cast %431 : vector<1xf32> to vector<1x1x1xf32>
    %433 = vector.extract %432[0, 0, 0] : f32 from vector<1x1x1xf32>
    %c0_i32_125 = arith.constant 0 : i32
    %434 = arith.addi %4, %c0_i32_125 : i32
    %435 = arith.index_cast %434 : i32 to index
    %c29 = arith.constant 29 : index
    %436 = memref.load %arg7[%435, %c29] : memref<2x54xf32, #tpu.memory_space<smem>>
    memref.store %433, %arg7[%435, %c29] : memref<2x54xf32, #tpu.memory_space<smem>>
    %437 = arith.mulf %377, %405 : vector<8x7xf32>
    %438 = vector.shape_cast %437 : vector<8x7xf32> to vector<1x8x7xf32>
    %cst_126 = arith.constant dense<0.000000e+00> : vector<1xf32>
    %439 = vector.multi_reduction <add>, %438, %cst_126 [1, 2] : vector<1x8x7xf32> to vector<1xf32>
    %440 = vector.shape_cast %439 : vector<1xf32> to vector<1x1x1xf32>
    %441 = vector.extract %440[0, 0, 0] : f32 from vector<1x1x1xf32>
    %c0_i32_127 = arith.constant 0 : i32
    %442 = arith.addi %4, %c0_i32_127 : i32
    %443 = arith.index_cast %442 : i32 to index
    %c30 = arith.constant 30 : index
    %444 = memref.load %arg7[%443, %c30] : memref<2x54xf32, #tpu.memory_space<smem>>
    memref.store %441, %arg7[%443, %c30] : memref<2x54xf32, #tpu.memory_space<smem>>
    %445 = arith.mulf %384, %405 : vector<8x7xf32>
    %446 = vector.shape_cast %445 : vector<8x7xf32> to vector<1x8x7xf32>
    %cst_128 = arith.constant dense<0.000000e+00> : vector<1xf32>
    %447 = vector.multi_reduction <add>, %446, %cst_128 [1, 2] : vector<1x8x7xf32> to vector<1xf32>
    %448 = vector.shape_cast %447 : vector<1xf32> to vector<1x1x1xf32>
    %449 = vector.extract %448[0, 0, 0] : f32 from vector<1x1x1xf32>
    %c0_i32_129 = arith.constant 0 : i32
    %450 = arith.addi %4, %c0_i32_129 : i32
    %451 = arith.index_cast %450 : i32 to index
    %c31 = arith.constant 31 : index
    %452 = memref.load %arg7[%451, %c31] : memref<2x54xf32, #tpu.memory_space<smem>>
    memref.store %449, %arg7[%451, %c31] : memref<2x54xf32, #tpu.memory_space<smem>>
    %453 = arith.mulf %391, %405 : vector<8x7xf32>
    %454 = vector.shape_cast %453 : vector<8x7xf32> to vector<1x8x7xf32>
    %cst_130 = arith.constant dense<0.000000e+00> : vector<1xf32>
    %455 = vector.multi_reduction <add>, %454, %cst_130 [1, 2] : vector<1x8x7xf32> to vector<1xf32>
    %456 = vector.shape_cast %455 : vector<1xf32> to vector<1x1x1xf32>
    %457 = vector.extract %456[0, 0, 0] : f32 from vector<1x1x1xf32>
    %c0_i32_131 = arith.constant 0 : i32
    %458 = arith.addi %4, %c0_i32_131 : i32
    %459 = arith.index_cast %458 : i32 to index
    %c32 = arith.constant 32 : index
    %460 = memref.load %arg7[%459, %c32] : memref<2x54xf32, #tpu.memory_space<smem>>
    memref.store %457, %arg7[%459, %c32] : memref<2x54xf32, #tpu.memory_space<smem>>
    %461 = arith.mulf %377, %412 : vector<8x7xf32>
    %462 = vector.shape_cast %461 : vector<8x7xf32> to vector<1x8x7xf32>
    %cst_132 = arith.constant dense<0.000000e+00> : vector<1xf32>
    %463 = vector.multi_reduction <add>, %462, %cst_132 [1, 2] : vector<1x8x7xf32> to vector<1xf32>
    %464 = vector.shape_cast %463 : vector<1xf32> to vector<1x1x1xf32>
    %465 = vector.extract %464[0, 0, 0] : f32 from vector<1x1x1xf32>
    %c0_i32_133 = arith.constant 0 : i32
    %466 = arith.addi %4, %c0_i32_133 : i32
    %467 = arith.index_cast %466 : i32 to index
    %c33 = arith.constant 33 : index
    %468 = memref.load %arg7[%467, %c33] : memref<2x54xf32, #tpu.memory_space<smem>>
    memref.store %465, %arg7[%467, %c33] : memref<2x54xf32, #tpu.memory_space<smem>>
    %469 = arith.mulf %384, %412 : vector<8x7xf32>
    %470 = vector.shape_cast %469 : vector<8x7xf32> to vector<1x8x7xf32>
    %cst_134 = arith.constant dense<0.000000e+00> : vector<1xf32>
    %471 = vector.multi_reduction <add>, %470, %cst_134 [1, 2] : vector<1x8x7xf32> to vector<1xf32>
    %472 = vector.shape_cast %471 : vector<1xf32> to vector<1x1x1xf32>
    %473 = vector.extract %472[0, 0, 0] : f32 from vector<1x1x1xf32>
    %c0_i32_135 = arith.constant 0 : i32
    %474 = arith.addi %4, %c0_i32_135 : i32
    %475 = arith.index_cast %474 : i32 to index
    %c34 = arith.constant 34 : index
    %476 = memref.load %arg7[%475, %c34] : memref<2x54xf32, #tpu.memory_space<smem>>
    memref.store %473, %arg7[%475, %c34] : memref<2x54xf32, #tpu.memory_space<smem>>
    %477 = arith.mulf %391, %412 : vector<8x7xf32>
    %478 = vector.shape_cast %477 : vector<8x7xf32> to vector<1x8x7xf32>
    %cst_136 = arith.constant dense<0.000000e+00> : vector<1xf32>
    %479 = vector.multi_reduction <add>, %478, %cst_136 [1, 2] : vector<1x8x7xf32> to vector<1xf32>
    %480 = vector.shape_cast %479 : vector<1xf32> to vector<1x1x1xf32>
    %481 = vector.extract %480[0, 0, 0] : f32 from vector<1x1x1xf32>
    %c0_i32_137 = arith.constant 0 : i32
    %482 = arith.addi %4, %c0_i32_137 : i32
    %483 = arith.index_cast %482 : i32 to index
    %c35 = arith.constant 35 : index
    %484 = memref.load %arg7[%483, %c35] : memref<2x54xf32, #tpu.memory_space<smem>>
    memref.store %481, %arg7[%483, %c35] : memref<2x54xf32, #tpu.memory_space<smem>>
    %cst_138 = arith.constant dense<0.000000e+00> : vector<8x4xf32>
    %485 = tpu.matmul %246, %3, %cst_138 {dimension_numbers = #tpu.dot_dimension_numbers<[1], [0], [0], [1], [0, 0, 1, 1], [], []>} : vector<8x8xf32>, vector<8x4xf32>, vector<8x4xf32> -> vector<8x4xf32>
    %cst_139 = arith.constant dense<0.000000e+00> : vector<4x4xf32>
    %486 = tpu.matmul %2, %485, %cst_139 {dimension_numbers = #tpu.dot_dimension_numbers<[1], [0], [0], [1], [0, 0, 1, 1], [], []>} : vector<4x8xf32>, vector<8x4xf32>, vector<4x4xf32> -> vector<4x4xf32>
    %cst_140 = arith.constant dense<0.000000e+00> : vector<8x4xf32>
    %487 = tpu.matmul %248, %3, %cst_140 {dimension_numbers = #tpu.dot_dimension_numbers<[1], [0], [0], [1], [0, 0, 1, 1], [], []>} : vector<8x8xf32>, vector<8x4xf32>, vector<8x4xf32> -> vector<8x4xf32>
    %cst_141 = arith.constant dense<0.000000e+00> : vector<4x4xf32>
    %488 = tpu.matmul %2, %487, %cst_141 {dimension_numbers = #tpu.dot_dimension_numbers<[1], [0], [0], [1], [0, 0, 1, 1], [], []>} : vector<4x8xf32>, vector<8x4xf32>, vector<4x4xf32> -> vector<4x4xf32>
    %cst_142 = arith.constant dense<0.000000e+00> : vector<8x4xf32>
    %489 = tpu.matmul %250, %3, %cst_142 {dimension_numbers = #tpu.dot_dimension_numbers<[1], [0], [0], [1], [0, 0, 1, 1], [], []>} : vector<8x8xf32>, vector<8x4xf32>, vector<8x4xf32> -> vector<8x4xf32>
    %cst_143 = arith.constant dense<0.000000e+00> : vector<4x4xf32>
    %490 = tpu.matmul %2, %489, %cst_143 {dimension_numbers = #tpu.dot_dimension_numbers<[1], [0], [0], [1], [0, 0, 1, 1], [], []>} : vector<4x8xf32>, vector<8x4xf32>, vector<4x4xf32> -> vector<4x4xf32>
    %cst_144 = arith.constant dense<0.000000e+00> : vector<8x4xf32>
    %491 = tpu.matmul %252, %3, %cst_144 {dimension_numbers = #tpu.dot_dimension_numbers<[1], [0], [0], [1], [0, 0, 1, 1], [], []>} : vector<8x8xf32>, vector<8x4xf32>, vector<8x4xf32> -> vector<8x4xf32>
    %cst_145 = arith.constant dense<0.000000e+00> : vector<4x4xf32>
    %492 = tpu.matmul %2, %491, %cst_145 {dimension_numbers = #tpu.dot_dimension_numbers<[1], [0], [0], [1], [0, 0, 1, 1], [], []>} : vector<4x8xf32>, vector<8x4xf32>, vector<4x4xf32> -> vector<4x4xf32>
    %cst_146 = arith.constant dense<0.000000e+00> : vector<8x4xf32>
    %493 = tpu.matmul %254, %3, %cst_146 {dimension_numbers = #tpu.dot_dimension_numbers<[1], [0], [0], [1], [0, 0, 1, 1], [], []>} : vector<8x8xf32>, vector<8x4xf32>, vector<8x4xf32> -> vector<8x4xf32>
    %cst_147 = arith.constant dense<0.000000e+00> : vector<4x4xf32>
    %494 = tpu.matmul %2, %493, %cst_147 {dimension_numbers = #tpu.dot_dimension_numbers<[1], [0], [0], [1], [0, 0, 1, 1], [], []>} : vector<4x8xf32>, vector<8x4xf32>, vector<4x4xf32> -> vector<4x4xf32>
    %cst_148 = arith.constant dense<0.000000e+00> : vector<8x4xf32>
    %495 = tpu.matmul %256, %3, %cst_148 {dimension_numbers = #tpu.dot_dimension_numbers<[1], [0], [0], [1], [0, 0, 1, 1], [], []>} : vector<8x8xf32>, vector<8x4xf32>, vector<8x4xf32> -> vector<8x4xf32>
    %cst_149 = arith.constant dense<0.000000e+00> : vector<4x4xf32>
    %496 = tpu.matmul %2, %495, %cst_149 {dimension_numbers = #tpu.dot_dimension_numbers<[1], [0], [0], [1], [0, 0, 1, 1], [], []>} : vector<4x8xf32>, vector<8x4xf32>, vector<4x4xf32> -> vector<4x4xf32>
    %497 = vector.extract_strided_slice %486 {offsets = [1, 0], sizes = [3, 4], strides = [1, 1]} : vector<4x4xf32> to vector<3x4xf32>
    %498 = vector.extract_strided_slice %486 {offsets = [0, 0], sizes = [3, 4], strides = [1, 1]} : vector<4x4xf32> to vector<3x4xf32>
    %499 = arith.subf %497, %498 : vector<3x4xf32>
    %cst_150 = arith.constant 5.000000e-01 : f32
    %500 = vector.broadcast %cst_150 : f32 to vector<3x4xf32>
    %501 = arith.mulf %500, %499 : vector<3x4xf32>
    %502 = math.tanh %501 : vector<3x4xf32>
    %503 = arith.mulf %502, %502 : vector<3x4xf32>
    %504 = vector.extract_strided_slice %488 {offsets = [1, 0], sizes = [3, 4], strides = [1, 1]} : vector<4x4xf32> to vector<3x4xf32>
    %505 = vector.extract_strided_slice %488 {offsets = [0, 0], sizes = [3, 4], strides = [1, 1]} : vector<4x4xf32> to vector<3x4xf32>
    %506 = arith.subf %504, %505 : vector<3x4xf32>
    %cst_151 = arith.constant 5.000000e-01 : f32
    %507 = vector.broadcast %cst_151 : f32 to vector<3x4xf32>
    %508 = arith.mulf %507, %506 : vector<3x4xf32>
    %509 = math.tanh %508 : vector<3x4xf32>
    %510 = arith.mulf %509, %509 : vector<3x4xf32>
    %511 = vector.extract_strided_slice %490 {offsets = [1, 0], sizes = [3, 4], strides = [1, 1]} : vector<4x4xf32> to vector<3x4xf32>
    %512 = vector.extract_strided_slice %490 {offsets = [0, 0], sizes = [3, 4], strides = [1, 1]} : vector<4x4xf32> to vector<3x4xf32>
    %513 = arith.subf %511, %512 : vector<3x4xf32>
    %cst_152 = arith.constant 5.000000e-01 : f32
    %514 = vector.broadcast %cst_152 : f32 to vector<3x4xf32>
    %515 = arith.mulf %514, %513 : vector<3x4xf32>
    %516 = math.tanh %515 : vector<3x4xf32>
    %517 = arith.mulf %516, %516 : vector<3x4xf32>
    %518 = vector.extract_strided_slice %492 {offsets = [1, 0], sizes = [3, 4], strides = [1, 1]} : vector<4x4xf32> to vector<3x4xf32>
    %519 = vector.extract_strided_slice %492 {offsets = [0, 0], sizes = [3, 4], strides = [1, 1]} : vector<4x4xf32> to vector<3x4xf32>
    %520 = arith.subf %518, %519 : vector<3x4xf32>
    %cst_153 = arith.constant 5.000000e-01 : f32
    %521 = vector.broadcast %cst_153 : f32 to vector<3x4xf32>
    %522 = arith.mulf %521, %520 : vector<3x4xf32>
    %523 = math.tanh %522 : vector<3x4xf32>
    %524 = arith.mulf %523, %523 : vector<3x4xf32>
    %525 = vector.extract_strided_slice %494 {offsets = [1, 0], sizes = [3, 4], strides = [1, 1]} : vector<4x4xf32> to vector<3x4xf32>
    %526 = vector.extract_strided_slice %494 {offsets = [0, 0], sizes = [3, 4], strides = [1, 1]} : vector<4x4xf32> to vector<3x4xf32>
    %527 = arith.subf %525, %526 : vector<3x4xf32>
    %cst_154 = arith.constant 5.000000e-01 : f32
    %528 = vector.broadcast %cst_154 : f32 to vector<3x4xf32>
    %529 = arith.mulf %528, %527 : vector<3x4xf32>
    %530 = math.tanh %529 : vector<3x4xf32>
    %531 = arith.mulf %530, %530 : vector<3x4xf32>
    %532 = vector.extract_strided_slice %496 {offsets = [1, 0], sizes = [3, 4], strides = [1, 1]} : vector<4x4xf32> to vector<3x4xf32>
    %533 = vector.extract_strided_slice %496 {offsets = [0, 0], sizes = [3, 4], strides = [1, 1]} : vector<4x4xf32> to vector<3x4xf32>
    %534 = arith.subf %532, %533 : vector<3x4xf32>
    %cst_155 = arith.constant 5.000000e-01 : f32
    %535 = vector.broadcast %cst_155 : f32 to vector<3x4xf32>
    %536 = arith.mulf %535, %534 : vector<3x4xf32>
    %537 = math.tanh %536 : vector<3x4xf32>
    %538 = arith.mulf %537, %537 : vector<3x4xf32>
    %539 = arith.mulf %503, %524 : vector<3x4xf32>
    %540 = vector.shape_cast %539 : vector<3x4xf32> to vector<1x3x4xf32>
    %cst_156 = arith.constant dense<0.000000e+00> : vector<1xf32>
    %541 = vector.multi_reduction <add>, %540, %cst_156 [1, 2] : vector<1x3x4xf32> to vector<1xf32>
    %542 = vector.shape_cast %541 : vector<1xf32> to vector<1x1x1xf32>
    %543 = vector.extract %542[0, 0, 0] : f32 from vector<1x1x1xf32>
    %c0_i32_157 = arith.constant 0 : i32
    %544 = arith.addi %4, %c0_i32_157 : i32
    %545 = arith.index_cast %544 : i32 to index
    %c36 = arith.constant 36 : index
    %546 = memref.load %arg7[%545, %c36] : memref<2x54xf32, #tpu.memory_space<smem>>
    memref.store %543, %arg7[%545, %c36] : memref<2x54xf32, #tpu.memory_space<smem>>
    %547 = arith.mulf %510, %524 : vector<3x4xf32>
    %548 = vector.shape_cast %547 : vector<3x4xf32> to vector<1x3x4xf32>
    %cst_158 = arith.constant dense<0.000000e+00> : vector<1xf32>
    %549 = vector.multi_reduction <add>, %548, %cst_158 [1, 2] : vector<1x3x4xf32> to vector<1xf32>
    %550 = vector.shape_cast %549 : vector<1xf32> to vector<1x1x1xf32>
    %551 = vector.extract %550[0, 0, 0] : f32 from vector<1x1x1xf32>
    %c0_i32_159 = arith.constant 0 : i32
    %552 = arith.addi %4, %c0_i32_159 : i32
    %553 = arith.index_cast %552 : i32 to index
    %c37 = arith.constant 37 : index
    %554 = memref.load %arg7[%553, %c37] : memref<2x54xf32, #tpu.memory_space<smem>>
    memref.store %551, %arg7[%553, %c37] : memref<2x54xf32, #tpu.memory_space<smem>>
    %555 = arith.mulf %517, %524 : vector<3x4xf32>
    %556 = vector.shape_cast %555 : vector<3x4xf32> to vector<1x3x4xf32>
    %cst_160 = arith.constant dense<0.000000e+00> : vector<1xf32>
    %557 = vector.multi_reduction <add>, %556, %cst_160 [1, 2] : vector<1x3x4xf32> to vector<1xf32>
    %558 = vector.shape_cast %557 : vector<1xf32> to vector<1x1x1xf32>
    %559 = vector.extract %558[0, 0, 0] : f32 from vector<1x1x1xf32>
    %c0_i32_161 = arith.constant 0 : i32
    %560 = arith.addi %4, %c0_i32_161 : i32
    %561 = arith.index_cast %560 : i32 to index
    %c38 = arith.constant 38 : index
    %562 = memref.load %arg7[%561, %c38] : memref<2x54xf32, #tpu.memory_space<smem>>
    memref.store %559, %arg7[%561, %c38] : memref<2x54xf32, #tpu.memory_space<smem>>
    %563 = arith.mulf %503, %531 : vector<3x4xf32>
    %564 = vector.shape_cast %563 : vector<3x4xf32> to vector<1x3x4xf32>
    %cst_162 = arith.constant dense<0.000000e+00> : vector<1xf32>
    %565 = vector.multi_reduction <add>, %564, %cst_162 [1, 2] : vector<1x3x4xf32> to vector<1xf32>
    %566 = vector.shape_cast %565 : vector<1xf32> to vector<1x1x1xf32>
    %567 = vector.extract %566[0, 0, 0] : f32 from vector<1x1x1xf32>
    %c0_i32_163 = arith.constant 0 : i32
    %568 = arith.addi %4, %c0_i32_163 : i32
    %569 = arith.index_cast %568 : i32 to index
    %c39 = arith.constant 39 : index
    %570 = memref.load %arg7[%569, %c39] : memref<2x54xf32, #tpu.memory_space<smem>>
    memref.store %567, %arg7[%569, %c39] : memref<2x54xf32, #tpu.memory_space<smem>>
    %571 = arith.mulf %510, %531 : vector<3x4xf32>
    %572 = vector.shape_cast %571 : vector<3x4xf32> to vector<1x3x4xf32>
    %cst_164 = arith.constant dense<0.000000e+00> : vector<1xf32>
    %573 = vector.multi_reduction <add>, %572, %cst_164 [1, 2] : vector<1x3x4xf32> to vector<1xf32>
    %574 = vector.shape_cast %573 : vector<1xf32> to vector<1x1x1xf32>
    %575 = vector.extract %574[0, 0, 0] : f32 from vector<1x1x1xf32>
    %c0_i32_165 = arith.constant 0 : i32
    %576 = arith.addi %4, %c0_i32_165 : i32
    %577 = arith.index_cast %576 : i32 to index
    %c40 = arith.constant 40 : index
    %578 = memref.load %arg7[%577, %c40] : memref<2x54xf32, #tpu.memory_space<smem>>
    memref.store %575, %arg7[%577, %c40] : memref<2x54xf32, #tpu.memory_space<smem>>
    %579 = arith.mulf %517, %531 : vector<3x4xf32>
    %580 = vector.shape_cast %579 : vector<3x4xf32> to vector<1x3x4xf32>
    %cst_166 = arith.constant dense<0.000000e+00> : vector<1xf32>
    %581 = vector.multi_reduction <add>, %580, %cst_166 [1, 2] : vector<1x3x4xf32> to vector<1xf32>
    %582 = vector.shape_cast %581 : vector<1xf32> to vector<1x1x1xf32>
    %583 = vector.extract %582[0, 0, 0] : f32 from vector<1x1x1xf32>
    %c0_i32_167 = arith.constant 0 : i32
    %584 = arith.addi %4, %c0_i32_167 : i32
    %585 = arith.index_cast %584 : i32 to index
    %c41 = arith.constant 41 : index
    %586 = memref.load %arg7[%585, %c41] : memref<2x54xf32, #tpu.memory_space<smem>>
    memref.store %583, %arg7[%585, %c41] : memref<2x54xf32, #tpu.memory_space<smem>>
    %587 = arith.mulf %503, %538 : vector<3x4xf32>
    %588 = vector.shape_cast %587 : vector<3x4xf32> to vector<1x3x4xf32>
    %cst_168 = arith.constant dense<0.000000e+00> : vector<1xf32>
    %589 = vector.multi_reduction <add>, %588, %cst_168 [1, 2] : vector<1x3x4xf32> to vector<1xf32>
    %590 = vector.shape_cast %589 : vector<1xf32> to vector<1x1x1xf32>
    %591 = vector.extract %590[0, 0, 0] : f32 from vector<1x1x1xf32>
    %c0_i32_169 = arith.constant 0 : i32
    %592 = arith.addi %4, %c0_i32_169 : i32
    %593 = arith.index_cast %592 : i32 to index
    %c42 = arith.constant 42 : index
    %594 = memref.load %arg7[%593, %c42] : memref<2x54xf32, #tpu.memory_space<smem>>
    memref.store %591, %arg7[%593, %c42] : memref<2x54xf32, #tpu.memory_space<smem>>
    %595 = arith.mulf %510, %538 : vector<3x4xf32>
    %596 = vector.shape_cast %595 : vector<3x4xf32> to vector<1x3x4xf32>
    %cst_170 = arith.constant dense<0.000000e+00> : vector<1xf32>
    %597 = vector.multi_reduction <add>, %596, %cst_170 [1, 2] : vector<1x3x4xf32> to vector<1xf32>
    %598 = vector.shape_cast %597 : vector<1xf32> to vector<1x1x1xf32>
    %599 = vector.extract %598[0, 0, 0] : f32 from vector<1x1x1xf32>
    %c0_i32_171 = arith.constant 0 : i32
    %600 = arith.addi %4, %c0_i32_171 : i32
    %601 = arith.index_cast %600 : i32 to index
    %c43 = arith.constant 43 : index
    %602 = memref.load %arg7[%601, %c43] : memref<2x54xf32, #tpu.memory_space<smem>>
    memref.store %599, %arg7[%601, %c43] : memref<2x54xf32, #tpu.memory_space<smem>>
    %603 = arith.mulf %517, %538 : vector<3x4xf32>
    %604 = vector.shape_cast %603 : vector<3x4xf32> to vector<1x3x4xf32>
    %cst_172 = arith.constant dense<0.000000e+00> : vector<1xf32>
    %605 = vector.multi_reduction <add>, %604, %cst_172 [1, 2] : vector<1x3x4xf32> to vector<1xf32>
    %606 = vector.shape_cast %605 : vector<1xf32> to vector<1x1x1xf32>
    %607 = vector.extract %606[0, 0, 0] : f32 from vector<1x1x1xf32>
    %c0_i32_173 = arith.constant 0 : i32
    %608 = arith.addi %4, %c0_i32_173 : i32
    %609 = arith.index_cast %608 : i32 to index
    %c44 = arith.constant 44 : index
    %610 = memref.load %arg7[%609, %c44] : memref<2x54xf32, #tpu.memory_space<smem>>
    memref.store %607, %arg7[%609, %c44] : memref<2x54xf32, #tpu.memory_space<smem>>
    %611 = vector.extract_strided_slice %486 {offsets = [0, 1], sizes = [4, 3], strides = [1, 1]} : vector<4x4xf32> to vector<4x3xf32>
    %612 = vector.extract_strided_slice %486 {offsets = [0, 0], sizes = [4, 3], strides = [1, 1]} : vector<4x4xf32> to vector<4x3xf32>
    %613 = arith.subf %611, %612 : vector<4x3xf32>
    %cst_174 = arith.constant 5.000000e-01 : f32
    %614 = vector.broadcast %cst_174 : f32 to vector<4x3xf32>
    %615 = arith.mulf %614, %613 : vector<4x3xf32>
    %616 = math.tanh %615 : vector<4x3xf32>
    %617 = arith.mulf %616, %616 : vector<4x3xf32>
    %618 = vector.extract_strided_slice %488 {offsets = [0, 1], sizes = [4, 3], strides = [1, 1]} : vector<4x4xf32> to vector<4x3xf32>
    %619 = vector.extract_strided_slice %488 {offsets = [0, 0], sizes = [4, 3], strides = [1, 1]} : vector<4x4xf32> to vector<4x3xf32>
    %620 = arith.subf %618, %619 : vector<4x3xf32>
    %cst_175 = arith.constant 5.000000e-01 : f32
    %621 = vector.broadcast %cst_175 : f32 to vector<4x3xf32>
    %622 = arith.mulf %621, %620 : vector<4x3xf32>
    %623 = math.tanh %622 : vector<4x3xf32>
    %624 = arith.mulf %623, %623 : vector<4x3xf32>
    %625 = vector.extract_strided_slice %490 {offsets = [0, 1], sizes = [4, 3], strides = [1, 1]} : vector<4x4xf32> to vector<4x3xf32>
    %626 = vector.extract_strided_slice %490 {offsets = [0, 0], sizes = [4, 3], strides = [1, 1]} : vector<4x4xf32> to vector<4x3xf32>
    %627 = arith.subf %625, %626 : vector<4x3xf32>
    %cst_176 = arith.constant 5.000000e-01 : f32
    %628 = vector.broadcast %cst_176 : f32 to vector<4x3xf32>
    %629 = arith.mulf %628, %627 : vector<4x3xf32>
    %630 = math.tanh %629 : vector<4x3xf32>
    %631 = arith.mulf %630, %630 : vector<4x3xf32>
    %632 = vector.extract_strided_slice %492 {offsets = [0, 1], sizes = [4, 3], strides = [1, 1]} : vector<4x4xf32> to vector<4x3xf32>
    %633 = vector.extract_strided_slice %492 {offsets = [0, 0], sizes = [4, 3], strides = [1, 1]} : vector<4x4xf32> to vector<4x3xf32>
    %634 = arith.subf %632, %633 : vector<4x3xf32>
    %cst_177 = arith.constant 5.000000e-01 : f32
    %635 = vector.broadcast %cst_177 : f32 to vector<4x3xf32>
    %636 = arith.mulf %635, %634 : vector<4x3xf32>
    %637 = math.tanh %636 : vector<4x3xf32>
    %638 = arith.mulf %637, %637 : vector<4x3xf32>
    %639 = vector.extract_strided_slice %494 {offsets = [0, 1], sizes = [4, 3], strides = [1, 1]} : vector<4x4xf32> to vector<4x3xf32>
    %640 = vector.extract_strided_slice %494 {offsets = [0, 0], sizes = [4, 3], strides = [1, 1]} : vector<4x4xf32> to vector<4x3xf32>
    %641 = arith.subf %639, %640 : vector<4x3xf32>
    %cst_178 = arith.constant 5.000000e-01 : f32
    %642 = vector.broadcast %cst_178 : f32 to vector<4x3xf32>
    %643 = arith.mulf %642, %641 : vector<4x3xf32>
    %644 = math.tanh %643 : vector<4x3xf32>
    %645 = arith.mulf %644, %644 : vector<4x3xf32>
    %646 = vector.extract_strided_slice %496 {offsets = [0, 1], sizes = [4, 3], strides = [1, 1]} : vector<4x4xf32> to vector<4x3xf32>
    %647 = vector.extract_strided_slice %496 {offsets = [0, 0], sizes = [4, 3], strides = [1, 1]} : vector<4x4xf32> to vector<4x3xf32>
    %648 = arith.subf %646, %647 : vector<4x3xf32>
    %cst_179 = arith.constant 5.000000e-01 : f32
    %649 = vector.broadcast %cst_179 : f32 to vector<4x3xf32>
    %650 = arith.mulf %649, %648 : vector<4x3xf32>
    %651 = math.tanh %650 : vector<4x3xf32>
    %652 = arith.mulf %651, %651 : vector<4x3xf32>
    %653 = arith.mulf %617, %638 : vector<4x3xf32>
    %654 = vector.shape_cast %653 : vector<4x3xf32> to vector<1x4x3xf32>
    %cst_180 = arith.constant dense<0.000000e+00> : vector<1xf32>
    %655 = vector.multi_reduction <add>, %654, %cst_180 [1, 2] : vector<1x4x3xf32> to vector<1xf32>
    %656 = vector.shape_cast %655 : vector<1xf32> to vector<1x1x1xf32>
    %657 = vector.extract %656[0, 0, 0] : f32 from vector<1x1x1xf32>
    %c0_i32_181 = arith.constant 0 : i32
    %658 = arith.addi %4, %c0_i32_181 : i32
    %659 = arith.index_cast %658 : i32 to index
    %c45 = arith.constant 45 : index
    %660 = memref.load %arg7[%659, %c45] : memref<2x54xf32, #tpu.memory_space<smem>>
    memref.store %657, %arg7[%659, %c45] : memref<2x54xf32, #tpu.memory_space<smem>>
    %661 = arith.mulf %624, %638 : vector<4x3xf32>
    %662 = vector.shape_cast %661 : vector<4x3xf32> to vector<1x4x3xf32>
    %cst_182 = arith.constant dense<0.000000e+00> : vector<1xf32>
    %663 = vector.multi_reduction <add>, %662, %cst_182 [1, 2] : vector<1x4x3xf32> to vector<1xf32>
    %664 = vector.shape_cast %663 : vector<1xf32> to vector<1x1x1xf32>
    %665 = vector.extract %664[0, 0, 0] : f32 from vector<1x1x1xf32>
    %c0_i32_183 = arith.constant 0 : i32
    %666 = arith.addi %4, %c0_i32_183 : i32
    %667 = arith.index_cast %666 : i32 to index
    %c46 = arith.constant 46 : index
    %668 = memref.load %arg7[%667, %c46] : memref<2x54xf32, #tpu.memory_space<smem>>
    memref.store %665, %arg7[%667, %c46] : memref<2x54xf32, #tpu.memory_space<smem>>
    %669 = arith.mulf %631, %638 : vector<4x3xf32>
    %670 = vector.shape_cast %669 : vector<4x3xf32> to vector<1x4x3xf32>
    %cst_184 = arith.constant dense<0.000000e+00> : vector<1xf32>
    %671 = vector.multi_reduction <add>, %670, %cst_184 [1, 2] : vector<1x4x3xf32> to vector<1xf32>
    %672 = vector.shape_cast %671 : vector<1xf32> to vector<1x1x1xf32>
    %673 = vector.extract %672[0, 0, 0] : f32 from vector<1x1x1xf32>
    %c0_i32_185 = arith.constant 0 : i32
    %674 = arith.addi %4, %c0_i32_185 : i32
    %675 = arith.index_cast %674 : i32 to index
    %c47 = arith.constant 47 : index
    %676 = memref.load %arg7[%675, %c47] : memref<2x54xf32, #tpu.memory_space<smem>>
    memref.store %673, %arg7[%675, %c47] : memref<2x54xf32, #tpu.memory_space<smem>>
    %677 = arith.mulf %617, %645 : vector<4x3xf32>
    %678 = vector.shape_cast %677 : vector<4x3xf32> to vector<1x4x3xf32>
    %cst_186 = arith.constant dense<0.000000e+00> : vector<1xf32>
    %679 = vector.multi_reduction <add>, %678, %cst_186 [1, 2] : vector<1x4x3xf32> to vector<1xf32>
    %680 = vector.shape_cast %679 : vector<1xf32> to vector<1x1x1xf32>
    %681 = vector.extract %680[0, 0, 0] : f32 from vector<1x1x1xf32>
    %c0_i32_187 = arith.constant 0 : i32
    %682 = arith.addi %4, %c0_i32_187 : i32
    %683 = arith.index_cast %682 : i32 to index
    %c48 = arith.constant 48 : index
    %684 = memref.load %arg7[%683, %c48] : memref<2x54xf32, #tpu.memory_space<smem>>
    memref.store %681, %arg7[%683, %c48] : memref<2x54xf32, #tpu.memory_space<smem>>
    %685 = arith.mulf %624, %645 : vector<4x3xf32>
    %686 = vector.shape_cast %685 : vector<4x3xf32> to vector<1x4x3xf32>
    %cst_188 = arith.constant dense<0.000000e+00> : vector<1xf32>
    %687 = vector.multi_reduction <add>, %686, %cst_188 [1, 2] : vector<1x4x3xf32> to vector<1xf32>
    %688 = vector.shape_cast %687 : vector<1xf32> to vector<1x1x1xf32>
    %689 = vector.extract %688[0, 0, 0] : f32 from vector<1x1x1xf32>
    %c0_i32_189 = arith.constant 0 : i32
    %690 = arith.addi %4, %c0_i32_189 : i32
    %691 = arith.index_cast %690 : i32 to index
    %c49 = arith.constant 49 : index
    %692 = memref.load %arg7[%691, %c49] : memref<2x54xf32, #tpu.memory_space<smem>>
    memref.store %689, %arg7[%691, %c49] : memref<2x54xf32, #tpu.memory_space<smem>>
    %693 = arith.mulf %631, %645 : vector<4x3xf32>
    %694 = vector.shape_cast %693 : vector<4x3xf32> to vector<1x4x3xf32>
    %cst_190 = arith.constant dense<0.000000e+00> : vector<1xf32>
    %695 = vector.multi_reduction <add>, %694, %cst_190 [1, 2] : vector<1x4x3xf32> to vector<1xf32>
    %696 = vector.shape_cast %695 : vector<1xf32> to vector<1x1x1xf32>
    %697 = vector.extract %696[0, 0, 0] : f32 from vector<1x1x1xf32>
    %c0_i32_191 = arith.constant 0 : i32
    %698 = arith.addi %4, %c0_i32_191 : i32
    %699 = arith.index_cast %698 : i32 to index
    %c50 = arith.constant 50 : index
    %700 = memref.load %arg7[%699, %c50] : memref<2x54xf32, #tpu.memory_space<smem>>
    memref.store %697, %arg7[%699, %c50] : memref<2x54xf32, #tpu.memory_space<smem>>
    %701 = arith.mulf %617, %652 : vector<4x3xf32>
    %702 = vector.shape_cast %701 : vector<4x3xf32> to vector<1x4x3xf32>
    %cst_192 = arith.constant dense<0.000000e+00> : vector<1xf32>
    %703 = vector.multi_reduction <add>, %702, %cst_192 [1, 2] : vector<1x4x3xf32> to vector<1xf32>
    %704 = vector.shape_cast %703 : vector<1xf32> to vector<1x1x1xf32>
    %705 = vector.extract %704[0, 0, 0] : f32 from vector<1x1x1xf32>
    %c0_i32_193 = arith.constant 0 : i32
    %706 = arith.addi %4, %c0_i32_193 : i32
    %707 = arith.index_cast %706 : i32 to index
    %c51 = arith.constant 51 : index
    %708 = memref.load %arg7[%707, %c51] : memref<2x54xf32, #tpu.memory_space<smem>>
    memref.store %705, %arg7[%707, %c51] : memref<2x54xf32, #tpu.memory_space<smem>>
    %709 = arith.mulf %624, %652 : vector<4x3xf32>
    %710 = vector.shape_cast %709 : vector<4x3xf32> to vector<1x4x3xf32>
    %cst_194 = arith.constant dense<0.000000e+00> : vector<1xf32>
    %711 = vector.multi_reduction <add>, %710, %cst_194 [1, 2] : vector<1x4x3xf32> to vector<1xf32>
    %712 = vector.shape_cast %711 : vector<1xf32> to vector<1x1x1xf32>
    %713 = vector.extract %712[0, 0, 0] : f32 from vector<1x1x1xf32>
    %c0_i32_195 = arith.constant 0 : i32
    %714 = arith.addi %4, %c0_i32_195 : i32
    %715 = arith.index_cast %714 : i32 to index
    %c52 = arith.constant 52 : index
    %716 = memref.load %arg7[%715, %c52] : memref<2x54xf32, #tpu.memory_space<smem>>
    memref.store %713, %arg7[%715, %c52] : memref<2x54xf32, #tpu.memory_space<smem>>
    %717 = arith.mulf %631, %652 : vector<4x3xf32>
    %718 = vector.shape_cast %717 : vector<4x3xf32> to vector<1x4x3xf32>
    %cst_196 = arith.constant dense<0.000000e+00> : vector<1xf32>
    %719 = vector.multi_reduction <add>, %718, %cst_196 [1, 2] : vector<1x4x3xf32> to vector<1xf32>
    %720 = vector.shape_cast %719 : vector<1xf32> to vector<1x1x1xf32>
    %721 = vector.extract %720[0, 0, 0] : f32 from vector<1x1x1xf32>
    %c0_i32_197 = arith.constant 0 : i32
    %722 = arith.addi %4, %c0_i32_197 : i32
    %723 = arith.index_cast %722 : i32 to index
    %c53 = arith.constant 53 : index
    %724 = memref.load %arg7[%723, %c53] : memref<2x54xf32, #tpu.memory_space<smem>>
    memref.store %721, %arg7[%723, %c53] : memref<2x54xf32, #tpu.memory_space<smem>>
    %c1_198 = arith.constant 1 : index
    %c0_199 = arith.constant 0 : index
    %c0_200 = arith.constant 0 : index
    %c0_201 = arith.constant 0 : index
    %725 = vector.load %arg1[%c1_198, %c0_199, %c0_200, %c0_201] : memref<2x3x16x16xf32, #tpu.memory_space<vmem>>, vector<1x1x16x16xf32>
    %726 = vector.shape_cast %725 : vector<1x1x16x16xf32> to vector<16x16xf32>
    %c1_202 = arith.constant 1 : index
    %c1_203 = arith.constant 1 : index
    %c0_204 = arith.constant 0 : index
    %c0_205 = arith.constant 0 : index
    %727 = vector.load %arg1[%c1_202, %c1_203, %c0_204, %c0_205] : memref<2x3x16x16xf32, #tpu.memory_space<vmem>>, vector<1x1x16x16xf32>
    %728 = vector.shape_cast %727 : vector<1x1x16x16xf32> to vector<16x16xf32>
    %c1_206 = arith.constant 1 : index
    %c2_207 = arith.constant 2 : index
    %c0_208 = arith.constant 0 : index
    %c0_209 = arith.constant 0 : index
    %729 = vector.load %arg1[%c1_206, %c2_207, %c0_208, %c0_209] : memref<2x3x16x16xf32, #tpu.memory_space<vmem>>, vector<1x1x16x16xf32>
    %730 = vector.shape_cast %729 : vector<1x1x16x16xf32> to vector<16x16xf32>
    %c1_210 = arith.constant 1 : index
    %c0_211 = arith.constant 0 : index
    %c0_212 = arith.constant 0 : index
    %c0_213 = arith.constant 0 : index
    %731 = vector.load %arg2[%c1_210, %c0_211, %c0_212, %c0_213] : memref<2x3x16x16xf32, #tpu.memory_space<vmem>>, vector<1x1x16x16xf32>
    %732 = vector.shape_cast %731 : vector<1x1x16x16xf32> to vector<16x16xf32>
    %c1_214 = arith.constant 1 : index
    %c1_215 = arith.constant 1 : index
    %c0_216 = arith.constant 0 : index
    %c0_217 = arith.constant 0 : index
    %733 = vector.load %arg2[%c1_214, %c1_215, %c0_216, %c0_217] : memref<2x3x16x16xf32, #tpu.memory_space<vmem>>, vector<1x1x16x16xf32>
    %734 = vector.shape_cast %733 : vector<1x1x16x16xf32> to vector<16x16xf32>
    %c1_218 = arith.constant 1 : index
    %c2_219 = arith.constant 2 : index
    %c0_220 = arith.constant 0 : index
    %c0_221 = arith.constant 0 : index
    %735 = vector.load %arg2[%c1_218, %c2_219, %c0_220, %c0_221] : memref<2x3x16x16xf32, #tpu.memory_space<vmem>>, vector<1x1x16x16xf32>
    %736 = vector.shape_cast %735 : vector<1x1x16x16xf32> to vector<16x16xf32>
    %737 = vector.extract_strided_slice %726 {offsets = [1, 0], sizes = [15, 16], strides = [1, 1]} : vector<16x16xf32> to vector<15x16xf32>
    %738 = vector.extract_strided_slice %726 {offsets = [0, 0], sizes = [15, 16], strides = [1, 1]} : vector<16x16xf32> to vector<15x16xf32>
    %739 = arith.subf %737, %738 : vector<15x16xf32>
    %cst_222 = arith.constant 5.000000e-01 : f32
    %740 = vector.broadcast %cst_222 : f32 to vector<15x16xf32>
    %741 = arith.mulf %740, %739 : vector<15x16xf32>
    %742 = math.tanh %741 : vector<15x16xf32>
    %743 = arith.mulf %742, %742 : vector<15x16xf32>
    %744 = vector.extract_strided_slice %728 {offsets = [1, 0], sizes = [15, 16], strides = [1, 1]} : vector<16x16xf32> to vector<15x16xf32>
    %745 = vector.extract_strided_slice %728 {offsets = [0, 0], sizes = [15, 16], strides = [1, 1]} : vector<16x16xf32> to vector<15x16xf32>
    %746 = arith.subf %744, %745 : vector<15x16xf32>
    %cst_223 = arith.constant 5.000000e-01 : f32
    %747 = vector.broadcast %cst_223 : f32 to vector<15x16xf32>
    %748 = arith.mulf %747, %746 : vector<15x16xf32>
    %749 = math.tanh %748 : vector<15x16xf32>
    %750 = arith.mulf %749, %749 : vector<15x16xf32>
    %751 = vector.extract_strided_slice %730 {offsets = [1, 0], sizes = [15, 16], strides = [1, 1]} : vector<16x16xf32> to vector<15x16xf32>
    %752 = vector.extract_strided_slice %730 {offsets = [0, 0], sizes = [15, 16], strides = [1, 1]} : vector<16x16xf32> to vector<15x16xf32>
    %753 = arith.subf %751, %752 : vector<15x16xf32>
    %cst_224 = arith.constant 5.000000e-01 : f32
    %754 = vector.broadcast %cst_224 : f32 to vector<15x16xf32>
    %755 = arith.mulf %754, %753 : vector<15x16xf32>
    %756 = math.tanh %755 : vector<15x16xf32>
    %757 = arith.mulf %756, %756 : vector<15x16xf32>
    %758 = vector.extract_strided_slice %732 {offsets = [1, 0], sizes = [15, 16], strides = [1, 1]} : vector<16x16xf32> to vector<15x16xf32>
    %759 = vector.extract_strided_slice %732 {offsets = [0, 0], sizes = [15, 16], strides = [1, 1]} : vector<16x16xf32> to vector<15x16xf32>
    %760 = arith.subf %758, %759 : vector<15x16xf32>
    %cst_225 = arith.constant 5.000000e-01 : f32
    %761 = vector.broadcast %cst_225 : f32 to vector<15x16xf32>
    %762 = arith.mulf %761, %760 : vector<15x16xf32>
    %763 = math.tanh %762 : vector<15x16xf32>
    %764 = arith.mulf %763, %763 : vector<15x16xf32>
    %765 = vector.extract_strided_slice %734 {offsets = [1, 0], sizes = [15, 16], strides = [1, 1]} : vector<16x16xf32> to vector<15x16xf32>
    %766 = vector.extract_strided_slice %734 {offsets = [0, 0], sizes = [15, 16], strides = [1, 1]} : vector<16x16xf32> to vector<15x16xf32>
    %767 = arith.subf %765, %766 : vector<15x16xf32>
    %cst_226 = arith.constant 5.000000e-01 : f32
    %768 = vector.broadcast %cst_226 : f32 to vector<15x16xf32>
    %769 = arith.mulf %768, %767 : vector<15x16xf32>
    %770 = math.tanh %769 : vector<15x16xf32>
    %771 = arith.mulf %770, %770 : vector<15x16xf32>
    %772 = vector.extract_strided_slice %736 {offsets = [1, 0], sizes = [15, 16], strides = [1, 1]} : vector<16x16xf32> to vector<15x16xf32>
    %773 = vector.extract_strided_slice %736 {offsets = [0, 0], sizes = [15, 16], strides = [1, 1]} : vector<16x16xf32> to vector<15x16xf32>
    %774 = arith.subf %772, %773 : vector<15x16xf32>
    %cst_227 = arith.constant 5.000000e-01 : f32
    %775 = vector.broadcast %cst_227 : f32 to vector<15x16xf32>
    %776 = arith.mulf %775, %774 : vector<15x16xf32>
    %777 = math.tanh %776 : vector<15x16xf32>
    %778 = arith.mulf %777, %777 : vector<15x16xf32>
    %779 = arith.mulf %743, %764 : vector<15x16xf32>
    %780 = vector.shape_cast %779 : vector<15x16xf32> to vector<1x15x16xf32>
    %cst_228 = arith.constant dense<0.000000e+00> : vector<1xf32>
    %781 = vector.multi_reduction <add>, %780, %cst_228 [1, 2] : vector<1x15x16xf32> to vector<1xf32>
    %782 = vector.shape_cast %781 : vector<1xf32> to vector<1x1x1xf32>
    %783 = vector.extract %782[0, 0, 0] : f32 from vector<1x1x1xf32>
    %c1_i32 = arith.constant 1 : i32
    %784 = arith.addi %4, %c1_i32 : i32
    %785 = arith.index_cast %784 : i32 to index
    %c0_229 = arith.constant 0 : index
    %786 = memref.load %arg7[%785, %c0_229] : memref<2x54xf32, #tpu.memory_space<smem>>
    memref.store %783, %arg7[%785, %c0_229] : memref<2x54xf32, #tpu.memory_space<smem>>
    %787 = arith.mulf %750, %764 : vector<15x16xf32>
    %788 = vector.shape_cast %787 : vector<15x16xf32> to vector<1x15x16xf32>
    %cst_230 = arith.constant dense<0.000000e+00> : vector<1xf32>
    %789 = vector.multi_reduction <add>, %788, %cst_230 [1, 2] : vector<1x15x16xf32> to vector<1xf32>
    %790 = vector.shape_cast %789 : vector<1xf32> to vector<1x1x1xf32>
    %791 = vector.extract %790[0, 0, 0] : f32 from vector<1x1x1xf32>
    %c1_i32_231 = arith.constant 1 : i32
    %792 = arith.addi %4, %c1_i32_231 : i32
    %793 = arith.index_cast %792 : i32 to index
    %c1_232 = arith.constant 1 : index
    %794 = memref.load %arg7[%793, %c1_232] : memref<2x54xf32, #tpu.memory_space<smem>>
    memref.store %791, %arg7[%793, %c1_232] : memref<2x54xf32, #tpu.memory_space<smem>>
    %795 = arith.mulf %757, %764 : vector<15x16xf32>
    %796 = vector.shape_cast %795 : vector<15x16xf32> to vector<1x15x16xf32>
    %cst_233 = arith.constant dense<0.000000e+00> : vector<1xf32>
    %797 = vector.multi_reduction <add>, %796, %cst_233 [1, 2] : vector<1x15x16xf32> to vector<1xf32>
    %798 = vector.shape_cast %797 : vector<1xf32> to vector<1x1x1xf32>
    %799 = vector.extract %798[0, 0, 0] : f32 from vector<1x1x1xf32>
    %c1_i32_234 = arith.constant 1 : i32
    %800 = arith.addi %4, %c1_i32_234 : i32
    %801 = arith.index_cast %800 : i32 to index
    %c2_235 = arith.constant 2 : index
    %802 = memref.load %arg7[%801, %c2_235] : memref<2x54xf32, #tpu.memory_space<smem>>
    memref.store %799, %arg7[%801, %c2_235] : memref<2x54xf32, #tpu.memory_space<smem>>
    %803 = arith.mulf %743, %771 : vector<15x16xf32>
    %804 = vector.shape_cast %803 : vector<15x16xf32> to vector<1x15x16xf32>
    %cst_236 = arith.constant dense<0.000000e+00> : vector<1xf32>
    %805 = vector.multi_reduction <add>, %804, %cst_236 [1, 2] : vector<1x15x16xf32> to vector<1xf32>
    %806 = vector.shape_cast %805 : vector<1xf32> to vector<1x1x1xf32>
    %807 = vector.extract %806[0, 0, 0] : f32 from vector<1x1x1xf32>
    %c1_i32_237 = arith.constant 1 : i32
    %808 = arith.addi %4, %c1_i32_237 : i32
    %809 = arith.index_cast %808 : i32 to index
    %c3_238 = arith.constant 3 : index
    %810 = memref.load %arg7[%809, %c3_238] : memref<2x54xf32, #tpu.memory_space<smem>>
    memref.store %807, %arg7[%809, %c3_238] : memref<2x54xf32, #tpu.memory_space<smem>>
    %811 = arith.mulf %750, %771 : vector<15x16xf32>
    %812 = vector.shape_cast %811 : vector<15x16xf32> to vector<1x15x16xf32>
    %cst_239 = arith.constant dense<0.000000e+00> : vector<1xf32>
    %813 = vector.multi_reduction <add>, %812, %cst_239 [1, 2] : vector<1x15x16xf32> to vector<1xf32>
    %814 = vector.shape_cast %813 : vector<1xf32> to vector<1x1x1xf32>
    %815 = vector.extract %814[0, 0, 0] : f32 from vector<1x1x1xf32>
    %c1_i32_240 = arith.constant 1 : i32
    %816 = arith.addi %4, %c1_i32_240 : i32
    %817 = arith.index_cast %816 : i32 to index
    %c4_241 = arith.constant 4 : index
    %818 = memref.load %arg7[%817, %c4_241] : memref<2x54xf32, #tpu.memory_space<smem>>
    memref.store %815, %arg7[%817, %c4_241] : memref<2x54xf32, #tpu.memory_space<smem>>
    %819 = arith.mulf %757, %771 : vector<15x16xf32>
    %820 = vector.shape_cast %819 : vector<15x16xf32> to vector<1x15x16xf32>
    %cst_242 = arith.constant dense<0.000000e+00> : vector<1xf32>
    %821 = vector.multi_reduction <add>, %820, %cst_242 [1, 2] : vector<1x15x16xf32> to vector<1xf32>
    %822 = vector.shape_cast %821 : vector<1xf32> to vector<1x1x1xf32>
    %823 = vector.extract %822[0, 0, 0] : f32 from vector<1x1x1xf32>
    %c1_i32_243 = arith.constant 1 : i32
    %824 = arith.addi %4, %c1_i32_243 : i32
    %825 = arith.index_cast %824 : i32 to index
    %c5_244 = arith.constant 5 : index
    %826 = memref.load %arg7[%825, %c5_244] : memref<2x54xf32, #tpu.memory_space<smem>>
    memref.store %823, %arg7[%825, %c5_244] : memref<2x54xf32, #tpu.memory_space<smem>>
    %827 = arith.mulf %743, %778 : vector<15x16xf32>
    %828 = vector.shape_cast %827 : vector<15x16xf32> to vector<1x15x16xf32>
    %cst_245 = arith.constant dense<0.000000e+00> : vector<1xf32>
    %829 = vector.multi_reduction <add>, %828, %cst_245 [1, 2] : vector<1x15x16xf32> to vector<1xf32>
    %830 = vector.shape_cast %829 : vector<1xf32> to vector<1x1x1xf32>
    %831 = vector.extract %830[0, 0, 0] : f32 from vector<1x1x1xf32>
    %c1_i32_246 = arith.constant 1 : i32
    %832 = arith.addi %4, %c1_i32_246 : i32
    %833 = arith.index_cast %832 : i32 to index
    %c6_247 = arith.constant 6 : index
    %834 = memref.load %arg7[%833, %c6_247] : memref<2x54xf32, #tpu.memory_space<smem>>
    memref.store %831, %arg7[%833, %c6_247] : memref<2x54xf32, #tpu.memory_space<smem>>
    %835 = arith.mulf %750, %778 : vector<15x16xf32>
    %836 = vector.shape_cast %835 : vector<15x16xf32> to vector<1x15x16xf32>
    %cst_248 = arith.constant dense<0.000000e+00> : vector<1xf32>
    %837 = vector.multi_reduction <add>, %836, %cst_248 [1, 2] : vector<1x15x16xf32> to vector<1xf32>
    %838 = vector.shape_cast %837 : vector<1xf32> to vector<1x1x1xf32>
    %839 = vector.extract %838[0, 0, 0] : f32 from vector<1x1x1xf32>
    %c1_i32_249 = arith.constant 1 : i32
    %840 = arith.addi %4, %c1_i32_249 : i32
    %841 = arith.index_cast %840 : i32 to index
    %c7_250 = arith.constant 7 : index
    %842 = memref.load %arg7[%841, %c7_250] : memref<2x54xf32, #tpu.memory_space<smem>>
    memref.store %839, %arg7[%841, %c7_250] : memref<2x54xf32, #tpu.memory_space<smem>>
    %843 = arith.mulf %757, %778 : vector<15x16xf32>
    %844 = vector.shape_cast %843 : vector<15x16xf32> to vector<1x15x16xf32>
    %cst_251 = arith.constant dense<0.000000e+00> : vector<1xf32>
    %845 = vector.multi_reduction <add>, %844, %cst_251 [1, 2] : vector<1x15x16xf32> to vector<1xf32>
    %846 = vector.shape_cast %845 : vector<1xf32> to vector<1x1x1xf32>
    %847 = vector.extract %846[0, 0, 0] : f32 from vector<1x1x1xf32>
    %c1_i32_252 = arith.constant 1 : i32
    %848 = arith.addi %4, %c1_i32_252 : i32
    %849 = arith.index_cast %848 : i32 to index
    %c8_253 = arith.constant 8 : index
    %850 = memref.load %arg7[%849, %c8_253] : memref<2x54xf32, #tpu.memory_space<smem>>
    memref.store %847, %arg7[%849, %c8_253] : memref<2x54xf32, #tpu.memory_space<smem>>
    %851 = vector.extract_strided_slice %726 {offsets = [0, 1], sizes = [16, 15], strides = [1, 1]} : vector<16x16xf32> to vector<16x15xf32>
    %852 = vector.extract_strided_slice %726 {offsets = [0, 0], sizes = [16, 15], strides = [1, 1]} : vector<16x16xf32> to vector<16x15xf32>
    %853 = arith.subf %851, %852 : vector<16x15xf32>
    %cst_254 = arith.constant 5.000000e-01 : f32
    %854 = vector.broadcast %cst_254 : f32 to vector<16x15xf32>
    %855 = arith.mulf %854, %853 : vector<16x15xf32>
    %856 = math.tanh %855 : vector<16x15xf32>
    %857 = arith.mulf %856, %856 : vector<16x15xf32>
    %858 = vector.extract_strided_slice %728 {offsets = [0, 1], sizes = [16, 15], strides = [1, 1]} : vector<16x16xf32> to vector<16x15xf32>
    %859 = vector.extract_strided_slice %728 {offsets = [0, 0], sizes = [16, 15], strides = [1, 1]} : vector<16x16xf32> to vector<16x15xf32>
    %860 = arith.subf %858, %859 : vector<16x15xf32>
    %cst_255 = arith.constant 5.000000e-01 : f32
    %861 = vector.broadcast %cst_255 : f32 to vector<16x15xf32>
    %862 = arith.mulf %861, %860 : vector<16x15xf32>
    %863 = math.tanh %862 : vector<16x15xf32>
    %864 = arith.mulf %863, %863 : vector<16x15xf32>
    %865 = vector.extract_strided_slice %730 {offsets = [0, 1], sizes = [16, 15], strides = [1, 1]} : vector<16x16xf32> to vector<16x15xf32>
    %866 = vector.extract_strided_slice %730 {offsets = [0, 0], sizes = [16, 15], strides = [1, 1]} : vector<16x16xf32> to vector<16x15xf32>
    %867 = arith.subf %865, %866 : vector<16x15xf32>
    %cst_256 = arith.constant 5.000000e-01 : f32
    %868 = vector.broadcast %cst_256 : f32 to vector<16x15xf32>
    %869 = arith.mulf %868, %867 : vector<16x15xf32>
    %870 = math.tanh %869 : vector<16x15xf32>
    %871 = arith.mulf %870, %870 : vector<16x15xf32>
    %872 = vector.extract_strided_slice %732 {offsets = [0, 1], sizes = [16, 15], strides = [1, 1]} : vector<16x16xf32> to vector<16x15xf32>
    %873 = vector.extract_strided_slice %732 {offsets = [0, 0], sizes = [16, 15], strides = [1, 1]} : vector<16x16xf32> to vector<16x15xf32>
    %874 = arith.subf %872, %873 : vector<16x15xf32>
    %cst_257 = arith.constant 5.000000e-01 : f32
    %875 = vector.broadcast %cst_257 : f32 to vector<16x15xf32>
    %876 = arith.mulf %875, %874 : vector<16x15xf32>
    %877 = math.tanh %876 : vector<16x15xf32>
    %878 = arith.mulf %877, %877 : vector<16x15xf32>
    %879 = vector.extract_strided_slice %734 {offsets = [0, 1], sizes = [16, 15], strides = [1, 1]} : vector<16x16xf32> to vector<16x15xf32>
    %880 = vector.extract_strided_slice %734 {offsets = [0, 0], sizes = [16, 15], strides = [1, 1]} : vector<16x16xf32> to vector<16x15xf32>
    %881 = arith.subf %879, %880 : vector<16x15xf32>
    %cst_258 = arith.constant 5.000000e-01 : f32
    %882 = vector.broadcast %cst_258 : f32 to vector<16x15xf32>
    %883 = arith.mulf %882, %881 : vector<16x15xf32>
    %884 = math.tanh %883 : vector<16x15xf32>
    %885 = arith.mulf %884, %884 : vector<16x15xf32>
    %886 = vector.extract_strided_slice %736 {offsets = [0, 1], sizes = [16, 15], strides = [1, 1]} : vector<16x16xf32> to vector<16x15xf32>
    %887 = vector.extract_strided_slice %736 {offsets = [0, 0], sizes = [16, 15], strides = [1, 1]} : vector<16x16xf32> to vector<16x15xf32>
    %888 = arith.subf %886, %887 : vector<16x15xf32>
    %cst_259 = arith.constant 5.000000e-01 : f32
    %889 = vector.broadcast %cst_259 : f32 to vector<16x15xf32>
    %890 = arith.mulf %889, %888 : vector<16x15xf32>
    %891 = math.tanh %890 : vector<16x15xf32>
    %892 = arith.mulf %891, %891 : vector<16x15xf32>
    %893 = arith.mulf %857, %878 : vector<16x15xf32>
    %894 = vector.shape_cast %893 : vector<16x15xf32> to vector<1x16x15xf32>
    %cst_260 = arith.constant dense<0.000000e+00> : vector<1xf32>
    %895 = vector.multi_reduction <add>, %894, %cst_260 [1, 2] : vector<1x16x15xf32> to vector<1xf32>
    %896 = vector.shape_cast %895 : vector<1xf32> to vector<1x1x1xf32>
    %897 = vector.extract %896[0, 0, 0] : f32 from vector<1x1x1xf32>
    %c1_i32_261 = arith.constant 1 : i32
    %898 = arith.addi %4, %c1_i32_261 : i32
    %899 = arith.index_cast %898 : i32 to index
    %c9_262 = arith.constant 9 : index
    %900 = memref.load %arg7[%899, %c9_262] : memref<2x54xf32, #tpu.memory_space<smem>>
    memref.store %897, %arg7[%899, %c9_262] : memref<2x54xf32, #tpu.memory_space<smem>>
    %901 = arith.mulf %864, %878 : vector<16x15xf32>
    %902 = vector.shape_cast %901 : vector<16x15xf32> to vector<1x16x15xf32>
    %cst_263 = arith.constant dense<0.000000e+00> : vector<1xf32>
    %903 = vector.multi_reduction <add>, %902, %cst_263 [1, 2] : vector<1x16x15xf32> to vector<1xf32>
    %904 = vector.shape_cast %903 : vector<1xf32> to vector<1x1x1xf32>
    %905 = vector.extract %904[0, 0, 0] : f32 from vector<1x1x1xf32>
    %c1_i32_264 = arith.constant 1 : i32
    %906 = arith.addi %4, %c1_i32_264 : i32
    %907 = arith.index_cast %906 : i32 to index
    %c10_265 = arith.constant 10 : index
    %908 = memref.load %arg7[%907, %c10_265] : memref<2x54xf32, #tpu.memory_space<smem>>
    memref.store %905, %arg7[%907, %c10_265] : memref<2x54xf32, #tpu.memory_space<smem>>
    %909 = arith.mulf %871, %878 : vector<16x15xf32>
    %910 = vector.shape_cast %909 : vector<16x15xf32> to vector<1x16x15xf32>
    %cst_266 = arith.constant dense<0.000000e+00> : vector<1xf32>
    %911 = vector.multi_reduction <add>, %910, %cst_266 [1, 2] : vector<1x16x15xf32> to vector<1xf32>
    %912 = vector.shape_cast %911 : vector<1xf32> to vector<1x1x1xf32>
    %913 = vector.extract %912[0, 0, 0] : f32 from vector<1x1x1xf32>
    %c1_i32_267 = arith.constant 1 : i32
    %914 = arith.addi %4, %c1_i32_267 : i32
    %915 = arith.index_cast %914 : i32 to index
    %c11_268 = arith.constant 11 : index
    %916 = memref.load %arg7[%915, %c11_268] : memref<2x54xf32, #tpu.memory_space<smem>>
    memref.store %913, %arg7[%915, %c11_268] : memref<2x54xf32, #tpu.memory_space<smem>>
    %917 = arith.mulf %857, %885 : vector<16x15xf32>
    %918 = vector.shape_cast %917 : vector<16x15xf32> to vector<1x16x15xf32>
    %cst_269 = arith.constant dense<0.000000e+00> : vector<1xf32>
    %919 = vector.multi_reduction <add>, %918, %cst_269 [1, 2] : vector<1x16x15xf32> to vector<1xf32>
    %920 = vector.shape_cast %919 : vector<1xf32> to vector<1x1x1xf32>
    %921 = vector.extract %920[0, 0, 0] : f32 from vector<1x1x1xf32>
    %c1_i32_270 = arith.constant 1 : i32
    %922 = arith.addi %4, %c1_i32_270 : i32
    %923 = arith.index_cast %922 : i32 to index
    %c12_271 = arith.constant 12 : index
    %924 = memref.load %arg7[%923, %c12_271] : memref<2x54xf32, #tpu.memory_space<smem>>
    memref.store %921, %arg7[%923, %c12_271] : memref<2x54xf32, #tpu.memory_space<smem>>
    %925 = arith.mulf %864, %885 : vector<16x15xf32>
    %926 = vector.shape_cast %925 : vector<16x15xf32> to vector<1x16x15xf32>
    %cst_272 = arith.constant dense<0.000000e+00> : vector<1xf32>
    %927 = vector.multi_reduction <add>, %926, %cst_272 [1, 2] : vector<1x16x15xf32> to vector<1xf32>
    %928 = vector.shape_cast %927 : vector<1xf32> to vector<1x1x1xf32>
    %929 = vector.extract %928[0, 0, 0] : f32 from vector<1x1x1xf32>
    %c1_i32_273 = arith.constant 1 : i32
    %930 = arith.addi %4, %c1_i32_273 : i32
    %931 = arith.index_cast %930 : i32 to index
    %c13_274 = arith.constant 13 : index
    %932 = memref.load %arg7[%931, %c13_274] : memref<2x54xf32, #tpu.memory_space<smem>>
    memref.store %929, %arg7[%931, %c13_274] : memref<2x54xf32, #tpu.memory_space<smem>>
    %933 = arith.mulf %871, %885 : vector<16x15xf32>
    %934 = vector.shape_cast %933 : vector<16x15xf32> to vector<1x16x15xf32>
    %cst_275 = arith.constant dense<0.000000e+00> : vector<1xf32>
    %935 = vector.multi_reduction <add>, %934, %cst_275 [1, 2] : vector<1x16x15xf32> to vector<1xf32>
    %936 = vector.shape_cast %935 : vector<1xf32> to vector<1x1x1xf32>
    %937 = vector.extract %936[0, 0, 0] : f32 from vector<1x1x1xf32>
    %c1_i32_276 = arith.constant 1 : i32
    %938 = arith.addi %4, %c1_i32_276 : i32
    %939 = arith.index_cast %938 : i32 to index
    %c14_277 = arith.constant 14 : index
    %940 = memref.load %arg7[%939, %c14_277] : memref<2x54xf32, #tpu.memory_space<smem>>
    memref.store %937, %arg7[%939, %c14_277] : memref<2x54xf32, #tpu.memory_space<smem>>
    %941 = arith.mulf %857, %892 : vector<16x15xf32>
    %942 = vector.shape_cast %941 : vector<16x15xf32> to vector<1x16x15xf32>
    %cst_278 = arith.constant dense<0.000000e+00> : vector<1xf32>
    %943 = vector.multi_reduction <add>, %942, %cst_278 [1, 2] : vector<1x16x15xf32> to vector<1xf32>
    %944 = vector.shape_cast %943 : vector<1xf32> to vector<1x1x1xf32>
    %945 = vector.extract %944[0, 0, 0] : f32 from vector<1x1x1xf32>
    %c1_i32_279 = arith.constant 1 : i32
    %946 = arith.addi %4, %c1_i32_279 : i32
    %947 = arith.index_cast %946 : i32 to index
    %c15_280 = arith.constant 15 : index
    %948 = memref.load %arg7[%947, %c15_280] : memref<2x54xf32, #tpu.memory_space<smem>>
    memref.store %945, %arg7[%947, %c15_280] : memref<2x54xf32, #tpu.memory_space<smem>>
    %949 = arith.mulf %864, %892 : vector<16x15xf32>
    %950 = vector.shape_cast %949 : vector<16x15xf32> to vector<1x16x15xf32>
    %cst_281 = arith.constant dense<0.000000e+00> : vector<1xf32>
    %951 = vector.multi_reduction <add>, %950, %cst_281 [1, 2] : vector<1x16x15xf32> to vector<1xf32>
    %952 = vector.shape_cast %951 : vector<1xf32> to vector<1x1x1xf32>
    %953 = vector.extract %952[0, 0, 0] : f32 from vector<1x1x1xf32>
    %c1_i32_282 = arith.constant 1 : i32
    %954 = arith.addi %4, %c1_i32_282 : i32
    %955 = arith.index_cast %954 : i32 to index
    %c16_283 = arith.constant 16 : index
    %956 = memref.load %arg7[%955, %c16_283] : memref<2x54xf32, #tpu.memory_space<smem>>
    memref.store %953, %arg7[%955, %c16_283] : memref<2x54xf32, #tpu.memory_space<smem>>
    %957 = arith.mulf %871, %892 : vector<16x15xf32>
    %958 = vector.shape_cast %957 : vector<16x15xf32> to vector<1x16x15xf32>
    %cst_284 = arith.constant dense<0.000000e+00> : vector<1xf32>
    %959 = vector.multi_reduction <add>, %958, %cst_284 [1, 2] : vector<1x16x15xf32> to vector<1xf32>
    %960 = vector.shape_cast %959 : vector<1xf32> to vector<1x1x1xf32>
    %961 = vector.extract %960[0, 0, 0] : f32 from vector<1x1x1xf32>
    %c1_i32_285 = arith.constant 1 : i32
    %962 = arith.addi %4, %c1_i32_285 : i32
    %963 = arith.index_cast %962 : i32 to index
    %c17_286 = arith.constant 17 : index
    %964 = memref.load %arg7[%963, %c17_286] : memref<2x54xf32, #tpu.memory_space<smem>>
    memref.store %961, %arg7[%963, %c17_286] : memref<2x54xf32, #tpu.memory_space<smem>>
    %cst_287 = arith.constant dense<0.000000e+00> : vector<16x8xf32>
    %965 = tpu.matmul %726, %1, %cst_287 {dimension_numbers = #tpu.dot_dimension_numbers<[1], [0], [0], [1], [0, 0, 1, 1], [], []>} : vector<16x16xf32>, vector<16x8xf32>, vector<16x8xf32> -> vector<16x8xf32>
    %cst_288 = arith.constant dense<0.000000e+00> : vector<8x8xf32>
    %966 = tpu.matmul %0, %965, %cst_288 {dimension_numbers = #tpu.dot_dimension_numbers<[1], [0], [0], [1], [0, 0, 1, 1], [], []>} : vector<8x16xf32>, vector<16x8xf32>, vector<8x8xf32> -> vector<8x8xf32>
    %cst_289 = arith.constant dense<0.000000e+00> : vector<16x8xf32>
    %967 = tpu.matmul %728, %1, %cst_289 {dimension_numbers = #tpu.dot_dimension_numbers<[1], [0], [0], [1], [0, 0, 1, 1], [], []>} : vector<16x16xf32>, vector<16x8xf32>, vector<16x8xf32> -> vector<16x8xf32>
    %cst_290 = arith.constant dense<0.000000e+00> : vector<8x8xf32>
    %968 = tpu.matmul %0, %967, %cst_290 {dimension_numbers = #tpu.dot_dimension_numbers<[1], [0], [0], [1], [0, 0, 1, 1], [], []>} : vector<8x16xf32>, vector<16x8xf32>, vector<8x8xf32> -> vector<8x8xf32>
    %cst_291 = arith.constant dense<0.000000e+00> : vector<16x8xf32>
    %969 = tpu.matmul %730, %1, %cst_291 {dimension_numbers = #tpu.dot_dimension_numbers<[1], [0], [0], [1], [0, 0, 1, 1], [], []>} : vector<16x16xf32>, vector<16x8xf32>, vector<16x8xf32> -> vector<16x8xf32>
    %cst_292 = arith.constant dense<0.000000e+00> : vector<8x8xf32>
    %970 = tpu.matmul %0, %969, %cst_292 {dimension_numbers = #tpu.dot_dimension_numbers<[1], [0], [0], [1], [0, 0, 1, 1], [], []>} : vector<8x16xf32>, vector<16x8xf32>, vector<8x8xf32> -> vector<8x8xf32>
    %cst_293 = arith.constant dense<0.000000e+00> : vector<16x8xf32>
    %971 = tpu.matmul %732, %1, %cst_293 {dimension_numbers = #tpu.dot_dimension_numbers<[1], [0], [0], [1], [0, 0, 1, 1], [], []>} : vector<16x16xf32>, vector<16x8xf32>, vector<16x8xf32> -> vector<16x8xf32>
    %cst_294 = arith.constant dense<0.000000e+00> : vector<8x8xf32>
    %972 = tpu.matmul %0, %971, %cst_294 {dimension_numbers = #tpu.dot_dimension_numbers<[1], [0], [0], [1], [0, 0, 1, 1], [], []>} : vector<8x16xf32>, vector<16x8xf32>, vector<8x8xf32> -> vector<8x8xf32>
    %cst_295 = arith.constant dense<0.000000e+00> : vector<16x8xf32>
    %973 = tpu.matmul %734, %1, %cst_295 {dimension_numbers = #tpu.dot_dimension_numbers<[1], [0], [0], [1], [0, 0, 1, 1], [], []>} : vector<16x16xf32>, vector<16x8xf32>, vector<16x8xf32> -> vector<16x8xf32>
    %cst_296 = arith.constant dense<0.000000e+00> : vector<8x8xf32>
    %974 = tpu.matmul %0, %973, %cst_296 {dimension_numbers = #tpu.dot_dimension_numbers<[1], [0], [0], [1], [0, 0, 1, 1], [], []>} : vector<8x16xf32>, vector<16x8xf32>, vector<8x8xf32> -> vector<8x8xf32>
    %cst_297 = arith.constant dense<0.000000e+00> : vector<16x8xf32>
    %975 = tpu.matmul %736, %1, %cst_297 {dimension_numbers = #tpu.dot_dimension_numbers<[1], [0], [0], [1], [0, 0, 1, 1], [], []>} : vector<16x16xf32>, vector<16x8xf32>, vector<16x8xf32> -> vector<16x8xf32>
    %cst_298 = arith.constant dense<0.000000e+00> : vector<8x8xf32>
    %976 = tpu.matmul %0, %975, %cst_298 {dimension_numbers = #tpu.dot_dimension_numbers<[1], [0], [0], [1], [0, 0, 1, 1], [], []>} : vector<8x16xf32>, vector<16x8xf32>, vector<8x8xf32> -> vector<8x8xf32>
    %977 = vector.extract_strided_slice %966 {offsets = [1, 0], sizes = [7, 8], strides = [1, 1]} : vector<8x8xf32> to vector<7x8xf32>
    %978 = vector.extract_strided_slice %966 {offsets = [0, 0], sizes = [7, 8], strides = [1, 1]} : vector<8x8xf32> to vector<7x8xf32>
    %979 = arith.subf %977, %978 : vector<7x8xf32>
    %cst_299 = arith.constant 5.000000e-01 : f32
    %980 = vector.broadcast %cst_299 : f32 to vector<7x8xf32>
    %981 = arith.mulf %980, %979 : vector<7x8xf32>
    %982 = math.tanh %981 : vector<7x8xf32>
    %983 = arith.mulf %982, %982 : vector<7x8xf32>
    %984 = vector.extract_strided_slice %968 {offsets = [1, 0], sizes = [7, 8], strides = [1, 1]} : vector<8x8xf32> to vector<7x8xf32>
    %985 = vector.extract_strided_slice %968 {offsets = [0, 0], sizes = [7, 8], strides = [1, 1]} : vector<8x8xf32> to vector<7x8xf32>
    %986 = arith.subf %984, %985 : vector<7x8xf32>
    %cst_300 = arith.constant 5.000000e-01 : f32
    %987 = vector.broadcast %cst_300 : f32 to vector<7x8xf32>
    %988 = arith.mulf %987, %986 : vector<7x8xf32>
    %989 = math.tanh %988 : vector<7x8xf32>
    %990 = arith.mulf %989, %989 : vector<7x8xf32>
    %991 = vector.extract_strided_slice %970 {offsets = [1, 0], sizes = [7, 8], strides = [1, 1]} : vector<8x8xf32> to vector<7x8xf32>
    %992 = vector.extract_strided_slice %970 {offsets = [0, 0], sizes = [7, 8], strides = [1, 1]} : vector<8x8xf32> to vector<7x8xf32>
    %993 = arith.subf %991, %992 : vector<7x8xf32>
    %cst_301 = arith.constant 5.000000e-01 : f32
    %994 = vector.broadcast %cst_301 : f32 to vector<7x8xf32>
    %995 = arith.mulf %994, %993 : vector<7x8xf32>
    %996 = math.tanh %995 : vector<7x8xf32>
    %997 = arith.mulf %996, %996 : vector<7x8xf32>
    %998 = vector.extract_strided_slice %972 {offsets = [1, 0], sizes = [7, 8], strides = [1, 1]} : vector<8x8xf32> to vector<7x8xf32>
    %999 = vector.extract_strided_slice %972 {offsets = [0, 0], sizes = [7, 8], strides = [1, 1]} : vector<8x8xf32> to vector<7x8xf32>
    %1000 = arith.subf %998, %999 : vector<7x8xf32>
    %cst_302 = arith.constant 5.000000e-01 : f32
    %1001 = vector.broadcast %cst_302 : f32 to vector<7x8xf32>
    %1002 = arith.mulf %1001, %1000 : vector<7x8xf32>
    %1003 = math.tanh %1002 : vector<7x8xf32>
    %1004 = arith.mulf %1003, %1003 : vector<7x8xf32>
    %1005 = vector.extract_strided_slice %974 {offsets = [1, 0], sizes = [7, 8], strides = [1, 1]} : vector<8x8xf32> to vector<7x8xf32>
    %1006 = vector.extract_strided_slice %974 {offsets = [0, 0], sizes = [7, 8], strides = [1, 1]} : vector<8x8xf32> to vector<7x8xf32>
    %1007 = arith.subf %1005, %1006 : vector<7x8xf32>
    %cst_303 = arith.constant 5.000000e-01 : f32
    %1008 = vector.broadcast %cst_303 : f32 to vector<7x8xf32>
    %1009 = arith.mulf %1008, %1007 : vector<7x8xf32>
    %1010 = math.tanh %1009 : vector<7x8xf32>
    %1011 = arith.mulf %1010, %1010 : vector<7x8xf32>
    %1012 = vector.extract_strided_slice %976 {offsets = [1, 0], sizes = [7, 8], strides = [1, 1]} : vector<8x8xf32> to vector<7x8xf32>
    %1013 = vector.extract_strided_slice %976 {offsets = [0, 0], sizes = [7, 8], strides = [1, 1]} : vector<8x8xf32> to vector<7x8xf32>
    %1014 = arith.subf %1012, %1013 : vector<7x8xf32>
    %cst_304 = arith.constant 5.000000e-01 : f32
    %1015 = vector.broadcast %cst_304 : f32 to vector<7x8xf32>
    %1016 = arith.mulf %1015, %1014 : vector<7x8xf32>
    %1017 = math.tanh %1016 : vector<7x8xf32>
    %1018 = arith.mulf %1017, %1017 : vector<7x8xf32>
    %1019 = arith.mulf %983, %1004 : vector<7x8xf32>
    %1020 = vector.shape_cast %1019 : vector<7x8xf32> to vector<1x7x8xf32>
    %cst_305 = arith.constant dense<0.000000e+00> : vector<1xf32>
    %1021 = vector.multi_reduction <add>, %1020, %cst_305 [1, 2] : vector<1x7x8xf32> to vector<1xf32>
    %1022 = vector.shape_cast %1021 : vector<1xf32> to vector<1x1x1xf32>
    %1023 = vector.extract %1022[0, 0, 0] : f32 from vector<1x1x1xf32>
    %c1_i32_306 = arith.constant 1 : i32
    %1024 = arith.addi %4, %c1_i32_306 : i32
    %1025 = arith.index_cast %1024 : i32 to index
    %c18_307 = arith.constant 18 : index
    %1026 = memref.load %arg7[%1025, %c18_307] : memref<2x54xf32, #tpu.memory_space<smem>>
    memref.store %1023, %arg7[%1025, %c18_307] : memref<2x54xf32, #tpu.memory_space<smem>>
    %1027 = arith.mulf %990, %1004 : vector<7x8xf32>
    %1028 = vector.shape_cast %1027 : vector<7x8xf32> to vector<1x7x8xf32>
    %cst_308 = arith.constant dense<0.000000e+00> : vector<1xf32>
    %1029 = vector.multi_reduction <add>, %1028, %cst_308 [1, 2] : vector<1x7x8xf32> to vector<1xf32>
    %1030 = vector.shape_cast %1029 : vector<1xf32> to vector<1x1x1xf32>
    %1031 = vector.extract %1030[0, 0, 0] : f32 from vector<1x1x1xf32>
    %c1_i32_309 = arith.constant 1 : i32
    %1032 = arith.addi %4, %c1_i32_309 : i32
    %1033 = arith.index_cast %1032 : i32 to index
    %c19_310 = arith.constant 19 : index
    %1034 = memref.load %arg7[%1033, %c19_310] : memref<2x54xf32, #tpu.memory_space<smem>>
    memref.store %1031, %arg7[%1033, %c19_310] : memref<2x54xf32, #tpu.memory_space<smem>>
    %1035 = arith.mulf %997, %1004 : vector<7x8xf32>
    %1036 = vector.shape_cast %1035 : vector<7x8xf32> to vector<1x7x8xf32>
    %cst_311 = arith.constant dense<0.000000e+00> : vector<1xf32>
    %1037 = vector.multi_reduction <add>, %1036, %cst_311 [1, 2] : vector<1x7x8xf32> to vector<1xf32>
    %1038 = vector.shape_cast %1037 : vector<1xf32> to vector<1x1x1xf32>
    %1039 = vector.extract %1038[0, 0, 0] : f32 from vector<1x1x1xf32>
    %c1_i32_312 = arith.constant 1 : i32
    %1040 = arith.addi %4, %c1_i32_312 : i32
    %1041 = arith.index_cast %1040 : i32 to index
    %c20_313 = arith.constant 20 : index
    %1042 = memref.load %arg7[%1041, %c20_313] : memref<2x54xf32, #tpu.memory_space<smem>>
    memref.store %1039, %arg7[%1041, %c20_313] : memref<2x54xf32, #tpu.memory_space<smem>>
    %1043 = arith.mulf %983, %1011 : vector<7x8xf32>
    %1044 = vector.shape_cast %1043 : vector<7x8xf32> to vector<1x7x8xf32>
    %cst_314 = arith.constant dense<0.000000e+00> : vector<1xf32>
    %1045 = vector.multi_reduction <add>, %1044, %cst_314 [1, 2] : vector<1x7x8xf32> to vector<1xf32>
    %1046 = vector.shape_cast %1045 : vector<1xf32> to vector<1x1x1xf32>
    %1047 = vector.extract %1046[0, 0, 0] : f32 from vector<1x1x1xf32>
    %c1_i32_315 = arith.constant 1 : i32
    %1048 = arith.addi %4, %c1_i32_315 : i32
    %1049 = arith.index_cast %1048 : i32 to index
    %c21_316 = arith.constant 21 : index
    %1050 = memref.load %arg7[%1049, %c21_316] : memref<2x54xf32, #tpu.memory_space<smem>>
    memref.store %1047, %arg7[%1049, %c21_316] : memref<2x54xf32, #tpu.memory_space<smem>>
    %1051 = arith.mulf %990, %1011 : vector<7x8xf32>
    %1052 = vector.shape_cast %1051 : vector<7x8xf32> to vector<1x7x8xf32>
    %cst_317 = arith.constant dense<0.000000e+00> : vector<1xf32>
    %1053 = vector.multi_reduction <add>, %1052, %cst_317 [1, 2] : vector<1x7x8xf32> to vector<1xf32>
    %1054 = vector.shape_cast %1053 : vector<1xf32> to vector<1x1x1xf32>
    %1055 = vector.extract %1054[0, 0, 0] : f32 from vector<1x1x1xf32>
    %c1_i32_318 = arith.constant 1 : i32
    %1056 = arith.addi %4, %c1_i32_318 : i32
    %1057 = arith.index_cast %1056 : i32 to index
    %c22_319 = arith.constant 22 : index
    %1058 = memref.load %arg7[%1057, %c22_319] : memref<2x54xf32, #tpu.memory_space<smem>>
    memref.store %1055, %arg7[%1057, %c22_319] : memref<2x54xf32, #tpu.memory_space<smem>>
    %1059 = arith.mulf %997, %1011 : vector<7x8xf32>
    %1060 = vector.shape_cast %1059 : vector<7x8xf32> to vector<1x7x8xf32>
    %cst_320 = arith.constant dense<0.000000e+00> : vector<1xf32>
    %1061 = vector.multi_reduction <add>, %1060, %cst_320 [1, 2] : vector<1x7x8xf32> to vector<1xf32>
    %1062 = vector.shape_cast %1061 : vector<1xf32> to vector<1x1x1xf32>
    %1063 = vector.extract %1062[0, 0, 0] : f32 from vector<1x1x1xf32>
    %c1_i32_321 = arith.constant 1 : i32
    %1064 = arith.addi %4, %c1_i32_321 : i32
    %1065 = arith.index_cast %1064 : i32 to index
    %c23_322 = arith.constant 23 : index
    %1066 = memref.load %arg7[%1065, %c23_322] : memref<2x54xf32, #tpu.memory_space<smem>>
    memref.store %1063, %arg7[%1065, %c23_322] : memref<2x54xf32, #tpu.memory_space<smem>>
    %1067 = arith.mulf %983, %1018 : vector<7x8xf32>
    %1068 = vector.shape_cast %1067 : vector<7x8xf32> to vector<1x7x8xf32>
    %cst_323 = arith.constant dense<0.000000e+00> : vector<1xf32>
    %1069 = vector.multi_reduction <add>, %1068, %cst_323 [1, 2] : vector<1x7x8xf32> to vector<1xf32>
    %1070 = vector.shape_cast %1069 : vector<1xf32> to vector<1x1x1xf32>
    %1071 = vector.extract %1070[0, 0, 0] : f32 from vector<1x1x1xf32>
    %c1_i32_324 = arith.constant 1 : i32
    %1072 = arith.addi %4, %c1_i32_324 : i32
    %1073 = arith.index_cast %1072 : i32 to index
    %c24_325 = arith.constant 24 : index
    %1074 = memref.load %arg7[%1073, %c24_325] : memref<2x54xf32, #tpu.memory_space<smem>>
    memref.store %1071, %arg7[%1073, %c24_325] : memref<2x54xf32, #tpu.memory_space<smem>>
    %1075 = arith.mulf %990, %1018 : vector<7x8xf32>
    %1076 = vector.shape_cast %1075 : vector<7x8xf32> to vector<1x7x8xf32>
    %cst_326 = arith.constant dense<0.000000e+00> : vector<1xf32>
    %1077 = vector.multi_reduction <add>, %1076, %cst_326 [1, 2] : vector<1x7x8xf32> to vector<1xf32>
    %1078 = vector.shape_cast %1077 : vector<1xf32> to vector<1x1x1xf32>
    %1079 = vector.extract %1078[0, 0, 0] : f32 from vector<1x1x1xf32>
    %c1_i32_327 = arith.constant 1 : i32
    %1080 = arith.addi %4, %c1_i32_327 : i32
    %1081 = arith.index_cast %1080 : i32 to index
    %c25_328 = arith.constant 25 : index
    %1082 = memref.load %arg7[%1081, %c25_328] : memref<2x54xf32, #tpu.memory_space<smem>>
    memref.store %1079, %arg7[%1081, %c25_328] : memref<2x54xf32, #tpu.memory_space<smem>>
    %1083 = arith.mulf %997, %1018 : vector<7x8xf32>
    %1084 = vector.shape_cast %1083 : vector<7x8xf32> to vector<1x7x8xf32>
    %cst_329 = arith.constant dense<0.000000e+00> : vector<1xf32>
    %1085 = vector.multi_reduction <add>, %1084, %cst_329 [1, 2] : vector<1x7x8xf32> to vector<1xf32>
    %1086 = vector.shape_cast %1085 : vector<1xf32> to vector<1x1x1xf32>
    %1087 = vector.extract %1086[0, 0, 0] : f32 from vector<1x1x1xf32>
    %c1_i32_330 = arith.constant 1 : i32
    %1088 = arith.addi %4, %c1_i32_330 : i32
    %1089 = arith.index_cast %1088 : i32 to index
    %c26_331 = arith.constant 26 : index
    %1090 = memref.load %arg7[%1089, %c26_331] : memref<2x54xf32, #tpu.memory_space<smem>>
    memref.store %1087, %arg7[%1089, %c26_331] : memref<2x54xf32, #tpu.memory_space<smem>>
    %1091 = vector.extract_strided_slice %966 {offsets = [0, 1], sizes = [8, 7], strides = [1, 1]} : vector<8x8xf32> to vector<8x7xf32>
    %1092 = vector.extract_strided_slice %966 {offsets = [0, 0], sizes = [8, 7], strides = [1, 1]} : vector<8x8xf32> to vector<8x7xf32>
    %1093 = arith.subf %1091, %1092 : vector<8x7xf32>
    %cst_332 = arith.constant 5.000000e-01 : f32
    %1094 = vector.broadcast %cst_332 : f32 to vector<8x7xf32>
    %1095 = arith.mulf %1094, %1093 : vector<8x7xf32>
    %1096 = math.tanh %1095 : vector<8x7xf32>
    %1097 = arith.mulf %1096, %1096 : vector<8x7xf32>
    %1098 = vector.extract_strided_slice %968 {offsets = [0, 1], sizes = [8, 7], strides = [1, 1]} : vector<8x8xf32> to vector<8x7xf32>
    %1099 = vector.extract_strided_slice %968 {offsets = [0, 0], sizes = [8, 7], strides = [1, 1]} : vector<8x8xf32> to vector<8x7xf32>
    %1100 = arith.subf %1098, %1099 : vector<8x7xf32>
    %cst_333 = arith.constant 5.000000e-01 : f32
    %1101 = vector.broadcast %cst_333 : f32 to vector<8x7xf32>
    %1102 = arith.mulf %1101, %1100 : vector<8x7xf32>
    %1103 = math.tanh %1102 : vector<8x7xf32>
    %1104 = arith.mulf %1103, %1103 : vector<8x7xf32>
    %1105 = vector.extract_strided_slice %970 {offsets = [0, 1], sizes = [8, 7], strides = [1, 1]} : vector<8x8xf32> to vector<8x7xf32>
    %1106 = vector.extract_strided_slice %970 {offsets = [0, 0], sizes = [8, 7], strides = [1, 1]} : vector<8x8xf32> to vector<8x7xf32>
    %1107 = arith.subf %1105, %1106 : vector<8x7xf32>
    %cst_334 = arith.constant 5.000000e-01 : f32
    %1108 = vector.broadcast %cst_334 : f32 to vector<8x7xf32>
    %1109 = arith.mulf %1108, %1107 : vector<8x7xf32>
    %1110 = math.tanh %1109 : vector<8x7xf32>
    %1111 = arith.mulf %1110, %1110 : vector<8x7xf32>
    %1112 = vector.extract_strided_slice %972 {offsets = [0, 1], sizes = [8, 7], strides = [1, 1]} : vector<8x8xf32> to vector<8x7xf32>
    %1113 = vector.extract_strided_slice %972 {offsets = [0, 0], sizes = [8, 7], strides = [1, 1]} : vector<8x8xf32> to vector<8x7xf32>
    %1114 = arith.subf %1112, %1113 : vector<8x7xf32>
    %cst_335 = arith.constant 5.000000e-01 : f32
    %1115 = vector.broadcast %cst_335 : f32 to vector<8x7xf32>
    %1116 = arith.mulf %1115, %1114 : vector<8x7xf32>
    %1117 = math.tanh %1116 : vector<8x7xf32>
    %1118 = arith.mulf %1117, %1117 : vector<8x7xf32>
    %1119 = vector.extract_strided_slice %974 {offsets = [0, 1], sizes = [8, 7], strides = [1, 1]} : vector<8x8xf32> to vector<8x7xf32>
    %1120 = vector.extract_strided_slice %974 {offsets = [0, 0], sizes = [8, 7], strides = [1, 1]} : vector<8x8xf32> to vector<8x7xf32>
    %1121 = arith.subf %1119, %1120 : vector<8x7xf32>
    %cst_336 = arith.constant 5.000000e-01 : f32
    %1122 = vector.broadcast %cst_336 : f32 to vector<8x7xf32>
    %1123 = arith.mulf %1122, %1121 : vector<8x7xf32>
    %1124 = math.tanh %1123 : vector<8x7xf32>
    %1125 = arith.mulf %1124, %1124 : vector<8x7xf32>
    %1126 = vector.extract_strided_slice %976 {offsets = [0, 1], sizes = [8, 7], strides = [1, 1]} : vector<8x8xf32> to vector<8x7xf32>
    %1127 = vector.extract_strided_slice %976 {offsets = [0, 0], sizes = [8, 7], strides = [1, 1]} : vector<8x8xf32> to vector<8x7xf32>
    %1128 = arith.subf %1126, %1127 : vector<8x7xf32>
    %cst_337 = arith.constant 5.000000e-01 : f32
    %1129 = vector.broadcast %cst_337 : f32 to vector<8x7xf32>
    %1130 = arith.mulf %1129, %1128 : vector<8x7xf32>
    %1131 = math.tanh %1130 : vector<8x7xf32>
    %1132 = arith.mulf %1131, %1131 : vector<8x7xf32>
    %1133 = arith.mulf %1097, %1118 : vector<8x7xf32>
    %1134 = vector.shape_cast %1133 : vector<8x7xf32> to vector<1x8x7xf32>
    %cst_338 = arith.constant dense<0.000000e+00> : vector<1xf32>
    %1135 = vector.multi_reduction <add>, %1134, %cst_338 [1, 2] : vector<1x8x7xf32> to vector<1xf32>
    %1136 = vector.shape_cast %1135 : vector<1xf32> to vector<1x1x1xf32>
    %1137 = vector.extract %1136[0, 0, 0] : f32 from vector<1x1x1xf32>
    %c1_i32_339 = arith.constant 1 : i32
    %1138 = arith.addi %4, %c1_i32_339 : i32
    %1139 = arith.index_cast %1138 : i32 to index
    %c27_340 = arith.constant 27 : index
    %1140 = memref.load %arg7[%1139, %c27_340] : memref<2x54xf32, #tpu.memory_space<smem>>
    memref.store %1137, %arg7[%1139, %c27_340] : memref<2x54xf32, #tpu.memory_space<smem>>
    %1141 = arith.mulf %1104, %1118 : vector<8x7xf32>
    %1142 = vector.shape_cast %1141 : vector<8x7xf32> to vector<1x8x7xf32>
    %cst_341 = arith.constant dense<0.000000e+00> : vector<1xf32>
    %1143 = vector.multi_reduction <add>, %1142, %cst_341 [1, 2] : vector<1x8x7xf32> to vector<1xf32>
    %1144 = vector.shape_cast %1143 : vector<1xf32> to vector<1x1x1xf32>
    %1145 = vector.extract %1144[0, 0, 0] : f32 from vector<1x1x1xf32>
    %c1_i32_342 = arith.constant 1 : i32
    %1146 = arith.addi %4, %c1_i32_342 : i32
    %1147 = arith.index_cast %1146 : i32 to index
    %c28_343 = arith.constant 28 : index
    %1148 = memref.load %arg7[%1147, %c28_343] : memref<2x54xf32, #tpu.memory_space<smem>>
    memref.store %1145, %arg7[%1147, %c28_343] : memref<2x54xf32, #tpu.memory_space<smem>>
    %1149 = arith.mulf %1111, %1118 : vector<8x7xf32>
    %1150 = vector.shape_cast %1149 : vector<8x7xf32> to vector<1x8x7xf32>
    %cst_344 = arith.constant dense<0.000000e+00> : vector<1xf32>
    %1151 = vector.multi_reduction <add>, %1150, %cst_344 [1, 2] : vector<1x8x7xf32> to vector<1xf32>
    %1152 = vector.shape_cast %1151 : vector<1xf32> to vector<1x1x1xf32>
    %1153 = vector.extract %1152[0, 0, 0] : f32 from vector<1x1x1xf32>
    %c1_i32_345 = arith.constant 1 : i32
    %1154 = arith.addi %4, %c1_i32_345 : i32
    %1155 = arith.index_cast %1154 : i32 to index
    %c29_346 = arith.constant 29 : index
    %1156 = memref.load %arg7[%1155, %c29_346] : memref<2x54xf32, #tpu.memory_space<smem>>
    memref.store %1153, %arg7[%1155, %c29_346] : memref<2x54xf32, #tpu.memory_space<smem>>
    %1157 = arith.mulf %1097, %1125 : vector<8x7xf32>
    %1158 = vector.shape_cast %1157 : vector<8x7xf32> to vector<1x8x7xf32>
    %cst_347 = arith.constant dense<0.000000e+00> : vector<1xf32>
    %1159 = vector.multi_reduction <add>, %1158, %cst_347 [1, 2] : vector<1x8x7xf32> to vector<1xf32>
    %1160 = vector.shape_cast %1159 : vector<1xf32> to vector<1x1x1xf32>
    %1161 = vector.extract %1160[0, 0, 0] : f32 from vector<1x1x1xf32>
    %c1_i32_348 = arith.constant 1 : i32
    %1162 = arith.addi %4, %c1_i32_348 : i32
    %1163 = arith.index_cast %1162 : i32 to index
    %c30_349 = arith.constant 30 : index
    %1164 = memref.load %arg7[%1163, %c30_349] : memref<2x54xf32, #tpu.memory_space<smem>>
    memref.store %1161, %arg7[%1163, %c30_349] : memref<2x54xf32, #tpu.memory_space<smem>>
    %1165 = arith.mulf %1104, %1125 : vector<8x7xf32>
    %1166 = vector.shape_cast %1165 : vector<8x7xf32> to vector<1x8x7xf32>
    %cst_350 = arith.constant dense<0.000000e+00> : vector<1xf32>
    %1167 = vector.multi_reduction <add>, %1166, %cst_350 [1, 2] : vector<1x8x7xf32> to vector<1xf32>
    %1168 = vector.shape_cast %1167 : vector<1xf32> to vector<1x1x1xf32>
    %1169 = vector.extract %1168[0, 0, 0] : f32 from vector<1x1x1xf32>
    %c1_i32_351 = arith.constant 1 : i32
    %1170 = arith.addi %4, %c1_i32_351 : i32
    %1171 = arith.index_cast %1170 : i32 to index
    %c31_352 = arith.constant 31 : index
    %1172 = memref.load %arg7[%1171, %c31_352] : memref<2x54xf32, #tpu.memory_space<smem>>
    memref.store %1169, %arg7[%1171, %c31_352] : memref<2x54xf32, #tpu.memory_space<smem>>
    %1173 = arith.mulf %1111, %1125 : vector<8x7xf32>
    %1174 = vector.shape_cast %1173 : vector<8x7xf32> to vector<1x8x7xf32>
    %cst_353 = arith.constant dense<0.000000e+00> : vector<1xf32>
    %1175 = vector.multi_reduction <add>, %1174, %cst_353 [1, 2] : vector<1x8x7xf32> to vector<1xf32>
    %1176 = vector.shape_cast %1175 : vector<1xf32> to vector<1x1x1xf32>
    %1177 = vector.extract %1176[0, 0, 0] : f32 from vector<1x1x1xf32>
    %c1_i32_354 = arith.constant 1 : i32
    %1178 = arith.addi %4, %c1_i32_354 : i32
    %1179 = arith.index_cast %1178 : i32 to index
    %c32_355 = arith.constant 32 : index
    %1180 = memref.load %arg7[%1179, %c32_355] : memref<2x54xf32, #tpu.memory_space<smem>>
    memref.store %1177, %arg7[%1179, %c32_355] : memref<2x54xf32, #tpu.memory_space<smem>>
    %1181 = arith.mulf %1097, %1132 : vector<8x7xf32>
    %1182 = vector.shape_cast %1181 : vector<8x7xf32> to vector<1x8x7xf32>
    %cst_356 = arith.constant dense<0.000000e+00> : vector<1xf32>
    %1183 = vector.multi_reduction <add>, %1182, %cst_356 [1, 2] : vector<1x8x7xf32> to vector<1xf32>
    %1184 = vector.shape_cast %1183 : vector<1xf32> to vector<1x1x1xf32>
    %1185 = vector.extract %1184[0, 0, 0] : f32 from vector<1x1x1xf32>
    %c1_i32_357 = arith.constant 1 : i32
    %1186 = arith.addi %4, %c1_i32_357 : i32
    %1187 = arith.index_cast %1186 : i32 to index
    %c33_358 = arith.constant 33 : index
    %1188 = memref.load %arg7[%1187, %c33_358] : memref<2x54xf32, #tpu.memory_space<smem>>
    memref.store %1185, %arg7[%1187, %c33_358] : memref<2x54xf32, #tpu.memory_space<smem>>
    %1189 = arith.mulf %1104, %1132 : vector<8x7xf32>
    %1190 = vector.shape_cast %1189 : vector<8x7xf32> to vector<1x8x7xf32>
    %cst_359 = arith.constant dense<0.000000e+00> : vector<1xf32>
    %1191 = vector.multi_reduction <add>, %1190, %cst_359 [1, 2] : vector<1x8x7xf32> to vector<1xf32>
    %1192 = vector.shape_cast %1191 : vector<1xf32> to vector<1x1x1xf32>
    %1193 = vector.extract %1192[0, 0, 0] : f32 from vector<1x1x1xf32>
    %c1_i32_360 = arith.constant 1 : i32
    %1194 = arith.addi %4, %c1_i32_360 : i32
    %1195 = arith.index_cast %1194 : i32 to index
    %c34_361 = arith.constant 34 : index
    %1196 = memref.load %arg7[%1195, %c34_361] : memref<2x54xf32, #tpu.memory_space<smem>>
    memref.store %1193, %arg7[%1195, %c34_361] : memref<2x54xf32, #tpu.memory_space<smem>>
    %1197 = arith.mulf %1111, %1132 : vector<8x7xf32>
    %1198 = vector.shape_cast %1197 : vector<8x7xf32> to vector<1x8x7xf32>
    %cst_362 = arith.constant dense<0.000000e+00> : vector<1xf32>
    %1199 = vector.multi_reduction <add>, %1198, %cst_362 [1, 2] : vector<1x8x7xf32> to vector<1xf32>
    %1200 = vector.shape_cast %1199 : vector<1xf32> to vector<1x1x1xf32>
    %1201 = vector.extract %1200[0, 0, 0] : f32 from vector<1x1x1xf32>
    %c1_i32_363 = arith.constant 1 : i32
    %1202 = arith.addi %4, %c1_i32_363 : i32
    %1203 = arith.index_cast %1202 : i32 to index
    %c35_364 = arith.constant 35 : index
    %1204 = memref.load %arg7[%1203, %c35_364] : memref<2x54xf32, #tpu.memory_space<smem>>
    memref.store %1201, %arg7[%1203, %c35_364] : memref<2x54xf32, #tpu.memory_space<smem>>
    %cst_365 = arith.constant dense<0.000000e+00> : vector<8x4xf32>
    %1205 = tpu.matmul %966, %3, %cst_365 {dimension_numbers = #tpu.dot_dimension_numbers<[1], [0], [0], [1], [0, 0, 1, 1], [], []>} : vector<8x8xf32>, vector<8x4xf32>, vector<8x4xf32> -> vector<8x4xf32>
    %cst_366 = arith.constant dense<0.000000e+00> : vector<4x4xf32>
    %1206 = tpu.matmul %2, %1205, %cst_366 {dimension_numbers = #tpu.dot_dimension_numbers<[1], [0], [0], [1], [0, 0, 1, 1], [], []>} : vector<4x8xf32>, vector<8x4xf32>, vector<4x4xf32> -> vector<4x4xf32>
    %cst_367 = arith.constant dense<0.000000e+00> : vector<8x4xf32>
    %1207 = tpu.matmul %968, %3, %cst_367 {dimension_numbers = #tpu.dot_dimension_numbers<[1], [0], [0], [1], [0, 0, 1, 1], [], []>} : vector<8x8xf32>, vector<8x4xf32>, vector<8x4xf32> -> vector<8x4xf32>
    %cst_368 = arith.constant dense<0.000000e+00> : vector<4x4xf32>
    %1208 = tpu.matmul %2, %1207, %cst_368 {dimension_numbers = #tpu.dot_dimension_numbers<[1], [0], [0], [1], [0, 0, 1, 1], [], []>} : vector<4x8xf32>, vector<8x4xf32>, vector<4x4xf32> -> vector<4x4xf32>
    %cst_369 = arith.constant dense<0.000000e+00> : vector<8x4xf32>
    %1209 = tpu.matmul %970, %3, %cst_369 {dimension_numbers = #tpu.dot_dimension_numbers<[1], [0], [0], [1], [0, 0, 1, 1], [], []>} : vector<8x8xf32>, vector<8x4xf32>, vector<8x4xf32> -> vector<8x4xf32>
    %cst_370 = arith.constant dense<0.000000e+00> : vector<4x4xf32>
    %1210 = tpu.matmul %2, %1209, %cst_370 {dimension_numbers = #tpu.dot_dimension_numbers<[1], [0], [0], [1], [0, 0, 1, 1], [], []>} : vector<4x8xf32>, vector<8x4xf32>, vector<4x4xf32> -> vector<4x4xf32>
    %cst_371 = arith.constant dense<0.000000e+00> : vector<8x4xf32>
    %1211 = tpu.matmul %972, %3, %cst_371 {dimension_numbers = #tpu.dot_dimension_numbers<[1], [0], [0], [1], [0, 0, 1, 1], [], []>} : vector<8x8xf32>, vector<8x4xf32>, vector<8x4xf32> -> vector<8x4xf32>
    %cst_372 = arith.constant dense<0.000000e+00> : vector<4x4xf32>
    %1212 = tpu.matmul %2, %1211, %cst_372 {dimension_numbers = #tpu.dot_dimension_numbers<[1], [0], [0], [1], [0, 0, 1, 1], [], []>} : vector<4x8xf32>, vector<8x4xf32>, vector<4x4xf32> -> vector<4x4xf32>
    %cst_373 = arith.constant dense<0.000000e+00> : vector<8x4xf32>
    %1213 = tpu.matmul %974, %3, %cst_373 {dimension_numbers = #tpu.dot_dimension_numbers<[1], [0], [0], [1], [0, 0, 1, 1], [], []>} : vector<8x8xf32>, vector<8x4xf32>, vector<8x4xf32> -> vector<8x4xf32>
    %cst_374 = arith.constant dense<0.000000e+00> : vector<4x4xf32>
    %1214 = tpu.matmul %2, %1213, %cst_374 {dimension_numbers = #tpu.dot_dimension_numbers<[1], [0], [0], [1], [0, 0, 1, 1], [], []>} : vector<4x8xf32>, vector<8x4xf32>, vector<4x4xf32> -> vector<4x4xf32>
    %cst_375 = arith.constant dense<0.000000e+00> : vector<8x4xf32>
    %1215 = tpu.matmul %976, %3, %cst_375 {dimension_numbers = #tpu.dot_dimension_numbers<[1], [0], [0], [1], [0, 0, 1, 1], [], []>} : vector<8x8xf32>, vector<8x4xf32>, vector<8x4xf32> -> vector<8x4xf32>
    %cst_376 = arith.constant dense<0.000000e+00> : vector<4x4xf32>
    %1216 = tpu.matmul %2, %1215, %cst_376 {dimension_numbers = #tpu.dot_dimension_numbers<[1], [0], [0], [1], [0, 0, 1, 1], [], []>} : vector<4x8xf32>, vector<8x4xf32>, vector<4x4xf32> -> vector<4x4xf32>
    %1217 = vector.extract_strided_slice %1206 {offsets = [1, 0], sizes = [3, 4], strides = [1, 1]} : vector<4x4xf32> to vector<3x4xf32>
    %1218 = vector.extract_strided_slice %1206 {offsets = [0, 0], sizes = [3, 4], strides = [1, 1]} : vector<4x4xf32> to vector<3x4xf32>
    %1219 = arith.subf %1217, %1218 : vector<3x4xf32>
    %cst_377 = arith.constant 5.000000e-01 : f32
    %1220 = vector.broadcast %cst_377 : f32 to vector<3x4xf32>
    %1221 = arith.mulf %1220, %1219 : vector<3x4xf32>
    %1222 = math.tanh %1221 : vector<3x4xf32>
    %1223 = arith.mulf %1222, %1222 : vector<3x4xf32>
    %1224 = vector.extract_strided_slice %1208 {offsets = [1, 0], sizes = [3, 4], strides = [1, 1]} : vector<4x4xf32> to vector<3x4xf32>
    %1225 = vector.extract_strided_slice %1208 {offsets = [0, 0], sizes = [3, 4], strides = [1, 1]} : vector<4x4xf32> to vector<3x4xf32>
    %1226 = arith.subf %1224, %1225 : vector<3x4xf32>
    %cst_378 = arith.constant 5.000000e-01 : f32
    %1227 = vector.broadcast %cst_378 : f32 to vector<3x4xf32>
    %1228 = arith.mulf %1227, %1226 : vector<3x4xf32>
    %1229 = math.tanh %1228 : vector<3x4xf32>
    %1230 = arith.mulf %1229, %1229 : vector<3x4xf32>
    %1231 = vector.extract_strided_slice %1210 {offsets = [1, 0], sizes = [3, 4], strides = [1, 1]} : vector<4x4xf32> to vector<3x4xf32>
    %1232 = vector.extract_strided_slice %1210 {offsets = [0, 0], sizes = [3, 4], strides = [1, 1]} : vector<4x4xf32> to vector<3x4xf32>
    %1233 = arith.subf %1231, %1232 : vector<3x4xf32>
    %cst_379 = arith.constant 5.000000e-01 : f32
    %1234 = vector.broadcast %cst_379 : f32 to vector<3x4xf32>
    %1235 = arith.mulf %1234, %1233 : vector<3x4xf32>
    %1236 = math.tanh %1235 : vector<3x4xf32>
    %1237 = arith.mulf %1236, %1236 : vector<3x4xf32>
    %1238 = vector.extract_strided_slice %1212 {offsets = [1, 0], sizes = [3, 4], strides = [1, 1]} : vector<4x4xf32> to vector<3x4xf32>
    %1239 = vector.extract_strided_slice %1212 {offsets = [0, 0], sizes = [3, 4], strides = [1, 1]} : vector<4x4xf32> to vector<3x4xf32>
    %1240 = arith.subf %1238, %1239 : vector<3x4xf32>
    %cst_380 = arith.constant 5.000000e-01 : f32
    %1241 = vector.broadcast %cst_380 : f32 to vector<3x4xf32>
    %1242 = arith.mulf %1241, %1240 : vector<3x4xf32>
    %1243 = math.tanh %1242 : vector<3x4xf32>
    %1244 = arith.mulf %1243, %1243 : vector<3x4xf32>
    %1245 = vector.extract_strided_slice %1214 {offsets = [1, 0], sizes = [3, 4], strides = [1, 1]} : vector<4x4xf32> to vector<3x4xf32>
    %1246 = vector.extract_strided_slice %1214 {offsets = [0, 0], sizes = [3, 4], strides = [1, 1]} : vector<4x4xf32> to vector<3x4xf32>
    %1247 = arith.subf %1245, %1246 : vector<3x4xf32>
    %cst_381 = arith.constant 5.000000e-01 : f32
    %1248 = vector.broadcast %cst_381 : f32 to vector<3x4xf32>
    %1249 = arith.mulf %1248, %1247 : vector<3x4xf32>
    %1250 = math.tanh %1249 : vector<3x4xf32>
    %1251 = arith.mulf %1250, %1250 : vector<3x4xf32>
    %1252 = vector.extract_strided_slice %1216 {offsets = [1, 0], sizes = [3, 4], strides = [1, 1]} : vector<4x4xf32> to vector<3x4xf32>
    %1253 = vector.extract_strided_slice %1216 {offsets = [0, 0], sizes = [3, 4], strides = [1, 1]} : vector<4x4xf32> to vector<3x4xf32>
    %1254 = arith.subf %1252, %1253 : vector<3x4xf32>
    %cst_382 = arith.constant 5.000000e-01 : f32
    %1255 = vector.broadcast %cst_382 : f32 to vector<3x4xf32>
    %1256 = arith.mulf %1255, %1254 : vector<3x4xf32>
    %1257 = math.tanh %1256 : vector<3x4xf32>
    %1258 = arith.mulf %1257, %1257 : vector<3x4xf32>
    %1259 = arith.mulf %1223, %1244 : vector<3x4xf32>
    %1260 = vector.shape_cast %1259 : vector<3x4xf32> to vector<1x3x4xf32>
    %cst_383 = arith.constant dense<0.000000e+00> : vector<1xf32>
    %1261 = vector.multi_reduction <add>, %1260, %cst_383 [1, 2] : vector<1x3x4xf32> to vector<1xf32>
    %1262 = vector.shape_cast %1261 : vector<1xf32> to vector<1x1x1xf32>
    %1263 = vector.extract %1262[0, 0, 0] : f32 from vector<1x1x1xf32>
    %c1_i32_384 = arith.constant 1 : i32
    %1264 = arith.addi %4, %c1_i32_384 : i32
    %1265 = arith.index_cast %1264 : i32 to index
    %c36_385 = arith.constant 36 : index
    %1266 = memref.load %arg7[%1265, %c36_385] : memref<2x54xf32, #tpu.memory_space<smem>>
    memref.store %1263, %arg7[%1265, %c36_385] : memref<2x54xf32, #tpu.memory_space<smem>>
    %1267 = arith.mulf %1230, %1244 : vector<3x4xf32>
    %1268 = vector.shape_cast %1267 : vector<3x4xf32> to vector<1x3x4xf32>
    %cst_386 = arith.constant dense<0.000000e+00> : vector<1xf32>
    %1269 = vector.multi_reduction <add>, %1268, %cst_386 [1, 2] : vector<1x3x4xf32> to vector<1xf32>
    %1270 = vector.shape_cast %1269 : vector<1xf32> to vector<1x1x1xf32>
    %1271 = vector.extract %1270[0, 0, 0] : f32 from vector<1x1x1xf32>
    %c1_i32_387 = arith.constant 1 : i32
    %1272 = arith.addi %4, %c1_i32_387 : i32
    %1273 = arith.index_cast %1272 : i32 to index
    %c37_388 = arith.constant 37 : index
    %1274 = memref.load %arg7[%1273, %c37_388] : memref<2x54xf32, #tpu.memory_space<smem>>
    memref.store %1271, %arg7[%1273, %c37_388] : memref<2x54xf32, #tpu.memory_space<smem>>
    %1275 = arith.mulf %1237, %1244 : vector<3x4xf32>
    %1276 = vector.shape_cast %1275 : vector<3x4xf32> to vector<1x3x4xf32>
    %cst_389 = arith.constant dense<0.000000e+00> : vector<1xf32>
    %1277 = vector.multi_reduction <add>, %1276, %cst_389 [1, 2] : vector<1x3x4xf32> to vector<1xf32>
    %1278 = vector.shape_cast %1277 : vector<1xf32> to vector<1x1x1xf32>
    %1279 = vector.extract %1278[0, 0, 0] : f32 from vector<1x1x1xf32>
    %c1_i32_390 = arith.constant 1 : i32
    %1280 = arith.addi %4, %c1_i32_390 : i32
    %1281 = arith.index_cast %1280 : i32 to index
    %c38_391 = arith.constant 38 : index
    %1282 = memref.load %arg7[%1281, %c38_391] : memref<2x54xf32, #tpu.memory_space<smem>>
    memref.store %1279, %arg7[%1281, %c38_391] : memref<2x54xf32, #tpu.memory_space<smem>>
    %1283 = arith.mulf %1223, %1251 : vector<3x4xf32>
    %1284 = vector.shape_cast %1283 : vector<3x4xf32> to vector<1x3x4xf32>
    %cst_392 = arith.constant dense<0.000000e+00> : vector<1xf32>
    %1285 = vector.multi_reduction <add>, %1284, %cst_392 [1, 2] : vector<1x3x4xf32> to vector<1xf32>
    %1286 = vector.shape_cast %1285 : vector<1xf32> to vector<1x1x1xf32>
    %1287 = vector.extract %1286[0, 0, 0] : f32 from vector<1x1x1xf32>
    %c1_i32_393 = arith.constant 1 : i32
    %1288 = arith.addi %4, %c1_i32_393 : i32
    %1289 = arith.index_cast %1288 : i32 to index
    %c39_394 = arith.constant 39 : index
    %1290 = memref.load %arg7[%1289, %c39_394] : memref<2x54xf32, #tpu.memory_space<smem>>
    memref.store %1287, %arg7[%1289, %c39_394] : memref<2x54xf32, #tpu.memory_space<smem>>
    %1291 = arith.mulf %1230, %1251 : vector<3x4xf32>
    %1292 = vector.shape_cast %1291 : vector<3x4xf32> to vector<1x3x4xf32>
    %cst_395 = arith.constant dense<0.000000e+00> : vector<1xf32>
    %1293 = vector.multi_reduction <add>, %1292, %cst_395 [1, 2] : vector<1x3x4xf32> to vector<1xf32>
    %1294 = vector.shape_cast %1293 : vector<1xf32> to vector<1x1x1xf32>
    %1295 = vector.extract %1294[0, 0, 0] : f32 from vector<1x1x1xf32>
    %c1_i32_396 = arith.constant 1 : i32
    %1296 = arith.addi %4, %c1_i32_396 : i32
    %1297 = arith.index_cast %1296 : i32 to index
    %c40_397 = arith.constant 40 : index
    %1298 = memref.load %arg7[%1297, %c40_397] : memref<2x54xf32, #tpu.memory_space<smem>>
    memref.store %1295, %arg7[%1297, %c40_397] : memref<2x54xf32, #tpu.memory_space<smem>>
    %1299 = arith.mulf %1237, %1251 : vector<3x4xf32>
    %1300 = vector.shape_cast %1299 : vector<3x4xf32> to vector<1x3x4xf32>
    %cst_398 = arith.constant dense<0.000000e+00> : vector<1xf32>
    %1301 = vector.multi_reduction <add>, %1300, %cst_398 [1, 2] : vector<1x3x4xf32> to vector<1xf32>
    %1302 = vector.shape_cast %1301 : vector<1xf32> to vector<1x1x1xf32>
    %1303 = vector.extract %1302[0, 0, 0] : f32 from vector<1x1x1xf32>
    %c1_i32_399 = arith.constant 1 : i32
    %1304 = arith.addi %4, %c1_i32_399 : i32
    %1305 = arith.index_cast %1304 : i32 to index
    %c41_400 = arith.constant 41 : index
    %1306 = memref.load %arg7[%1305, %c41_400] : memref<2x54xf32, #tpu.memory_space<smem>>
    memref.store %1303, %arg7[%1305, %c41_400] : memref<2x54xf32, #tpu.memory_space<smem>>
    %1307 = arith.mulf %1223, %1258 : vector<3x4xf32>
    %1308 = vector.shape_cast %1307 : vector<3x4xf32> to vector<1x3x4xf32>
    %cst_401 = arith.constant dense<0.000000e+00> : vector<1xf32>
    %1309 = vector.multi_reduction <add>, %1308, %cst_401 [1, 2] : vector<1x3x4xf32> to vector<1xf32>
    %1310 = vector.shape_cast %1309 : vector<1xf32> to vector<1x1x1xf32>
    %1311 = vector.extract %1310[0, 0, 0] : f32 from vector<1x1x1xf32>
    %c1_i32_402 = arith.constant 1 : i32
    %1312 = arith.addi %4, %c1_i32_402 : i32
    %1313 = arith.index_cast %1312 : i32 to index
    %c42_403 = arith.constant 42 : index
    %1314 = memref.load %arg7[%1313, %c42_403] : memref<2x54xf32, #tpu.memory_space<smem>>
    memref.store %1311, %arg7[%1313, %c42_403] : memref<2x54xf32, #tpu.memory_space<smem>>
    %1315 = arith.mulf %1230, %1258 : vector<3x4xf32>
    %1316 = vector.shape_cast %1315 : vector<3x4xf32> to vector<1x3x4xf32>
    %cst_404 = arith.constant dense<0.000000e+00> : vector<1xf32>
    %1317 = vector.multi_reduction <add>, %1316, %cst_404 [1, 2] : vector<1x3x4xf32> to vector<1xf32>
    %1318 = vector.shape_cast %1317 : vector<1xf32> to vector<1x1x1xf32>
    %1319 = vector.extract %1318[0, 0, 0] : f32 from vector<1x1x1xf32>
    %c1_i32_405 = arith.constant 1 : i32
    %1320 = arith.addi %4, %c1_i32_405 : i32
    %1321 = arith.index_cast %1320 : i32 to index
    %c43_406 = arith.constant 43 : index
    %1322 = memref.load %arg7[%1321, %c43_406] : memref<2x54xf32, #tpu.memory_space<smem>>
    memref.store %1319, %arg7[%1321, %c43_406] : memref<2x54xf32, #tpu.memory_space<smem>>
    %1323 = arith.mulf %1237, %1258 : vector<3x4xf32>
    %1324 = vector.shape_cast %1323 : vector<3x4xf32> to vector<1x3x4xf32>
    %cst_407 = arith.constant dense<0.000000e+00> : vector<1xf32>
    %1325 = vector.multi_reduction <add>, %1324, %cst_407 [1, 2] : vector<1x3x4xf32> to vector<1xf32>
    %1326 = vector.shape_cast %1325 : vector<1xf32> to vector<1x1x1xf32>
    %1327 = vector.extract %1326[0, 0, 0] : f32 from vector<1x1x1xf32>
    %c1_i32_408 = arith.constant 1 : i32
    %1328 = arith.addi %4, %c1_i32_408 : i32
    %1329 = arith.index_cast %1328 : i32 to index
    %c44_409 = arith.constant 44 : index
    %1330 = memref.load %arg7[%1329, %c44_409] : memref<2x54xf32, #tpu.memory_space<smem>>
    memref.store %1327, %arg7[%1329, %c44_409] : memref<2x54xf32, #tpu.memory_space<smem>>
    %1331 = vector.extract_strided_slice %1206 {offsets = [0, 1], sizes = [4, 3], strides = [1, 1]} : vector<4x4xf32> to vector<4x3xf32>
    %1332 = vector.extract_strided_slice %1206 {offsets = [0, 0], sizes = [4, 3], strides = [1, 1]} : vector<4x4xf32> to vector<4x3xf32>
    %1333 = arith.subf %1331, %1332 : vector<4x3xf32>
    %cst_410 = arith.constant 5.000000e-01 : f32
    %1334 = vector.broadcast %cst_410 : f32 to vector<4x3xf32>
    %1335 = arith.mulf %1334, %1333 : vector<4x3xf32>
    %1336 = math.tanh %1335 : vector<4x3xf32>
    %1337 = arith.mulf %1336, %1336 : vector<4x3xf32>
    %1338 = vector.extract_strided_slice %1208 {offsets = [0, 1], sizes = [4, 3], strides = [1, 1]} : vector<4x4xf32> to vector<4x3xf32>
    %1339 = vector.extract_strided_slice %1208 {offsets = [0, 0], sizes = [4, 3], strides = [1, 1]} : vector<4x4xf32> to vector<4x3xf32>
    %1340 = arith.subf %1338, %1339 : vector<4x3xf32>
    %cst_411 = arith.constant 5.000000e-01 : f32
    %1341 = vector.broadcast %cst_411 : f32 to vector<4x3xf32>
    %1342 = arith.mulf %1341, %1340 : vector<4x3xf32>
    %1343 = math.tanh %1342 : vector<4x3xf32>
    %1344 = arith.mulf %1343, %1343 : vector<4x3xf32>
    %1345 = vector.extract_strided_slice %1210 {offsets = [0, 1], sizes = [4, 3], strides = [1, 1]} : vector<4x4xf32> to vector<4x3xf32>
    %1346 = vector.extract_strided_slice %1210 {offsets = [0, 0], sizes = [4, 3], strides = [1, 1]} : vector<4x4xf32> to vector<4x3xf32>
    %1347 = arith.subf %1345, %1346 : vector<4x3xf32>
    %cst_412 = arith.constant 5.000000e-01 : f32
    %1348 = vector.broadcast %cst_412 : f32 to vector<4x3xf32>
    %1349 = arith.mulf %1348, %1347 : vector<4x3xf32>
    %1350 = math.tanh %1349 : vector<4x3xf32>
    %1351 = arith.mulf %1350, %1350 : vector<4x3xf32>
    %1352 = vector.extract_strided_slice %1212 {offsets = [0, 1], sizes = [4, 3], strides = [1, 1]} : vector<4x4xf32> to vector<4x3xf32>
    %1353 = vector.extract_strided_slice %1212 {offsets = [0, 0], sizes = [4, 3], strides = [1, 1]} : vector<4x4xf32> to vector<4x3xf32>
    %1354 = arith.subf %1352, %1353 : vector<4x3xf32>
    %cst_413 = arith.constant 5.000000e-01 : f32
    %1355 = vector.broadcast %cst_413 : f32 to vector<4x3xf32>
    %1356 = arith.mulf %1355, %1354 : vector<4x3xf32>
    %1357 = math.tanh %1356 : vector<4x3xf32>
    %1358 = arith.mulf %1357, %1357 : vector<4x3xf32>
    %1359 = vector.extract_strided_slice %1214 {offsets = [0, 1], sizes = [4, 3], strides = [1, 1]} : vector<4x4xf32> to vector<4x3xf32>
    %1360 = vector.extract_strided_slice %1214 {offsets = [0, 0], sizes = [4, 3], strides = [1, 1]} : vector<4x4xf32> to vector<4x3xf32>
    %1361 = arith.subf %1359, %1360 : vector<4x3xf32>
    %cst_414 = arith.constant 5.000000e-01 : f32
    %1362 = vector.broadcast %cst_414 : f32 to vector<4x3xf32>
    %1363 = arith.mulf %1362, %1361 : vector<4x3xf32>
    %1364 = math.tanh %1363 : vector<4x3xf32>
    %1365 = arith.mulf %1364, %1364 : vector<4x3xf32>
    %1366 = vector.extract_strided_slice %1216 {offsets = [0, 1], sizes = [4, 3], strides = [1, 1]} : vector<4x4xf32> to vector<4x3xf32>
    %1367 = vector.extract_strided_slice %1216 {offsets = [0, 0], sizes = [4, 3], strides = [1, 1]} : vector<4x4xf32> to vector<4x3xf32>
    %1368 = arith.subf %1366, %1367 : vector<4x3xf32>
    %cst_415 = arith.constant 5.000000e-01 : f32
    %1369 = vector.broadcast %cst_415 : f32 to vector<4x3xf32>
    %1370 = arith.mulf %1369, %1368 : vector<4x3xf32>
    %1371 = math.tanh %1370 : vector<4x3xf32>
    %1372 = arith.mulf %1371, %1371 : vector<4x3xf32>
    %1373 = arith.mulf %1337, %1358 : vector<4x3xf32>
    %1374 = vector.shape_cast %1373 : vector<4x3xf32> to vector<1x4x3xf32>
    %cst_416 = arith.constant dense<0.000000e+00> : vector<1xf32>
    %1375 = vector.multi_reduction <add>, %1374, %cst_416 [1, 2] : vector<1x4x3xf32> to vector<1xf32>
    %1376 = vector.shape_cast %1375 : vector<1xf32> to vector<1x1x1xf32>
    %1377 = vector.extract %1376[0, 0, 0] : f32 from vector<1x1x1xf32>
    %c1_i32_417 = arith.constant 1 : i32
    %1378 = arith.addi %4, %c1_i32_417 : i32
    %1379 = arith.index_cast %1378 : i32 to index
    %c45_418 = arith.constant 45 : index
    %1380 = memref.load %arg7[%1379, %c45_418] : memref<2x54xf32, #tpu.memory_space<smem>>
    memref.store %1377, %arg7[%1379, %c45_418] : memref<2x54xf32, #tpu.memory_space<smem>>
    %1381 = arith.mulf %1344, %1358 : vector<4x3xf32>
    %1382 = vector.shape_cast %1381 : vector<4x3xf32> to vector<1x4x3xf32>
    %cst_419 = arith.constant dense<0.000000e+00> : vector<1xf32>
    %1383 = vector.multi_reduction <add>, %1382, %cst_419 [1, 2] : vector<1x4x3xf32> to vector<1xf32>
    %1384 = vector.shape_cast %1383 : vector<1xf32> to vector<1x1x1xf32>
    %1385 = vector.extract %1384[0, 0, 0] : f32 from vector<1x1x1xf32>
    %c1_i32_420 = arith.constant 1 : i32
    %1386 = arith.addi %4, %c1_i32_420 : i32
    %1387 = arith.index_cast %1386 : i32 to index
    %c46_421 = arith.constant 46 : index
    %1388 = memref.load %arg7[%1387, %c46_421] : memref<2x54xf32, #tpu.memory_space<smem>>
    memref.store %1385, %arg7[%1387, %c46_421] : memref<2x54xf32, #tpu.memory_space<smem>>
    %1389 = arith.mulf %1351, %1358 : vector<4x3xf32>
    %1390 = vector.shape_cast %1389 : vector<4x3xf32> to vector<1x4x3xf32>
    %cst_422 = arith.constant dense<0.000000e+00> : vector<1xf32>
    %1391 = vector.multi_reduction <add>, %1390, %cst_422 [1, 2] : vector<1x4x3xf32> to vector<1xf32>
    %1392 = vector.shape_cast %1391 : vector<1xf32> to vector<1x1x1xf32>
    %1393 = vector.extract %1392[0, 0, 0] : f32 from vector<1x1x1xf32>
    %c1_i32_423 = arith.constant 1 : i32
    %1394 = arith.addi %4, %c1_i32_423 : i32
    %1395 = arith.index_cast %1394 : i32 to index
    %c47_424 = arith.constant 47 : index
    %1396 = memref.load %arg7[%1395, %c47_424] : memref<2x54xf32, #tpu.memory_space<smem>>
    memref.store %1393, %arg7[%1395, %c47_424] : memref<2x54xf32, #tpu.memory_space<smem>>
    %1397 = arith.mulf %1337, %1365 : vector<4x3xf32>
    %1398 = vector.shape_cast %1397 : vector<4x3xf32> to vector<1x4x3xf32>
    %cst_425 = arith.constant dense<0.000000e+00> : vector<1xf32>
    %1399 = vector.multi_reduction <add>, %1398, %cst_425 [1, 2] : vector<1x4x3xf32> to vector<1xf32>
    %1400 = vector.shape_cast %1399 : vector<1xf32> to vector<1x1x1xf32>
    %1401 = vector.extract %1400[0, 0, 0] : f32 from vector<1x1x1xf32>
    %c1_i32_426 = arith.constant 1 : i32
    %1402 = arith.addi %4, %c1_i32_426 : i32
    %1403 = arith.index_cast %1402 : i32 to index
    %c48_427 = arith.constant 48 : index
    %1404 = memref.load %arg7[%1403, %c48_427] : memref<2x54xf32, #tpu.memory_space<smem>>
    memref.store %1401, %arg7[%1403, %c48_427] : memref<2x54xf32, #tpu.memory_space<smem>>
    %1405 = arith.mulf %1344, %1365 : vector<4x3xf32>
    %1406 = vector.shape_cast %1405 : vector<4x3xf32> to vector<1x4x3xf32>
    %cst_428 = arith.constant dense<0.000000e+00> : vector<1xf32>
    %1407 = vector.multi_reduction <add>, %1406, %cst_428 [1, 2] : vector<1x4x3xf32> to vector<1xf32>
    %1408 = vector.shape_cast %1407 : vector<1xf32> to vector<1x1x1xf32>
    %1409 = vector.extract %1408[0, 0, 0] : f32 from vector<1x1x1xf32>
    %c1_i32_429 = arith.constant 1 : i32
    %1410 = arith.addi %4, %c1_i32_429 : i32
    %1411 = arith.index_cast %1410 : i32 to index
    %c49_430 = arith.constant 49 : index
    %1412 = memref.load %arg7[%1411, %c49_430] : memref<2x54xf32, #tpu.memory_space<smem>>
    memref.store %1409, %arg7[%1411, %c49_430] : memref<2x54xf32, #tpu.memory_space<smem>>
    %1413 = arith.mulf %1351, %1365 : vector<4x3xf32>
    %1414 = vector.shape_cast %1413 : vector<4x3xf32> to vector<1x4x3xf32>
    %cst_431 = arith.constant dense<0.000000e+00> : vector<1xf32>
    %1415 = vector.multi_reduction <add>, %1414, %cst_431 [1, 2] : vector<1x4x3xf32> to vector<1xf32>
    %1416 = vector.shape_cast %1415 : vector<1xf32> to vector<1x1x1xf32>
    %1417 = vector.extract %1416[0, 0, 0] : f32 from vector<1x1x1xf32>
    %c1_i32_432 = arith.constant 1 : i32
    %1418 = arith.addi %4, %c1_i32_432 : i32
    %1419 = arith.index_cast %1418 : i32 to index
    %c50_433 = arith.constant 50 : index
    %1420 = memref.load %arg7[%1419, %c50_433] : memref<2x54xf32, #tpu.memory_space<smem>>
    memref.store %1417, %arg7[%1419, %c50_433] : memref<2x54xf32, #tpu.memory_space<smem>>
    %1421 = arith.mulf %1337, %1372 : vector<4x3xf32>
    %1422 = vector.shape_cast %1421 : vector<4x3xf32> to vector<1x4x3xf32>
    %cst_434 = arith.constant dense<0.000000e+00> : vector<1xf32>
    %1423 = vector.multi_reduction <add>, %1422, %cst_434 [1, 2] : vector<1x4x3xf32> to vector<1xf32>
    %1424 = vector.shape_cast %1423 : vector<1xf32> to vector<1x1x1xf32>
    %1425 = vector.extract %1424[0, 0, 0] : f32 from vector<1x1x1xf32>
    %c1_i32_435 = arith.constant 1 : i32
    %1426 = arith.addi %4, %c1_i32_435 : i32
    %1427 = arith.index_cast %1426 : i32 to index
    %c51_436 = arith.constant 51 : index
    %1428 = memref.load %arg7[%1427, %c51_436] : memref<2x54xf32, #tpu.memory_space<smem>>
    memref.store %1425, %arg7[%1427, %c51_436] : memref<2x54xf32, #tpu.memory_space<smem>>
    %1429 = arith.mulf %1344, %1372 : vector<4x3xf32>
    %1430 = vector.shape_cast %1429 : vector<4x3xf32> to vector<1x4x3xf32>
    %cst_437 = arith.constant dense<0.000000e+00> : vector<1xf32>
    %1431 = vector.multi_reduction <add>, %1430, %cst_437 [1, 2] : vector<1x4x3xf32> to vector<1xf32>
    %1432 = vector.shape_cast %1431 : vector<1xf32> to vector<1x1x1xf32>
    %1433 = vector.extract %1432[0, 0, 0] : f32 from vector<1x1x1xf32>
    %c1_i32_438 = arith.constant 1 : i32
    %1434 = arith.addi %4, %c1_i32_438 : i32
    %1435 = arith.index_cast %1434 : i32 to index
    %c52_439 = arith.constant 52 : index
    %1436 = memref.load %arg7[%1435, %c52_439] : memref<2x54xf32, #tpu.memory_space<smem>>
    memref.store %1433, %arg7[%1435, %c52_439] : memref<2x54xf32, #tpu.memory_space<smem>>
    %1437 = arith.mulf %1351, %1372 : vector<4x3xf32>
    %1438 = vector.shape_cast %1437 : vector<4x3xf32> to vector<1x4x3xf32>
    %cst_440 = arith.constant dense<0.000000e+00> : vector<1xf32>
    %1439 = vector.multi_reduction <add>, %1438, %cst_440 [1, 2] : vector<1x4x3xf32> to vector<1xf32>
    %1440 = vector.shape_cast %1439 : vector<1xf32> to vector<1x1x1xf32>
    %1441 = vector.extract %1440[0, 0, 0] : f32 from vector<1x1x1xf32>
    %c1_i32_441 = arith.constant 1 : i32
    %1442 = arith.addi %4, %c1_i32_441 : i32
    %1443 = arith.index_cast %1442 : i32 to index
    %c53_442 = arith.constant 53 : index
    %1444 = memref.load %arg7[%1443, %c53_442] : memref<2x54xf32, #tpu.memory_space<smem>>
    memref.store %1441, %arg7[%1443, %c53_442] : memref<2x54xf32, #tpu.memory_space<smem>>
    return
  }
  func.func @transform_0(%arg0: i32) -> (i32, i32, i32, i32) {
    %c0_i32 = arith.constant 0 : i32
    %c0_i32_0 = arith.constant 0 : i32
    %c0_i32_1 = arith.constant 0 : i32
    %c0_i32_2 = arith.constant 0 : i32
    return %arg0, %c0_i32, %c0_i32_0, %c0_i32_1 : i32, i32, i32, i32
  }
  func.func @transform_1(%arg0: i32) -> (i32, i32, i32, i32) {
    %c0_i32 = arith.constant 0 : i32
    %c0_i32_0 = arith.constant 0 : i32
    %c0_i32_1 = arith.constant 0 : i32
    %c0_i32_2 = arith.constant 0 : i32
    return %arg0, %c0_i32, %c0_i32_0, %c0_i32_1 : i32, i32, i32, i32
  }
  func.func @transform_2(%arg0: i32) -> (i32, i32) {
    %c0_i32 = arith.constant 0 : i32
    %c0_i32_0 = arith.constant 0 : i32
    %c0_i32_1 = arith.constant 0 : i32
    return %c0_i32, %c0_i32_0 : i32, i32
  }
  func.func @transform_3(%arg0: i32) -> (i32, i32) {
    %c0_i32 = arith.constant 0 : i32
    %c0_i32_0 = arith.constant 0 : i32
    %c0_i32_1 = arith.constant 0 : i32
    return %c0_i32, %c0_i32_0 : i32, i32
  }
  func.func @transform_4(%arg0: i32) -> (i32, i32) {
    %c0_i32 = arith.constant 0 : i32
    %c0_i32_0 = arith.constant 0 : i32
    %c0_i32_1 = arith.constant 0 : i32
    return %c0_i32, %c0_i32_0 : i32, i32
  }
  func.func @transform_5(%arg0: i32) -> (i32, i32) {
    %c0_i32 = arith.constant 0 : i32
    %c0_i32_0 = arith.constant 0 : i32
    %c0_i32_1 = arith.constant 0 : i32
    return %c0_i32, %c0_i32_0 : i32, i32
  }
  func.func @transform_6(%arg0: i32) -> (i32, i32) {
    %c0_i32 = arith.constant 0 : i32
    %c0_i32_0 = arith.constant 0 : i32
    %c0_i32_1 = arith.constant 0 : i32
    return %c0_i32, %c0_i32_0 : i32, i32
  }
}

</mosaic_0001>

<llo_original>
// kernel: exclusion_loss.1
$region0: #{exclusion_loss.1}
  #allocation0 [shape = 'u32[]', space=smem, size = 0x4, offset = 0x4, fixed_abs, tag = 'smem constant byte address 0x4 - core index']
  #allocation1 [shape = 'u32[144,128]{1,0:T(1,128)}', space=vmem, size = 0x12000, scoped, tag = 'internal scratch']
  %s0 = inlined_call_operand.vmem [shape: f32[2,3,16,16], index: 0, kind: input, shape index: {}]
  %s1 = inlined_call_operand.vmem [shape: f32[2,3,16,16], index: 1, kind: input, shape index: {}]
  %s2 = inlined_call_operand.vmem [shape: f32[8,16], index: 2, kind: input, shape index: {}]
  %s3 = inlined_call_operand.vmem [shape: f32[16,8], index: 3, kind: input, shape index: {}]
  %s4 = inlined_call_operand.vmem [shape: f32[4,8], index: 4, kind: input, shape index: {}]
  %s5 = inlined_call_operand.vmem [shape: f32[8,4], index: 5, kind: input, shape index: {}]
  %s6 = inlined_call_operand.vmem [shape: f32[2,54], index: 6, kind: output, shape index: {}]
  %s7 = sld [smem:[#allocation0]]
  $region34: #{exclusion_loss.1} parent=0
    _
  %s9 = ssub.s32 1, %s7
  %s10 = scalar_select 0, %s9, %s7
  $region1: #{exclusion_loss.1} parent=0
    #allocation2 [shape = 'u8[1024]{0}', space=smem, size = 0x400, scoped, tag = 'output window, operand 0, single buffered']
    #allocation3 [shape = 's32[1]{0}', space=sflag, size = 0x4, scoped, tag = 'scoped memory for exclusion_loss.1']
    %11 = vsyncpa [#allocation3], 0
    // Predicated region
    $region2: #{exclusion_loss.1} parent=1 // pred_check
      _
    $region3: #{exclusion_loss.1} parent=1 // pred_check_branch
      %13 = sbr.rel (0) target = $region5
    $region4: #{exclusion_loss.1} parent=1 // pred_region
      _
    $region5: #{exclusion_loss.1} parent=1 // pred_fallthru
      _
    // Predicated region
    $region6: #{exclusion_loss.1} parent=1 // pred_check
      _
    $region7: #{exclusion_loss.1} parent=1 // pred_check_branch
      %15 = sbr.rel (0) target = $region9
    $region8: #{exclusion_loss.1} parent=1 // pred_region
      _
    $region9: #{exclusion_loss.1} parent=1 // pred_fallthru
      _
    // Predicated region
    $region10: #{exclusion_loss.1} parent=1 // pred_check
      _
    $region11: #{exclusion_loss.1} parent=1 // pred_check_branch
      %17 = sbr.rel (0) target = $region13
    $region12: #{exclusion_loss.1} parent=1 // pred_region
      _
    $region13: #{exclusion_loss.1} parent=1 // pred_fallthru
      _
    // Predicated region
    $region14: #{exclusion_loss.1} parent=1 // pred_check
      _
    $region15: #{exclusion_loss.1} parent=1 // pred_check_branch
      %19 = sbr.rel (0) target = $region17
    $region16: #{exclusion_loss.1} parent=1 // pred_region
      _
    $region17: #{exclusion_loss.1} parent=1 // pred_fallthru
      _
    // Predicated region
    $region18: #{exclusion_loss.1} parent=1 // pred_check
      _
    $region19: #{exclusion_loss.1} parent=1 // pred_check_branch
      %21 = sbr.rel (0) target = $region21
    $region20: #{exclusion_loss.1} parent=1 // pred_region
      _
    $region21: #{exclusion_loss.1} parent=1 // pred_fallthru
      _
    // Predicated region
    $region22: #{exclusion_loss.1} parent=1 // pred_check
      _
    $region23: #{exclusion_loss.1} parent=1 // pred_check_branch
      %23 = sbr.rel (0) target = $region25
    $region24: #{exclusion_loss.1} parent=1 // pred_region
      _
    $region25: #{exclusion_loss.1} parent=1 // pred_fallthru
      _
    %v24 = vld [vmem:[%s2] sm:$0xff]
    %v25 = vld [vmem:[%s3] sm:$0xff]
    %v26 = vld [vmem:[%s3 + $0x8] sm:$0xff]
    %v27 = vld [vmem:[%s4] sm:$0xf]
    %v28 = vld [vmem:[%s5] sm:$0xff]
    %s29 = smul.u32 0, 2
    %v30 = vld [vmem:[%s0] sm:$0xff]
    %v31 = vld [vmem:[%s0 + $0x8] sm:$0xff]
    %s32 = scalar_lea.vmem %s0, 16
    %v33 = vld [vmem:[%s32] sm:$0xff]
    %v34 = vld [vmem:[%s32 + $0x8] sm:$0xff]
    %s35 = scalar_lea.vmem %s0, 32
    %v36 = vld [vmem:[%s35] sm:$0xff]
    %v37 = vld [vmem:[%s35 + $0x8] sm:$0xff]
    %v38 = vld [vmem:[%s1] sm:$0xff]
    %v39 = vld [vmem:[%s1 + $0x8] sm:$0xff]
    %s40 = scalar_lea.vmem %s1, 16
    %v41 = vld [vmem:[%s40] sm:$0xff]
    %v42 = vld [vmem:[%s40 + $0x8] sm:$0xff]
    %s43 = scalar_lea.vmem %s1, 32
    %v44 = vld [vmem:[%s43] sm:$0xff]
    %v45 = vld [vmem:[%s43 + $0x8] sm:$0xff]
    %vm48 = vcmask 1040384
    %v49 = vrot.slane %v30, 7
    %v50 = vrot.slane %v31, 7
    %v51 = vsel %vm48, %v49, %v50
    %v54 = vsub.f32 %v30, %v49
    %v55 = vsub.f32 %v31, %v51
    %v56 = vmul.f32 %v54, 0.5
    %v57 = vmul.f32 %v55, 0.5
    %v58 = vtanh.pop %v56
    %v59 = vtanh.pop %v57
    %v60 = vmul.f32 %v58, %v58
    %v61 = vmul.f32 %v59, %v59
    %v64 = vrot.slane %v33, 7
    %v65 = vrot.slane %v34, 7
    %v66 = vsel %vm48, %v64, %v65
    %v69 = vsub.f32 %v33, %v64
    %v70 = vsub.f32 %v34, %v66
    %v71 = vmul.f32 %v69, 0.5
    %v72 = vmul.f32 %v70, 0.5
    %v73 = vtanh.pop %v71
    %v74 = vtanh.pop %v72
    %v75 = vmul.f32 %v73, %v73
    %v76 = vmul.f32 %v74, %v74
    %v79 = vrot.slane %v36, 7
    %v80 = vrot.slane %v37, 7
    %v81 = vsel %vm48, %v79, %v80
    %v84 = vsub.f32 %v36, %v79
    %v85 = vsub.f32 %v37, %v81
    %v86 = vmul.f32 %v84, 0.5
    %v87 = vmul.f32 %v85, 0.5
    %v88 = vtanh.pop %v86
    %v89 = vtanh.pop %v87
    %v90 = vmul.f32 %v88, %v88
    %v91 = vmul.f32 %v89, %v89
    %v94 = vrot.slane %v38, 7
    %v95 = vrot.slane %v39, 7
    %v96 = vsel %vm48, %v94, %v95
    %v99 = vsub.f32 %v38, %v94
    %v100 = vsub.f32 %v39, %v96
    %v101 = vmul.f32 %v99, 0.5
    %v102 = vmul.f32 %v100, 0.5
    %v103 = vtanh.pop %v101
    %v104 = vtanh.pop %v102
    %v105 = vmul.f32 %v103, %v103
    %v106 = vmul.f32 %v104, %v104
    %v109 = vrot.slane %v41, 7
    %v110 = vrot.slane %v42, 7
    %v111 = vsel %vm48, %v109, %v110
    %v114 = vsub.f32 %v41, %v109
    %v115 = vsub.f32 %v42, %v111
    %v116 = vmul.f32 %v114, 0.5
    %v117 = vmul.f32 %v115, 0.5
    %v118 = vtanh.pop %v116
    %v119 = vtanh.pop %v117
    %v120 = vmul.f32 %v118, %v118
    %v121 = vmul.f32 %v119, %v119
    %v124 = vrot.slane %v44, 7
    %v125 = vrot.slane %v45, 7
    %v126 = vsel %vm48, %v124, %v125
    %v129 = vsub.f32 %v44, %v124
    %v130 = vsub.f32 %v45, %v126
    %v131 = vmul.f32 %v129, 0.5
    %v132 = vmul.f32 %v130, 0.5
    %v133 = vtanh.pop %v131
    %v134 = vtanh.pop %v132
    %v135 = vmul.f32 %v133, %v133
    %v136 = vmul.f32 %v134, %v134
    %v137 = vmul.f32 %v60, %v105
    %v138 = vmul.f32 %v61, %v106
    %vm141 = vcmask 1046528
    %v142 = vrot.slane %v137, 1
    %v143 = vrot.slane %v138, 1
    %v144 = vsel %vm141, %v142, %v143
    %vm147 = vcmask 130048
    %v148 = vsel %vm147, %v144, 0.0
    %vm149 = vcmask 129024
    %v150 = vsel %vm149, %v143, 0.0
    %v151 = vadd.f32 %v148, %v150
    %152 = vadd.xlane.f32.xlu0 %v151
    %v153 = vpop.xlane.xlu0 %152
    %v154 = vrot.slane %v153, 4
    %v155 = vadd.f32 %v153, %v154
    %v156 = vrot.slane %v155, 2
    %v157 = vadd.f32 %v155, %v156
    %v158 = vrot.slane %v157, 1
    %v159 = vadd.f32 %v157, %v158
    %s160 = vtos %v159
    %s161 = smul.u32 %s29, 128
    %s162 = scalar_lea.smem [#allocation2], %s161
    %163 = sst [smem:[%s162]] %s160
    %v164 = vmul.f32 %v75, %v105
    %v165 = vmul.f32 %v76, %v106
    %v168 = vrot.slane %v164, 1
    %v169 = vrot.slane %v165, 1
    %v170 = vsel %vm141, %v168, %v169
    %v173 = vsel %vm147, %v170, 0.0
    %v174 = vsel %vm149, %v169, 0.0
    %v175 = vadd.f32 %v173, %v174
    %176 = vadd.xlane.f32.xlu0 %v175
    %v177 = vpop.xlane.xlu0 %176
    %v178 = vrot.slane %v177, 4
    %v179 = vadd.f32 %v177, %v178
    %v180 = vrot.slane %v179, 2
    %v181 = vadd.f32 %v179, %v180
    %v182 = vrot.slane %v181, 1
    %v183 = vadd.f32 %v181, %v182
    %s184 = vtos %v183
    %s185 = sadd.s32 %s161, 1
    %s186 = scalar_lea.smem [#allocation2], %s185
    %187 = sst [smem:[%s186]] %s184
    %v188 = vmul.f32 %v90, %v105
    %v189 = vmul.f32 %v91, %v106
    %v192 = vrot.slane %v188, 1
    %v193 = vrot.slane %v189, 1
    %v194 = vsel %vm141, %v192, %v193
    %v197 = vsel %vm147, %v194, 0.0
    %v198 = vsel %vm149, %v193, 0.0
    %v199 = vadd.f32 %v197, %v198
    %200 = vadd.xlane.f32.xlu0 %v199
    %v201 = vpop.xlane.xlu0 %200
    %v202 = vrot.slane %v201, 4
    %v203 = vadd.f32 %v201, %v202
    %v204 = vrot.slane %v203, 2
    %v205 = vadd.f32 %v203, %v204
    %v206 = vrot.slane %v205, 1
    %v207 = vadd.f32 %v205, %v206
    %s208 = vtos %v207
    %s209 = sadd.s32 %s161, 2
    %s210 = scalar_lea.smem [#allocation2], %s209
    %211 = sst [smem:[%s210]] %s208
    %v212 = vmul.f32 %v60, %v120
    %v213 = vmul.f32 %v61, %v121
    %v216 = vrot.slane %v212, 1
    %v217 = vrot.slane %v213, 1
    %v218 = vsel %vm141, %v216, %v217
    %v221 = vsel %vm147, %v218, 0.0
    %v222 = vsel %vm149, %v217, 0.0
    %v223 = vadd.f32 %v221, %v222
    %224 = vadd.xlane.f32.xlu0 %v223
    %v225 = vpop.xlane.xlu0 %224
    %v226 = vrot.slane %v225, 4
    %v227 = vadd.f32 %v225, %v226
    %v228 = vrot.slane %v227, 2
    %v229 = vadd.f32 %v227, %v228
    %v230 = vrot.slane %v229, 1
    %v231 = vadd.f32 %v229, %v230
    %s232 = vtos %v231
    %s233 = sadd.s32 %s161, 3
    %s234 = scalar_lea.smem [#allocation2], %s233
    %235 = sst [smem:[%s234]] %s232
    %v236 = vmul.f32 %v75, %v120
    %v237 = vmul.f32 %v76, %v121
    %v240 = vrot.slane %v236, 1
    %v241 = vrot.slane %v237, 1
    %v242 = vsel %vm141, %v240, %v241
    %v245 = vsel %vm147, %v242, 0.0
    %v246 = vsel %vm149, %v241, 0.0
    %v247 = vadd.f32 %v245, %v246
    %248 = vadd.xlane.f32.xlu0 %v247
    %v249 = vpop.xlane.xlu0 %248
    %v250 = vrot.slane %v249, 4
    %v251 = vadd.f32 %v249, %v250
    %v252 = vrot.slane %v251, 2
    %v253 = vadd.f32 %v251, %v252
    %v254 = vrot.slane %v253, 1
    %v255 = vadd.f32 %v253, %v254
    %s256 = vtos %v255
    %s257 = sadd.s32 %s161, 4
    %s258 = scalar_lea.smem [#allocation2], %s257
    %259 = sst [smem:[%s258]] %s256
    %v260 = vmul.f32 %v90, %v120
    %v261 = vmul.f32 %v91, %v121
    %v264 = vrot.slane %v260, 1
    %v265 = vrot.slane %v261, 1
    %v266 = vsel %vm141, %v264, %v265
    %v269 = vsel %vm147, %v266, 0.0
    %v270 = vsel %vm149, %v265, 0.0
    %v271 = vadd.f32 %v269, %v270
    %272 = vadd.xlane.f32.xlu0 %v271
    %v273 = vpop.xlane.xlu0 %272
    %v274 = vrot.slane %v273, 4
    %v275 = vadd.f32 %v273, %v274
    %v276 = vrot.slane %v275, 2
    %v277 = vadd.f32 %v275, %v276
    %v278 = vrot.slane %v277, 1
    %v279 = vadd.f32 %v277, %v278
    %s280 = vtos %v279
    %s281 = sadd.s32 %s161, 5
    %s282 = scalar_lea.smem [#allocation2], %s281
    %283 = sst [smem:[%s282]] %s280
    %v284 = vmul.f32 %v60, %v135
    %v285 = vmul.f32 %v61, %v136
    %v288 = vrot.slane %v284, 1
    %v289 = vrot.slane %v285, 1
    %v290 = vsel %vm141, %v288, %v289
    %v293 = vsel %vm147, %v290, 0.0
    %v294 = vsel %vm149, %v289, 0.0
    %v295 = vadd.f32 %v293, %v294
    %296 = vadd.xlane.f32.xlu0 %v295
    %v297 = vpop.xlane.xlu0 %296
    %v298 = vrot.slane %v297, 4
    %v299 = vadd.f32 %v297, %v298
    %v300 = vrot.slane %v299, 2
    %v301 = vadd.f32 %v299, %v300
    %v302 = vrot.slane %v301, 1
    %v303 = vadd.f32 %v301, %v302
    %s304 = vtos %v303
    %s305 = sadd.s32 %s161, 6
    %s306 = scalar_lea.smem [#allocation2], %s305
    %307 = sst [smem:[%s306]] %s304
    %v308 = vmul.f32 %v75, %v135
    %v309 = vmul.f32 %v76, %v136
    %v312 = vrot.slane %v308, 1
    %v313 = vrot.slane %v309, 1
    %v314 = vsel %vm141, %v312, %v313
    %v317 = vsel %vm147, %v314, 0.0
    %v318 = vsel %vm149, %v313, 0.0
    %v319 = vadd.f32 %v317, %v318
    %320 = vadd.xlane.f32.xlu0 %v319
    %v321 = vpop.xlane.xlu0 %320
    %v322 = vrot.slane %v321, 4
    %v323 = vadd.f32 %v321, %v322
    %v324 = vrot.slane %v323, 2
    %v325 = vadd.f32 %v323, %v324
    %v326 = vrot.slane %v325, 1
    %v327 = vadd.f32 %v325, %v326
    %s328 = vtos %v327
    %s329 = sadd.s32 %s161, 7
    %s330 = scalar_lea.smem [#allocation2], %s329
    %331 = sst [smem:[%s330]] %s328
    %v332 = vmul.f32 %v90, %v135
    %v333 = vmul.f32 %v91, %v136
    %v336 = vrot.slane %v332, 1
    %v337 = vrot.slane %v333, 1
    %v338 = vsel %vm141, %v336, %v337
    %v341 = vsel %vm147, %v338, 0.0
    %v342 = vsel %vm149, %v337, 0.0
    %v343 = vadd.f32 %v341, %v342
    %344 = vadd.xlane.f32.xlu0 %v343
    %v345 = vpop.xlane.xlu0 %344
    %v346 = vrot.slane %v345, 4
    %v347 = vadd.f32 %v345, %v346
    %v348 = vrot.slane %v347, 2
    %v349 = vadd.f32 %v347, %v348
    %v350 = vrot.slane %v349, 1
    %v351 = vadd.f32 %v349, %v350
    %s352 = vtos %v351
    %s353 = sadd.s32 %s161, 8
    %s354 = scalar_lea.smem [#allocation2], %s353
    %355 = sst [smem:[%s354]] %s352
    %356 = vrot.lane.b32.xlu0 %v30, 1
    %v357 = vpop.permute.xlu0 %356
    %358 = vrot.lane.b32.xlu0 %v31, 1
    %v359 = vpop.permute.xlu0 %358
    %v362 = vsub.f32 %v30, %v357
    %v363 = vsub.f32 %v31, %v359
    %v364 = vmul.f32 %v362, 0.5
    %v365 = vmul.f32 %v363, 0.5
    %v366 = vtanh.pop %v364
    %v367 = vtanh.pop %v365
    %v368 = vmul.f32 %v366, %v366
    %v369 = vmul.f32 %v367, %v367
    %370 = vrot.lane.b32.xlu0 %v33, 1
    %v371 = vpop.permute.xlu0 %370
    %372 = vrot.lane.b32.xlu0 %v34, 1
    %v373 = vpop.permute.xlu0 %372
    %v376 = vsub.f32 %v33, %v371
    %v377 = vsub.f32 %v34, %v373
    %v378 = vmul.f32 %v376, 0.5
    %v379 = vmul.f32 %v377, 0.5
    %v380 = vtanh.pop %v378
    %v381 = vtanh.pop %v379
    %v382 = vmul.f32 %v380, %v380
    %v383 = vmul.f32 %v381, %v381
    %384 = vrot.lane.b32.xlu0 %v36, 1
    %v385 = vpop.permute.xlu0 %384
    %386 = vrot.lane.b32.xlu0 %v37, 1
    %v387 = vpop.permute.xlu0 %386
    %v390 = vsub.f32 %v36, %v385
    %v391 = vsub.f32 %v37, %v387
    %v392 = vmul.f32 %v390, 0.5
    %v393 = vmul.f32 %v391, 0.5
    %v394 = vtanh.pop %v392
    %v395 = vtanh.pop %v393
    %v396 = vmul.f32 %v394, %v394
    %v397 = vmul.f32 %v395, %v395
    %398 = vrot.lane.b32.xlu0 %v38, 1
    %v399 = vpop.permute.xlu0 %398
    %400 = vrot.lane.b32.xlu0 %v39, 1
    %v401 = vpop.permute.xlu0 %400
    %v404 = vsub.f32 %v38, %v399
    %v405 = vsub.f32 %v39, %v401
    %v406 = vmul.f32 %v404, 0.5
    %v407 = vmul.f32 %v405, 0.5
    %v408 = vtanh.pop %v406
    %v409 = vtanh.pop %v407
    %v410 = vmul.f32 %v408, %v408
    %v411 = vmul.f32 %v409, %v409
    %412 = vrot.lane.b32.xlu0 %v41, 1
    %v413 = vpop.permute.xlu0 %412
    %414 = vrot.lane.b32.xlu0 %v42, 1
    %v415 = vpop.permute.xlu0 %414
    %v418 = vsub.f32 %v41, %v413
    %v419 = vsub.f32 %v42, %v415
    %v420 = vmul.f32 %v418, 0.5
    %v421 = vmul.f32 %v419, 0.5
    %v422 = vtanh.pop %v420
    %v423 = vtanh.pop %v421
    %v424 = vmul.f32 %v422, %v422
    %v425 = vmul.f32 %v423, %v423
    %426 = vrot.lane.b32.xlu0 %v44, 1
    %v427 = vpop.permute.xlu0 %426
    %428 = vrot.lane.b32.xlu0 %v45, 1
    %v429 = vpop.permute.xlu0 %428
    %v432 = vsub.f32 %v44, %v427
    %v433 = vsub.f32 %v45, %v429
    %v434 = vmul.f32 %v432, 0.5
    %v435 = vmul.f32 %v433, 0.5
    %v436 = vtanh.pop %v434
    %v437 = vtanh.pop %v435
    %v438 = vmul.f32 %v436, %v436
    %v439 = vmul.f32 %v437, %v437
    %v440 = vmul.f32 %v368, %v410
    %v441 = vmul.f32 %v369, %v411
    %444 = vrot.lane.b32.xlu0 %v440, 127
    %v445 = vpop.permute.xlu0 %444
    %446 = vrot.lane.b32.xlu0 %v441, 127
    %v447 = vpop.permute.xlu0 %446
    %vm450 = vcmask 121856
    %v451 = vsel %vm450, %v445, 0.0
    %v452 = vsel %vm450, %v447, 0.0
    %v453 = vadd.f32 %v451, %v452
    %454 = vadd.xlane.f32.xlu0 %v453
    %v455 = vpop.xlane.xlu0 %454
    %v456 = vrot.slane %v455, 4
    %v457 = vadd.f32 %v455, %v456
    %v458 = vrot.slane %v457, 2
    %v459 = vadd.f32 %v457, %v458
    %v460 = vrot.slane %v459, 1
    %v461 = vadd.f32 %v459, %v460
    %s462 = vtos %v461
    %s463 = sadd.s32 %s161, 9
    %s464 = scalar_lea.smem [#allocation2], %s463
    %465 = sst [smem:[%s464]] %s462
    %v466 = vmul.f32 %v382, %v410
    %v467 = vmul.f32 %v383, %v411
    %470 = vrot.lane.b32.xlu0 %v466, 127
    %v471 = vpop.permute.xlu0 %470
    %472 = vrot.lane.b32.xlu0 %v467, 127
    %v473 = vpop.permute.xlu0 %472
    %v476 = vsel %vm450, %v471, 0.0
    %v477 = vsel %vm450, %v473, 0.0
    %v478 = vadd.f32 %v476, %v477
    %479 = vadd.xlane.f32.xlu0 %v478
    %v480 = vpop.xlane.xlu0 %479
    %v481 = vrot.slane %v480, 4
    %v482 = vadd.f32 %v480, %v481
    %v483 = vrot.slane %v482, 2
    %v484 = vadd.f32 %v482, %v483
    %v485 = vrot.slane %v484, 1
    %v486 = vadd.f32 %v484, %v485
    %s487 = vtos %v486
    %s488 = sadd.s32 %s161, 10
    %s489 = scalar_lea.smem [#allocation2], %s488
    %490 = sst [smem:[%s489]] %s487
    %v491 = vmul.f32 %v396, %v410
    %v492 = vmul.f32 %v397, %v411
    %495 = vrot.lane.b32.xlu0 %v491, 127
    %v496 = vpop.permute.xlu0 %495
    %497 = vrot.lane.b32.xlu0 %v492, 127
    %v498 = vpop.permute.xlu0 %497
    %v501 = vsel %vm450, %v496, 0.0
    %v502 = vsel %vm450, %v498, 0.0
    %v503 = vadd.f32 %v501, %v502
    %504 = vadd.xlane.f32.xlu0 %v503
    %v505 = vpop.xlane.xlu0 %504
    %v506 = vrot.slane %v505, 4
    %v507 = vadd.f32 %v505, %v506
    %v508 = vrot.slane %v507, 2
    %v509 = vadd.f32 %v507, %v508
    %v510 = vrot.slane %v509, 1
    %v511 = vadd.f32 %v509, %v510
    %s512 = vtos %v511
    %s513 = sadd.s32 %s161, 11
    %s514 = scalar_lea.smem [#allocation2], %s513
    %515 = sst [smem:[%s514]] %s512
    %v516 = vmul.f32 %v368, %v424
    %v517 = vmul.f32 %v369, %v425
    %520 = vrot.lane.b32.xlu0 %v516, 127
    %v521 = vpop.permute.xlu0 %520
    %522 = vrot.lane.b32.xlu0 %v517, 127
    %v523 = vpop.permute.xlu0 %522
    %v526 = vsel %vm450, %v521, 0.0
    %v527 = vsel %vm450, %v523, 0.0
    %v528 = vadd.f32 %v526, %v527
    %529 = vadd.xlane.f32.xlu0 %v528
    %v530 = vpop.xlane.xlu0 %529
    %v531 = vrot.slane %v530, 4
    %v532 = vadd.f32 %v530, %v531
    %v533 = vrot.slane %v532, 2
    %v534 = vadd.f32 %v532, %v533
    %v535 = vrot.slane %v534, 1
    %v536 = vadd.f32 %v534, %v535
    %s537 = vtos %v536
    %s538 = sadd.s32 %s161, 12
    %s539 = scalar_lea.smem [#allocation2], %s538
    %540 = sst [smem:[%s539]] %s537
    %v541 = vmul.f32 %v382, %v424
    %v542 = vmul.f32 %v383, %v425
    %545 = vrot.lane.b32.xlu0 %v541, 127
    %v546 = vpop.permute.xlu0 %545
    %547 = vrot.lane.b32.xlu0 %v542, 127
    %v548 = vpop.permute.xlu0 %547
    %v551 = vsel %vm450, %v546, 0.0
    %v552 = vsel %vm450, %v548, 0.0
    %v553 = vadd.f32 %v551, %v552
    %554 = vadd.xlane.f32.xlu0 %v553
    %v555 = vpop.xlane.xlu0 %554
    %v556 = vrot.slane %v555, 4
    %v557 = vadd.f32 %v555, %v556
    %v558 = vrot.slane %v557, 2
    %v559 = vadd.f32 %v557, %v558
    %v560 = vrot.slane %v559, 1
    %v561 = vadd.f32 %v559, %v560
    %s562 = vtos %v561
    %s563 = sadd.s32 %s161, 13
    %s564 = scalar_lea.smem [#allocation2], %s563
    %565 = sst [smem:[%s564]] %s562
    %v566 = vmul.f32 %v396, %v424
    %v567 = vmul.f32 %v397, %v425
    %570 = vrot.lane.b32.xlu0 %v566, 127
    %v571 = vpop.permute.xlu0 %570
    %572 = vrot.lane.b32.xlu0 %v567, 127
    %v573 = vpop.permute.xlu0 %572
    %v576 = vsel %vm450, %v571, 0.0
    %v577 = vsel %vm450, %v573, 0.0
    %v578 = vadd.f32 %v576, %v577
    %579 = vadd.xlane.f32.xlu0 %v578
    %v580 = vpop.xlane.xlu0 %579
    %v581 = vrot.slane %v580, 4
    %v582 = vadd.f32 %v580, %v581
    %v583 = vrot.slane %v582, 2
    %v584 = vadd.f32 %v582, %v583
    %v585 = vrot.slane %v584, 1
    %v586 = vadd.f32 %v584, %v585
    %s587 = vtos %v586
    %s588 = sadd.s32 %s161, 14
    %s589 = scalar_lea.smem [#allocation2], %s588
    %590 = sst [smem:[%s589]] %s587
    %v591 = vmul.f32 %v368, %v438
    %v592 = vmul.f32 %v369, %v439
    %595 = vrot.lane.b32.xlu0 %v591, 127
    %v596 = vpop.permute.xlu0 %595
    %597 = vrot.lane.b32.xlu0 %v592, 127
    %v598 = vpop.permute.xlu0 %597
    %v601 = vsel %vm450, %v596, 0.0
    %v602 = vsel %vm450, %v598, 0.0
    %v603 = vadd.f32 %v601, %v602
    %604 = vadd.xlane.f32.xlu0 %v603
    %v605 = vpop.xlane.xlu0 %604
    %v606 = vrot.slane %v605, 4
    %v607 = vadd.f32 %v605, %v606
    %v608 = vrot.slane %v607, 2
    %v609 = vadd.f32 %v607, %v608
    %v610 = vrot.slane %v609, 1
    %v611 = vadd.f32 %v609, %v610
    %s612 = vtos %v611
    %s613 = sadd.s32 %s161, 15
    %s614 = scalar_lea.smem [#allocation2], %s613
    %615 = sst [smem:[%s614]] %s612
    %v616 = vmul.f32 %v382, %v438
    %v617 = vmul.f32 %v383, %v439
    %620 = vrot.lane.b32.xlu0 %v616, 127
    %v621 = vpop.permute.xlu0 %620
    %622 = vrot.lane.b32.xlu0 %v617, 127
    %v623 = vpop.permute.xlu0 %622
    %v626 = vsel %vm450, %v621, 0.0
    %v627 = vsel %vm450, %v623, 0.0
    %v628 = vadd.f32 %v626, %v627
    %629 = vadd.xlane.f32.xlu0 %v628
    %v630 = vpop.xlane.xlu0 %629
    %v631 = vrot.slane %v630, 4
    %v632 = vadd.f32 %v630, %v631
    %v633 = vrot.slane %v632, 2
    %v634 = vadd.f32 %v632, %v633
    %v635 = vrot.slane %v634, 1
    %v636 = vadd.f32 %v634, %v635
    %s637 = vtos %v636
    %s638 = sadd.s32 %s161, 16
    %s639 = scalar_lea.smem [#allocation2], %s638
    %640 = sst [smem:[%s639]] %s637
    %v641 = vmul.f32 %v396, %v438
    %v642 = vmul.f32 %v397, %v439
    %645 = vrot.lane.b32.xlu0 %v641, 127
    %v646 = vpop.permute.xlu0 %645
    %647 = vrot.lane.b32.xlu0 %v642, 127
    %v648 = vpop.permute.xlu0 %647
    %v651 = vsel %vm450, %v646, 0.0
    %v652 = vsel %vm450, %v648, 0.0
    %v653 = vadd.f32 %v651, %v652
    %654 = vadd.xlane.f32.xlu0 %v653
    %v655 = vpop.xlane.xlu0 %654
    %v656 = vrot.slane %v655, 4
    %v657 = vadd.f32 %v655, %v656
    %v658 = vrot.slane %v657, 2
    %v659 = vadd.f32 %v657, %v658
    %v660 = vrot.slane %v659, 1
    %v661 = vadd.f32 %v659, %v660
    %s662 = vtos %v661
    %s663 = sadd.s32 %s161, 17
    %s664 = scalar_lea.smem [#allocation2], %s663
    %665 = sst [smem:[%s664]] %s662
    %v666 = vsel %vm147, %v30, 0
    %v668 = vsel %vm147, %v31, 0
    %670 = vmatprep.subr.mxu0 0.0
    %671 = vmatpush1.msra.mxu0 %v25
    %672 = vmatprep.subr.mxu0 0.0
    %673 = vmatpush1.msra.mxu0 %v26
    %674 = vmatprep.subr.mxu0 0.0
    %675 = vmatpush1.msra.mxu0 0.0
    %676 = vmatprep.subr.mxu0 0.0
    %677 = vmatpush1.msra.mxu0 0.0
    %678 = vmatprep.subr.mxu0 0.0
    %679 = vmatpush1.msra.mxu0 0.0
    %680 = vmatprep.subr.mxu0 0.0
    %681 = vmatpush1.msra.mxu0 0.0
    %682 = vmatprep.subr.mxu0 0.0
    %683 = vmatpush1.msra.mxu0 0.0
    %684 = vmatprep.subr.mxu0 0.0
    %685 = vmatpush1.msra.mxu0 0.0
    %686 = vmatprep.subr.mxu0 0.0
    %687 = vmatpush1.msra.mxu0 0.0
    %688 = vmatprep.subr.mxu0 0.0
    %689 = vmatpush1.msra.mxu0 0.0
    %690 = vmatprep.subr.mxu0 0.0
    %691 = vmatpush1.msra.mxu0 0.0
    %692 = vmatprep.subr.mxu0 0.0
    %693 = vmatpush1.msra.mxu0 0.0
    %694 = vmatprep.subr.mxu0 0.0
    %695 = vmatpush1.msra.mxu0 0.0
    %696 = vmatprep.subr.mxu0 0.0
    %697 = vmatpush1.msra.mxu0 0.0
    %698 = vmatprep.subr.mxu0 0.0
    %699 = vmatpush1.msra.mxu0 0.0
    %700 = vmatprep.subr.mxu0 0.0
    %701 = vmatpush1.msra.mxu0 0.0
    %702 = vmatprep.subr.mxu0 0.0
    %703 = vmatpush1.msra.mxu0 0.0
    %704 = vmatprep.subr.mxu0 0.0
    %705 = vmatpush1.msra.mxu0 0.0
    %706 = vmatprep.subr.mxu0 0.0
    %707 = vmatpush1.msra.mxu0 0.0
    %708 = vmatprep.subr.mxu0 0.0
    %709 = vmatpush1.msra.mxu0 0.0
    %710 = vmatprep.subr.mxu0 0.0
    %711 = vmatpush1.msra.mxu0 0.0
    %712 = vmatprep.subr.mxu0 0.0
    %713 = vmatpush1.msra.mxu0 0.0
    %714 = vmatprep.subr.mxu0 0.0
    %715 = vmatpush1.msra.mxu0 0.0
    %716 = vmatprep.subr.mxu0 0.0
    %717 = vmatpush1.msra.mxu0 0.0
    %718 = vmatprep.subr.mxu0 0.0
    %719 = vmatpush1.msra.mxu0 0.0
    %720 = vmatprep.subr.mxu0 0.0
    %721 = vmatpush1.msra.mxu0 0.0
    %722 = vmatprep.subr.mxu0 0.0
    %723 = vmatpush1.msra.mxu0 0.0
    %724 = vmatprep.subr.mxu0 0.0
    %725 = vmatpush1.msra.mxu0 0.0
    %726 = vmatprep.subr.mxu0 0.0
    %727 = vmatpush1.msra.mxu0 0.0
    %728 = vmatprep.subr.mxu0 0.0
    %729 = vmatpush1.msra.mxu0 0.0
    %730 = vmatprep.subr.mxu0 0.0
    %731 = vmatpush1.msra.mxu0 0.0
    %732 = vmatprep.subr.mxu0 0.0
    %733 = vmatpush1.msra.mxu0 0.0
    %734 = vmatprep.mubr.f32.mxu0 0.0
    %735 = vmatmul.mubr.f32.gmra.mrb[0].mxu0 %v666
    %v736 = vpop.f32.mrb[0].mxu0
    %v737 = vadd.f32 0.0, %v736
    %v738 = vpop.f32.mrb[0].mxu0
    %739 = vmatprep.mubr.f32.mxu0 0.0
    %740 = vmatmul.mubr.f32.gmra.mrb[0].mxu0 %v668
    %v741 = vpop.f32.mrb[0].mxu0
    %v742 = vadd.f32 0.0, %v741
    %v743 = vpop.f32.mrb[0].mxu0
    %744 = vdwg.mxu0
    %v746 = vsel %vm147, %v24, 0
    %748 = vmatprep.subr.mxu0 0.0
    %749 = vmatpush1.msra.mxu0 %v737
    %750 = vmatprep.subr.mxu0 0.0
    %751 = vmatpush1.msra.mxu0 %v742
    %752 = vmatprep.subr.mxu0 0.0
    %753 = vmatpush1.msra.mxu0 0.0
    %754 = vmatprep.subr.mxu0 0.0
    %755 = vmatpush1.msra.mxu0 0.0
    %756 = vmatprep.subr.mxu0 0.0
    %757 = vmatpush1.msra.mxu0 0.0
    %758 = vmatprep.subr.mxu0 0.0
    %759 = vmatpush1.msra.mxu0 0.0
    %760 = vmatprep.subr.mxu0 0.0
    %761 = vmatpush1.msra.mxu0 0.0
    %762 = vmatprep.subr.mxu0 0.0
    %763 = vmatpush1.msra.mxu0 0.0
    %764 = vmatprep.subr.mxu0 0.0
    %765 = vmatpush1.msra.mxu0 0.0
    %766 = vmatprep.subr.mxu0 0.0
    %767 = vmatpush1.msra.mxu0 0.0
    %768 = vmatprep.subr.mxu0 0.0
    %769 = vmatpush1.msra.mxu0 0.0
    %770 = vmatprep.subr.mxu0 0.0
    %771 = vmatpush1.msra.mxu0 0.0
    %772 = vmatprep.subr.mxu0 0.0
    %773 = vmatpush1.msra.mxu0 0.0
    %774 = vmatprep.subr.mxu0 0.0
    %775 = vmatpush1.msra.mxu0 0.0
    %776 = vmatprep.subr.mxu0 0.0
    %777 = vmatpush1.msra.mxu0 0.0
    %778 = vmatprep.subr.mxu0 0.0
    %779 = vmatpush1.msra.mxu0 0.0
    %780 = vmatprep.subr.mxu0 0.0
    %781 = vmatpush1.msra.mxu0 0.0
    %782 = vmatprep.subr.mxu0 0.0
    %783 = vmatpush1.msra.mxu0 0.0
    %784 = vmatprep.subr.mxu0 0.0
    %785 = vmatpush1.msra.mxu0 0.0
    %786 = vmatprep.subr.mxu0 0.0
    %787 = vmatpush1.msra.mxu0 0.0
    %788 = vmatprep.subr.mxu0 0.0
    %789 = vmatpush1.msra.mxu0 0.0
    %790 = vmatprep.subr.mxu0 0.0
    %791 = vmatpush1.msra.mxu0 0.0
    %792 = vmatprep.subr.mxu0 0.0
    %793 = vmatpush1.msra.mxu0 0.0
    %794 = vmatprep.subr.mxu0 0.0
    %795 = vmatpush1.msra.mxu0 0.0
    %796 = vmatprep.subr.mxu0 0.0
    %797 = vmatpush1.msra.mxu0 0.0
    %798 = vmatprep.subr.mxu0 0.0
    %799 = vmatpush1.msra.mxu0 0.0
    %800 = vmatprep.subr.mxu0 0.0
    %801 = vmatpush1.msra.mxu0 0.0
    %802 = vmatprep.subr.mxu0 0.0
    %803 = vmatpush1.msra.mxu0 0.0
    %804 = vmatprep.subr.mxu0 0.0
    %805 = vmatpush1.msra.mxu0 0.0
    %806 = vmatprep.subr.mxu0 0.0
    %807 = vmatpush1.msra.mxu0 0.0
    %808 = vmatprep.subr.mxu0 0.0
    %809 = vmatpush1.msra.mxu0 0.0
    %810 = vmatprep.subr.mxu0 0.0
    %811 = vmatpush1.msra.mxu0 0.0
    %812 = vmatprep.mubr.f32.mxu0 0.0
    %813 = vmatmul.mubr.f32.gmra.mrb[0].mxu0 %v746
    %v814 = vpop.f32.mrb[0].mxu0
    %v815 = vadd.f32 0.0, %v814
    %v816 = vpop.f32.mrb[0].mxu0
    %817 = vdwg.mxu0
    %v818 = vsel %vm147, %v33, 0
    %v820 = vsel %vm147, %v34, 0
    %822 = vmatprep.subr.mxu0 0.0
    %823 = vmatpush1.msra.mxu0 %v25
    %824 = vmatprep.subr.mxu0 0.0
    %825 = vmatpush1.msra.mxu0 %v26
    %826 = vmatprep.subr.mxu0 0.0
    %827 = vmatpush1.msra.mxu0 0.0
    %828 = vmatprep.subr.mxu0 0.0
    %829 = vmatpush1.msra.mxu0 0.0
    %830 = vmatprep.subr.mxu0 0.0
    %831 = vmatpush1.msra.mxu0 0.0
    %832 = vmatprep.subr.mxu0 0.0
    %833 = vmatpush1.msra.mxu0 0.0
    %834 = vmatprep.subr.mxu0 0.0
    %835 = vmatpush1.msra.mxu0 0.0
    %836 = vmatprep.subr.mxu0 0.0
    %837 = vmatpush1.msra.mxu0 0.0
    %838 = vmatprep.subr.mxu0 0.0
    %839 = vmatpush1.msra.mxu0 0.0
    %840 = vmatprep.subr.mxu0 0.0
    %841 = vmatpush1.msra.mxu0 0.0
    %842 = vmatprep.subr.mxu0 0.0
    %843 = vmatpush1.msra.mxu0 0.0
    %844 = vmatprep.subr.mxu0 0.0
    %845 = vmatpush1.msra.mxu0 0.0
    %846 = vmatprep.subr.mxu0 0.0
    %847 = vmatpush1.msra.mxu0 0.0
    %848 = vmatprep.subr.mxu0 0.0
    %849 = vmatpush1.msra.mxu0 0.0
    %850 = vmatprep.subr.mxu0 0.0
    %851 = vmatpush1.msra.mxu0 0.0
    %852 = vmatprep.subr.mxu0 0.0
    %853 = vmatpush1.msra.mxu0 0.0
    %854 = vmatprep.subr.mxu0 0.0
    %855 = vmatpush1.msra.mxu0 0.0
    %856 = vmatprep.subr.mxu0 0.0
    %857 = vmatpush1.msra.mxu0 0.0
    %858 = vmatprep.subr.mxu0 0.0
    %859 = vmatpush1.msra.mxu0 0.0
    %860 = vmatprep.subr.mxu0 0.0
    %861 = vmatpush1.msra.mxu0 0.0
    %862 = vmatprep.subr.mxu0 0.0
    %863 = vmatpush1.msra.mxu0 0.0
    %864 = vmatprep.subr.mxu0 0.0
    %865 = vmatpush1.msra.mxu0 0.0
    %866 = vmatprep.subr.mxu0 0.0
    %867 = vmatpush1.msra.mxu0 0.0
    %868 = vmatprep.subr.mxu0 0.0
    %869 = vmatpush1.msra.mxu0 0.0
    %870 = vmatprep.subr.mxu0 0.0
    %871 = vmatpush1.msra.mxu0 0.0
    %872 = vmatprep.subr.mxu0 0.0
    %873 = vmatpush1.msra.mxu0 0.0
    %874 = vmatprep.subr.mxu0 0.0
    %875 = vmatpush1.msra.mxu0 0.0
    %876 = vmatprep.subr.mxu0 0.0
    %877 = vmatpush1.msra.mxu0 0.0
    %878 = vmatprep.subr.mxu0 0.0
    %879 = vmatpush1.msra.mxu0 0.0
    %880 = vmatprep.subr.mxu0 0.0
    %881 = vmatpush1.msra.mxu0 0.0
    %882 = vmatprep.subr.mxu0 0.0
    %883 = vmatpush1.msra.mxu0 0.0
    %884 = vmatprep.subr.mxu0 0.0
    %885 = vmatpush1.msra.mxu0 0.0
    %886 = vmatprep.mubr.f32.mxu0 0.0
    %887 = vmatmul.mubr.f32.gmra.mrb[0].mxu0 %v818
    %v888 = vpop.f32.mrb[0].mxu0
    %v889 = vadd.f32 0.0, %v888
    %v890 = vpop.f32.mrb[0].mxu0
    %891 = vmatprep.mubr.f32.mxu0 0.0
    %892 = vmatmul.mubr.f32.gmra.mrb[0].mxu0 %v820
    %v893 = vpop.f32.mrb[0].mxu0
    %v894 = vadd.f32 0.0, %v893
    %v895 = vpop.f32.mrb[0].mxu0
    %896 = vdwg.mxu0
    %897 = vmatprep.subr.mxu0 0.0
    %898 = vmatpush1.msra.mxu0 %v889
    %899 = vmatprep.subr.mxu0 0.0
    %900 = vmatpush1.msra.mxu0 %v894
    %901 = vmatprep.subr.mxu0 0.0
    %902 = vmatpush1.msra.mxu0 0.0
    %903 = vmatprep.subr.mxu0 0.0
    %904 = vmatpush1.msra.mxu0 0.0
    %905 = vmatprep.subr.mxu0 0.0
    %906 = vmatpush1.msra.mxu0 0.0
    %907 = vmatprep.subr.mxu0 0.0
    %908 = vmatpush1.msra.mxu0 0.0
    %909 = vmatprep.subr.mxu0 0.0
    %910 = vmatpush1.msra.mxu0 0.0
    %911 = vmatprep.subr.mxu0 0.0
    %912 = vmatpush1.msra.mxu0 0.0
    %913 = vmatprep.subr.mxu0 0.0
    %914 = vmatpush1.msra.mxu0 0.0
    %915 = vmatprep.subr.mxu0 0.0
    %916 = vmatpush1.msra.mxu0 0.0
    %917 = vmatprep.subr.mxu0 0.0
    %918 = vmatpush1.msra.mxu0 0.0
    %919 = vmatprep.subr.mxu0 0.0
    %920 = vmatpush1.msra.mxu0 0.0
    %921 = vmatprep.subr.mxu0 0.0
    %922 = vmatpush1.msra.mxu0 0.0
    %923 = vmatprep.subr.mxu0 0.0
    %924 = vmatpush1.msra.mxu0 0.0
    %925 = vmatprep.subr.mxu0 0.0
    %926 = vmatpush1.msra.mxu0 0.0
    %927 = vmatprep.subr.mxu0 0.0
    %928 = vmatpush1.msra.mxu0 0.0
    %929 = vmatprep.subr.mxu0 0.0
    %930 = vmatpush1.msra.mxu0 0.0
    %931 = vmatprep.subr.mxu0 0.0
    %932 = vmatpush1.msra.mxu0 0.0
    %933 = vmatprep.subr.mxu0 0.0
    %934 = vmatpush1.msra.mxu0 0.0
    %935 = vmatprep.subr.mxu0 0.0
    %936 = vmatpush1.msra.mxu0 0.0
    %937 = vmatprep.subr.mxu0 0.0
    %938 = vmatpush1.msra.mxu0 0.0
    %939 = vmatprep.subr.mxu0 0.0
    %940 = vmatpush1.msra.mxu0 0.0
    %941 = vmatprep.subr.mxu0 0.0
    %942 = vmatpush1.msra.mxu0 0.0
    %943 = vmatprep.subr.mxu0 0.0
    %944 = vmatpush1.msra.mxu0 0.0
    %945 = vmatprep.subr.mxu0 0.0
    %946 = vmatpush1.msra.mxu0 0.0
    %947 = vmatprep.subr.mxu0 0.0
    %948 = vmatpush1.msra.mxu0 0.0
    %949 = vmatprep.subr.mxu0 0.0
    %950 = vmatpush1.msra.mxu0 0.0
    %951 = vmatprep.subr.mxu0 0.0
    %952 = vmatpush1.msra.mxu0 0.0
    %953 = vmatprep.subr.mxu0 0.0
    %954 = vmatpush1.msra.mxu0 0.0
    %955 = vmatprep.subr.mxu0 0.0
    %956 = vmatpush1.msra.mxu0 0.0
    %957 = vmatprep.subr.mxu0 0.0
    %958 = vmatpush1.msra.mxu0 0.0
    %959 = vmatprep.subr.mxu0 0.0
    %960 = vmatpush1.msra.mxu0 0.0
    %961 = vmatprep.mubr.f32.mxu0 0.0
    %962 = vmatmul.mubr.f32.gmra.mrb[0].mxu0 %v746
    %v963 = vpop.f32.mrb[0].mxu0
    %v964 = vadd.f32 0.0, %v963
    %v965 = vpop.f32.mrb[0].mxu0
    %966 = vdwg.mxu0
    %v967 = vsel %vm147, %v36, 0
    %v969 = vsel %vm147, %v37, 0
    %971 = vmatprep.subr.mxu0 0.0
    %972 = vmatpush1.msra.mxu0 %v25
    %973 = vmatprep.subr.mxu0 0.0
    %974 = vmatpush1.msra.mxu0 %v26
    %975 = vmatprep.subr.mxu0 0.0
    %976 = vmatpush1.msra.mxu0 0.0
    %977 = vmatprep.subr.mxu0 0.0
    %978 = vmatpush1.msra.mxu0 0.0
    %979 = vmatprep.subr.mxu0 0.0
    %980 = vmatpush1.msra.mxu0 0.0
    %981 = vmatprep.subr.mxu0 0.0
    %982 = vmatpush1.msra.mxu0 0.0
    %983 = vmatprep.subr.mxu0 0.0
    %984 = vmatpush1.msra.mxu0 0.0
    %985 = vmatprep.subr.mxu0 0.0
    %986 = vmatpush1.msra.mxu0 0.0
    %987 = vmatprep.subr.mxu0 0.0
    %988 = vmatpush1.msra.mxu0 0.0
    %989 = vmatprep.subr.mxu0 0.0
    %990 = vmatpush1.msra.mxu0 0.0
    %991 = vmatprep.subr.mxu0 0.0
    %992 = vmatpush1.msra.mxu0 0.0
    %993 = vmatprep.subr.mxu0 0.0
    %994 = vmatpush1.msra.mxu0 0.0
    %995 = vmatprep.subr.mxu0 0.0
    %996 = vmatpush1.msra.mxu0 0.0
    %997 = vmatprep.subr.mxu0 0.0
    %998 = vmatpush1.msra.mxu0 0.0
    %999 = vmatprep.subr.mxu0 0.0
    %1000 = vmatpush1.msra.mxu0 0.0
    %1001 = vmatprep.subr.mxu0 0.0
    %1002 = vmatpush1.msra.mxu0 0.0
    %1003 = vmatprep.subr.mxu0 0.0
    %1004 = vmatpush1.msra.mxu0 0.0
    %1005 = vmatprep.subr.mxu0 0.0
    %1006 = vmatpush1.msra.mxu0 0.0
    %1007 = vmatprep.subr.mxu0 0.0
    %1008 = vmatpush1.msra.mxu0 0.0
    %1009 = vmatprep.subr.mxu0 0.0
    %1010 = vmatpush1.msra.mxu0 0.0
    %1011 = vmatprep.subr.mxu0 0.0
    %1012 = vmatpush1.msra.mxu0 0.0
    %1013 = vmatprep.subr.mxu0 0.0
    %1014 = vmatpush1.msra.mxu0 0.0
    %1015 = vmatprep.subr.mxu0 0.0
    %1016 = vmatpush1.msra.mxu0 0.0
    %1017 = vmatprep.subr.mxu0 0.0
    %1018 = vmatpush1.msra.mxu0 0.0
    %1019 = vmatprep.subr.mxu0 0.0
    %1020 = vmatpush1.msra.mxu0 0.0
    %1021 = vmatprep.subr.mxu0 0.0
    %1022 = vmatpush1.msra.mxu0 0.0
    %1023 = vmatprep.subr.mxu0 0.0
    %1024 = vmatpush1.msra.mxu0 0.0
    %1025 = vmatprep.subr.mxu0 0.0
    %1026 = vmatpush1.msra.mxu0 0.0
    %1027 = vmatprep.subr.mxu0 0.0
    %1028 = vmatpush1.msra.mxu0 0.0
    %1029 = vmatprep.subr.mxu0 0.0
    %1030 = vmatpush1.msra.mxu0 0.0
    %1031 = vmatprep.subr.mxu0 0.0
    %1032 = vmatpush1.msra.mxu0 0.0
    %1033 = vmatprep.subr.mxu0 0.0
    %1034 = vmatpush1.msra.mxu0 0.0
    %1035 = vmatprep.mubr.f32.mxu0 0.0
    %1036 = vmatmul.mubr.f32.gmra.mrb[0].mxu0 %v967
    %v1037 = vpop.f32.mrb[0].mxu0
    %v1038 = vadd.f32 0.0, %v1037
    %v1039 = vpop.f32.mrb[0].mxu0
    %1040 = vmatprep.mubr.f32.mxu0 0.0
    %1041 = vmatmul.mubr.f32.gmra.mrb[0].mxu0 %v969
    %v1042 = vpop.f32.mrb[0].mxu0
    %v1043 = vadd.f32 0.0, %v1042
    %v1044 = vpop.f32.mrb[0].mxu0
    %1045 = vdwg.mxu0
    %1046 = vmatprep.subr.mxu0 0.0
    %1047 = vmatpush1.msra.mxu0 %v1038
    %1048 = vmatprep.subr.mxu0 0.0
    %1049 = vmatpush1.msra.mxu0 %v1043
    %1050 = vmatprep.subr.mxu0 0.0
    %1051 = vmatpush1.msra.mxu0 0.0
    %1052 = vmatprep.subr.mxu0 0.0
    %1053 = vmatpush1.msra.mxu0 0.0
    %1054 = vmatprep.subr.mxu0 0.0
    %1055 = vmatpush1.msra.mxu0 0.0
    %1056 = vmatprep.subr.mxu0 0.0
    %1057 = vmatpush1.msra.mxu0 0.0
    %1058 = vmatprep.subr.mxu0 0.0
    %1059 = vmatpush1.msra.mxu0 0.0
    %1060 = vmatprep.subr.mxu0 0.0
    %1061 = vmatpush1.msra.mxu0 0.0
    %1062 = vmatprep.subr.mxu0 0.0
    %1063 = vmatpush1.msra.mxu0 0.0
    %1064 = vmatprep.subr.mxu0 0.0
    %1065 = vmatpush1.msra.mxu0 0.0
    %1066 = vmatprep.subr.mxu0 0.0
    %1067 = vmatpush1.msra.mxu0 0.0
    %1068 = vmatprep.subr.mxu0 0.0
    %1069 = vmatpush1.msra.mxu0 0.0
    %1070 = vmatprep.subr.mxu0 0.0
    %1071 = vmatpush1.msra.mxu0 0.0
    %1072 = vmatprep.subr.mxu0 0.0
    %1073 = vmatpush1.msra.mxu0 0.0
    %1074 = vmatprep.subr.mxu0 0.0
    %1075 = vmatpush1.msra.mxu0 0.0
    %1076 = vmatprep.subr.mxu0 0.0
    %1077 = vmatpush1.msra.mxu0 0.0
    %1078 = vmatprep.subr.mxu0 0.0
    %1079 = vmatpush1.msra.mxu0 0.0
    %1080 = vmatprep.subr.mxu0 0.0
    %1081 = vmatpush1.msra.mxu0 0.0
    %1082 = vmatprep.subr.mxu0 0.0
    %1083 = vmatpush1.msra.mxu0 0.0
    %1084 = vmatprep.subr.mxu0 0.0
    %1085 = vmatpush1.msra.mxu0 0.0
    %1086 = vmatprep.subr.mxu0 0.0
    %1087 = vmatpush1.msra.mxu0 0.0
    %1088 = vmatprep.subr.mxu0 0.0
    %1089 = vmatpush1.msra.mxu0 0.0
    %1090 = vmatprep.subr.mxu0 0.0
    %1091 = vmatpush1.msra.mxu0 0.0
    %1092 = vmatprep.subr.mxu0 0.0
    %1093 = vmatpush1.msra.mxu0 0.0
    %1094 = vmatprep.subr.mxu0 0.0
    %1095 = vmatpush1.msra.mxu0 0.0
    %1096 = vmatprep.subr.mxu0 0.0
    %1097 = vmatpush1.msra.mxu0 0.0
    %1098 = vmatprep.subr.mxu0 0.0
    %1099 = vmatpush1.msra.mxu0 0.0
    %1100 = vmatprep.subr.mxu0 0.0
    %1101 = vmatpush1.msra.mxu0 0.0
    %1102 = vmatprep.subr.mxu0 0.0
    %1103 = vmatpush1.msra.mxu0 0.0
    %1104 = vmatprep.subr.mxu0 0.0
    %1105 = vmatpush1.msra.mxu0 0.0
    %1106 = vmatprep.subr.mxu0 0.0
    %1107 = vmatpush1.msra.mxu0 0.0
    %1108 = vmatprep.subr.mxu0 0.0
    %1109 = vmatpush1.msra.mxu0 0.0
    %1110 = vmatprep.mubr.f32.mxu0 0.0
    %1111 = vmatmul.mubr.f32.gmra.mrb[0].mxu0 %v746
    %v1112 = vpop.f32.mrb[0].mxu0
    %v1113 = vadd.f32 0.0, %v1112
    %v1114 = vpop.f32.mrb[0].mxu0
    %1115 = vdwg.mxu0
    %v1116 = vsel %vm147, %v38, 0
    %v1118 = vsel %vm147, %v39, 0
    %1120 = vmatprep.subr.mxu0 0.0
    %1121 = vmatpush1.msra.mxu0 %v25
    %1122 = vmatprep.subr.mxu0 0.0
    %1123 = vmatpush1.msra.mxu0 %v26
    %1124 = vmatprep.subr.mxu0 0.0
    %1125 = vmatpush1.msra.mxu0 0.0
    %1126 = vmatprep.subr.mxu0 0.0
    %1127 = vmatpush1.msra.mxu0 0.0
    %1128 = vmatprep.subr.mxu0 0.0
    %1129 = vmatpush1.msra.mxu0 0.0
    %1130 = vmatprep.subr.mxu0 0.0
    %1131 = vmatpush1.msra.mxu0 0.0
    %1132 = vmatprep.subr.mxu0 0.0
    %1133 = vmatpush1.msra.mxu0 0.0
    %1134 = vmatprep.subr.mxu0 0.0
    %1135 = vmatpush1.msra.mxu0 0.0
    %1136 = vmatprep.subr.mxu0 0.0
    %1137 = vmatpush1.msra.mxu0 0.0
    %1138 = vmatprep.subr.mxu0 0.0
    %1139 = vmatpush1.msra.mxu0 0.0
    %1140 = vmatprep.subr.mxu0 0.0
    %1141 = vmatpush1.msra.mxu0 0.0
    %1142 = vmatprep.subr.mxu0 0.0
    %1143 = vmatpush1.msra.mxu0 0.0
    %1144 = vmatprep.subr.mxu0 0.0
    %1145 = vmatpush1.msra.mxu0 0.0
    %1146 = vmatprep.subr.mxu0 0.0
    %1147 = vmatpush1.msra.mxu0 0.0
    %1148 = vmatprep.subr.mxu0 0.0
    %1149 = vmatpush1.msra.mxu0 0.0
    %1150 = vmatprep.subr.mxu0 0.0
    %1151 = vmatpush1.msra.mxu0 0.0
    %1152 = vmatprep.subr.mxu0 0.0
    %1153 = vmatpush1.msra.mxu0 0.0
    %1154 = vmatprep.subr.mxu0 0.0
    %1155 = vmatpush1.msra.mxu0 0.0
    %1156 = vmatprep.subr.mxu0 0.0
    %1157 = vmatpush1.msra.mxu0 0.0
    %1158 = vmatprep.subr.mxu0 0.0
    %1159 = vmatpush1.msra.mxu0 0.0
    %1160 = vmatprep.subr.mxu0 0.0
    %1161 = vmatpush1.msra.mxu0 0.0
    %1162 = vmatprep.subr.mxu0 0.0
    %1163 = vmatpush1.msra.mxu0 0.0
    %1164 = vmatprep.subr.mxu0 0.0
    %1165 = vmatpush1.msra.mxu0 0.0
    %1166 = vmatprep.subr.mxu0 0.0
    %1167 = vmatpush1.msra.mxu0 0.0
    %1168 = vmatprep.subr.mxu0 0.0
    %1169 = vmatpush1.msra.mxu0 0.0
    %1170 = vmatprep.subr.mxu0 0.0
    %1171 = vmatpush1.msra.mxu0 0.0
    %1172 = vmatprep.subr.mxu0 0.0
    %1173 = vmatpush1.msra.mxu0 0.0
    %1174 = vmatprep.subr.mxu0 0.0
    %1175 = vmatpush1.msra.mxu0 0.0
    %1176 = vmatprep.subr.mxu0 0.0
    %1177 = vmatpush1.msra.mxu0 0.0
    %1178 = vmatprep.subr.mxu0 0.0
    %1179 = vmatpush1.msra.mxu0 0.0
    %1180 = vmatprep.subr.mxu0 0.0
    %1181 = vmatpush1.msra.mxu0 0.0
    %1182 = vmatprep.subr.mxu0 0.0
    %1183 = vmatpush1.msra.mxu0 0.0
    %1184 = vmatprep.mubr.f32.mxu0 0.0
    %1185 = vmatmul.mubr.f32.gmra.mrb[0].mxu0 %v1116
    %v1186 = vpop.f32.mrb[0].mxu0
    %v1187 = vadd.f32 0.0, %v1186
    %v1188 = vpop.f32.mrb[0].mxu0
    %1189 = vmatprep.mubr.f32.mxu0 0.0
    %1190 = vmatmul.mubr.f32.gmra.mrb[0].mxu0 %v1118
    %v1191 = vpop.f32.mrb[0].mxu0
    %v1192 = vadd.f32 0.0, %v1191
    %v1193 = vpop.f32.mrb[0].mxu0
    %1194 = vdwg.mxu0
    %1195 = vmatprep.subr.mxu0 0.0
    %1196 = vmatpush1.msra.mxu0 %v1187
    %1197 = vmatprep.subr.mxu0 0.0
    %1198 = vmatpush1.msra.mxu0 %v1192
    %1199 = vmatprep.subr.mxu0 0.0
    %1200 = vmatpush1.msra.mxu0 0.0
    %1201 = vmatprep.subr.mxu0 0.0
    %1202 = vmatpush1.msra.mxu0 0.0
    %1203 = vmatprep.subr.mxu0 0.0
    %1204 = vmatpush1.msra.mxu0 0.0
    %1205 = vmatprep.subr.mxu0 0.0
    %1206 = vmatpush1.msra.mxu0 0.0
    %1207 = vmatprep.subr.mxu0 0.0
    %1208 = vmatpush1.msra.mxu0 0.0
    %1209 = vmatprep.subr.mxu0 0.0
    %1210 = vmatpush1.msra.mxu0 0.0
    %1211 = vmatprep.subr.mxu0 0.0
    %1212 = vmatpush1.msra.mxu0 0.0
    %1213 = vmatprep.subr.mxu0 0.0
    %1214 = vmatpush1.msra.mxu0 0.0
    %1215 = vmatprep.subr.mxu0 0.0
    %1216 = vmatpush1.msra.mxu0 0.0
    %1217 = vmatprep.subr.mxu0 0.0
    %1218 = vmatpush1.msra.mxu0 0.0
    %1219 = vmatprep.subr.mxu0 0.0
    %1220 = vmatpush1.msra.mxu0 0.0
    %1221 = vmatprep.subr.mxu0 0.0
    %1222 = vmatpush1.msra.mxu0 0.0
    %1223 = vmatprep.subr.mxu0 0.0
    %1224 = vmatpush1.msra.mxu0 0.0
    %1225 = vmatprep.subr.mxu0 0.0
    %1226 = vmatpush1.msra.mxu0 0.0
    %1227 = vmatprep.subr.mxu0 0.0
    %1228 = vmatpush1.msra.mxu0 0.0
    %1229 = vmatprep.subr.mxu0 0.0
    %1230 = vmatpush1.msra.mxu0 0.0
    %1231 = vmatprep.subr.mxu0 0.0
    %1232 = vmatpush1.msra.mxu0 0.0
    %1233 = vmatprep.subr.mxu0 0.0
    %1234 = vmatpush1.msra.mxu0 0.0
    %1235 = vmatprep.subr.mxu0 0.0
    %1236 = vmatpush1.msra.mxu0 0.0
    %1237 = vmatprep.subr.mxu0 0.0
    %1238 = vmatpush1.msra.mxu0 0.0
    %1239 = vmatprep.subr.mxu0 0.0
    %1240 = vmatpush1.msra.mxu0 0.0
    %1241 = vmatprep.subr.mxu0 0.0
    %1242 = vmatpush1.msra.mxu0 0.0
    %1243 = vmatprep.subr.mxu0 0.0
    %1244 = vmatpush1.msra.mxu0 0.0
    %1245 = vmatprep.subr.mxu0 0.0
    %1246 = vmatpush1.msra.mxu0 0.0
    %1247 = vmatprep.subr.mxu0 0.0
    %1248 = vmatpush1.msra.mxu0 0.0
    %1249 = vmatprep.subr.mxu0 0.0
    %1250 = vmatpush1.msra.mxu0 0.0
    %1251 = vmatprep.subr.mxu0 0.0
    %1252 = vmatpush1.msra.mxu0 0.0
    %1253 = vmatprep.subr.mxu0 0.0
    %1254 = vmatpush1.msra.mxu0 0.0
    %1255 = vmatprep.subr.mxu0 0.0
    %1256 = vmatpush1.msra.mxu0 0.0
    %1257 = vmatprep.subr.mxu0 0.0
    %1258 = vmatpush1.msra.mxu0 0.0
    %1259 = vmatprep.mubr.f32.mxu0 0.0
    %1260 = vmatmul.mubr.f32.gmra.mrb[0].mxu0 %v746
    %v1261 = vpop.f32.mrb[0].mxu0
    %v1262 = vadd.f32 0.0, %v1261
    %v1263 = vpop.f32.mrb[0].mxu0
    %1264 = vdwg.mxu0
    %v1265 = vsel %vm147, %v41, 0
    %v1267 = vsel %vm147, %v42, 0
    %1269 = vmatprep.subr.mxu0 0.0
    %1270 = vmatpush1.msra.mxu0 %v25
    %1271 = vmatprep.subr.mxu0 0.0
    %1272 = vmatpush1.msra.mxu0 %v26
    %1273 = vmatprep.subr.mxu0 0.0
    %1274 = vmatpush1.msra.mxu0 0.0
    %1275 = vmatprep.subr.mxu0 0.0
    %1276 = vmatpush1.msra.mxu0 0.0
    %1277 = vmatprep.subr.mxu0 0.0
    %1278 = vmatpush1.msra.mxu0 0.0
    %1279 = vmatprep.subr.mxu0 0.0
    %1280 = vmatpush1.msra.mxu0 0.0
    %1281 = vmatprep.subr.mxu0 0.0
    %1282 = vmatpush1.msra.mxu0 0.0
    %1283 = vmatprep.subr.mxu0 0.0
    %1284 = vmatpush1.msra.mxu0 0.0
    %1285 = vmatprep.subr.mxu0 0.0
    %1286 = vmatpush1.msra.mxu0 0.0
    %1287 = vmatprep.subr.mxu0 0.0
    %1288 = vmatpush1.msra.mxu0 0.0
    %1289 = vmatprep.subr.mxu0 0.0
    %1290 = vmatpush1.msra.mxu0 0.0
    %1291 = vmatprep.subr.mxu0 0.0
    %1292 = vmatpush1.msra.mxu0 0.0
    %1293 = vmatprep.subr.mxu0 0.0
    %1294 = vmatpush1.msra.mxu0 0.0
    %1295 = vmatprep.subr.mxu0 0.0
    %1296 = vmatpush1.msra.mxu0 0.0
    %1297 = vmatprep.subr.mxu0 0.0
    %1298 = vmatpush1.msra.mxu0 0.0
    %1299 = vmatprep.subr.mxu0 0.0
    %1300 = vmatpush1.msra.mxu0 0.0
    %1301 = vmatprep.subr.mxu0 0.0
    %1302 = vmatpush1.msra.mxu0 0.0
    %1303 = vmatprep.subr.mxu0 0.0
    %1304 = vmatpush1.msra.mxu0 0.0
    %1305 = vmatprep.subr.mxu0 0.0
    %1306 = vmatpush1.msra.mxu0 0.0
    %1307 = vmatprep.subr.mxu0 0.0
    %1308 = vmatpush1.msra.mxu0 0.0
    %1309 = vmatprep.subr.mxu0 0.0
    %1310 = vmatpush1.msra.mxu0 0.0
    %1311 = vmatprep.subr.mxu0 0.0
    %1312 = vmatpush1.msra.mxu0 0.0
    %1313 = vmatprep.subr.mxu0 0.0
    %1314 = vmatpush1.msra.mxu0 0.0
    %1315 = vmatprep.subr.mxu0 0.0
    %1316 = vmatpush1.msra.mxu0 0.0
    %1317 = vmatprep.subr.mxu0 0.0
    %1318 = vmatpush1.msra.mxu0 0.0
    %1319 = vmatprep.subr.mxu0 0.0
    %1320 = vmatpush1.msra.mxu0 0.0
    %1321 = vmatprep.subr.mxu0 0.0
    %1322 = vmatpush1.msra.mxu0 0.0
    %1323 = vmatprep.subr.mxu0 0.0
    %1324 = vmatpush1.msra.mxu0 0.0
    %1325 = vmatprep.subr.mxu0 0.0
    %1326 = vmatpush1.msra.mxu0 0.0
    %1327 = vmatprep.subr.mxu0 0.0
    %1328 = vmatpush1.msra.mxu0 0.0
    %1329 = vmatprep.subr.mxu0 0.0
    %1330 = vmatpush1.msra.mxu0 0.0
    %1331 = vmatprep.subr.mxu0 0.0
    %1332 = vmatpush1.msra.mxu0 0.0
    %1333 = vmatprep.mubr.f32.mxu0 0.0
    %1334 = vmatmul.mubr.f32.gmra.mrb[0].mxu0 %v1265
    %v1335 = vpop.f32.mrb[0].mxu0
    %v1336 = vadd.f32 0.0, %v1335
    %v1337 = vpop.f32.mrb[0].mxu0
    %1338 = vmatprep.mubr.f32.mxu0 0.0
    %1339 = vmatmul.mubr.f32.gmra.mrb[0].mxu0 %v1267
    %v1340 = vpop.f32.mrb[0].mxu0
    %v1341 = vadd.f32 0.0, %v1340
    %v1342 = vpop.f32.mrb[0].mxu0
    %1343 = vdwg.mxu0
    %1344 = vmatprep.subr.mxu0 0.0
    %1345 = vmatpush1.msra.mxu0 %v1336
    %1346 = vmatprep.subr.mxu0 0.0
    %1347 = vmatpush1.msra.mxu0 %v1341
    %1348 = vmatprep.subr.mxu0 0.0
    %1349 = vmatpush1.msra.mxu0 0.0
    %1350 = vmatprep.subr.mxu0 0.0
    %1351 = vmatpush1.msra.mxu0 0.0
    %1352 = vmatprep.subr.mxu0 0.0
    %1353 = vmatpush1.msra.mxu0 0.0
    %1354 = vmatprep.subr.mxu0 0.0
    %1355 = vmatpush1.msra.mxu0 0.0
    %1356 = vmatprep.subr.mxu0 0.0
    %1357 = vmatpush1.msra.mxu0 0.0
    %1358 = vmatprep.subr.mxu0 0.0
    %1359 = vmatpush1.msra.mxu0 0.0
    %1360 = vmatprep.subr.mxu0 0.0
    %1361 = vmatpush1.msra.mxu0 0.0
    %1362 = vmatprep.subr.mxu0 0.0
    %1363 = vmatpush1.msra.mxu0 0.0
    %1364 = vmatprep.subr.mxu0 0.0
    %1365 = vmatpush1.msra.mxu0 0.0
    %1366 = vmatprep.subr.mxu0 0.0
    %1367 = vmatpush1.msra.mxu0 0.0
    %1368 = vmatprep.subr.mxu0 0.0
    %1369 = vmatpush1.msra.mxu0 0.0
    %1370 = vmatprep.subr.mxu0 0.0
    %1371 = vmatpush1.msra.mxu0 0.0
    %1372 = vmatprep.subr.mxu0 0.0
    %1373 = vmatpush1.msra.mxu0 0.0
    %1374 = vmatprep.subr.mxu0 0.0
    %1375 = vmatpush1.msra.mxu0 0.0
    %1376 = vmatprep.subr.mxu0 0.0
    %1377 = vmatpush1.msra.mxu0 0.0
    %1378 = vmatprep.subr.mxu0 0.0
    %1379 = vmatpush1.msra.mxu0 0.0
    %1380 = vmatprep.subr.mxu0 0.0
    %1381 = vmatpush1.msra.mxu0 0.0
    %1382 = vmatprep.subr.mxu0 0.0
    %1383 = vmatpush1.msra.mxu0 0.0
    %1384 = vmatprep.subr.mxu0 0.0
    %1385 = vmatpush1.msra.mxu0 0.0
    %1386 = vmatprep.subr.mxu0 0.0
    %1387 = vmatpush1.msra.mxu0 0.0
    %1388 = vmatprep.subr.mxu0 0.0
    %1389 = vmatpush1.msra.mxu0 0.0
    %1390 = vmatprep.subr.mxu0 0.0
    %1391 = vmatpush1.msra.mxu0 0.0
    %1392 = vmatprep.subr.mxu0 0.0
    %1393 = vmatpush1.msra.mxu0 0.0
    %1394 = vmatprep.subr.mxu0 0.0
    %1395 = vmatpush1.msra.mxu0 0.0
    %1396 = vmatprep.subr.mxu0 0.0
    %1397 = vmatpush1.msra.mxu0 0.0
    %1398 = vmatprep.subr.mxu0 0.0
    %1399 = vmatpush1.msra.mxu0 0.0
    %1400 = vmatprep.subr.mxu0 0.0
    %1401 = vmatpush1.msra.mxu0 0.0
    %1402 = vmatprep.subr.mxu0 0.0
    %1403 = vmatpush1.msra.mxu0 0.0
    %1404 = vmatprep.subr.mxu0 0.0
    %1405 = vmatpush1.msra.mxu0 0.0
    %1406 = vmatprep.subr.mxu0 0.0
    %1407 = vmatpush1.msra.mxu0 0.0
    %1408 = vmatprep.mubr.f32.mxu0 0.0
    %1409 = vmatmul.mubr.f32.gmra.mrb[0].mxu0 %v746
    %v1410 = vpop.f32.mrb[0].mxu0
    %v1411 = vadd.f32 0.0, %v1410
    %v1412 = vpop.f32.mrb[0].mxu0
    %1413 = vdwg.mxu0
    %v1414 = vsel %vm147, %v44, 0
    %v1416 = vsel %vm147, %v45, 0
    %1418 = vmatprep.subr.mxu0 0.0
    %1419 = vmatpush1.msra.mxu0 %v25
    %1420 = vmatprep.subr.mxu0 0.0
    %1421 = vmatpush1.msra.mxu0 %v26
    %1422 = vmatprep.subr.mxu0 0.0
    %1423 = vmatpush1.msra.mxu0 0.0
    %1424 = vmatprep.subr.mxu0 0.0
    %1425 = vmatpush1.msra.mxu0 0.0
    %1426 = vmatprep.subr.mxu0 0.0
    %1427 = vmatpush1.msra.mxu0 0.0
    %1428 = vmatprep.subr.mxu0 0.0
    %1429 = vmatpush1.msra.mxu0 0.0
    %1430 = vmatprep.subr.mxu0 0.0
    %1431 = vmatpush1.msra.mxu0 0.0
    %1432 = vmatprep.subr.mxu0 0.0
    %1433 = vmatpush1.msra.mxu0 0.0
    %1434 = vmatprep.subr.mxu0 0.0
    %1435 = vmatpush1.msra.mxu0 0.0
    %1436 = vmatprep.subr.mxu0 0.0
    %1437 = vmatpush1.msra.mxu0 0.0
    %1438 = vmatprep.subr.mxu0 0.0
    %1439 = vmatpush1.msra.mxu0 0.0
    %1440 = vmatprep.subr.mxu0 0.0
    %1441 = vmatpush1.msra.mxu0 0.0
    %1442 = vmatprep.subr.mxu0 0.0
    %1443 = vmatpush1.msra.mxu0 0.0
    %1444 = vmatprep.subr.mxu0 0.0
    %1445 = vmatpush1.msra.mxu0 0.0
    %1446 = vmatprep.subr.mxu0 0.0
    %1447 = vmatpush1.msra.mxu0 0.0
    %1448 = vmatprep.subr.mxu0 0.0
    %1449 = vmatpush1.msra.mxu0 0.0
    %1450 = vmatprep.subr.mxu0 0.0
    %1451 = vmatpush1.msra.mxu0 0.0
    %1452 = vmatprep.subr.mxu0 0.0
    %1453 = vmatpush1.msra.mxu0 0.0
    %1454 = vmatprep.subr.mxu0 0.0
    %1455 = vmatpush1.msra.mxu0 0.0
    %1456 = vmatprep.subr.mxu0 0.0
    %1457 = vmatpush1.msra.mxu0 0.0
    %1458 = vmatprep.subr.mxu0 0.0
    %1459 = vmatpush1.msra.mxu0 0.0
    %1460 = vmatprep.subr.mxu0 0.0
    %1461 = vmatpush1.msra.mxu0 0.0
    %1462 = vmatprep.subr.mxu0 0.0
    %1463 = vmatpush1.msra.mxu0 0.0
    %1464 = vmatprep.subr.mxu0 0.0
    %1465 = vmatpush1.msra.mxu0 0.0
    %1466 = vmatprep.subr.mxu0 0.0
    %1467 = vmatpush1.msra.mxu0 0.0
    %1468 = vmatprep.subr.mxu0 0.0
    %1469 = vmatpush1.msra.mxu0 0.0
    %1470 = vmatprep.subr.mxu0 0.0
    %1471 = vmatpush1.msra.mxu0 0.0
    %1472 = vmatprep.subr.mxu0 0.0
    %1473 = vmatpush1.msra.mxu0 0.0
    %1474 = vmatprep.subr.mxu0 0.0
    %1475 = vmatpush1.msra.mxu0 0.0
    %1476 = vmatprep.subr.mxu0 0.0
    %1477 = vmatpush1.msra.mxu0 0.0
    %1478 = vmatprep.subr.mxu0 0.0
    %1479 = vmatpush1.msra.mxu0 0.0
    %1480 = vmatprep.subr.mxu0 0.0
    %1481 = vmatpush1.msra.mxu0 0.0
    %1482 = vmatprep.mubr.f32.mxu0 0.0
    %1483 = vmatmul.mubr.f32.gmra.mrb[0].mxu0 %v1414
    %v1484 = vpop.f32.mrb[0].mxu0
    %v1485 = vadd.f32 0.0, %v1484
    %v1486 = vpop.f32.mrb[0].mxu0
    %1487 = vmatprep.mubr.f32.mxu0 0.0
    %1488 = vmatmul.mubr.f32.gmra.mrb[0].mxu0 %v1416
    %v1489 = vpop.f32.mrb[0].mxu0
    %v1490 = vadd.f32 0.0, %v1489
    %v1491 = vpop.f32.mrb[0].mxu0
    %1492 = vdwg.mxu0
    %1493 = vmatprep.subr.mxu0 0.0
    %1494 = vmatpush1.msra.mxu0 %v1485
    %1495 = vmatprep.subr.mxu0 0.0
    %1496 = vmatpush1.msra.mxu0 %v1490
    %1497 = vmatprep.subr.mxu0 0.0
    %1498 = vmatpush1.msra.mxu0 0.0
    %1499 = vmatprep.subr.mxu0 0.0
    %1500 = vmatpush1.msra.mxu0 0.0
    %1501 = vmatprep.subr.mxu0 0.0
    %1502 = vmatpush1.msra.mxu0 0.0
    %1503 = vmatprep.subr.mxu0 0.0
    %1504 = vmatpush1.msra.mxu0 0.0
    %1505 = vmatprep.subr.mxu0 0.0
    %1506 = vmatpush1.msra.mxu0 0.0
    %1507 = vmatprep.subr.mxu0 0.0
    %1508 = vmatpush1.msra.mxu0 0.0
    %1509 = vmatprep.subr.mxu0 0.0
    %1510 = vmatpush1.msra.mxu0 0.0
    %1511 = vmatprep.subr.mxu0 0.0
    %1512 = vmatpush1.msra.mxu0 0.0
    %1513 = vmatprep.subr.mxu0 0.0
    %1514 = vmatpush1.msra.mxu0 0.0
    %1515 = vmatprep.subr.mxu0 0.0
    %1516 = vmatpush1.msra.mxu0 0.0
    %1517 = vmatprep.subr.mxu0 0.0
    %1518 = vmatpush1.msra.mxu0 0.0
    %1519 = vmatprep.subr.mxu0 0.0
    %1520 = vmatpush1.msra.mxu0 0.0
    %1521 = vmatprep.subr.mxu0 0.0
    %1522 = vmatpush1.msra.mxu0 0.0
    %1523 = vmatprep.subr.mxu0 0.0
    %1524 = vmatpush1.msra.mxu0 0.0
    %1525 = vmatprep.subr.mxu0 0.0
    %1526 = vmatpush1.msra.mxu0 0.0
    %1527 = vmatprep.subr.mxu0 0.0
    %1528 = vmatpush1.msra.mxu0 0.0
    %1529 = vmatprep.subr.mxu0 0.0
    %1530 = vmatpush1.msra.mxu0 0.0
    %1531 = vmatprep.subr.mxu0 0.0
    %1532 = vmatpush1.msra.mxu0 0.0
    %1533 = vmatprep.subr.mxu0 0.0
    %1534 = vmatpush1.msra.mxu0 0.0
    %1535 = vmatprep.subr.mxu0 0.0
    %1536 = vmatpush1.msra.mxu0 0.0
    %1537 = vmatprep.subr.mxu0 0.0
    %1538 = vmatpush1.msra.mxu0 0.0
    %1539 = vmatprep.subr.mxu0 0.0
    %1540 = vmatpush1.msra.mxu0 0.0
    %1541 = vmatprep.subr.mxu0 0.0
    %1542 = vmatpush1.msra.mxu0 0.0
    %1543 = vmatprep.subr.mxu0 0.0
    %1544 = vmatpush1.msra.mxu0 0.0
    %1545 = vmatprep.subr.mxu0 0.0
    %1546 = vmatpush1.msra.mxu0 0.0
    %1547 = vmatprep.subr.mxu0 0.0
    %1548 = vmatpush1.msra.mxu0 0.0
    %1549 = vmatprep.subr.mxu0 0.0
    %1550 = vmatpush1.msra.mxu0 0.0
    %1551 = vmatprep.subr.mxu0 0.0
    %1552 = vmatpush1.msra.mxu0 0.0
    %1553 = vmatprep.subr.mxu0 0.0
    %1554 = vmatpush1.msra.mxu0 0.0
    %1555 = vmatprep.subr.mxu0 0.0
    %1556 = vmatpush1.msra.mxu0 0.0
    %1557 = vmatprep.mubr.f32.mxu0 0.0
    %1558 = vmatmul.mubr.f32.gmra.mrb[0].mxu0 %v746
    %v1559 = vpop.f32.mrb[0].mxu0
    %v1560 = vadd.f32 0.0, %v1559
    %v1561 = vpop.f32.mrb[0].mxu0
    %1562 = vdwg.mxu0
    %v1564 = vrot.slane %v815, 7
    %v1566 = vsub.f32 %v815, %v1564
    %v1567 = vmul.f32 %v1566, 0.5
    %v1568 = vtanh.pop %v1567
    %v1569 = vmul.f32 %v1568, %v1568
    %v1571 = vrot.slane %v964, 7
    %v1573 = vsub.f32 %v964, %v1571
    %v1574 = vmul.f32 %v1573, 0.5
    %v1575 = vtanh.pop %v1574
    %v1576 = vmul.f32 %v1575, %v1575
    %v1578 = vrot.slane %v1113, 7
    %v1580 = vsub.f32 %v1113, %v1578
    %v1581 = vmul.f32 %v1580, 0.5
    %v1582 = vtanh.pop %v1581
    %v1583 = vmul.f32 %v1582, %v1582
    %v1585 = vrot.slane %v1262, 7
    %v1587 = vsub.f32 %v1262, %v1585
    %v1588 = vmul.f32 %v1587, 0.5
    %v1589 = vtanh.pop %v1588
    %v1590 = vmul.f32 %v1589, %v1589
    %v1592 = vrot.slane %v1411, 7
    %v1594 = vsub.f32 %v1411, %v1592
    %v1595 = vmul.f32 %v1594, 0.5
    %v1596 = vtanh.pop %v1595
    %v1597 = vmul.f32 %v1596, %v1596
    %v1599 = vrot.slane %v1560, 7
    %v1601 = vsub.f32 %v1560, %v1599
    %v1602 = vmul.f32 %v1601, 0.5
    %v1603 = vtanh.pop %v1602
    %v1604 = vmul.f32 %v1603, %v1603
    %v1605 = vmul.f32 %v1569, %v1590
    %v1607 = vrot.slane %v1605, 1
    %vm1609 = vcmask 63488
    %v1610 = vsel %vm1609, %v1607, 0.0
    %1611 = vadd.xlane.f32.xlu0 %v1610
    %v1612 = vpop.xlane.xlu0 %1611
    %v1613 = vrot.slane %v1612, 4
    %v1614 = vadd.f32 %v1612, %v1613
    %v1615 = vrot.slane %v1614, 2
    %v1616 = vadd.f32 %v1614, %v1615
    %v1617 = vrot.slane %v1616, 1
    %v1618 = vadd.f32 %v1616, %v1617
    %s1619 = vtos %v1618
    %s1620 = sadd.s32 %s161, 18
    %s1621 = scalar_lea.smem [#allocation2], %s1620
    %1622 = sst [smem:[%s1621]] %s1619
    %v1623 = vmul.f32 %v1576, %v1590
    %v1625 = vrot.slane %v1623, 1
    %v1627 = vsel %vm1609, %v1625, 0.0
    %1628 = vadd.xlane.f32.xlu0 %v1627
    %v1629 = vpop.xlane.xlu0 %1628
    %v1630 = vrot.slane %v1629, 4
    %v1631 = vadd.f32 %v1629, %v1630
    %v1632 = vrot.slane %v1631, 2
    %v1633 = vadd.f32 %v1631, %v1632
    %v1634 = vrot.slane %v1633, 1
    %v1635 = vadd.f32 %v1633, %v1634
    %s1636 = vtos %v1635
    %s1637 = sadd.s32 %s161, 19
    %s1638 = scalar_lea.smem [#allocation2], %s1637
    %1639 = sst [smem:[%s1638]] %s1636
    %v1640 = vmul.f32 %v1583, %v1590
    %v1642 = vrot.slane %v1640, 1
    %v1644 = vsel %vm1609, %v1642, 0.0
    %1645 = vadd.xlane.f32.xlu0 %v1644
    %v1646 = vpop.xlane.xlu0 %1645
    %v1647 = vrot.slane %v1646, 4
    %v1648 = vadd.f32 %v1646, %v1647
    %v1649 = vrot.slane %v1648, 2
    %v1650 = vadd.f32 %v1648, %v1649
    %v1651 = vrot.slane %v1650, 1
    %v1652 = vadd.f32 %v1650, %v1651
    %s1653 = vtos %v1652
    %s1654 = sadd.s32 %s161, 20
    %s1655 = scalar_lea.smem [#allocation2], %s1654
    %1656 = sst [smem:[%s1655]] %s1653
    %v1657 = vmul.f32 %v1569, %v1597
    %v1659 = vrot.slane %v1657, 1
    %v1661 = vsel %vm1609, %v1659, 0.0
    %1662 = vadd.xlane.f32.xlu0 %v1661
    %v1663 = vpop.xlane.xlu0 %1662
    %v1664 = vrot.slane %v1663, 4
    %v1665 = vadd.f32 %v1663, %v1664
    %v1666 = vrot.slane %v1665, 2
    %v1667 = vadd.f32 %v1665, %v1666
    %v1668 = vrot.slane %v1667, 1
    %v1669 = vadd.f32 %v1667, %v1668
    %s1670 = vtos %v1669
    %s1671 = sadd.s32 %s161, 21
    %s1672 = scalar_lea.smem [#allocation2], %s1671
    %1673 = sst [smem:[%s1672]] %s1670
    %v1674 = vmul.f32 %v1576, %v1597
    %v1676 = vrot.slane %v1674, 1
    %v1678 = vsel %vm1609, %v1676, 0.0
    %1679 = vadd.xlane.f32.xlu0 %v1678
    %v1680 = vpop.xlane.xlu0 %1679
    %v1681 = vrot.slane %v1680, 4
    %v1682 = vadd.f32 %v1680, %v1681
    %v1683 = vrot.slane %v1682, 2
    %v1684 = vadd.f32 %v1682, %v1683
    %v1685 = vrot.slane %v1684, 1
    %v1686 = vadd.f32 %v1684, %v1685
    %s1687 = vtos %v1686
    %s1688 = sadd.s32 %s161, 22
    %s1689 = scalar_lea.smem [#allocation2], %s1688
    %1690 = sst [smem:[%s1689]] %s1687
    %v1691 = vmul.f32 %v1583, %v1597
    %v1693 = vrot.slane %v1691, 1
    %v1695 = vsel %vm1609, %v1693, 0.0
    %1696 = vadd.xlane.f32.xlu0 %v1695
    %v1697 = vpop.xlane.xlu0 %1696
    %v1698 = vrot.slane %v1697, 4
    %v1699 = vadd.f32 %v1697, %v1698
    %v1700 = vrot.slane %v1699, 2
    %v1701 = vadd.f32 %v1699, %v1700
    %v1702 = vrot.slane %v1701, 1
    %v1703 = vadd.f32 %v1701, %v1702
    %s1704 = vtos %v1703
    %s1705 = sadd.s32 %s161, 23
    %s1706 = scalar_lea.smem [#allocation2], %s1705
    %1707 = sst [smem:[%s1706]] %s1704
    %v1708 = vmul.f32 %v1569, %v1604
    %v1710 = vrot.slane %v1708, 1
    %v1712 = vsel %vm1609, %v1710, 0.0
    %1713 = vadd.xlane.f32.xlu0 %v1712
    %v1714 = vpop.xlane.xlu0 %1713
    %v1715 = vrot.slane %v1714, 4
    %v1716 = vadd.f32 %v1714, %v1715
    %v1717 = vrot.slane %v1716, 2
    %v1718 = vadd.f32 %v1716, %v1717
    %v1719 = vrot.slane %v1718, 1
    %v1720 = vadd.f32 %v1718, %v1719
    %s1721 = vtos %v1720
    %s1722 = sadd.s32 %s161, 24
    %s1723 = scalar_lea.smem [#allocation2], %s1722
    %1724 = sst [smem:[%s1723]] %s1721
    %v1725 = vmul.f32 %v1576, %v1604
    %v1727 = vrot.slane %v1725, 1
    %v1729 = vsel %vm1609, %v1727, 0.0
    %1730 = vadd.xlane.f32.xlu0 %v1729
    %v1731 = vpop.xlane.xlu0 %1730
    %v1732 = vrot.slane %v1731, 4
    %v1733 = vadd.f32 %v1731, %v1732
    %v1734 = vrot.slane %v1733, 2
    %v1735 = vadd.f32 %v1733, %v1734
    %v1736 = vrot.slane %v1735, 1
    %v1737 = vadd.f32 %v1735, %v1736
    %s1738 = vtos %v1737
    %s1739 = sadd.s32 %s161, 25
    %s1740 = scalar_lea.smem [#allocation2], %s1739
    %1741 = sst [smem:[%s1740]] %s1738
    %v1742 = vmul.f32 %v1583, %v1604
    %v1744 = vrot.slane %v1742, 1
    %v1746 = vsel %vm1609, %v1744, 0.0
    %1747 = vadd.xlane.f32.xlu0 %v1746
    %v1748 = vpop.xlane.xlu0 %1747
    %v1749 = vrot.slane %v1748, 4
    %v1750 = vadd.f32 %v1748, %v1749
    %v1751 = vrot.slane %v1750, 2
    %v1752 = vadd.f32 %v1750, %v1751
    %v1753 = vrot.slane %v1752, 1
    %v1754 = vadd.f32 %v1752, %v1753
    %s1755 = vtos %v1754
    %s1756 = sadd.s32 %s161, 26
    %s1757 = scalar_lea.smem [#allocation2], %s1756
    %1758 = sst [smem:[%s1757]] %s1755
    %1759 = vrot.lane.b32.xlu0 %v815, 1
    %v1760 = vpop.permute.xlu0 %1759
    %v1762 = vsub.f32 %v815, %v1760
    %v1763 = vmul.f32 %v1762, 0.5
    %v1764 = vtanh.pop %v1763
    %v1765 = vmul.f32 %v1764, %v1764
    %1766 = vrot.lane.b32.xlu0 %v964, 1
    %v1767 = vpop.permute.xlu0 %1766
    %v1769 = vsub.f32 %v964, %v1767
    %v1770 = vmul.f32 %v1769, 0.5
    %v1771 = vtanh.pop %v1770
    %v1772 = vmul.f32 %v1771, %v1771
    %1773 = vrot.lane.b32.xlu0 %v1113, 1
    %v1774 = vpop.permute.xlu0 %1773
    %v1776 = vsub.f32 %v1113, %v1774
    %v1777 = vmul.f32 %v1776, 0.5
    %v1778 = vtanh.pop %v1777
    %v1779 = vmul.f32 %v1778, %v1778
    %1780 = vrot.lane.b32.xlu0 %v1262, 1
    %v1781 = vpop.permute.xlu0 %1780
    %v1783 = vsub.f32 %v1262, %v1781
    %v1784 = vmul.f32 %v1783, 0.5
    %v1785 = vtanh.pop %v1784
    %v1786 = vmul.f32 %v1785, %v1785
    %1787 = vrot.lane.b32.xlu0 %v1411, 1
    %v1788 = vpop.permute.xlu0 %1787
    %v1790 = vsub.f32 %v1411, %v1788
    %v1791 = vmul.f32 %v1790, 0.5
    %v1792 = vtanh.pop %v1791
    %v1793 = vmul.f32 %v1792, %v1792
    %1794 = vrot.lane.b32.xlu0 %v1560, 1
    %v1795 = vpop.permute.xlu0 %1794
    %v1797 = vsub.f32 %v1560, %v1795
    %v1798 = vmul.f32 %v1797, 0.5
    %v1799 = vtanh.pop %v1798
    %v1800 = vmul.f32 %v1799, %v1799
    %v1801 = vmul.f32 %v1765, %v1786
    %1803 = vrot.lane.b32.xlu0 %v1801, 127
    %v1804 = vpop.permute.xlu0 %1803
    %vm1806 = vcmask 56320
    %v1807 = vsel %vm1806, %v1804, 0.0
    %1808 = vadd.xlane.f32.xlu0 %v1807
    %v1809 = vpop.xlane.xlu0 %1808
    %v1810 = vrot.slane %v1809, 4
    %v1811 = vadd.f32 %v1809, %v1810
    %v1812 = vrot.slane %v1811, 2
    %v1813 = vadd.f32 %v1811, %v1812
    %v1814 = vrot.slane %v1813, 1
    %v1815 = vadd.f32 %v1813, %v1814
    %s1816 = vtos %v1815
    %s1817 = sadd.s32 %s161, 27
    %s1818 = scalar_lea.smem [#allocation2], %s1817
    %1819 = sst [smem:[%s1818]] %s1816
    %v1820 = vmul.f32 %v1772, %v1786
    %1822 = vrot.lane.b32.xlu0 %v1820, 127
    %v1823 = vpop.permute.xlu0 %1822
    %v1825 = vsel %vm1806, %v1823, 0.0
    %1826 = vadd.xlane.f32.xlu0 %v1825
    %v1827 = vpop.xlane.xlu0 %1826
    %v1828 = vrot.slane %v1827, 4
    %v1829 = vadd.f32 %v1827, %v1828
    %v1830 = vrot.slane %v1829, 2
    %v1831 = vadd.f32 %v1829, %v1830
    %v1832 = vrot.slane %v1831, 1
    %v1833 = vadd.f32 %v1831, %v1832
    %s1834 = vtos %v1833
    %s1835 = sadd.s32 %s161, 28
    %s1836 = scalar_lea.smem [#allocation2], %s1835
    %1837 = sst [smem:[%s1836]] %s1834
    %v1838 = vmul.f32 %v1779, %v1786
    %1840 = vrot.lane.b32.xlu0 %v1838, 127
    %v1841 = vpop.permute.xlu0 %1840
    %v1843 = vsel %vm1806, %v1841, 0.0
    %1844 = vadd.xlane.f32.xlu0 %v1843
    %v1845 = vpop.xlane.xlu0 %1844
    %v1846 = vrot.slane %v1845, 4
    %v1847 = vadd.f32 %v1845, %v1846
    %v1848 = vrot.slane %v1847, 2
    %v1849 = vadd.f32 %v1847, %v1848
    %v1850 = vrot.slane %v1849, 1
    %v1851 = vadd.f32 %v1849, %v1850
    %s1852 = vtos %v1851
    %s1853 = sadd.s32 %s161, 29
    %s1854 = scalar_lea.smem [#allocation2], %s1853
    %1855 = sst [smem:[%s1854]] %s1852
    %v1856 = vmul.f32 %v1765, %v1793
    %1858 = vrot.lane.b32.xlu0 %v1856, 127
    %v1859 = vpop.permute.xlu0 %1858
    %v1861 = vsel %vm1806, %v1859, 0.0
    %1862 = vadd.xlane.f32.xlu0 %v1861
    %v1863 = vpop.xlane.xlu0 %1862
    %v1864 = vrot.slane %v1863, 4
    %v1865 = vadd.f32 %v1863, %v1864
    %v1866 = vrot.slane %v1865, 2
    %v1867 = vadd.f32 %v1865, %v1866
    %v1868 = vrot.slane %v1867, 1
    %v1869 = vadd.f32 %v1867, %v1868
    %s1870 = vtos %v1869
    %s1871 = sadd.s32 %s161, 30
    %s1872 = scalar_lea.smem [#allocation2], %s1871
    %1873 = sst [smem:[%s1872]] %s1870
    %v1874 = vmul.f32 %v1772, %v1793
    %1876 = vrot.lane.b32.xlu0 %v1874, 127
    %v1877 = vpop.permute.xlu0 %1876
    %v1879 = vsel %vm1806, %v1877, 0.0
    %1880 = vadd.xlane.f32.xlu0 %v1879
    %v1881 = vpop.xlane.xlu0 %1880
    %v1882 = vrot.slane %v1881, 4
    %v1883 = vadd.f32 %v1881, %v1882
    %v1884 = vrot.slane %v1883, 2
    %v1885 = vadd.f32 %v1883, %v1884
    %v1886 = vrot.slane %v1885, 1
    %v1887 = vadd.f32 %v1885, %v1886
    %s1888 = vtos %v1887
    %s1889 = sadd.s32 %s161, 31
    %s1890 = scalar_lea.smem [#allocation2], %s1889
    %1891 = sst [smem:[%s1890]] %s1888
    %v1892 = vmul.f32 %v1779, %v1793
    %1894 = vrot.lane.b32.xlu0 %v1892, 127
    %v1895 = vpop.permute.xlu0 %1894
    %v1897 = vsel %vm1806, %v1895, 0.0
    %1898 = vadd.xlane.f32.xlu0 %v1897
    %v1899 = vpop.xlane.xlu0 %1898
    %v1900 = vrot.slane %v1899, 4
    %v1901 = vadd.f32 %v1899, %v1900
    %v1902 = vrot.slane %v1901, 2
    %v1903 = vadd.f32 %v1901, %v1902
    %v1904 = vrot.slane %v1903, 1
    %v1905 = vadd.f32 %v1903, %v1904
    %s1906 = vtos %v1905
    %s1907 = sadd.s32 %s161, 32
    %s1908 = scalar_lea.smem [#allocation2], %s1907
    %1909 = sst [smem:[%s1908]] %s1906
    %v1910 = vmul.f32 %v1765, %v1800
    %1912 = vrot.lane.b32.xlu0 %v1910, 127
    %v1913 = vpop.permute.xlu0 %1912
    %v1915 = vsel %vm1806, %v1913, 0.0
    %1916 = vadd.xlane.f32.xlu0 %v1915
    %v1917 = vpop.xlane.xlu0 %1916
    %v1918 = vrot.slane %v1917, 4
    %v1919 = vadd.f32 %v1917, %v1918
    %v1920 = vrot.slane %v1919, 2
    %v1921 = vadd.f32 %v1919, %v1920
    %v1922 = vrot.slane %v1921, 1
    %v1923 = vadd.f32 %v1921, %v1922
    %s1924 = vtos %v1923
    %s1925 = sadd.s32 %s161, 33
    %s1926 = scalar_lea.smem [#allocation2], %s1925
    %1927 = sst [smem:[%s1926]] %s1924
    %v1928 = vmul.f32 %v1772, %v1800
    %1930 = vrot.lane.b32.xlu0 %v1928, 127
    %v1931 = vpop.permute.xlu0 %1930
    %v1933 = vsel %vm1806, %v1931, 0.0
    %1934 = vadd.xlane.f32.xlu0 %v1933
    %v1935 = vpop.xlane.xlu0 %1934
    %v1936 = vrot.slane %v1935, 4
    %v1937 = vadd.f32 %v1935, %v1936
    %v1938 = vrot.slane %v1937, 2
    %v1939 = vadd.f32 %v1937, %v1938
    %v1940 = vrot.slane %v1939, 1
    %v1941 = vadd.f32 %v1939, %v1940
    %s1942 = vtos %v1941
    %s1943 = sadd.s32 %s161, 34
    %s1944 = scalar_lea.smem [#allocation2], %s1943
    %1945 = sst [smem:[%s1944]] %s1942
    %v1946 = vmul.f32 %v1779, %v1800
    %1948 = vrot.lane.b32.xlu0 %v1946, 127
    %v1949 = vpop.permute.xlu0 %1948
    %v1951 = vsel %vm1806, %v1949, 0.0
    %1952 = vadd.xlane.f32.xlu0 %v1951
    %v1953 = vpop.xlane.xlu0 %1952
    %v1954 = vrot.slane %v1953, 4
    %v1955 = vadd.f32 %v1953, %v1954
    %v1956 = vrot.slane %v1955, 2
    %v1957 = vadd.f32 %v1955, %v1956
    %v1958 = vrot.slane %v1957, 1
    %v1959 = vadd.f32 %v1957, %v1958
    %s1960 = vtos %v1959
    %s1961 = sadd.s32 %s161, 35
    %s1962 = scalar_lea.smem [#allocation2], %s1961
    %1963 = sst [smem:[%s1962]] %s1960
    %vm1964 = vcmask 64512
    %v1965 = vsel %vm1964, %v815, 0
    %1967 = vmatprep.subr.mxu0 0.0
    %1968 = vmatpush1.msra.mxu0 %v28
    %1969 = vmatprep.subr.mxu0 0.0
    %1970 = vmatpush1.msra.mxu0 0.0
    %1971 = vmatprep.subr.mxu0 0.0
    %1972 = vmatpush1.msra.mxu0 0.0
    %1973 = vmatprep.subr.mxu0 0.0
    %1974 = vmatpush1.msra.mxu0 0.0
    %1975 = vmatprep.subr.mxu0 0.0
    %1976 = vmatpush1.msra.mxu0 0.0
    %1977 = vmatprep.subr.mxu0 0.0
    %1978 = vmatpush1.msra.mxu0 0.0
    %1979 = vmatprep.subr.mxu0 0.0
    %1980 = vmatpush1.msra.mxu0 0.0
    %1981 = vmatprep.subr.mxu0 0.0
    %1982 = vmatpush1.msra.mxu0 0.0
    %1983 = vmatprep.subr.mxu0 0.0
    %1984 = vmatpush1.msra.mxu0 0.0
    %1985 = vmatprep.subr.mxu0 0.0
    %1986 = vmatpush1.msra.mxu0 0.0
    %1987 = vmatprep.subr.mxu0 0.0
    %1988 = vmatpush1.msra.mxu0 0.0
    %1989 = vmatprep.subr.mxu0 0.0
    %1990 = vmatpush1.msra.mxu0 0.0
    %1991 = vmatprep.subr.mxu0 0.0
    %1992 = vmatpush1.msra.mxu0 0.0
    %1993 = vmatprep.subr.mxu0 0.0
    %1994 = vmatpush1.msra.mxu0 0.0
    %1995 = vmatprep.subr.mxu0 0.0
    %1996 = vmatpush1.msra.mxu0 0.0
    %1997 = vmatprep.subr.mxu0 0.0
    %1998 = vmatpush1.msra.mxu0 0.0
    %1999 = vmatprep.subr.mxu0 0.0
    %2000 = vmatpush1.msra.mxu0 0.0
    %2001 = vmatprep.subr.mxu0 0.0
    %2002 = vmatpush1.msra.mxu0 0.0
    %2003 = vmatprep.subr.mxu0 0.0
    %2004 = vmatpush1.msra.mxu0 0.0
    %2005 = vmatprep.subr.mxu0 0.0
    %2006 = vmatpush1.msra.mxu0 0.0
    %2007 = vmatprep.subr.mxu0 0.0
    %2008 = vmatpush1.msra.mxu0 0.0
    %2009 = vmatprep.subr.mxu0 0.0
    %2010 = vmatpush1.msra.mxu0 0.0
    %2011 = vmatprep.subr.mxu0 0.0
    %2012 = vmatpush1.msra.mxu0 0.0
    %2013 = vmatprep.subr.mxu0 0.0
    %2014 = vmatpush1.msra.mxu0 0.0
    %2015 = vmatprep.subr.mxu0 0.0
    %2016 = vmatpush1.msra.mxu0 0.0
    %2017 = vmatprep.subr.mxu0 0.0
    %2018 = vmatpush1.msra.mxu0 0.0
    %2019 = vmatprep.subr.mxu0 0.0
    %2020 = vmatpush1.msra.mxu0 0.0
    %2021 = vmatprep.subr.mxu0 0.0
    %2022 = vmatpush1.msra.mxu0 0.0
    %2023 = vmatprep.subr.mxu0 0.0
    %2024 = vmatpush1.msra.mxu0 0.0
    %2025 = vmatprep.subr.mxu0 0.0
    %2026 = vmatpush1.msra.mxu0 0.0
    %2027 = vmatprep.subr.mxu0 0.0
    %2028 = vmatpush1.msra.mxu0 0.0
    %2029 = vmatprep.subr.mxu0 0.0
    %2030 = vmatpush1.msra.mxu0 0.0
    %2031 = vmatprep.mubr.f32.mxu0 0.0
    %2032 = vmatmul.mubr.f32.gmra.mrb[0].mxu0 %v1965
    %v2033 = vpop.f32.mrb[0].mxu0
    %v2034 = vadd.f32 0.0, %v2033
    %v2035 = vpop.f32.mrb[0].mxu0
    %2036 = vdwg.mxu0
    %v2038 = vsel %vm1964, %v27, 0
    %2040 = vmatprep.subr.mxu0 0.0
    %2041 = vmatpush1.msra.mxu0 %v2034
    %2042 = vmatprep.subr.mxu0 0.0
    %2043 = vmatpush1.msra.mxu0 0.0
    %2044 = vmatprep.subr.mxu0 0.0
    %2045 = vmatpush1.msra.mxu0 0.0
    %2046 = vmatprep.subr.mxu0 0.0
    %2047 = vmatpush1.msra.mxu0 0.0
    %2048 = vmatprep.subr.mxu0 0.0
    %2049 = vmatpush1.msra.mxu0 0.0
    %2050 = vmatprep.subr.mxu0 0.0
    %2051 = vmatpush1.msra.mxu0 0.0
    %2052 = vmatprep.subr.mxu0 0.0
    %2053 = vmatpush1.msra.mxu0 0.0
    %2054 = vmatprep.subr.mxu0 0.0
    %2055 = vmatpush1.msra.mxu0 0.0
    %2056 = vmatprep.subr.mxu0 0.0
    %2057 = vmatpush1.msra.mxu0 0.0
    %2058 = vmatprep.subr.mxu0 0.0
    %2059 = vmatpush1.msra.mxu0 0.0
    %2060 = vmatprep.subr.mxu0 0.0
    %2061 = vmatpush1.msra.mxu0 0.0
    %2062 = vmatprep.subr.mxu0 0.0
    %2063 = vmatpush1.msra.mxu0 0.0
    %2064 = vmatprep.subr.mxu0 0.0
    %2065 = vmatpush1.msra.mxu0 0.0
    %2066 = vmatprep.subr.mxu0 0.0
    %2067 = vmatpush1.msra.mxu0 0.0
    %2068 = vmatprep.subr.mxu0 0.0
    %2069 = vmatpush1.msra.mxu0 0.0
    %2070 = vmatprep.subr.mxu0 0.0
    %2071 = vmatpush1.msra.mxu0 0.0
    %2072 = vmatprep.subr.mxu0 0.0
    %2073 = vmatpush1.msra.mxu0 0.0
    %2074 = vmatprep.subr.mxu0 0.0
    %2075 = vmatpush1.msra.mxu0 0.0
    %2076 = vmatprep.subr.mxu0 0.0
    %2077 = vmatpush1.msra.mxu0 0.0
    %2078 = vmatprep.subr.mxu0 0.0
    %2079 = vmatpush1.msra.mxu0 0.0
    %2080 = vmatprep.subr.mxu0 0.0
    %2081 = vmatpush1.msra.mxu0 0.0
    %2082 = vmatprep.subr.mxu0 0.0
    %2083 = vmatpush1.msra.mxu0 0.0
    %2084 = vmatprep.subr.mxu0 0.0
    %2085 = vmatpush1.msra.mxu0 0.0
    %2086 = vmatprep.subr.mxu0 0.0
    %2087 = vmatpush1.msra.mxu0 0.0
    %2088 = vmatprep.subr.mxu0 0.0
    %2089 = vmatpush1.msra.mxu0 0.0
    %2090 = vmatprep.subr.mxu0 0.0
    %2091 = vmatpush1.msra.mxu0 0.0
    %2092 = vmatprep.subr.mxu0 0.0
    %2093 = vmatpush1.msra.mxu0 0.0
    %2094 = vmatprep.subr.mxu0 0.0
    %2095 = vmatpush1.msra.mxu0 0.0
    %2096 = vmatprep.subr.mxu0 0.0
    %2097 = vmatpush1.msra.mxu0 0.0
    %2098 = vmatprep.subr.mxu0 0.0
    %2099 = vmatpush1.msra.mxu0 0.0
    %2100 = vmatprep.subr.mxu0 0.0
    %2101 = vmatpush1.msra.mxu0 0.0
    %2102 = vmatprep.subr.mxu0 0.0
    %2103 = vmatpush1.msra.mxu0 0.0
    %2104 = vmatprep.mubr.f32.mxu0 0.0
    %2105 = vmatmul.mubr.f32.gmra.mrb[0].mxu0 %v2038
    %v2106 = vpop.f32.mrb[0].mxu0
    %v2107 = vadd.f32 0.0, %v2106
    %v2108 = vpop.f32.mrb[0].mxu0
    %2109 = vdwg.mxu0
    %v2110 = vsel %vm1964, %v964, 0
    %2112 = vmatprep.subr.mxu0 0.0
    %2113 = vmatpush1.msra.mxu0 %v28
    %2114 = vmatprep.subr.mxu0 0.0
    %2115 = vmatpush1.msra.mxu0 0.0
    %2116 = vmatprep.subr.mxu0 0.0
    %2117 = vmatpush1.msra.mxu0 0.0
    %2118 = vmatprep.subr.mxu0 0.0
    %2119 = vmatpush1.msra.mxu0 0.0
    %2120 = vmatprep.subr.mxu0 0.0
    %2121 = vmatpush1.msra.mxu0 0.0
    %2122 = vmatprep.subr.mxu0 0.0
    %2123 = vmatpush1.msra.mxu0 0.0
    %2124 = vmatprep.subr.mxu0 0.0
    %2125 = vmatpush1.msra.mxu0 0.0
    %2126 = vmatprep.subr.mxu0 0.0
    %2127 = vmatpush1.msra.mxu0 0.0
    %2128 = vmatprep.subr.mxu0 0.0
    %2129 = vmatpush1.msra.mxu0 0.0
    %2130 = vmatprep.subr.mxu0 0.0
    %2131 = vmatpush1.msra.mxu0 0.0
    %2132 = vmatprep.subr.mxu0 0.0
    %2133 = vmatpush1.msra.mxu0 0.0
    %2134 = vmatprep.subr.mxu0 0.0
    %2135 = vmatpush1.msra.mxu0 0.0
    %2136 = vmatprep.subr.mxu0 0.0
    %2137 = vmatpush1.msra.mxu0 0.0
    %2138 = vmatprep.subr.mxu0 0.0
    %2139 = vmatpush1.msra.mxu0 0.0
    %2140 = vmatprep.subr.mxu0 0.0
    %2141 = vmatpush1.msra.mxu0 0.0
    %2142 = vmatprep.subr.mxu0 0.0
    %2143 = vmatpush1.msra.mxu0 0.0
    %2144 = vmatprep.subr.mxu0 0.0
    %2145 = vmatpush1.msra.mxu0 0.0
    %2146 = vmatprep.subr.mxu0 0.0
    %2147 = vmatpush1.msra.mxu0 0.0
    %2148 = vmatprep.subr.mxu0 0.0
    %2149 = vmatpush1.msra.mxu0 0.0
    %2150 = vmatprep.subr.mxu0 0.0
    %2151 = vmatpush1.msra.mxu0 0.0
    %2152 = vmatprep.subr.mxu0 0.0
    %2153 = vmatpush1.msra.mxu0 0.0
    %2154 = vmatprep.subr.mxu0 0.0
    %2155 = vmatpush1.msra.mxu0 0.0
    %2156 = vmatprep.subr.mxu0 0.0
    %2157 = vmatpush1.msra.mxu0 0.0
    %2158 = vmatprep.subr.mxu0 0.0
    %2159 = vmatpush1.msra.mxu0 0.0
    %2160 = vmatprep.subr.mxu0 0.0
    %2161 = vmatpush1.msra.mxu0 0.0
    %2162 = vmatprep.subr.mxu0 0.0
    %2163 = vmatpush1.msra.mxu0 0.0
    %2164 = vmatprep.subr.mxu0 0.0
    %2165 = vmatpush1.msra.mxu0 0.0
    %2166 = vmatprep.subr.mxu0 0.0
    %2167 = vmatpush1.msra.mxu0 0.0
    %2168 = vmatprep.subr.mxu0 0.0
    %2169 = vmatpush1.msra.mxu0 0.0
    %2170 = vmatprep.subr.mxu0 0.0
    %2171 = vmatpush1.msra.mxu0 0.0
    %2172 = vmatprep.subr.mxu0 0.0
    %2173 = vmatpush1.msra.mxu0 0.0
    %2174 = vmatprep.subr.mxu0 0.0
    %2175 = vmatpush1.msra.mxu0 0.0
    %2176 = vmatprep.mubr.f32.mxu0 0.0
    %2177 = vmatmul.mubr.f32.gmra.mrb[0].mxu0 %v2110
    %v2178 = vpop.f32.mrb[0].mxu0
    %v2179 = vadd.f32 0.0, %v2178
    %v2180 = vpop.f32.mrb[0].mxu0
    %2181 = vdwg.mxu0
    %2182 = vmatprep.subr.mxu0 0.0
    %2183 = vmatpush1.msra.mxu0 %v2179
    %2184 = vmatprep.subr.mxu0 0.0
    %2185 = vmatpush1.msra.mxu0 0.0
    %2186 = vmatprep.subr.mxu0 0.0
    %2187 = vmatpush1.msra.mxu0 0.0
    %2188 = vmatprep.subr.mxu0 0.0
    %2189 = vmatpush1.msra.mxu0 0.0
    %2190 = vmatprep.subr.mxu0 0.0
    %2191 = vmatpush1.msra.mxu0 0.0
    %2192 = vmatprep.subr.mxu0 0.0
    %2193 = vmatpush1.msra.mxu0 0.0
    %2194 = vmatprep.subr.mxu0 0.0
    %2195 = vmatpush1.msra.mxu0 0.0
    %2196 = vmatprep.subr.mxu0 0.0
    %2197 = vmatpush1.msra.mxu0 0.0
    %2198 = vmatprep.subr.mxu0 0.0
    %2199 = vmatpush1.msra.mxu0 0.0
    %2200 = vmatprep.subr.mxu0 0.0
    %2201 = vmatpush1.msra.mxu0 0.0
    %2202 = vmatprep.subr.mxu0 0.0
    %2203 = vmatpush1.msra.mxu0 0.0
    %2204 = vmatprep.subr.mxu0 0.0
    %2205 = vmatpush1.msra.mxu0 0.0
    %2206 = vmatprep.subr.mxu0 0.0
    %2207 = vmatpush1.msra.mxu0 0.0
    %2208 = vmatprep.subr.mxu0 0.0
    %2209 = vmatpush1.msra.mxu0 0.0
    %2210 = vmatprep.subr.mxu0 0.0
    %2211 = vmatpush1.msra.mxu0 0.0
    %2212 = vmatprep.subr.mxu0 0.0
    %2213 = vmatpush1.msra.mxu0 0.0
    %2214 = vmatprep.subr.mxu0 0.0
    %2215 = vmatpush1.msra.mxu0 0.0
    %2216 = vmatprep.subr.mxu0 0.0
    %2217 = vmatpush1.msra.mxu0 0.0
    %2218 = vmatprep.subr.mxu0 0.0
    %2219 = vmatpush1.msra.mxu0 0.0
    %2220 = vmatprep.subr.mxu0 0.0
    %2221 = vmatpush1.msra.mxu0 0.0
    %2222 = vmatprep.subr.mxu0 0.0
    %2223 = vmatpush1.msra.mxu0 0.0
    %2224 = vmatprep.subr.mxu0 0.0
    %2225 = vmatpush1.msra.mxu0 0.0
    %2226 = vmatprep.subr.mxu0 0.0
    %2227 = vmatpush1.msra.mxu0 0.0
    %2228 = vmatprep.subr.mxu0 0.0
    %2229 = vmatpush1.msra.mxu0 0.0
    %2230 = vmatprep.subr.mxu0 0.0
    %2231 = vmatpush1.msra.mxu0 0.0
    %2232 = vmatprep.subr.mxu0 0.0
    %2233 = vmatpush1.msra.mxu0 0.0
    %2234 = vmatprep.subr.mxu0 0.0
    %2235 = vmatpush1.msra.mxu0 0.0
    %2236 = vmatprep.subr.mxu0 0.0
    %2237 = vmatpush1.msra.mxu0 0.0
    %2238 = vmatprep.subr.mxu0 0.0
    %2239 = vmatpush1.msra.mxu0 0.0
    %2240 = vmatprep.subr.mxu0 0.0
    %2241 = vmatpush1.msra.mxu0 0.0
    %2242 = vmatprep.subr.mxu0 0.0
    %2243 = vmatpush1.msra.mxu0 0.0
    %2244 = vmatprep.subr.mxu0 0.0
    %2245 = vmatpush1.msra.mxu0 0.0
    %2246 = vmatprep.mubr.f32.mxu0 0.0
    %2247 = vmatmul.mubr.f32.gmra.mrb[0].mxu0 %v2038
    %v2248 = vpop.f32.mrb[0].mxu0
    %v2249 = vadd.f32 0.0, %v2248
    %v2250 = vpop.f32.mrb[0].mxu0
    %2251 = vdwg.mxu0
    %v2252 = vsel %vm1964, %v1113, 0
    %2254 = vmatprep.subr.mxu0 0.0
    %2255 = vmatpush1.msra.mxu0 %v28
    %2256 = vmatprep.subr.mxu0 0.0
    %2257 = vmatpush1.msra.mxu0 0.0
    %2258 = vmatprep.subr.mxu0 0.0
    %2259 = vmatpush1.msra.mxu0 0.0
    %2260 = vmatprep.subr.mxu0 0.0
    %2261 = vmatpush1.msra.mxu0 0.0
    %2262 = vmatprep.subr.mxu0 0.0
    %2263 = vmatpush1.msra.mxu0 0.0
    %2264 = vmatprep.subr.mxu0 0.0
    %2265 = vmatpush1.msra.mxu0 0.0
    %2266 = vmatprep.subr.mxu0 0.0
    %2267 = vmatpush1.msra.mxu0 0.0
    %2268 = vmatprep.subr.mxu0 0.0
    %2269 = vmatpush1.msra.mxu0 0.0
    %2270 = vmatprep.subr.mxu0 0.0
    %2271 = vmatpush1.msra.mxu0 0.0
    %2272 = vmatprep.subr.mxu0 0.0
    %2273 = vmatpush1.msra.mxu0 0.0
    %2274 = vmatprep.subr.mxu0 0.0
    %2275 = vmatpush1.msra.mxu0 0.0
    %2276 = vmatprep.subr.mxu0 0.0
    %2277 = vmatpush1.msra.mxu0 0.0
    %2278 = vmatprep.subr.mxu0 0.0
    %2279 = vmatpush1.msra.mxu0 0.0
    %2280 = vmatprep.subr.mxu0 0.0
    %2281 = vmatpush1.msra.mxu0 0.0
    %2282 = vmatprep.subr.mxu0 0.0
    %2283 = vmatpush1.msra.mxu0 0.0
    %2284 = vmatprep.subr.mxu0 0.0
    %2285 = vmatpush1.msra.mxu0 0.0
    %2286 = vmatprep.subr.mxu0 0.0
    %2287 = vmatpush1.msra.mxu0 0.0
    %2288 = vmatprep.subr.mxu0 0.0
    %2289 = vmatpush1.msra.mxu0 0.0
    %2290 = vmatprep.subr.mxu0 0.0
    %2291 = vmatpush1.msra.mxu0 0.0
    %2292 = vmatprep.subr.mxu0 0.0
    %2293 = vmatpush1.msra.mxu0 0.0
    %2294 = vmatprep.subr.mxu0 0.0
    %2295 = vmatpush1.msra.mxu0 0.0
    %2296 = vmatprep.subr.mxu0 0.0
    %2297 = vmatpush1.msra.mxu0 0.0
    %2298 = vmatprep.subr.mxu0 0.0
    %2299 = vmatpush1.msra.mxu0 0.0
    %2300 = vmatprep.subr.mxu0 0.0
    %2301 = vmatpush1.msra.mxu0 0.0
    %2302 = vmatprep.subr.mxu0 0.0
    %2303 = vmatpush1.msra.mxu0 0.0
    %2304 = vmatprep.subr.mxu0 0.0
    %2305 = vmatpush1.msra.mxu0 0.0
    %2306 = vmatprep.subr.mxu0 0.0
    %2307 = vmatpush1.msra.mxu0 0.0
    %2308 = vmatprep.subr.mxu0 0.0
    %2309 = vmatpush1.msra.mxu0 0.0
    %2310 = vmatprep.subr.mxu0 0.0
    %2311 = vmatpush1.msra.mxu0 0.0
    %2312 = vmatprep.subr.mxu0 0.0
    %2313 = vmatpush1.msra.mxu0 0.0
    %2314 = vmatprep.subr.mxu0 0.0
    %2315 = vmatpush1.msra.mxu0 0.0
    %2316 = vmatprep.subr.mxu0 0.0
    %2317 = vmatpush1.msra.mxu0 0.0
    %2318 = vmatprep.mubr.f32.mxu0 0.0
    %2319 = vmatmul.mubr.f32.gmra.mrb[0].mxu0 %v2252
    %v2320 = vpop.f32.mrb[0].mxu0
    %v2321 = vadd.f32 0.0, %v2320
    %v2322 = vpop.f32.mrb[0].mxu0
    %2323 = vdwg.mxu0
    %2324 = vmatprep.subr.mxu0 0.0
    %2325 = vmatpush1.msra.mxu0 %v2321
    %2326 = vmatprep.subr.mxu0 0.0
    %2327 = vmatpush1.msra.mxu0 0.0
    %2328 = vmatprep.subr.mxu0 0.0
    %2329 = vmatpush1.msra.mxu0 0.0
    %2330 = vmatprep.subr.mxu0 0.0
    %2331 = vmatpush1.msra.mxu0 0.0
    %2332 = vmatprep.subr.mxu0 0.0
    %2333 = vmatpush1.msra.mxu0 0.0
    %2334 = vmatprep.subr.mxu0 0.0
    %2335 = vmatpush1.msra.mxu0 0.0
    %2336 = vmatprep.subr.mxu0 0.0
    %2337 = vmatpush1.msra.mxu0 0.0
    %2338 = vmatprep.subr.mxu0 0.0
    %2339 = vmatpush1.msra.mxu0 0.0
    %2340 = vmatprep.subr.mxu0 0.0
    %2341 = vmatpush1.msra.mxu0 0.0
    %2342 = vmatprep.subr.mxu0 0.0
    %2343 = vmatpush1.msra.mxu0 0.0
    %2344 = vmatprep.subr.mxu0 0.0
    %2345 = vmatpush1.msra.mxu0 0.0
    %2346 = vmatprep.subr.mxu0 0.0
    %2347 = vmatpush1.msra.mxu0 0.0
    %2348 = vmatprep.subr.mxu0 0.0
    %2349 = vmatpush1.msra.mxu0 0.0
    %2350 = vmatprep.subr.mxu0 0.0
    %2351 = vmatpush1.msra.mxu0 0.0
    %2352 = vmatprep.subr.mxu0 0.0
    %2353 = vmatpush1.msra.mxu0 0.0
    %2354 = vmatprep.subr.mxu0 0.0
    %2355 = vmatpush1.msra.mxu0 0.0
    %2356 = vmatprep.subr.mxu0 0.0
    %2357 = vmatpush1.msra.mxu0 0.0
    %2358 = vmatprep.subr.mxu0 0.0
    %2359 = vmatpush1.msra.mxu0 0.0
    %2360 = vmatprep.subr.mxu0 0.0
    %2361 = vmatpush1.msra.mxu0 0.0
    %2362 = vmatprep.subr.mxu0 0.0
    %2363 = vmatpush1.msra.mxu0 0.0
    %2364 = vmatprep.subr.mxu0 0.0
    %2365 = vmatpush1.msra.mxu0 0.0
    %2366 = vmatprep.subr.mxu0 0.0
    %2367 = vmatpush1.msra.mxu0 0.0
    %2368 = vmatprep.subr.mxu0 0.0
    %2369 = vmatpush1.msra.mxu0 0.0
    %2370 = vmatprep.subr.mxu0 0.0
    %2371 = vmatpush1.msra.mxu0 0.0
    %2372 = vmatprep.subr.mxu0 0.0
    %2373 = vmatpush1.msra.mxu0 0.0
    %2374 = vmatprep.subr.mxu0 0.0
    %2375 = vmatpush1.msra.mxu0 0.0
    %2376 = vmatprep.subr.mxu0 0.0
    %2377 = vmatpush1.msra.mxu0 0.0
    %2378 = vmatprep.subr.mxu0 0.0
    %2379 = vmatpush1.msra.mxu0 0.0
    %2380 = vmatprep.subr.mxu0 0.0
    %2381 = vmatpush1.msra.mxu0 0.0
    %2382 = vmatprep.subr.mxu0 0.0
    %2383 = vmatpush1.msra.mxu0 0.0
    %2384 = vmatprep.subr.mxu0 0.0
    %2385 = vmatpush1.msra.mxu0 0.0
    %2386 = vmatprep.subr.mxu0 0.0
    %2387 = vmatpush1.msra.mxu0 0.0
    %2388 = vmatprep.mubr.f32.mxu0 0.0
    %2389 = vmatmul.mubr.f32.gmra.mrb[0].mxu0 %v2038
    %v2390 = vpop.f32.mrb[0].mxu0
    %v2391 = vadd.f32 0.0, %v2390
    %v2392 = vpop.f32.mrb[0].mxu0
    %2393 = vdwg.mxu0
    %v2394 = vsel %vm1964, %v1262, 0
    %2396 = vmatprep.subr.mxu0 0.0
    %2397 = vmatpush1.msra.mxu0 %v28
    %2398 = vmatprep.subr.mxu0 0.0
    %2399 = vmatpush1.msra.mxu0 0.0
    %2400 = vmatprep.subr.mxu0 0.0
    %2401 = vmatpush1.msra.mxu0 0.0
    %2402 = vmatprep.subr.mxu0 0.0
    %2403 = vmatpush1.msra.mxu0 0.0
    %2404 = vmatprep.subr.mxu0 0.0
    %2405 = vmatpush1.msra.mxu0 0.0
    %2406 = vmatprep.subr.mxu0 0.0
    %2407 = vmatpush1.msra.mxu0 0.0
    %2408 = vmatprep.subr.mxu0 0.0
    %2409 = vmatpush1.msra.mxu0 0.0
    %2410 = vmatprep.subr.mxu0 0.0
    %2411 = vmatpush1.msra.mxu0 0.0
    %2412 = vmatprep.subr.mxu0 0.0
    %2413 = vmatpush1.msra.mxu0 0.0
    %2414 = vmatprep.subr.mxu0 0.0
    %2415 = vmatpush1.msra.mxu0 0.0
    %2416 = vmatprep.subr.mxu0 0.0
    %2417 = vmatpush1.msra.mxu0 0.0
    %2418 = vmatprep.subr.mxu0 0.0
    %2419 = vmatpush1.msra.mxu0 0.0
    %2420 = vmatprep.subr.mxu0 0.0
    %2421 = vmatpush1.msra.mxu0 0.0
    %2422 = vmatprep.subr.mxu0 0.0
    %2423 = vmatpush1.msra.mxu0 0.0
    %2424 = vmatprep.subr.mxu0 0.0
    %2425 = vmatpush1.msra.mxu0 0.0
    %2426 = vmatprep.subr.mxu0 0.0
    %2427 = vmatpush1.msra.mxu0 0.0
    %2428 = vmatprep.subr.mxu0 0.0
    %2429 = vmatpush1.msra.mxu0 0.0
    %2430 = vmatprep.subr.mxu0 0.0
    %2431 = vmatpush1.msra.mxu0 0.0
    %2432 = vmatprep.subr.mxu0 0.0
    %2433 = vmatpush1.msra.mxu0 0.0
    %2434 = vmatprep.subr.mxu0 0.0
    %2435 = vmatpush1.msra.mxu0 0.0
    %2436 = vmatprep.subr.mxu0 0.0
    %2437 = vmatpush1.msra.mxu0 0.0
    %2438 = vmatprep.subr.mxu0 0.0
    %2439 = vmatpush1.msra.mxu0 0.0
    %2440 = vmatprep.subr.mxu0 0.0
    %2441 = vmatpush1.msra.mxu0 0.0
    %2442 = vmatprep.subr.mxu0 0.0
    %2443 = vmatpush1.msra.mxu0 0.0
    %2444 = vmatprep.subr.mxu0 0.0
    %2445 = vmatpush1.msra.mxu0 0.0
    %2446 = vmatprep.subr.mxu0 0.0
    %2447 = vmatpush1.msra.mxu0 0.0
    %2448 = vmatprep.subr.mxu0 0.0
    %2449 = vmatpush1.msra.mxu0 0.0
    %2450 = vmatprep.subr.mxu0 0.0
    %2451 = vmatpush1.msra.mxu0 0.0
    %2452 = vmatprep.subr.mxu0 0.0
    %2453 = vmatpush1.msra.mxu0 0.0
    %2454 = vmatprep.subr.mxu0 0.0
    %2455 = vmatpush1.msra.mxu0 0.0
    %2456 = vmatprep.subr.mxu0 0.0
    %2457 = vmatpush1.msra.mxu0 0.0
    %2458 = vmatprep.subr.mxu0 0.0
    %2459 = vmatpush1.msra.mxu0 0.0
    %2460 = vmatprep.mubr.f32.mxu0 0.0
    %2461 = vmatmul.mubr.f32.gmra.mrb[0].mxu0 %v2394
    %v2462 = vpop.f32.mrb[0].mxu0
    %v2463 = vadd.f32 0.0, %v2462
    %v2464 = vpop.f32.mrb[0].mxu0
    %2465 = vdwg.mxu0
    %2466 = vmatprep.subr.mxu0 0.0
    %2467 = vmatpush1.msra.mxu0 %v2463
    %2468 = vmatprep.subr.mxu0 0.0
    %2469 = vmatpush1.msra.mxu0 0.0
    %2470 = vmatprep.subr.mxu0 0.0
    %2471 = vmatpush1.msra.mxu0 0.0
    %2472 = vmatprep.subr.mxu0 0.0
    %2473 = vmatpush1.msra.mxu0 0.0
    %2474 = vmatprep.subr.mxu0 0.0
    %2475 = vmatpush1.msra.mxu0 0.0
    %2476 = vmatprep.subr.mxu0 0.0
    %2477 = vmatpush1.msra.mxu0 0.0
    %2478 = vmatprep.subr.mxu0 0.0
    %2479 = vmatpush1.msra.mxu0 0.0
    %2480 = vmatprep.subr.mxu0 0.0
    %2481 = vmatpush1.msra.mxu0 0.0
    %2482 = vmatprep.subr.mxu0 0.0
    %2483 = vmatpush1.msra.mxu0 0.0
    %2484 = vmatprep.subr.mxu0 0.0
    %2485 = vmatpush1.msra.mxu0 0.0
    %2486 = vmatprep.subr.mxu0 0.0
    %2487 = vmatpush1.msra.mxu0 0.0
    %2488 = vmatprep.subr.mxu0 0.0
    %2489 = vmatpush1.msra.mxu0 0.0
    %2490 = vmatprep.subr.mxu0 0.0
    %2491 = vmatpush1.msra.mxu0 0.0
    %2492 = vmatprep.subr.mxu0 0.0
    %2493 = vmatpush1.msra.mxu0 0.0
    %2494 = vmatprep.subr.mxu0 0.0
    %2495 = vmatpush1.msra.mxu0 0.0
    %2496 = vmatprep.subr.mxu0 0.0
    %2497 = vmatpush1.msra.mxu0 0.0
    %2498 = vmatprep.subr.mxu0 0.0
    %2499 = vmatpush1.msra.mxu0 0.0
    %2500 = vmatprep.subr.mxu0 0.0
    %2501 = vmatpush1.msra.mxu0 0.0
    %2502 = vmatprep.subr.mxu0 0.0
    %2503 = vmatpush1.msra.mxu0 0.0
    %2504 = vmatprep.subr.mxu0 0.0
    %2505 = vmatpush1.msra.mxu0 0.0
    %2506 = vmatprep.subr.mxu0 0.0
    %2507 = vmatpush1.msra.mxu0 0.0
    %2508 = vmatprep.subr.mxu0 0.0
    %2509 = vmatpush1.msra.mxu0 0.0
    %2510 = vmatprep.subr.mxu0 0.0
    %2511 = vmatpush1.msra.mxu0 0.0
    %2512 = vmatprep.subr.mxu0 0.0
    %2513 = vmatpush1.msra.mxu0 0.0
    %2514 = vmatprep.subr.mxu0 0.0
    %2515 = vmatpush1.msra.mxu0 0.0
    %2516 = vmatprep.subr.mxu0 0.0
    %2517 = vmatpush1.msra.mxu0 0.0
    %2518 = vmatprep.subr.mxu0 0.0
    %2519 = vmatpush1.msra.mxu0 0.0
    %2520 = vmatprep.subr.mxu0 0.0
    %2521 = vmatpush1.msra.mxu0 0.0
    %2522 = vmatprep.subr.mxu0 0.0
    %2523 = vmatpush1.msra.mxu0 0.0
    %2524 = vmatprep.subr.mxu0 0.0
    %2525 = vmatpush1.msra.mxu0 0.0
    %2526 = vmatprep.subr.mxu0 0.0
    %2527 = vmatpush1.msra.mxu0 0.0
    %2528 = vmatprep.subr.mxu0 0.0
    %2529 = vmatpush1.msra.mxu0 0.0
    %2530 = vmatprep.mubr.f32.mxu0 0.0
    %2531 = vmatmul.mubr.f32.gmra.mrb[0].mxu0 %v2038
    %v2532 = vpop.f32.mrb[0].mxu0
    %v2533 = vadd.f32 0.0, %v2532
    %v2534 = vpop.f32.mrb[0].mxu0
    %2535 = vdwg.mxu0
    %v2536 = vsel %vm1964, %v1411, 0
    %2538 = vmatprep.subr.mxu0 0.0
    %2539 = vmatpush1.msra.mxu0 %v28
    %2540 = vmatprep.subr.mxu0 0.0
    %2541 = vmatpush1.msra.mxu0 0.0
    %2542 = vmatprep.subr.mxu0 0.0
    %2543 = vmatpush1.msra.mxu0 0.0
    %2544 = vmatprep.subr.mxu0 0.0
    %2545 = vmatpush1.msra.mxu0 0.0
    %2546 = vmatprep.subr.mxu0 0.0
    %2547 = vmatpush1.msra.mxu0 0.0
    %2548 = vmatprep.subr.mxu0 0.0
    %2549 = vmatpush1.msra.mxu0 0.0
    %2550 = vmatprep.subr.mxu0 0.0
    %2551 = vmatpush1.msra.mxu0 0.0
    %2552 = vmatprep.subr.mxu0 0.0
    %2553 = vmatpush1.msra.mxu0 0.0
    %2554 = vmatprep.subr.mxu0 0.0
    %2555 = vmatpush1.msra.mxu0 0.0
    %2556 = vmatprep.subr.mxu0 0.0
    %2557 = vmatpush1.msra.mxu0 0.0
    %2558 = vmatprep.subr.mxu0 0.0
    %2559 = vmatpush1.msra.mxu0 0.0
    %2560 = vmatprep.subr.mxu0 0.0
    %2561 = vmatpush1.msra.mxu0 0.0
    %2562 = vmatprep.subr.mxu0 0.0
    %2563 = vmatpush1.msra.mxu0 0.0
    %2564 = vmatprep.subr.mxu0 0.0
    %2565 = vmatpush1.msra.mxu0 0.0
    %2566 = vmatprep.subr.mxu0 0.0
    %2567 = vmatpush1.msra.mxu0 0.0
    %2568 = vmatprep.subr.mxu0 0.0
    %2569 = vmatpush1.msra.mxu0 0.0
    %2570 = vmatprep.subr.mxu0 0.0
    %2571 = vmatpush1.msra.mxu0 0.0
    %2572 = vmatprep.subr.mxu0 0.0
    %2573 = vmatpush1.msra.mxu0 0.0
    %2574 = vmatprep.subr.mxu0 0.0
    %2575 = vmatpush1.msra.mxu0 0.0
    %2576 = vmatprep.subr.mxu0 0.0
    %2577 = vmatpush1.msra.mxu0 0.0
    %2578 = vmatprep.subr.mxu0 0.0
    %2579 = vmatpush1.msra.mxu0 0.0
    %2580 = vmatprep.subr.mxu0 0.0
    %2581 = vmatpush1.msra.mxu0 0.0
    %2582 = vmatprep.subr.mxu0 0.0
    %2583 = vmatpush1.msra.mxu0 0.0
    %2584 = vmatprep.subr.mxu0 0.0
    %2585 = vmatpush1.msra.mxu0 0.0
    %2586 = vmatprep.subr.mxu0 0.0
    %2587 = vmatpush1.msra.mxu0 0.0
    %2588 = vmatprep.subr.mxu0 0.0
    %2589 = vmatpush1.msra.mxu0 0.0
    %2590 = vmatprep.subr.mxu0 0.0
    %2591 = vmatpush1.msra.mxu0 0.0
    %2592 = vmatprep.subr.mxu0 0.0
    %2593 = vmatpush1.msra.mxu0 0.0
    %2594 = vmatprep.subr.mxu0 0.0
    %2595 = vmatpush1.msra.mxu0 0.0
    %2596 = vmatprep.subr.mxu0 0.0
    %2597 = vmatpush1.msra.mxu0 0.0
    %2598 = vmatprep.subr.mxu0 0.0
    %2599 = vmatpush1.msra.mxu0 0.0
    %2600 = vmatprep.subr.mxu0 0.0
    %2601 = vmatpush1.msra.mxu0 0.0
    %2602 = vmatprep.mubr.f32.mxu0 0.0
    %2603 = vmatmul.mubr.f32.gmra.mrb[0].mxu0 %v2536
    %v2604 = vpop.f32.mrb[0].mxu0
    %v2605 = vadd.f32 0.0, %v2604
    %v2606 = vpop.f32.mrb[0].mxu0
    %2607 = vdwg.mxu0
    %2608 = vmatprep.subr.mxu0 0.0
    %2609 = vmatpush1.msra.mxu0 %v2605
    %2610 = vmatprep.subr.mxu0 0.0
    %2611 = vmatpush1.msra.mxu0 0.0
    %2612 = vmatprep.subr.mxu0 0.0
    %2613 = vmatpush1.msra.mxu0 0.0
    %2614 = vmatprep.subr.mxu0 0.0
    %2615 = vmatpush1.msra.mxu0 0.0
    %2616 = vmatprep.subr.mxu0 0.0
    %2617 = vmatpush1.msra.mxu0 0.0
    %2618 = vmatprep.subr.mxu0 0.0
    %2619 = vmatpush1.msra.mxu0 0.0
    %2620 = vmatprep.subr.mxu0 0.0
    %2621 = vmatpush1.msra.mxu0 0.0
    %2622 = vmatprep.subr.mxu0 0.0
    %2623 = vmatpush1.msra.mxu0 0.0
    %2624 = vmatprep.subr.mxu0 0.0
    %2625 = vmatpush1.msra.mxu0 0.0
    %2626 = vmatprep.subr.mxu0 0.0
    %2627 = vmatpush1.msra.mxu0 0.0
    %2628 = vmatprep.subr.mxu0 0.0
    %2629 = vmatpush1.msra.mxu0 0.0
    %2630 = vmatprep.subr.mxu0 0.0
    %2631 = vmatpush1.msra.mxu0 0.0
    %2632 = vmatprep.subr.mxu0 0.0
    %2633 = vmatpush1.msra.mxu0 0.0
    %2634 = vmatprep.subr.mxu0 0.0
    %2635 = vmatpush1.msra.mxu0 0.0
    %2636 = vmatprep.subr.mxu0 0.0
    %2637 = vmatpush1.msra.mxu0 0.0
    %2638 = vmatprep.subr.mxu0 0.0
    %2639 = vmatpush1.msra.mxu0 0.0
    %2640 = vmatprep.subr.mxu0 0.0
    %2641 = vmatpush1.msra.mxu0 0.0
    %2642 = vmatprep.subr.mxu0 0.0
    %2643 = vmatpush1.msra.mxu0 0.0
    %2644 = vmatprep.subr.mxu0 0.0
    %2645 = vmatpush1.msra.mxu0 0.0
    %2646 = vmatprep.subr.mxu0 0.0
    %2647 = vmatpush1.msra.mxu0 0.0
    %2648 = vmatprep.subr.mxu0 0.0
    %2649 = vmatpush1.msra.mxu0 0.0
    %2650 = vmatprep.subr.mxu0 0.0
    %2651 = vmatpush1.msra.mxu0 0.0
    %2652 = vmatprep.subr.mxu0 0.0
    %2653 = vmatpush1.msra.mxu0 0.0
    %2654 = vmatprep.subr.mxu0 0.0
    %2655 = vmatpush1.msra.mxu0 0.0
    %2656 = vmatprep.subr.mxu0 0.0
    %2657 = vmatpush1.msra.mxu0 0.0
    %2658 = vmatprep.subr.mxu0 0.0
    %2659 = vmatpush1.msra.mxu0 0.0
    %2660 = vmatprep.subr.mxu0 0.0
    %2661 = vmatpush1.msra.mxu0 0.0
    %2662 = vmatprep.subr.mxu0 0.0
    %2663 = vmatpush1.msra.mxu0 0.0
    %2664 = vmatprep.subr.mxu0 0.0
    %2665 = vmatpush1.msra.mxu0 0.0
    %2666 = vmatprep.subr.mxu0 0.0
    %2667 = vmatpush1.msra.mxu0 0.0
    %2668 = vmatprep.subr.mxu0 0.0
    %2669 = vmatpush1.msra.mxu0 0.0
    %2670 = vmatprep.subr.mxu0 0.0
    %2671 = vmatpush1.msra.mxu0 0.0
    %2672 = vmatprep.mubr.f32.mxu0 0.0
    %2673 = vmatmul.mubr.f32.gmra.mrb[0].mxu0 %v2038
    %v2674 = vpop.f32.mrb[0].mxu0
    %v2675 = vadd.f32 0.0, %v2674
    %v2676 = vpop.f32.mrb[0].mxu0
    %2677 = vdwg.mxu0
    %v2678 = vsel %vm1964, %v1560, 0
    %2680 = vmatprep.subr.mxu0 0.0
    %2681 = vmatpush1.msra.mxu0 %v28
    %2682 = vmatprep.subr.mxu0 0.0
    %2683 = vmatpush1.msra.mxu0 0.0
    %2684 = vmatprep.subr.mxu0 0.0
    %2685 = vmatpush1.msra.mxu0 0.0
    %2686 = vmatprep.subr.mxu0 0.0
    %2687 = vmatpush1.msra.mxu0 0.0
    %2688 = vmatprep.subr.mxu0 0.0
    %2689 = vmatpush1.msra.mxu0 0.0
    %2690 = vmatprep.subr.mxu0 0.0
    %2691 = vmatpush1.msra.mxu0 0.0
    %2692 = vmatprep.subr.mxu0 0.0
    %2693 = vmatpush1.msra.mxu0 0.0
    %2694 = vmatprep.subr.mxu0 0.0
    %2695 = vmatpush1.msra.mxu0 0.0
    %2696 = vmatprep.subr.mxu0 0.0
    %2697 = vmatpush1.msra.mxu0 0.0
    %2698 = vmatprep.subr.mxu0 0.0
    %2699 = vmatpush1.msra.mxu0 0.0
    %2700 = vmatprep.subr.mxu0 0.0
    %2701 = vmatpush1.msra.mxu0 0.0
    %2702 = vmatprep.subr.mxu0 0.0
    %2703 = vmatpush1.msra.mxu0 0.0
    %2704 = vmatprep.subr.mxu0 0.0
    %2705 = vmatpush1.msra.mxu0 0.0
    %2706 = vmatprep.subr.mxu0 0.0
    %2707 = vmatpush1.msra.mxu0 0.0
    %2708 = vmatprep.subr.mxu0 0.0
    %2709 = vmatpush1.msra.mxu0 0.0
    %2710 = vmatprep.subr.mxu0 0.0
    %2711 = vmatpush1.msra.mxu0 0.0
    %2712 = vmatprep.subr.mxu0 0.0
    %2713 = vmatpush1.msra.mxu0 0.0
    %2714 = vmatprep.subr.mxu0 0.0
    %2715 = vmatpush1.msra.mxu0 0.0
    %2716 = vmatprep.subr.mxu0 0.0
    %2717 = vmatpush1.msra.mxu0 0.0
    %2718 = vmatprep.subr.mxu0 0.0
    %2719 = vmatpush1.msra.mxu0 0.0
    %2720 = vmatprep.subr.mxu0 0.0
    %2721 = vmatpush1.msra.mxu0 0.0
    %2722 = vmatprep.subr.mxu0 0.0
    %2723 = vmatpush1.msra.mxu0 0.0
    %2724 = vmatprep.subr.mxu0 0.0
    %2725 = vmatpush1.msra.mxu0 0.0
    %2726 = vmatprep.subr.mxu0 0.0
    %2727 = vmatpush1.msra.mxu0 0.0
    %2728 = vmatprep.subr.mxu0 0.0
    %2729 = vmatpush1.msra.mxu0 0.0
    %2730 = vmatprep.subr.mxu0 0.0
    %2731 = vmatpush1.msra.mxu0 0.0
    %2732 = vmatprep.subr.mxu0 0.0
    %2733 = vmatpush1.msra.mxu0 0.0
    %2734 = vmatprep.subr.mxu0 0.0
    %2735 = vmatpush1.msra.mxu0 0.0
    %2736 = vmatprep.subr.mxu0 0.0
    %2737 = vmatpush1.msra.mxu0 0.0
    %2738 = vmatprep.subr.mxu0 0.0
    %2739 = vmatpush1.msra.mxu0 0.0
    %2740 = vmatprep.subr.mxu0 0.0
    %2741 = vmatpush1.msra.mxu0 0.0
    %2742 = vmatprep.subr.mxu0 0.0
    %2743 = vmatpush1.msra.mxu0 0.0
    %2744 = vmatprep.mubr.f32.mxu0 0.0
    %2745 = vmatmul.mubr.f32.gmra.mrb[0].mxu0 %v2678
    %v2746 = vpop.f32.mrb[0].mxu0
    %v2747 = vadd.f32 0.0, %v2746
    %v2748 = vpop.f32.mrb[0].mxu0
    %2749 = vdwg.mxu0
    %2750 = vmatprep.subr.mxu0 0.0
    %2751 = vmatpush1.msra.mxu0 %v2747
    %2752 = vmatprep.subr.mxu0 0.0
    %2753 = vmatpush1.msra.mxu0 0.0
    %2754 = vmatprep.subr.mxu0 0.0
    %2755 = vmatpush1.msra.mxu0 0.0
    %2756 = vmatprep.subr.mxu0 0.0
    %2757 = vmatpush1.msra.mxu0 0.0
    %2758 = vmatprep.subr.mxu0 0.0
    %2759 = vmatpush1.msra.mxu0 0.0
    %2760 = vmatprep.subr.mxu0 0.0
    %2761 = vmatpush1.msra.mxu0 0.0
    %2762 = vmatprep.subr.mxu0 0.0
    %2763 = vmatpush1.msra.mxu0 0.0
    %2764 = vmatprep.subr.mxu0 0.0
    %2765 = vmatpush1.msra.mxu0 0.0
    %2766 = vmatprep.subr.mxu0 0.0
    %2767 = vmatpush1.msra.mxu0 0.0
    %2768 = vmatprep.subr.mxu0 0.0
    %2769 = vmatpush1.msra.mxu0 0.0
    %2770 = vmatprep.subr.mxu0 0.0
    %2771 = vmatpush1.msra.mxu0 0.0
    %2772 = vmatprep.subr.mxu0 0.0
    %2773 = vmatpush1.msra.mxu0 0.0
    %2774 = vmatprep.subr.mxu0 0.0
    %2775 = vmatpush1.msra.mxu0 0.0
    %2776 = vmatprep.subr.mxu0 0.0
    %2777 = vmatpush1.msra.mxu0 0.0
    %2778 = vmatprep.subr.mxu0 0.0
    %2779 = vmatpush1.msra.mxu0 0.0
    %2780 = vmatprep.subr.mxu0 0.0
    %2781 = vmatpush1.msra.mxu0 0.0
    %2782 = vmatprep.subr.mxu0 0.0
    %2783 = vmatpush1.msra.mxu0 0.0
    %2784 = vmatprep.subr.mxu0 0.0
    %2785 = vmatpush1.msra.mxu0 0.0
    %2786 = vmatprep.subr.mxu0 0.0
    %2787 = vmatpush1.msra.mxu0 0.0
    %2788 = vmatprep.subr.mxu0 0.0
    %2789 = vmatpush1.msra.mxu0 0.0
    %2790 = vmatprep.subr.mxu0 0.0
    %2791 = vmatpush1.msra.mxu0 0.0
    %2792 = vmatprep.subr.mxu0 0.0
    %2793 = vmatpush1.msra.mxu0 0.0
    %2794 = vmatprep.subr.mxu0 0.0
    %2795 = vmatpush1.msra.mxu0 0.0
    %2796 = vmatprep.subr.mxu0 0.0
    %2797 = vmatpush1.msra.mxu0 0.0
    %2798 = vmatprep.subr.mxu0 0.0
    %2799 = vmatpush1.msra.mxu0 0.0
    %2800 = vmatprep.subr.mxu0 0.0
    %2801 = vmatpush1.msra.mxu0 0.0
    %2802 = vmatprep.subr.mxu0 0.0
    %2803 = vmatpush1.msra.mxu0 0.0
    %2804 = vmatprep.subr.mxu0 0.0
    %2805 = vmatpush1.msra.mxu0 0.0
    %2806 = vmatprep.subr.mxu0 0.0
    %2807 = vmatpush1.msra.mxu0 0.0
    %2808 = vmatprep.subr.mxu0 0.0
    %2809 = vmatpush1.msra.mxu0 0.0
    %2810 = vmatprep.subr.mxu0 0.0
    %2811 = vmatpush1.msra.mxu0 0.0
    %2812 = vmatprep.subr.mxu0 0.0
    %2813 = vmatpush1.msra.mxu0 0.0
    %2814 = vmatprep.mubr.f32.mxu0 0.0
    %2815 = vmatmul.mubr.f32.gmra.mrb[0].mxu0 %v2038
    %v2816 = vpop.f32.mrb[0].mxu0
    %v2817 = vadd.f32 0.0, %v2816
    %v2818 = vpop.f32.mrb[0].mxu0
    %2819 = vdwg.mxu0
    %v2821 = vrot.slane %v2107, 7
    %v2823 = vsub.f32 %v2107, %v2821
    %v2824 = vmul.f32 %v2823, 0.5
    %v2825 = vtanh.pop %v2824
    %v2826 = vmul.f32 %v2825, %v2825
    %v2828 = vrot.slane %v2249, 7
    %v2830 = vsub.f32 %v2249, %v2828
    %v2831 = vmul.f32 %v2830, 0.5
    %v2832 = vtanh.pop %v2831
    %v2833 = vmul.f32 %v2832, %v2832
    %v2835 = vrot.slane %v2391, 7
    %v2837 = vsub.f32 %v2391, %v2835
    %v2838 = vmul.f32 %v2837, 0.5
    %v2839 = vtanh.pop %v2838
    %v2840 = vmul.f32 %v2839, %v2839
    %v2842 = vrot.slane %v2533, 7
    %v2844 = vsub.f32 %v2533, %v2842
    %v2845 = vmul.f32 %v2844, 0.5
    %v2846 = vtanh.pop %v2845
    %v2847 = vmul.f32 %v2846, %v2846
    %v2849 = vrot.slane %v2675, 7
    %v2851 = vsub.f32 %v2675, %v2849
    %v2852 = vmul.f32 %v2851, 0.5
    %v2853 = vtanh.pop %v2852
    %v2854 = vmul.f32 %v2853, %v2853
    %v2856 = vrot.slane %v2817, 7
    %v2858 = vsub.f32 %v2817, %v2856
    %v2859 = vmul.f32 %v2858, 0.5
    %v2860 = vtanh.pop %v2859
    %v2861 = vmul.f32 %v2860, %v2860
    %v2862 = vmul.f32 %v2826, %v2847
    %v2864 = vrot.slane %v2862, 1
    %vm2866 = vcmask 26624
    %v2867 = vsel %vm2866, %v2864, 0.0
    %2868 = vadd.xlane.f32.xlu0 %v2867
    %v2869 = vpop.xlane.xlu0 %2868
    %v2870 = vrot.slane %v2869, 4
    %v2871 = vadd.f32 %v2869, %v2870
    %v2872 = vrot.slane %v2871, 2
    %v2873 = vadd.f32 %v2871, %v2872
    %v2874 = vrot.slane %v2873, 1
    %v2875 = vadd.f32 %v2873, %v2874
    %s2876 = vtos %v2875
    %s2877 = sadd.s32 %s161, 36
    %s2878 = scalar_lea.smem [#allocation2], %s2877
    %2879 = sst [smem:[%s2878]] %s2876
    %v2880 = vmul.f32 %v2833, %v2847
    %v2882 = vrot.slane %v2880, 1
    %v2884 = vsel %vm2866, %v2882, 0.0
    %2885 = vadd.xlane.f32.xlu0 %v2884
    %v2886 = vpop.xlane.xlu0 %2885
    %v2887 = vrot.slane %v2886, 4
    %v2888 = vadd.f32 %v2886, %v2887
    %v2889 = vrot.slane %v2888, 2
    %v2890 = vadd.f32 %v2888, %v2889
    %v2891 = vrot.slane %v2890, 1
    %v2892 = vadd.f32 %v2890, %v2891
    %s2893 = vtos %v2892
    %s2894 = sadd.s32 %s161, 37
    %s2895 = scalar_lea.smem [#allocation2], %s2894
    %2896 = sst [smem:[%s2895]] %s2893
    %v2897 = vmul.f32 %v2840, %v2847
    %v2899 = vrot.slane %v2897, 1
    %v2901 = vsel %vm2866, %v2899, 0.0
    %2902 = vadd.xlane.f32.xlu0 %v2901
    %v2903 = vpop.xlane.xlu0 %2902
    %v2904 = vrot.slane %v2903, 4
    %v2905 = vadd.f32 %v2903, %v2904
    %v2906 = vrot.slane %v2905, 2
    %v2907 = vadd.f32 %v2905, %v2906
    %v2908 = vrot.slane %v2907, 1
    %v2909 = vadd.f32 %v2907, %v2908
    %s2910 = vtos %v2909
    %s2911 = sadd.s32 %s161, 38
    %s2912 = scalar_lea.smem [#allocation2], %s2911
    %2913 = sst [smem:[%s2912]] %s2910
    %v2914 = vmul.f32 %v2826, %v2854
    %v2916 = vrot.slane %v2914, 1
    %v2918 = vsel %vm2866, %v2916, 0.0
    %2919 = vadd.xlane.f32.xlu0 %v2918
    %v2920 = vpop.xlane.xlu0 %2919
    %v2921 = vrot.slane %v2920, 4
    %v2922 = vadd.f32 %v2920, %v2921
    %v2923 = vrot.slane %v2922, 2
    %v2924 = vadd.f32 %v2922, %v2923
    %v2925 = vrot.slane %v2924, 1
    %v2926 = vadd.f32 %v2924, %v2925
    %s2927 = vtos %v2926
    %s2928 = sadd.s32 %s161, 39
    %s2929 = scalar_lea.smem [#allocation2], %s2928
    %2930 = sst [smem:[%s2929]] %s2927
    %v2931 = vmul.f32 %v2833, %v2854
    %v2933 = vrot.slane %v2931, 1
    %v2935 = vsel %vm2866, %v2933, 0.0
    %2936 = vadd.xlane.f32.xlu0 %v2935
    %v2937 = vpop.xlane.xlu0 %2936
    %v2938 = vrot.slane %v2937, 4
    %v2939 = vadd.f32 %v2937, %v2938
    %v2940 = vrot.slane %v2939, 2
    %v2941 = vadd.f32 %v2939, %v2940
    %v2942 = vrot.slane %v2941, 1
    %v2943 = vadd.f32 %v2941, %v2942
    %s2944 = vtos %v2943
    %s2945 = sadd.s32 %s161, 40
    %s2946 = scalar_lea.smem [#allocation2], %s2945
    %2947 = sst [smem:[%s2946]] %s2944
    %v2948 = vmul.f32 %v2840, %v2854
    %v2950 = vrot.slane %v2948, 1
    %v2952 = vsel %vm2866, %v2950, 0.0
    %2953 = vadd.xlane.f32.xlu0 %v2952
    %v2954 = vpop.xlane.xlu0 %2953
    %v2955 = vrot.slane %v2954, 4
    %v2956 = vadd.f32 %v2954, %v2955
    %v2957 = vrot.slane %v2956, 2
    %v2958 = vadd.f32 %v2956, %v2957
    %v2959 = vrot.slane %v2958, 1
    %v2960 = vadd.f32 %v2958, %v2959
    %s2961 = vtos %v2960
    %s2962 = sadd.s32 %s161, 41
    %s2963 = scalar_lea.smem [#allocation2], %s2962
    %2964 = sst [smem:[%s2963]] %s2961
    %v2965 = vmul.f32 %v2826, %v2861
    %v2967 = vrot.slane %v2965, 1
    %v2969 = vsel %vm2866, %v2967, 0.0
    %2970 = vadd.xlane.f32.xlu0 %v2969
    %v2971 = vpop.xlane.xlu0 %2970
    %v2972 = vrot.slane %v2971, 4
    %v2973 = vadd.f32 %v2971, %v2972
    %v2974 = vrot.slane %v2973, 2
    %v2975 = vadd.f32 %v2973, %v2974
    %v2976 = vrot.slane %v2975, 1
    %v2977 = vadd.f32 %v2975, %v2976
    %s2978 = vtos %v2977
    %s2979 = sadd.s32 %s161, 42
    %s2980 = scalar_lea.smem [#allocation2], %s2979
    %2981 = sst [smem:[%s2980]] %s2978
    %v2982 = vmul.f32 %v2833, %v2861
    %v2984 = vrot.slane %v2982, 1
    %v2986 = vsel %vm2866, %v2984, 0.0
    %2987 = vadd.xlane.f32.xlu0 %v2986
    %v2988 = vpop.xlane.xlu0 %2987
    %v2989 = vrot.slane %v2988, 4
    %v2990 = vadd.f32 %v2988, %v2989
    %v2991 = vrot.slane %v2990, 2
    %v2992 = vadd.f32 %v2990, %v2991
    %v2993 = vrot.slane %v2992, 1
    %v2994 = vadd.f32 %v2992, %v2993
    %s2995 = vtos %v2994
    %s2996 = sadd.s32 %s161, 43
    %s2997 = scalar_lea.smem [#allocation2], %s2996
    %2998 = sst [smem:[%s2997]] %s2995
    %v2999 = vmul.f32 %v2840, %v2861
    %v3001 = vrot.slane %v2999, 1
    %v3003 = vsel %vm2866, %v3001, 0.0
    %3004 = vadd.xlane.f32.xlu0 %v3003
    %v3005 = vpop.xlane.xlu0 %3004
    %v3006 = vrot.slane %v3005, 4
    %v3007 = vadd.f32 %v3005, %v3006
    %v3008 = vrot.slane %v3007, 2
    %v3009 = vadd.f32 %v3007, %v3008
    %v3010 = vrot.slane %v3009, 1
    %v3011 = vadd.f32 %v3009, %v3010
    %s3012 = vtos %v3011
    %s3013 = sadd.s32 %s161, 44
    %s3014 = scalar_lea.smem [#allocation2], %s3013
    %3015 = sst [smem:[%s3014]] %s3012
    %3016 = vrot.lane.b32.xlu0 %v2107, 1
    %v3017 = vpop.permute.xlu0 %3016
    %v3019 = vsub.f32 %v2107, %v3017
    %v3020 = vmul.f32 %v3019, 0.5
    %v3021 = vtanh.pop %v3020
    %v3022 = vmul.f32 %v3021, %v3021
    %3023 = vrot.lane.b32.xlu0 %v2249, 1
    %v3024 = vpop.permute.xlu0 %3023
    %v3026 = vsub.f32 %v2249, %v3024
    %v3027 = vmul.f32 %v3026, 0.5
    %v3028 = vtanh.pop %v3027
    %v3029 = vmul.f32 %v3028, %v3028
    %3030 = vrot.lane.b32.xlu0 %v2391, 1
    %v3031 = vpop.permute.xlu0 %3030
    %v3033 = vsub.f32 %v2391, %v3031
    %v3034 = vmul.f32 %v3033, 0.5
    %v3035 = vtanh.pop %v3034
    %v3036 = vmul.f32 %v3035, %v3035
    %3037 = vrot.lane.b32.xlu0 %v2533, 1
    %v3038 = vpop.permute.xlu0 %3037
    %v3040 = vsub.f32 %v2533, %v3038
    %v3041 = vmul.f32 %v3040, 0.5
    %v3042 = vtanh.pop %v3041
    %v3043 = vmul.f32 %v3042, %v3042
    %3044 = vrot.lane.b32.xlu0 %v2675, 1
    %v3045 = vpop.permute.xlu0 %3044
    %v3047 = vsub.f32 %v2675, %v3045
    %v3048 = vmul.f32 %v3047, 0.5
    %v3049 = vtanh.pop %v3048
    %v3050 = vmul.f32 %v3049, %v3049
    %3051 = vrot.lane.b32.xlu0 %v2817, 1
    %v3052 = vpop.permute.xlu0 %3051
    %v3054 = vsub.f32 %v2817, %v3052
    %v3055 = vmul.f32 %v3054, 0.5
    %v3056 = vtanh.pop %v3055
    %v3057 = vmul.f32 %v3056, %v3056
    %v3058 = vmul.f32 %v3022, %v3043
    %3060 = vrot.lane.b32.xlu0 %v3058, 127
    %v3061 = vpop.permute.xlu0 %3060
    %vm3063 = vcmask 19456
    %v3064 = vsel %vm3063, %v3061, 0.0
    %3065 = vadd.xlane.f32.xlu0 %v3064
    %v3066 = vpop.xlane.xlu0 %3065
    %v3067 = vrot.slane %v3066, 4
    %v3068 = vadd.f32 %v3066, %v3067
    %v3069 = vrot.slane %v3068, 2
    %v3070 = vadd.f32 %v3068, %v3069
    %v3071 = vrot.slane %v3070, 1
    %v3072 = vadd.f32 %v3070, %v3071
    %s3073 = vtos %v3072
    %s3074 = sadd.s32 %s161, 45
    %s3075 = scalar_lea.smem [#allocation2], %s3074
    %3076 = sst [smem:[%s3075]] %s3073
    %v3077 = vmul.f32 %v3029, %v3043
    %3079 = vrot.lane.b32.xlu0 %v3077, 127
    %v3080 = vpop.permute.xlu0 %3079
    %v3082 = vsel %vm3063, %v3080, 0.0
    %3083 = vadd.xlane.f32.xlu0 %v3082
    %v3084 = vpop.xlane.xlu0 %3083
    %v3085 = vrot.slane %v3084, 4
    %v3086 = vadd.f32 %v3084, %v3085
    %v3087 = vrot.slane %v3086, 2
    %v3088 = vadd.f32 %v3086, %v3087
    %v3089 = vrot.slane %v3088, 1
    %v3090 = vadd.f32 %v3088, %v3089
    %s3091 = vtos %v3090
    %s3092 = sadd.s32 %s161, 46
    %s3093 = scalar_lea.smem [#allocation2], %s3092
    %3094 = sst [smem:[%s3093]] %s3091
    %v3095 = vmul.f32 %v3036, %v3043
    %3097 = vrot.lane.b32.xlu0 %v3095, 127
    %v3098 = vpop.permute.xlu0 %3097
    %v3100 = vsel %vm3063, %v3098, 0.0
    %3101 = vadd.xlane.f32.xlu0 %v3100
    %v3102 = vpop.xlane.xlu0 %3101
    %v3103 = vrot.slane %v3102, 4
    %v3104 = vadd.f32 %v3102, %v3103
    %v3105 = vrot.slane %v3104, 2
    %v3106 = vadd.f32 %v3104, %v3105
    %v3107 = vrot.slane %v3106, 1
    %v3108 = vadd.f32 %v3106, %v3107
    %s3109 = vtos %v3108
    %s3110 = sadd.s32 %s161, 47
    %s3111 = scalar_lea.smem [#allocation2], %s3110
    %3112 = sst [smem:[%s3111]] %s3109
    %v3113 = vmul.f32 %v3022, %v3050
    %3115 = vrot.lane.b32.xlu0 %v3113, 127
    %v3116 = vpop.permute.xlu0 %3115
    %v3118 = vsel %vm3063, %v3116, 0.0
    %3119 = vadd.xlane.f32.xlu0 %v3118
    %v3120 = vpop.xlane.xlu0 %3119
    %v3121 = vrot.slane %v3120, 4
    %v3122 = vadd.f32 %v3120, %v3121
    %v3123 = vrot.slane %v3122, 2
    %v3124 = vadd.f32 %v3122, %v3123
    %v3125 = vrot.slane %v3124, 1
    %v3126 = vadd.f32 %v3124, %v3125
    %s3127 = vtos %v3126
    %s3128 = sadd.s32 %s161, 48
    %s3129 = scalar_lea.smem [#allocation2], %s3128
    %3130 = sst [smem:[%s3129]] %s3127
    %v3131 = vmul.f32 %v3029, %v3050
    %3133 = vrot.lane.b32.xlu0 %v3131, 127
    %v3134 = vpop.permute.xlu0 %3133
    %v3136 = vsel %vm3063, %v3134, 0.0
    %3137 = vadd.xlane.f32.xlu0 %v3136
    %v3138 = vpop.xlane.xlu0 %3137
    %v3139 = vrot.slane %v3138, 4
    %v3140 = vadd.f32 %v3138, %v3139
    %v3141 = vrot.slane %v3140, 2
    %v3142 = vadd.f32 %v3140, %v3141
    %v3143 = vrot.slane %v3142, 1
    %v3144 = vadd.f32 %v3142, %v3143
    %s3145 = vtos %v3144
    %s3146 = sadd.s32 %s161, 49
    %s3147 = scalar_lea.smem [#allocation2], %s3146
    %3148 = sst [smem:[%s3147]] %s3145
    %v3149 = vmul.f32 %v3036, %v3050
    %3151 = vrot.lane.b32.xlu0 %v3149, 127
    %v3152 = vpop.permute.xlu0 %3151
    %v3154 = vsel %vm3063, %v3152, 0.0
    %3155 = vadd.xlane.f32.xlu0 %v3154
    %v3156 = vpop.xlane.xlu0 %3155
    %v3157 = vrot.slane %v3156, 4
    %v3158 = vadd.f32 %v3156, %v3157
    %v3159 = vrot.slane %v3158, 2
    %v3160 = vadd.f32 %v3158, %v3159
    %v3161 = vrot.slane %v3160, 1
    %v3162 = vadd.f32 %v3160, %v3161
    %s3163 = vtos %v3162
    %s3164 = sadd.s32 %s161, 50
    %s3165 = scalar_lea.smem [#allocation2], %s3164
    %3166 = sst [smem:[%s3165]] %s3163
    %v3167 = vmul.f32 %v3022, %v3057
    %3169 = vrot.lane.b32.xlu0 %v3167, 127
    %v3170 = vpop.permute.xlu0 %3169
    %v3172 = vsel %vm3063, %v3170, 0.0
    %3173 = vadd.xlane.f32.xlu0 %v3172
    %v3174 = vpop.xlane.xlu0 %3173
    %v3175 = vrot.slane %v3174, 4
    %v3176 = vadd.f32 %v3174, %v3175
    %v3177 = vrot.slane %v3176, 2
    %v3178 = vadd.f32 %v3176, %v3177
    %v3179 = vrot.slane %v3178, 1
    %v3180 = vadd.f32 %v3178, %v3179
    %s3181 = vtos %v3180
    %s3182 = sadd.s32 %s161, 51
    %s3183 = scalar_lea.smem [#allocation2], %s3182
    %3184 = sst [smem:[%s3183]] %s3181
    %v3185 = vmul.f32 %v3029, %v3057
    %3187 = vrot.lane.b32.xlu0 %v3185, 127
    %v3188 = vpop.permute.xlu0 %3187
    %v3190 = vsel %vm3063, %v3188, 0.0
    %3191 = vadd.xlane.f32.xlu0 %v3190
    %v3192 = vpop.xlane.xlu0 %3191
    %v3193 = vrot.slane %v3192, 4
    %v3194 = vadd.f32 %v3192, %v3193
    %v3195 = vrot.slane %v3194, 2
    %v3196 = vadd.f32 %v3194, %v3195
    %v3197 = vrot.slane %v3196, 1
    %v3198 = vadd.f32 %v3196, %v3197
    %s3199 = vtos %v3198
    %s3200 = sadd.s32 %s161, 52
    %s3201 = scalar_lea.smem [#allocation2], %s3200
    %3202 = sst [smem:[%s3201]] %s3199
    %v3203 = vmul.f32 %v3036, %v3057
    %3205 = vrot.lane.b32.xlu0 %v3203, 127
    %v3206 = vpop.permute.xlu0 %3205
    %v3208 = vsel %vm3063, %v3206, 0.0
    %3209 = vadd.xlane.f32.xlu0 %v3208
    %v3210 = vpop.xlane.xlu0 %3209
    %v3211 = vrot.slane %v3210, 4
    %v3212 = vadd.f32 %v3210, %v3211
    %v3213 = vrot.slane %v3212, 2
    %v3214 = vadd.f32 %v3212, %v3213
    %v3215 = vrot.slane %v3214, 1
    %v3216 = vadd.f32 %v3214, %v3215
    %s3217 = vtos %v3216
    %s3218 = sadd.s32 %s161, 53
    %s3219 = scalar_lea.smem [#allocation2], %s3218
    %3220 = sst [smem:[%s3219]] %s3217
    %s3221 = scalar_lea.vmem %s0, 48
    %v3222 = vld [vmem:[%s3221] sm:$0xff]
    %v3223 = vld [vmem:[%s3221 + $0x8] sm:$0xff]
    %s3224 = scalar_lea.vmem %s0, 64
    %v3225 = vld [vmem:[%s3224] sm:$0xff]
    %v3226 = vld [vmem:[%s3224 + $0x8] sm:$0xff]
    %s3227 = scalar_lea.vmem %s0, 80
    %v3228 = vld [vmem:[%s3227] sm:$0xff]
    %v3229 = vld [vmem:[%s3227 + $0x8] sm:$0xff]
    %s3230 = scalar_lea.vmem %s1, 48
    %v3231 = vld [vmem:[%s3230] sm:$0xff]
    %v3232 = vld [vmem:[%s3230 + $0x8] sm:$0xff]
    %s3233 = scalar_lea.vmem %s1, 64
    %v3234 = vld [vmem:[%s3233] sm:$0xff]
    %v3235 = vld [vmem:[%s3233 + $0x8] sm:$0xff]
    %s3236 = scalar_lea.vmem %s1, 80
    %v3237 = vld [vmem:[%s3236] sm:$0xff]
    %v3238 = vld [vmem:[%s3236 + $0x8] sm:$0xff]
    %v3241 = vrot.slane %v3222, 7
    %v3242 = vrot.slane %v3223, 7
    %v3243 = vsel %vm48, %v3241, %v3242
    %v3246 = vsub.f32 %v3222, %v3241
    %v3247 = vsub.f32 %v3223, %v3243
    %v3248 = vmul.f32 %v3246, 0.5
    %v3249 = vmul.f32 %v3247, 0.5
    %v3250 = vtanh.pop %v3248
    %v3251 = vtanh.pop %v3249
    %v3252 = vmul.f32 %v3250, %v3250
    %v3253 = vmul.f32 %v3251, %v3251
    %v3256 = vrot.slane %v3225, 7
    %v3257 = vrot.slane %v3226, 7
    %v3258 = vsel %vm48, %v3256, %v3257
    %v3261 = vsub.f32 %v3225, %v3256
    %v3262 = vsub.f32 %v3226, %v3258
    %v3263 = vmul.f32 %v3261, 0.5
    %v3264 = vmul.f32 %v3262, 0.5
    %v3265 = vtanh.pop %v3263
    %v3266 = vtanh.pop %v3264
    %v3267 = vmul.f32 %v3265, %v3265
    %v3268 = vmul.f32 %v3266, %v3266
    %v3271 = vrot.slane %v3228, 7
    %v3272 = vrot.slane %v3229, 7
    %v3273 = vsel %vm48, %v3271, %v3272
    %v3276 = vsub.f32 %v3228, %v3271
    %v3277 = vsub.f32 %v3229, %v3273
    %v3278 = vmul.f32 %v3276, 0.5
    %v3279 = vmul.f32 %v3277, 0.5
    %v3280 = vtanh.pop %v3278
    %v3281 = vtanh.pop %v3279
    %v3282 = vmul.f32 %v3280, %v3280
    %v3283 = vmul.f32 %v3281, %v3281
    %v3286 = vrot.slane %v3231, 7
    %v3287 = vrot.slane %v3232, 7
    %v3288 = vsel %vm48, %v3286, %v3287
    %v3291 = vsub.f32 %v3231, %v3286
    %v3292 = vsub.f32 %v3232, %v3288
    %v3293 = vmul.f32 %v3291, 0.5
    %v3294 = vmul.f32 %v3292, 0.5
    %v3295 = vtanh.pop %v3293
    %v3296 = vtanh.pop %v3294
    %v3297 = vmul.f32 %v3295, %v3295
    %v3298 = vmul.f32 %v3296, %v3296
    %v3301 = vrot.slane %v3234, 7
    %v3302 = vrot.slane %v3235, 7
    %v3303 = vsel %vm48, %v3301, %v3302
    %v3306 = vsub.f32 %v3234, %v3301
    %v3307 = vsub.f32 %v3235, %v3303
    %v3308 = vmul.f32 %v3306, 0.5
    %v3309 = vmul.f32 %v3307, 0.5
    %v3310 = vtanh.pop %v3308
    %v3311 = vtanh.pop %v3309
    %v3312 = vmul.f32 %v3310, %v3310
    %v3313 = vmul.f32 %v3311, %v3311
    %v3316 = vrot.slane %v3237, 7
    %v3317 = vrot.slane %v3238, 7
    %v3318 = vsel %vm48, %v3316, %v3317
    %v3321 = vsub.f32 %v3237, %v3316
    %v3322 = vsub.f32 %v3238, %v3318
    %v3323 = vmul.f32 %v3321, 0.5
    %v3324 = vmul.f32 %v3322, 0.5
    %v3325 = vtanh.pop %v3323
    %v3326 = vtanh.pop %v3324
    %v3327 = vmul.f32 %v3325, %v3325
    %v3328 = vmul.f32 %v3326, %v3326
    %v3329 = vmul.f32 %v3252, %v3297
    %v3330 = vmul.f32 %v3253, %v3298
    %v3333 = vrot.slane %v3329, 1
    %v3334 = vrot.slane %v3330, 1
    %v3335 = vsel %vm141, %v3333, %v3334
    %v3338 = vsel %vm147, %v3335, 0.0
    %v3339 = vsel %vm149, %v3334, 0.0
    %v3340 = vadd.f32 %v3338, %v3339
    %3341 = vadd.xlane.f32.xlu0 %v3340
    %v3342 = vpop.xlane.xlu0 %3341
    %v3343 = vrot.slane %v3342, 4
    %v3344 = vadd.f32 %v3342, %v3343
    %v3345 = vrot.slane %v3344, 2
    %v3346 = vadd.f32 %v3344, %v3345
    %v3347 = vrot.slane %v3346, 1
    %v3348 = vadd.f32 %v3346, %v3347
    %s3349 = vtos %v3348
    %s3350 = sadd.s32 %s29, 1
    %s3351 = smul.u32 %s3350, 128
    %s3352 = scalar_lea.smem [#allocation2], %s3351
    %3353 = sst [smem:[%s3352]] %s3349
    %v3354 = vmul.f32 %v3267, %v3297
    %v3355 = vmul.f32 %v3268, %v3298
    %v3358 = vrot.slane %v3354, 1
    %v3359 = vrot.slane %v3355, 1
    %v3360 = vsel %vm141, %v3358, %v3359
    %v3363 = vsel %vm147, %v3360, 0.0
    %v3364 = vsel %vm149, %v3359, 0.0
    %v3365 = vadd.f32 %v3363, %v3364
    %3366 = vadd.xlane.f32.xlu0 %v3365
    %v3367 = vpop.xlane.xlu0 %3366
    %v3368 = vrot.slane %v3367, 4
    %v3369 = vadd.f32 %v3367, %v3368
    %v3370 = vrot.slane %v3369, 2
    %v3371 = vadd.f32 %v3369, %v3370
    %v3372 = vrot.slane %v3371, 1
    %v3373 = vadd.f32 %v3371, %v3372
    %s3374 = vtos %v3373
    %s3375 = sadd.s32 %s3351, 1
    %s3376 = scalar_lea.smem [#allocation2], %s3375
    %3377 = sst [smem:[%s3376]] %s3374
    %v3378 = vmul.f32 %v3282, %v3297
    %v3379 = vmul.f32 %v3283, %v3298
    %v3382 = vrot.slane %v3378, 1
    %v3383 = vrot.slane %v3379, 1
    %v3384 = vsel %vm141, %v3382, %v3383
    %v3387 = vsel %vm147, %v3384, 0.0
    %v3388 = vsel %vm149, %v3383, 0.0
    %v3389 = vadd.f32 %v3387, %v3388
    %3390 = vadd.xlane.f32.xlu0 %v3389
    %v3391 = vpop.xlane.xlu0 %3390
    %v3392 = vrot.slane %v3391, 4
    %v3393 = vadd.f32 %v3391, %v3392
    %v3394 = vrot.slane %v3393, 2
    %v3395 = vadd.f32 %v3393, %v3394
    %v3396 = vrot.slane %v3395, 1
    %v3397 = vadd.f32 %v3395, %v3396
    %s3398 = vtos %v3397
    %s3399 = sadd.s32 %s3351, 2
    %s3400 = scalar_lea.smem [#allocation2], %s3399
    %3401 = sst [smem:[%s3400]] %s3398
    %v3402 = vmul.f32 %v3252, %v3312
    %v3403 = vmul.f32 %v3253, %v3313
    %v3406 = vrot.slane %v3402, 1
    %v3407 = vrot.slane %v3403, 1
    %v3408 = vsel %vm141, %v3406, %v3407
    %v3411 = vsel %vm147, %v3408, 0.0
    %v3412 = vsel %vm149, %v3407, 0.0
    %v3413 = vadd.f32 %v3411, %v3412
    %3414 = vadd.xlane.f32.xlu0 %v3413
    %v3415 = vpop.xlane.xlu0 %3414
    %v3416 = vrot.slane %v3415, 4
    %v3417 = vadd.f32 %v3415, %v3416
    %v3418 = vrot.slane %v3417, 2
    %v3419 = vadd.f32 %v3417, %v3418
    %v3420 = vrot.slane %v3419, 1
    %v3421 = vadd.f32 %v3419, %v3420
    %s3422 = vtos %v3421
    %s3423 = sadd.s32 %s3351, 3
    %s3424 = scalar_lea.smem [#allocation2], %s3423
    %3425 = sst [smem:[%s3424]] %s3422
    %v3426 = vmul.f32 %v3267, %v3312
    %v3427 = vmul.f32 %v3268, %v3313
    %v3430 = vrot.slane %v3426, 1
    %v3431 = vrot.slane %v3427, 1
    %v3432 = vsel %vm141, %v3430, %v3431
    %v3435 = vsel %vm147, %v3432, 0.0
    %v3436 = vsel %vm149, %v3431, 0.0
    %v3437 = vadd.f32 %v3435, %v3436
    %3438 = vadd.xlane.f32.xlu0 %v3437
    %v3439 = vpop.xlane.xlu0 %3438
    %v3440 = vrot.slane %v3439, 4
    %v3441 = vadd.f32 %v3439, %v3440
    %v3442 = vrot.slane %v3441, 2
    %v3443 = vadd.f32 %v3441, %v3442
    %v3444 = vrot.slane %v3443, 1
    %v3445 = vadd.f32 %v3443, %v3444
    %s3446 = vtos %v3445
    %s3447 = sadd.s32 %s3351, 4
    %s3448 = scalar_lea.smem [#allocation2], %s3447
    %3449 = sst [smem:[%s3448]] %s3446
    %v3450 = vmul.f32 %v3282, %v3312
    %v3451 = vmul.f32 %v3283, %v3313
    %v3454 = vrot.slane %v3450, 1
    %v3455 = vrot.slane %v3451, 1
    %v3456 = vsel %vm141, %v3454, %v3455
    %v3459 = vsel %vm147, %v3456, 0.0
    %v3460 = vsel %vm149, %v3455, 0.0
    %v3461 = vadd.f32 %v3459, %v3460
    %3462 = vadd.xlane.f32.xlu0 %v3461
    %v3463 = vpop.xlane.xlu0 %3462
    %v3464 = vrot.slane %v3463, 4
    %v3465 = vadd.f32 %v3463, %v3464
    %v3466 = vrot.slane %v3465, 2
    %v3467 = vadd.f32 %v3465, %v3466
    %v3468 = vrot.slane %v3467, 1
    %v3469 = vadd.f32 %v3467, %v3468
    %s3470 = vtos %v3469
    %s3471 = sadd.s32 %s3351, 5
    %s3472 = scalar_lea.smem [#allocation2], %s3471
    %3473 = sst [smem:[%s3472]] %s3470
    %v3474 = vmul.f32 %v3252, %v3327
    %v3475 = vmul.f32 %v3253, %v3328
    %v3478 = vrot.slane %v3474, 1
    %v3479 = vrot.slane %v3475, 1
    %v3480 = vsel %vm141, %v3478, %v3479
    %v3483 = vsel %vm147, %v3480, 0.0
    %v3484 = vsel %vm149, %v3479, 0.0
    %v3485 = vadd.f32 %v3483, %v3484
    %3486 = vadd.xlane.f32.xlu0 %v3485
    %v3487 = vpop.xlane.xlu0 %3486
    %v3488 = vrot.slane %v3487, 4
    %v3489 = vadd.f32 %v3487, %v3488
    %v3490 = vrot.slane %v3489, 2
    %v3491 = vadd.f32 %v3489, %v3490
    %v3492 = vrot.slane %v3491, 1
    %v3493 = vadd.f32 %v3491, %v3492
    %s3494 = vtos %v3493
    %s3495 = sadd.s32 %s3351, 6
    %s3496 = scalar_lea.smem [#allocation2], %s3495
    %3497 = sst [smem:[%s3496]] %s3494
    %v3498 = vmul.f32 %v3267, %v3327
    %v3499 = vmul.f32 %v3268, %v3328
    %v3502 = vrot.slane %v3498, 1
    %v3503 = vrot.slane %v3499, 1
    %v3504 = vsel %vm141, %v3502, %v3503
    %v3507 = vsel %vm147, %v3504, 0.0
    %v3508 = vsel %vm149, %v3503, 0.0
    %v3509 = vadd.f32 %v3507, %v3508
    %3510 = vadd.xlane.f32.xlu0 %v3509
    %v3511 = vpop.xlane.xlu0 %3510
    %v3512 = vrot.slane %v3511, 4
    %v3513 = vadd.f32 %v3511, %v3512
    %v3514 = vrot.slane %v3513, 2
    %v3515 = vadd.f32 %v3513, %v3514
    %v3516 = vrot.slane %v3515, 1
    %v3517 = vadd.f32 %v3515, %v3516
    %s3518 = vtos %v3517
    %s3519 = sadd.s32 %s3351, 7
    %s3520 = scalar_lea.smem [#allocation2], %s3519
    %3521 = sst [smem:[%s3520]] %s3518
    %v3522 = vmul.f32 %v3282, %v3327
    %v3523 = vmul.f32 %v3283, %v3328
    %v3526 = vrot.slane %v3522, 1
    %v3527 = vrot.slane %v3523, 1
    %v3528 = vsel %vm141, %v3526, %v3527
    %v3531 = vsel %vm147, %v3528, 0.0
    %v3532 = vsel %vm149, %v3527, 0.0
    %v3533 = vadd.f32 %v3531, %v3532
    %3534 = vadd.xlane.f32.xlu0 %v3533
    %v3535 = vpop.xlane.xlu0 %3534
    %v3536 = vrot.slane %v3535, 4
    %v3537 = vadd.f32 %v3535, %v3536
    %v3538 = vrot.slane %v3537, 2
    %v3539 = vadd.f32 %v3537, %v3538
    %v3540 = vrot.slane %v3539, 1
    %v3541 = vadd.f32 %v3539, %v3540
    %s3542 = vtos %v3541
    %s3543 = sadd.s32 %s3351, 8
    %s3544 = scalar_lea.smem [#allocation2], %s3543
    %3545 = sst [smem:[%s3544]] %s3542
    %3546 = vrot.lane.b32.xlu0 %v3222, 1
    %v3547 = vpop.permute.xlu0 %3546
    %3548 = vrot.lane.b32.xlu0 %v3223, 1
    %v3549 = vpop.permute.xlu0 %3548
    %v3552 = vsub.f32 %v3222, %v3547
    %v3553 = vsub.f32 %v3223, %v3549
    %v3554 = vmul.f32 %v3552, 0.5
    %v3555 = vmul.f32 %v3553, 0.5
    %v3556 = vtanh.pop %v3554
    %v3557 = vtanh.pop %v3555
    %v3558 = vmul.f32 %v3556, %v3556
    %v3559 = vmul.f32 %v3557, %v3557
    %3560 = vrot.lane.b32.xlu0 %v3225, 1
    %v3561 = vpop.permute.xlu0 %3560
    %3562 = vrot.lane.b32.xlu0 %v3226, 1
    %v3563 = vpop.permute.xlu0 %3562
    %v3566 = vsub.f32 %v3225, %v3561
    %v3567 = vsub.f32 %v3226, %v3563
    %v3568 = vmul.f32 %v3566, 0.5
    %v3569 = vmul.f32 %v3567, 0.5
    %v3570 = vtanh.pop %v3568
    %v3571 = vtanh.pop %v3569
    %v3572 = vmul.f32 %v3570, %v3570
    %v3573 = vmul.f32 %v3571, %v3571
    %3574 = vrot.lane.b32.xlu0 %v3228, 1
    %v3575 = vpop.permute.xlu0 %3574
    %3576 = vrot.lane.b32.xlu0 %v3229, 1
    %v3577 = vpop.permute.xlu0 %3576
    %v3580 = vsub.f32 %v3228, %v3575
    %v3581 = vsub.f32 %v3229, %v3577
    %v3582 = vmul.f32 %v3580, 0.5
    %v3583 = vmul.f32 %v3581, 0.5
    %v3584 = vtanh.pop %v3582
    %v3585 = vtanh.pop %v3583
    %v3586 = vmul.f32 %v3584, %v3584
    %v3587 = vmul.f32 %v3585, %v3585
    %3588 = vrot.lane.b32.xlu0 %v3231, 1
    %v3589 = vpop.permute.xlu0 %3588
    %3590 = vrot.lane.b32.xlu0 %v3232, 1
    %v3591 = vpop.permute.xlu0 %3590
    %v3594 = vsub.f32 %v3231, %v3589
    %v3595 = vsub.f32 %v3232, %v3591
    %v3596 = vmul.f32 %v3594, 0.5
    %v3597 = vmul.f32 %v3595, 0.5
    %v3598 = vtanh.pop %v3596
    %v3599 = vtanh.pop %v3597
    %v3600 = vmul.f32 %v3598, %v3598
    %v3601 = vmul.f32 %v3599, %v3599
    %3602 = vrot.lane.b32.xlu0 %v3234, 1
    %v3603 = vpop.permute.xlu0 %3602
    %3604 = vrot.lane.b32.xlu0 %v3235, 1
    %v3605 = vpop.permute.xlu0 %3604
    %v3608 = vsub.f32 %v3234, %v3603
    %v3609 = vsub.f32 %v3235, %v3605
    %v3610 = vmul.f32 %v3608, 0.5
    %v3611 = vmul.f32 %v3609, 0.5
    %v3612 = vtanh.pop %v3610
    %v3613 = vtanh.pop %v3611
    %v3614 = vmul.f32 %v3612, %v3612
    %v3615 = vmul.f32 %v3613, %v3613
    %3616 = vrot.lane.b32.xlu0 %v3237, 1
    %v3617 = vpop.permute.xlu0 %3616
    %3618 = vrot.lane.b32.xlu0 %v3238, 1
    %v3619 = vpop.permute.xlu0 %3618
    %v3622 = vsub.f32 %v3237, %v3617
    %v3623 = vsub.f32 %v3238, %v3619
    %v3624 = vmul.f32 %v3622, 0.5
    %v3625 = vmul.f32 %v3623, 0.5
    %v3626 = vtanh.pop %v3624
    %v3627 = vtanh.pop %v3625
    %v3628 = vmul.f32 %v3626, %v3626
    %v3629 = vmul.f32 %v3627, %v3627
    %v3630 = vmul.f32 %v3558, %v3600
    %v3631 = vmul.f32 %v3559, %v3601
    %3634 = vrot.lane.b32.xlu0 %v3630, 127
    %v3635 = vpop.permute.xlu0 %3634
    %3636 = vrot.lane.b32.xlu0 %v3631, 127
    %v3637 = vpop.permute.xlu0 %3636
    %v3640 = vsel %vm450, %v3635, 0.0
    %v3641 = vsel %vm450, %v3637, 0.0
    %v3642 = vadd.f32 %v3640, %v3641
    %3643 = vadd.xlane.f32.xlu0 %v3642
    %v3644 = vpop.xlane.xlu0 %3643
    %v3645 = vrot.slane %v3644, 4
    %v3646 = vadd.f32 %v3644, %v3645
    %v3647 = vrot.slane %v3646, 2
    %v3648 = vadd.f32 %v3646, %v3647
    %v3649 = vrot.slane %v3648, 1
    %v3650 = vadd.f32 %v3648, %v3649
    %s3651 = vtos %v3650
    %s3652 = sadd.s32 %s3351, 9
    %s3653 = scalar_lea.smem [#allocation2], %s3652
    %3654 = sst [smem:[%s3653]] %s3651
    %v3655 = vmul.f32 %v3572, %v3600
    %v3656 = vmul.f32 %v3573, %v3601
    %3659 = vrot.lane.b32.xlu0 %v3655, 127
    %v3660 = vpop.permute.xlu0 %3659
    %3661 = vrot.lane.b32.xlu0 %v3656, 127
    %v3662 = vpop.permute.xlu0 %3661
    %v3665 = vsel %vm450, %v3660, 0.0
    %v3666 = vsel %vm450, %v3662, 0.0
    %v3667 = vadd.f32 %v3665, %v3666
    %3668 = vadd.xlane.f32.xlu0 %v3667
    %v3669 = vpop.xlane.xlu0 %3668
    %v3670 = vrot.slane %v3669, 4
    %v3671 = vadd.f32 %v3669, %v3670
    %v3672 = vrot.slane %v3671, 2
    %v3673 = vadd.f32 %v3671, %v3672
    %v3674 = vrot.slane %v3673, 1
    %v3675 = vadd.f32 %v3673, %v3674
    %s3676 = vtos %v3675
    %s3677 = sadd.s32 %s3351, 10
    %s3678 = scalar_lea.smem [#allocation2], %s3677
    %3679 = sst [smem:[%s3678]] %s3676
    %v3680 = vmul.f32 %v3586, %v3600
    %v3681 = vmul.f32 %v3587, %v3601
    %3684 = vrot.lane.b32.xlu0 %v3680, 127
    %v3685 = vpop.permute.xlu0 %3684
    %3686 = vrot.lane.b32.xlu0 %v3681, 127
    %v3687 = vpop.permute.xlu0 %3686
    %v3690 = vsel %vm450, %v3685, 0.0
    %v3691 = vsel %vm450, %v3687, 0.0
    %v3692 = vadd.f32 %v3690, %v3691
    %3693 = vadd.xlane.f32.xlu0 %v3692
    %v3694 = vpop.xlane.xlu0 %3693
    %v3695 = vrot.slane %v3694, 4
    %v3696 = vadd.f32 %v3694, %v3695
    %v3697 = vrot.slane %v3696, 2
    %v3698 = vadd.f32 %v3696, %v3697
    %v3699 = vrot.slane %v3698, 1
    %v3700 = vadd.f32 %v3698, %v3699
    %s3701 = vtos %v3700
    %s3702 = sadd.s32 %s3351, 11
    %s3703 = scalar_lea.smem [#allocation2], %s3702
    %3704 = sst [smem:[%s3703]] %s3701
    %v3705 = vmul.f32 %v3558, %v3614
    %v3706 = vmul.f32 %v3559, %v3615
    %3709 = vrot.lane.b32.xlu0 %v3705, 127
    %v3710 = vpop.permute.xlu0 %3709
    %3711 = vrot.lane.b32.xlu0 %v3706, 127
    %v3712 = vpop.permute.xlu0 %3711
    %v3715 = vsel %vm450, %v3710, 0.0
    %v3716 = vsel %vm450, %v3712, 0.0
    %v3717 = vadd.f32 %v3715, %v3716
    %3718 = vadd.xlane.f32.xlu0 %v3717
    %v3719 = vpop.xlane.xlu0 %3718
    %v3720 = vrot.slane %v3719, 4
    %v3721 = vadd.f32 %v3719, %v3720
    %v3722 = vrot.slane %v3721, 2
    %v3723 = vadd.f32 %v3721, %v3722
    %v3724 = vrot.slane %v3723, 1
    %v3725 = vadd.f32 %v3723, %v3724
    %s3726 = vtos %v3725
    %s3727 = sadd.s32 %s3351, 12
    %s3728 = scalar_lea.smem [#allocation2], %s3727
    %3729 = sst [smem:[%s3728]] %s3726
    %v3730 = vmul.f32 %v3572, %v3614
    %v3731 = vmul.f32 %v3573, %v3615
    %3734 = vrot.lane.b32.xlu0 %v3730, 127
    %v3735 = vpop.permute.xlu0 %3734
    %3736 = vrot.lane.b32.xlu0 %v3731, 127
    %v3737 = vpop.permute.xlu0 %3736
    %v3740 = vsel %vm450, %v3735, 0.0
    %v3741 = vsel %vm450, %v3737, 0.0
    %v3742 = vadd.f32 %v3740, %v3741
    %3743 = vadd.xlane.f32.xlu0 %v3742
    %v3744 = vpop.xlane.xlu0 %3743
    %v3745 = vrot.slane %v3744, 4
    %v3746 = vadd.f32 %v3744, %v3745
    %v3747 = vrot.slane %v3746, 2
    %v3748 = vadd.f32 %v3746, %v3747
    %v3749 = vrot.slane %v3748, 1
    %v3750 = vadd.f32 %v3748, %v3749
    %s3751 = vtos %v3750
    %s3752 = sadd.s32 %s3351, 13
    %s3753 = scalar_lea.smem [#allocation2], %s3752
    %3754 = sst [smem:[%s3753]] %s3751
    %v3755 = vmul.f32 %v3586, %v3614
    %v3756 = vmul.f32 %v3587, %v3615
    %3759 = vrot.lane.b32.xlu0 %v3755, 127
    %v3760 = vpop.permute.xlu0 %3759
    %3761 = vrot.lane.b32.xlu0 %v3756, 127
    %v3762 = vpop.permute.xlu0 %3761
    %v3765 = vsel %vm450, %v3760, 0.0
    %v3766 = vsel %vm450, %v3762, 0.0
    %v3767 = vadd.f32 %v3765, %v3766
    %3768 = vadd.xlane.f32.xlu0 %v3767
    %v3769 = vpop.xlane.xlu0 %3768
    %v3770 = vrot.slane %v3769, 4
    %v3771 = vadd.f32 %v3769, %v3770
    %v3772 = vrot.slane %v3771, 2
    %v3773 = vadd.f32 %v3771, %v3772
    %v3774 = vrot.slane %v3773, 1
    %v3775 = vadd.f32 %v3773, %v3774
    %s3776 = vtos %v3775
    %s3777 = sadd.s32 %s3351, 14
    %s3778 = scalar_lea.smem [#allocation2], %s3777
    %3779 = sst [smem:[%s3778]] %s3776
    %v3780 = vmul.f32 %v3558, %v3628
    %v3781 = vmul.f32 %v3559, %v3629
    %3784 = vrot.lane.b32.xlu0 %v3780, 127
    %v3785 = vpop.permute.xlu0 %3784
    %3786 = vrot.lane.b32.xlu0 %v3781, 127
    %v3787 = vpop.permute.xlu0 %3786
    %v3790 = vsel %vm450, %v3785, 0.0
    %v3791 = vsel %vm450, %v3787, 0.0
    %v3792 = vadd.f32 %v3790, %v3791
    %3793 = vadd.xlane.f32.xlu0 %v3792
    %v3794 = vpop.xlane.xlu0 %3793
    %v3795 = vrot.slane %v3794, 4
    %v3796 = vadd.f32 %v3794, %v3795
    %v3797 = vrot.slane %v3796, 2
    %v3798 = vadd.f32 %v3796, %v3797
    %v3799 = vrot.slane %v3798, 1
    %v3800 = vadd.f32 %v3798, %v3799
    %s3801 = vtos %v3800
    %s3802 = sadd.s32 %s3351, 15
    %s3803 = scalar_lea.smem [#allocation2], %s3802
    %3804 = sst [smem:[%s3803]] %s3801
    %v3805 = vmul.f32 %v3572, %v3628
    %v3806 = vmul.f32 %v3573, %v3629
    %3809 = vrot.lane.b32.xlu0 %v3805, 127
    %v3810 = vpop.permute.xlu0 %3809
    %3811 = vrot.lane.b32.xlu0 %v3806, 127
    %v3812 = vpop.permute.xlu0 %3811
    %v3815 = vsel %vm450, %v3810, 0.0
    %v3816 = vsel %vm450, %v3812, 0.0
    %v3817 = vadd.f32 %v3815, %v3816
    %3818 = vadd.xlane.f32.xlu0 %v3817
    %v3819 = vpop.xlane.xlu0 %3818
    %v3820 = vrot.slane %v3819, 4
    %v3821 = vadd.f32 %v3819, %v3820
    %v3822 = vrot.slane %v3821, 2
    %v3823 = vadd.f32 %v3821, %v3822
    %v3824 = vrot.slane %v3823, 1
    %v3825 = vadd.f32 %v3823, %v3824
    %s3826 = vtos %v3825
    %s3827 = sadd.s32 %s3351, 16
    %s3828 = scalar_lea.smem [#allocation2], %s3827
    %3829 = sst [smem:[%s3828]] %s3826
    %v3830 = vmul.f32 %v3586, %v3628
    %v3831 = vmul.f32 %v3587, %v3629
    %3834 = vrot.lane.b32.xlu0 %v3830, 127
    %v3835 = vpop.permute.xlu0 %3834
    %3836 = vrot.lane.b32.xlu0 %v3831, 127
    %v3837 = vpop.permute.xlu0 %3836
    %v3840 = vsel %vm450, %v3835, 0.0
    %v3841 = vsel %vm450, %v3837, 0.0
    %v3842 = vadd.f32 %v3840, %v3841
    %3843 = vadd.xlane.f32.xlu0 %v3842
    %v3844 = vpop.xlane.xlu0 %3843
    %v3845 = vrot.slane %v3844, 4
    %v3846 = vadd.f32 %v3844, %v3845
    %v3847 = vrot.slane %v3846, 2
    %v3848 = vadd.f32 %v3846, %v3847
    %v3849 = vrot.slane %v3848, 1
    %v3850 = vadd.f32 %v3848, %v3849
    %s3851 = vtos %v3850
    %s3852 = sadd.s32 %s3351, 17
    %s3853 = scalar_lea.smem [#allocation2], %s3852
    %3854 = sst [smem:[%s3853]] %s3851
    %v3855 = vsel %vm147, %v3222, 0
    %v3857 = vsel %vm147, %v3223, 0
    %3859 = vmatprep.subr.mxu0 0.0
    %3860 = vmatpush1.msra.mxu0 %v25
    %3861 = vmatprep.subr.mxu0 0.0
    %3862 = vmatpush1.msra.mxu0 %v26
    %3863 = vmatprep.subr.mxu0 0.0
    %3864 = vmatpush1.msra.mxu0 0.0
    %3865 = vmatprep.subr.mxu0 0.0
    %3866 = vmatpush1.msra.mxu0 0.0
    %3867 = vmatprep.subr.mxu0 0.0
    %3868 = vmatpush1.msra.mxu0 0.0
    %3869 = vmatprep.subr.mxu0 0.0
    %3870 = vmatpush1.msra.mxu0 0.0
    %3871 = vmatprep.subr.mxu0 0.0
    %3872 = vmatpush1.msra.mxu0 0.0
    %3873 = vmatprep.subr.mxu0 0.0
    %3874 = vmatpush1.msra.mxu0 0.0
    %3875 = vmatprep.subr.mxu0 0.0
    %3876 = vmatpush1.msra.mxu0 0.0
    %3877 = vmatprep.subr.mxu0 0.0
    %3878 = vmatpush1.msra.mxu0 0.0
    %3879 = vmatprep.subr.mxu0 0.0
    %3880 = vmatpush1.msra.mxu0 0.0
    %3881 = vmatprep.subr.mxu0 0.0
    %3882 = vmatpush1.msra.mxu0 0.0
    %3883 = vmatprep.subr.mxu0 0.0
    %3884 = vmatpush1.msra.mxu0 0.0
    %3885 = vmatprep.subr.mxu0 0.0
    %3886 = vmatpush1.msra.mxu0 0.0
    %3887 = vmatprep.subr.mxu0 0.0
    %3888 = vmatpush1.msra.mxu0 0.0
    %3889 = vmatprep.subr.mxu0 0.0
    %3890 = vmatpush1.msra.mxu0 0.0
    %3891 = vmatprep.subr.mxu0 0.0
    %3892 = vmatpush1.msra.mxu0 0.0
    %3893 = vmatprep.subr.mxu0 0.0
    %3894 = vmatpush1.msra.mxu0 0.0
    %3895 = vmatprep.subr.mxu0 0.0
    %3896 = vmatpush1.msra.mxu0 0.0
    %3897 = vmatprep.subr.mxu0 0.0
    %3898 = vmatpush1.msra.mxu0 0.0
    %3899 = vmatprep.subr.mxu0 0.0
    %3900 = vmatpush1.msra.mxu0 0.0
    %3901 = vmatprep.subr.mxu0 0.0
    %3902 = vmatpush1.msra.mxu0 0.0
    %3903 = vmatprep.subr.mxu0 0.0
    %3904 = vmatpush1.msra.mxu0 0.0
    %3905 = vmatprep.subr.mxu0 0.0
    %3906 = vmatpush1.msra.mxu0 0.0
    %3907 = vmatprep.subr.mxu0 0.0
    %3908 = vmatpush1.msra.mxu0 0.0
    %3909 = vmatprep.subr.mxu0 0.0
    %3910 = vmatpush1.msra.mxu0 0.0
    %3911 = vmatprep.subr.mxu0 0.0
    %3912 = vmatpush1.msra.mxu0 0.0
    %3913 = vmatprep.subr.mxu0 0.0
    %3914 = vmatpush1.msra.mxu0 0.0
    %3915 = vmatprep.subr.mxu0 0.0
    %3916 = vmatpush1.msra.mxu0 0.0
    %3917 = vmatprep.subr.mxu0 0.0
    %3918 = vmatpush1.msra.mxu0 0.0
    %3919 = vmatprep.subr.mxu0 0.0
    %3920 = vmatpush1.msra.mxu0 0.0
    %3921 = vmatprep.subr.mxu0 0.0
    %3922 = vmatpush1.msra.mxu0 0.0
    %3923 = vmatprep.mubr.f32.mxu0 0.0
    %3924 = vmatmul.mubr.f32.gmra.mrb[0].mxu0 %v3855
    %v3925 = vpop.f32.mrb[0].mxu0
    %v3926 = vadd.f32 0.0, %v3925
    %v3927 = vpop.f32.mrb[0].mxu0
    %3928 = vmatprep.mubr.f32.mxu0 0.0
    %3929 = vmatmul.mubr.f32.gmra.mrb[0].mxu0 %v3857
    %v3930 = vpop.f32.mrb[0].mxu0
    %v3931 = vadd.f32 0.0, %v3930
    %v3932 = vpop.f32.mrb[0].mxu0
    %3933 = vdwg.mxu0
    %3934 = vmatprep.subr.mxu0 0.0
    %3935 = vmatpush1.msra.mxu0 %v3926
    %3936 = vmatprep.subr.mxu0 0.0
    %3937 = vmatpush1.msra.mxu0 %v3931
    %3938 = vmatprep.subr.mxu0 0.0
    %3939 = vmatpush1.msra.mxu0 0.0
    %3940 = vmatprep.subr.mxu0 0.0
    %3941 = vmatpush1.msra.mxu0 0.0
    %3942 = vmatprep.subr.mxu0 0.0
    %3943 = vmatpush1.msra.mxu0 0.0
    %3944 = vmatprep.subr.mxu0 0.0
    %3945 = vmatpush1.msra.mxu0 0.0
    %3946 = vmatprep.subr.mxu0 0.0
    %3947 = vmatpush1.msra.mxu0 0.0
    %3948 = vmatprep.subr.mxu0 0.0
    %3949 = vmatpush1.msra.mxu0 0.0
    %3950 = vmatprep.subr.mxu0 0.0
    %3951 = vmatpush1.msra.mxu0 0.0
    %3952 = vmatprep.subr.mxu0 0.0
    %3953 = vmatpush1.msra.mxu0 0.0
    %3954 = vmatprep.subr.mxu0 0.0
    %3955 = vmatpush1.msra.mxu0 0.0
    %3956 = vmatprep.subr.mxu0 0.0
    %3957 = vmatpush1.msra.mxu0 0.0
    %3958 = vmatprep.subr.mxu0 0.0
    %3959 = vmatpush1.msra.mxu0 0.0
    %3960 = vmatprep.subr.mxu0 0.0
    %3961 = vmatpush1.msra.mxu0 0.0
    %3962 = vmatprep.subr.mxu0 0.0
    %3963 = vmatpush1.msra.mxu0 0.0
    %3964 = vmatprep.subr.mxu0 0.0
    %3965 = vmatpush1.msra.mxu0 0.0
    %3966 = vmatprep.subr.mxu0 0.0
    %3967 = vmatpush1.msra.mxu0 0.0
    %3968 = vmatprep.subr.mxu0 0.0
    %3969 = vmatpush1.msra.mxu0 0.0
    %3970 = vmatprep.subr.mxu0 0.0
    %3971 = vmatpush1.msra.mxu0 0.0
    %3972 = vmatprep.subr.mxu0 0.0
    %3973 = vmatpush1.msra.mxu0 0.0
    %3974 = vmatprep.subr.mxu0 0.0
    %3975 = vmatpush1.msra.mxu0 0.0
    %3976 = vmatprep.subr.mxu0 0.0
    %3977 = vmatpush1.msra.mxu0 0.0
    %3978 = vmatprep.subr.mxu0 0.0
    %3979 = vmatpush1.msra.mxu0 0.0
    %3980 = vmatprep.subr.mxu0 0.0
    %3981 = vmatpush1.msra.mxu0 0.0
    %3982 = vmatprep.subr.mxu0 0.0
    %3983 = vmatpush1.msra.mxu0 0.0
    %3984 = vmatprep.subr.mxu0 0.0
    %3985 = vmatpush1.msra.mxu0 0.0
    %3986 = vmatprep.subr.mxu0 0.0
    %3987 = vmatpush1.msra.mxu0 0.0
    %3988 = vmatprep.subr.mxu0 0.0
    %3989 = vmatpush1.msra.mxu0 0.0
    %3990 = vmatprep.subr.mxu0 0.0
    %3991 = vmatpush1.msra.mxu0 0.0
    %3992 = vmatprep.subr.mxu0 0.0
    %3993 = vmatpush1.msra.mxu0 0.0
    %3994 = vmatprep.subr.mxu0 0.0
    %3995 = vmatpush1.msra.mxu0 0.0
    %3996 = vmatprep.subr.mxu0 0.0
    %3997 = vmatpush1.msra.mxu0 0.0
    %3998 = vmatprep.mubr.f32.mxu0 0.0
    %3999 = vmatmul.mubr.f32.gmra.mrb[0].mxu0 %v746
    %v4000 = vpop.f32.mrb[0].mxu0
    %v4001 = vadd.f32 0.0, %v4000
    %v4002 = vpop.f32.mrb[0].mxu0
    %4003 = vdwg.mxu0
    %v4004 = vsel %vm147, %v3225, 0
    %v4006 = vsel %vm147, %v3226, 0
    %4008 = vmatprep.subr.mxu0 0.0
    %4009 = vmatpush1.msra.mxu0 %v25
    %4010 = vmatprep.subr.mxu0 0.0
    %4011 = vmatpush1.msra.mxu0 %v26
    %4012 = vmatprep.subr.mxu0 0.0
    %4013 = vmatpush1.msra.mxu0 0.0
    %4014 = vmatprep.subr.mxu0 0.0
    %4015 = vmatpush1.msra.mxu0 0.0
    %4016 = vmatprep.subr.mxu0 0.0
    %4017 = vmatpush1.msra.mxu0 0.0
    %4018 = vmatprep.subr.mxu0 0.0
    %4019 = vmatpush1.msra.mxu0 0.0
    %4020 = vmatprep.subr.mxu0 0.0
    %4021 = vmatpush1.msra.mxu0 0.0
    %4022 = vmatprep.subr.mxu0 0.0
    %4023 = vmatpush1.msra.mxu0 0.0
    %4024 = vmatprep.subr.mxu0 0.0
    %4025 = vmatpush1.msra.mxu0 0.0
    %4026 = vmatprep.subr.mxu0 0.0
    %4027 = vmatpush1.msra.mxu0 0.0
    %4028 = vmatprep.subr.mxu0 0.0
    %4029 = vmatpush1.msra.mxu0 0.0
    %4030 = vmatprep.subr.mxu0 0.0
    %4031 = vmatpush1.msra.mxu0 0.0
    %4032 = vmatprep.subr.mxu0 0.0
    %4033 = vmatpush1.msra.mxu0 0.0
    %4034 = vmatprep.subr.mxu0 0.0
    %4035 = vmatpush1.msra.mxu0 0.0
    %4036 = vmatprep.subr.mxu0 0.0
    %4037 = vmatpush1.msra.mxu0 0.0
    %4038 = vmatprep.subr.mxu0 0.0
    %4039 = vmatpush1.msra.mxu0 0.0
    %4040 = vmatprep.subr.mxu0 0.0
    %4041 = vmatpush1.msra.mxu0 0.0
    %4042 = vmatprep.subr.mxu0 0.0
    %4043 = vmatpush1.msra.mxu0 0.0
    %4044 = vmatprep.subr.mxu0 0.0
    %4045 = vmatpush1.msra.mxu0 0.0
    %4046 = vmatprep.subr.mxu0 0.0
    %4047 = vmatpush1.msra.mxu0 0.0
    %4048 = vmatprep.subr.mxu0 0.0
    %4049 = vmatpush1.msra.mxu0 0.0
    %4050 = vmatprep.subr.mxu0 0.0
    %4051 = vmatpush1.msra.mxu0 0.0
    %4052 = vmatprep.subr.mxu0 0.0
    %4053 = vmatpush1.msra.mxu0 0.0
    %4054 = vmatprep.subr.mxu0 0.0
    %4055 = vmatpush1.msra.mxu0 0.0
    %4056 = vmatprep.subr.mxu0 0.0
    %4057 = vmatpush1.msra.mxu0 0.0
    %4058 = vmatprep.subr.mxu0 0.0
    %4059 = vmatpush1.msra.mxu0 0.0
    %4060 = vmatprep.subr.mxu0 0.0
    %4061 = vmatpush1.msra.mxu0 0.0
    %4062 = vmatprep.subr.mxu0 0.0
    %4063 = vmatpush1.msra.mxu0 0.0
    %4064 = vmatprep.subr.mxu0 0.0
    %4065 = vmatpush1.msra.mxu0 0.0
    %4066 = vmatprep.subr.mxu0 0.0
    %4067 = vmatpush1.msra.mxu0 0.0
    %4068 = vmatprep.subr.mxu0 0.0
    %4069 = vmatpush1.msra.mxu0 0.0
    %4070 = vmatprep.subr.mxu0 0.0
    %4071 = vmatpush1.msra.mxu0 0.0
    %4072 = vmatprep.mubr.f32.mxu0 0.0
    %4073 = vmatmul.mubr.f32.gmra.mrb[0].mxu0 %v4004
    %v4074 = vpop.f32.mrb[0].mxu0
    %v4075 = vadd.f32 0.0, %v4074
    %v4076 = vpop.f32.mrb[0].mxu0
    %4077 = vmatprep.mubr.f32.mxu0 0.0
    %4078 = vmatmul.mubr.f32.gmra.mrb[0].mxu0 %v4006
    %v4079 = vpop.f32.mrb[0].mxu0
    %v4080 = vadd.f32 0.0, %v4079
    %v4081 = vpop.f32.mrb[0].mxu0
    %4082 = vdwg.mxu0
    %4083 = vmatprep.subr.mxu0 0.0
    %4084 = vmatpush1.msra.mxu0 %v4075
    %4085 = vmatprep.subr.mxu0 0.0
    %4086 = vmatpush1.msra.mxu0 %v4080
    %4087 = vmatprep.subr.mxu0 0.0
    %4088 = vmatpush1.msra.mxu0 0.0
    %4089 = vmatprep.subr.mxu0 0.0
    %4090 = vmatpush1.msra.mxu0 0.0
    %4091 = vmatprep.subr.mxu0 0.0
    %4092 = vmatpush1.msra.mxu0 0.0
    %4093 = vmatprep.subr.mxu0 0.0
    %4094 = vmatpush1.msra.mxu0 0.0
    %4095 = vmatprep.subr.mxu0 0.0
    %4096 = vmatpush1.msra.mxu0 0.0
    %4097 = vmatprep.subr.mxu0 0.0
    %4098 = vmatpush1.msra.mxu0 0.0
    %4099 = vmatprep.subr.mxu0 0.0
    %4100 = vmatpush1.msra.mxu0 0.0
    %4101 = vmatprep.subr.mxu0 0.0
    %4102 = vmatpush1.msra.mxu0 0.0
    %4103 = vmatprep.subr.mxu0 0.0
    %4104 = vmatpush1.msra.mxu0 0.0
    %4105 = vmatprep.subr.mxu0 0.0
    %4106 = vmatpush1.msra.mxu0 0.0
    %4107 = vmatprep.subr.mxu0 0.0
    %4108 = vmatpush1.msra.mxu0 0.0
    %4109 = vmatprep.subr.mxu0 0.0
    %4110 = vmatpush1.msra.mxu0 0.0
    %4111 = vmatprep.subr.mxu0 0.0
    %4112 = vmatpush1.msra.mxu0 0.0
    %4113 = vmatprep.subr.mxu0 0.0
    %4114 = vmatpush1.msra.mxu0 0.0
    %4115 = vmatprep.subr.mxu0 0.0
    %4116 = vmatpush1.msra.mxu0 0.0
    %4117 = vmatprep.subr.mxu0 0.0
    %4118 = vmatpush1.msra.mxu0 0.0
    %4119 = vmatprep.subr.mxu0 0.0
    %4120 = vmatpush1.msra.mxu0 0.0
    %4121 = vmatprep.subr.mxu0 0.0
    %4122 = vmatpush1.msra.mxu0 0.0
    %4123 = vmatprep.subr.mxu0 0.0
    %4124 = vmatpush1.msra.mxu0 0.0
    %4125 = vmatprep.subr.mxu0 0.0
    %4126 = vmatpush1.msra.mxu0 0.0
    %4127 = vmatprep.subr.mxu0 0.0
    %4128 = vmatpush1.msra.mxu0 0.0
    %4129 = vmatprep.subr.mxu0 0.0
    %4130 = vmatpush1.msra.mxu0 0.0
    %4131 = vmatprep.subr.mxu0 0.0
    %4132 = vmatpush1.msra.mxu0 0.0
    %4133 = vmatprep.subr.mxu0 0.0
    %4134 = vmatpush1.msra.mxu0 0.0
    %4135 = vmatprep.subr.mxu0 0.0
    %4136 = vmatpush1.msra.mxu0 0.0
    %4137 = vmatprep.subr.mxu0 0.0
    %4138 = vmatpush1.msra.mxu0 0.0
    %4139 = vmatprep.subr.mxu0 0.0
    %4140 = vmatpush1.msra.mxu0 0.0
    %4141 = vmatprep.subr.mxu0 0.0
    %4142 = vmatpush1.msra.mxu0 0.0
    %4143 = vmatprep.subr.mxu0 0.0
    %4144 = vmatpush1.msra.mxu0 0.0
    %4145 = vmatprep.subr.mxu0 0.0
    %4146 = vmatpush1.msra.mxu0 0.0
    %4147 = vmatprep.mubr.f32.mxu0 0.0
    %4148 = vmatmul.mubr.f32.gmra.mrb[0].mxu0 %v746
    %v4149 = vpop.f32.mrb[0].mxu0
    %v4150 = vadd.f32 0.0, %v4149
    %v4151 = vpop.f32.mrb[0].mxu0
    %4152 = vdwg.mxu0
    %v4153 = vsel %vm147, %v3228, 0
    %v4155 = vsel %vm147, %v3229, 0
    %4157 = vmatprep.subr.mxu0 0.0
    %4158 = vmatpush1.msra.mxu0 %v25
    %4159 = vmatprep.subr.mxu0 0.0
    %4160 = vmatpush1.msra.mxu0 %v26
    %4161 = vmatprep.subr.mxu0 0.0
    %4162 = vmatpush1.msra.mxu0 0.0
    %4163 = vmatprep.subr.mxu0 0.0
    %4164 = vmatpush1.msra.mxu0 0.0
    %4165 = vmatprep.subr.mxu0 0.0
    %4166 = vmatpush1.msra.mxu0 0.0
    %4167 = vmatprep.subr.mxu0 0.0
    %4168 = vmatpush1.msra.mxu0 0.0
    %4169 = vmatprep.subr.mxu0 0.0
    %4170 = vmatpush1.msra.mxu0 0.0
    %4171 = vmatprep.subr.mxu0 0.0
    %4172 = vmatpush1.msra.mxu0 0.0
    %4173 = vmatprep.subr.mxu0 0.0
    %4174 = vmatpush1.msra.mxu0 0.0
    %4175 = vmatprep.subr.mxu0 0.0
    %4176 = vmatpush1.msra.mxu0 0.0
    %4177 = vmatprep.subr.mxu0 0.0
    %4178 = vmatpush1.msra.mxu0 0.0
    %4179 = vmatprep.subr.mxu0 0.0
    %4180 = vmatpush1.msra.mxu0 0.0
    %4181 = vmatprep.subr.mxu0 0.0
    %4182 = vmatpush1.msra.mxu0 0.0
    %4183 = vmatprep.subr.mxu0 0.0
    %4184 = vmatpush1.msra.mxu0 0.0
    %4185 = vmatprep.subr.mxu0 0.0
    %4186 = vmatpush1.msra.mxu0 0.0
    %4187 = vmatprep.subr.mxu0 0.0
    %4188 = vmatpush1.msra.mxu0 0.0
    %4189 = vmatprep.subr.mxu0 0.0
    %4190 = vmatpush1.msra.mxu0 0.0
    %4191 = vmatprep.subr.mxu0 0.0
    %4192 = vmatpush1.msra.mxu0 0.0
    %4193 = vmatprep.subr.mxu0 0.0
    %4194 = vmatpush1.msra.mxu0 0.0
    %4195 = vmatprep.subr.mxu0 0.0
    %4196 = vmatpush1.msra.mxu0 0.0
    %4197 = vmatprep.subr.mxu0 0.0
    %4198 = vmatpush1.msra.mxu0 0.0
    %4199 = vmatprep.subr.mxu0 0.0
    %4200 = vmatpush1.msra.mxu0 0.0
    %4201 = vmatprep.subr.mxu0 0.0
    %4202 = vmatpush1.msra.mxu0 0.0
    %4203 = vmatprep.subr.mxu0 0.0
    %4204 = vmatpush1.msra.mxu0 0.0
    %4205 = vmatprep.subr.mxu0 0.0
    %4206 = vmatpush1.msra.mxu0 0.0
    %4207 = vmatprep.subr.mxu0 0.0
    %4208 = vmatpush1.msra.mxu0 0.0
    %4209 = vmatprep.subr.mxu0 0.0
    %4210 = vmatpush1.msra.mxu0 0.0
    %4211 = vmatprep.subr.mxu0 0.0
    %4212 = vmatpush1.msra.mxu0 0.0
    %4213 = vmatprep.subr.mxu0 0.0
    %4214 = vmatpush1.msra.mxu0 0.0
    %4215 = vmatprep.subr.mxu0 0.0
    %4216 = vmatpush1.msra.mxu0 0.0
    %4217 = vmatprep.subr.mxu0 0.0
    %4218 = vmatpush1.msra.mxu0 0.0
    %4219 = vmatprep.subr.mxu0 0.0
    %4220 = vmatpush1.msra.mxu0 0.0
    %4221 = vmatprep.mubr.f32.mxu0 0.0
    %4222 = vmatmul.mubr.f32.gmra.mrb[0].mxu0 %v4153
    %v4223 = vpop.f32.mrb[0].mxu0
    %v4224 = vadd.f32 0.0, %v4223
    %v4225 = vpop.f32.mrb[0].mxu0
    %4226 = vmatprep.mubr.f32.mxu0 0.0
    %4227 = vmatmul.mubr.f32.gmra.mrb[0].mxu0 %v4155
    %v4228 = vpop.f32.mrb[0].mxu0
    %v4229 = vadd.f32 0.0, %v4228
    %v4230 = vpop.f32.mrb[0].mxu0
    %4231 = vdwg.mxu0
    %4232 = vmatprep.subr.mxu0 0.0
    %4233 = vmatpush1.msra.mxu0 %v4224
    %4234 = vmatprep.subr.mxu0 0.0
    %4235 = vmatpush1.msra.mxu0 %v4229
    %4236 = vmatprep.subr.mxu0 0.0
    %4237 = vmatpush1.msra.mxu0 0.0
    %4238 = vmatprep.subr.mxu0 0.0
    %4239 = vmatpush1.msra.mxu0 0.0
    %4240 = vmatprep.subr.mxu0 0.0
    %4241 = vmatpush1.msra.mxu0 0.0
    %4242 = vmatprep.subr.mxu0 0.0
    %4243 = vmatpush1.msra.mxu0 0.0
    %4244 = vmatprep.subr.mxu0 0.0
    %4245 = vmatpush1.msra.mxu0 0.0
    %4246 = vmatprep.subr.mxu0 0.0
    %4247 = vmatpush1.msra.mxu0 0.0
    %4248 = vmatprep.subr.mxu0 0.0
    %4249 = vmatpush1.msra.mxu0 0.0
    %4250 = vmatprep.subr.mxu0 0.0
    %4251 = vmatpush1.msra.mxu0 0.0
    %4252 = vmatprep.subr.mxu0 0.0
    %4253 = vmatpush1.msra.mxu0 0.0
    %4254 = vmatprep.subr.mxu0 0.0
    %4255 = vmatpush1.msra.mxu0 0.0
    %4256 = vmatprep.subr.mxu0 0.0
    %4257 = vmatpush1.msra.mxu0 0.0
    %4258 = vmatprep.subr.mxu0 0.0
    %4259 = vmatpush1.msra.mxu0 0.0
    %4260 = vmatprep.subr.mxu0 0.0
    %4261 = vmatpush1.msra.mxu0 0.0
    %4262 = vmatprep.subr.mxu0 0.0
    %4263 = vmatpush1.msra.mxu0 0.0
    %4264 = vmatprep.subr.mxu0 0.0
    %4265 = vmatpush1.msra.mxu0 0.0
    %4266 = vmatprep.subr.mxu0 0.0
    %4267 = vmatpush1.msra.mxu0 0.0
    %4268 = vmatprep.subr.mxu0 0.0
    %4269 = vmatpush1.msra.mxu0 0.0
    %4270 = vmatprep.subr.mxu0 0.0
    %4271 = vmatpush1.msra.mxu0 0.0
    %4272 = vmatprep.subr.mxu0 0.0
    %4273 = vmatpush1.msra.mxu0 0.0
    %4274 = vmatprep.subr.mxu0 0.0
    %4275 = vmatpush1.msra.mxu0 0.0
    %4276 = vmatprep.subr.mxu0 0.0
    %4277 = vmatpush1.msra.mxu0 0.0
    %4278 = vmatprep.subr.mxu0 0.0
    %4279 = vmatpush1.msra.mxu0 0.0
    %4280 = vmatprep.subr.mxu0 0.0
    %4281 = vmatpush1.msra.mxu0 0.0
    %4282 = vmatprep.subr.mxu0 0.0
    %4283 = vmatpush1.msra.mxu0 0.0
    %4284 = vmatprep.subr.mxu0 0.0
    %4285 = vmatpush1.msra.mxu0 0.0
    %4286 = vmatprep.subr.mxu0 0.0
    %4287 = vmatpush1.msra.mxu0 0.0
    %4288 = vmatprep.subr.mxu0 0.0
    %4289 = vmatpush1.msra.mxu0 0.0
    %4290 = vmatprep.subr.mxu0 0.0
    %4291 = vmatpush1.msra.mxu0 0.0
    %4292 = vmatprep.subr.mxu0 0.0
    %4293 = vmatpush1.msra.mxu0 0.0
    %4294 = vmatprep.subr.mxu0 0.0
    %4295 = vmatpush1.msra.mxu0 0.0
    %4296 = vmatprep.mubr.f32.mxu0 0.0
    %4297 = vmatmul.mubr.f32.gmra.mrb[0].mxu0 %v746
    %v4298 = vpop.f32.mrb[0].mxu0
    %v4299 = vadd.f32 0.0, %v4298
    %v4300 = vpop.f32.mrb[0].mxu0
    %4301 = vdwg.mxu0
    %v4302 = vsel %vm147, %v3231, 0
    %v4304 = vsel %vm147, %v3232, 0
    %4306 = vmatprep.subr.mxu0 0.0
    %4307 = vmatpush1.msra.mxu0 %v25
    %4308 = vmatprep.subr.mxu0 0.0
    %4309 = vmatpush1.msra.mxu0 %v26
    %4310 = vmatprep.subr.mxu0 0.0
    %4311 = vmatpush1.msra.mxu0 0.0
    %4312 = vmatprep.subr.mxu0 0.0
    %4313 = vmatpush1.msra.mxu0 0.0
    %4314 = vmatprep.subr.mxu0 0.0
    %4315 = vmatpush1.msra.mxu0 0.0
    %4316 = vmatprep.subr.mxu0 0.0
    %4317 = vmatpush1.msra.mxu0 0.0
    %4318 = vmatprep.subr.mxu0 0.0
    %4319 = vmatpush1.msra.mxu0 0.0
    %4320 = vmatprep.subr.mxu0 0.0
    %4321 = vmatpush1.msra.mxu0 0.0
    %4322 = vmatprep.subr.mxu0 0.0
    %4323 = vmatpush1.msra.mxu0 0.0
    %4324 = vmatprep.subr.mxu0 0.0
    %4325 = vmatpush1.msra.mxu0 0.0
    %4326 = vmatprep.subr.mxu0 0.0
    %4327 = vmatpush1.msra.mxu0 0.0
    %4328 = vmatprep.subr.mxu0 0.0
    %4329 = vmatpush1.msra.mxu0 0.0
    %4330 = vmatprep.subr.mxu0 0.0
    %4331 = vmatpush1.msra.mxu0 0.0
    %4332 = vmatprep.subr.mxu0 0.0
    %4333 = vmatpush1.msra.mxu0 0.0
    %4334 = vmatprep.subr.mxu0 0.0
    %4335 = vmatpush1.msra.mxu0 0.0
    %4336 = vmatprep.subr.mxu0 0.0
    %4337 = vmatpush1.msra.mxu0 0.0
    %4338 = vmatprep.subr.mxu0 0.0
    %4339 = vmatpush1.msra.mxu0 0.0
    %4340 = vmatprep.subr.mxu0 0.0
    %4341 = vmatpush1.msra.mxu0 0.0
    %4342 = vmatprep.subr.mxu0 0.0
    %4343 = vmatpush1.msra.mxu0 0.0
    %4344 = vmatprep.subr.mxu0 0.0
    %4345 = vmatpush1.msra.mxu0 0.0
    %4346 = vmatprep.subr.mxu0 0.0
    %4347 = vmatpush1.msra.mxu0 0.0
    %4348 = vmatprep.subr.mxu0 0.0
    %4349 = vmatpush1.msra.mxu0 0.0
    %4350 = vmatprep.subr.mxu0 0.0
    %4351 = vmatpush1.msra.mxu0 0.0
    %4352 = vmatprep.subr.mxu0 0.0
    %4353 = vmatpush1.msra.mxu0 0.0
    %4354 = vmatprep.subr.mxu0 0.0
    %4355 = vmatpush1.msra.mxu0 0.0
    %4356 = vmatprep.subr.mxu0 0.0
    %4357 = vmatpush1.msra.mxu0 0.0
    %4358 = vmatprep.subr.mxu0 0.0
    %4359 = vmatpush1.msra.mxu0 0.0
    %4360 = vmatprep.subr.mxu0 0.0
    %4361 = vmatpush1.msra.mxu0 0.0
    %4362 = vmatprep.subr.mxu0 0.0
    %4363 = vmatpush1.msra.mxu0 0.0
    %4364 = vmatprep.subr.mxu0 0.0
    %4365 = vmatpush1.msra.mxu0 0.0
    %4366 = vmatprep.subr.mxu0 0.0
    %4367 = vmatpush1.msra.mxu0 0.0
    %4368 = vmatprep.subr.mxu0 0.0
    %4369 = vmatpush1.msra.mxu0 0.0
    %4370 = vmatprep.mubr.f32.mxu0 0.0
    %4371 = vmatmul.mubr.f32.gmra.mrb[0].mxu0 %v4302
    %v4372 = vpop.f32.mrb[0].mxu0
    %v4373 = vadd.f32 0.0, %v4372
    %v4374 = vpop.f32.mrb[0].mxu0
    %4375 = vmatprep.mubr.f32.mxu0 0.0
    %4376 = vmatmul.mubr.f32.gmra.mrb[0].mxu0 %v4304
    %v4377 = vpop.f32.mrb[0].mxu0
    %v4378 = vadd.f32 0.0, %v4377
    %v4379 = vpop.f32.mrb[0].mxu0
    %4380 = vdwg.mxu0
    %4381 = vmatprep.subr.mxu0 0.0
    %4382 = vmatpush1.msra.mxu0 %v4373
    %4383 = vmatprep.subr.mxu0 0.0
    %4384 = vmatpush1.msra.mxu0 %v4378
    %4385 = vmatprep.subr.mxu0 0.0
    %4386 = vmatpush1.msra.mxu0 0.0
    %4387 = vmatprep.subr.mxu0 0.0
    %4388 = vmatpush1.msra.mxu0 0.0
    %4389 = vmatprep.subr.mxu0 0.0
    %4390 = vmatpush1.msra.mxu0 0.0
    %4391 = vmatprep.subr.mxu0 0.0
    %4392 = vmatpush1.msra.mxu0 0.0
    %4393 = vmatprep.subr.mxu0 0.0
    %4394 = vmatpush1.msra.mxu0 0.0
    %4395 = vmatprep.subr.mxu0 0.0
    %4396 = vmatpush1.msra.mxu0 0.0
    %4397 = vmatprep.subr.mxu0 0.0
    %4398 = vmatpush1.msra.mxu0 0.0
    %4399 = vmatprep.subr.mxu0 0.0
    %4400 = vmatpush1.msra.mxu0 0.0
    %4401 = vmatprep.subr.mxu0 0.0
    %4402 = vmatpush1.msra.mxu0 0.0
    %4403 = vmatprep.subr.mxu0 0.0
    %4404 = vmatpush1.msra.mxu0 0.0
    %4405 = vmatprep.subr.mxu0 0.0
    %4406 = vmatpush1.msra.mxu0 0.0
    %4407 = vmatprep.subr.mxu0 0.0
    %4408 = vmatpush1.msra.mxu0 0.0
    %4409 = vmatprep.subr.mxu0 0.0
    %4410 = vmatpush1.msra.mxu0 0.0
    %4411 = vmatprep.subr.mxu0 0.0
    %4412 = vmatpush1.msra.mxu0 0.0
    %4413 = vmatprep.subr.mxu0 0.0
    %4414 = vmatpush1.msra.mxu0 0.0
    %4415 = vmatprep.subr.mxu0 0.0
    %4416 = vmatpush1.msra.mxu0 0.0
    %4417 = vmatprep.subr.mxu0 0.0
    %4418 = vmatpush1.msra.mxu0 0.0
    %4419 = vmatprep.subr.mxu0 0.0
    %4420 = vmatpush1.msra.mxu0 0.0
    %4421 = vmatprep.subr.mxu0 0.0
    %4422 = vmatpush1.msra.mxu0 0.0
    %4423 = vmatprep.subr.mxu0 0.0
    %4424 = vmatpush1.msra.mxu0 0.0
    %4425 = vmatprep.subr.mxu0 0.0
    %4426 = vmatpush1.msra.mxu0 0.0
    %4427 = vmatprep.subr.mxu0 0.0
    %4428 = vmatpush1.msra.mxu0 0.0
    %4429 = vmatprep.subr.mxu0 0.0
    %4430 = vmatpush1.msra.mxu0 0.0
    %4431 = vmatprep.subr.mxu0 0.0
    %4432 = vmatpush1.msra.mxu0 0.0
    %4433 = vmatprep.subr.mxu0 0.0
    %4434 = vmatpush1.msra.mxu0 0.0
    %4435 = vmatprep.subr.mxu0 0.0
    %4436 = vmatpush1.msra.mxu0 0.0
    %4437 = vmatprep.subr.mxu0 0.0
    %4438 = vmatpush1.msra.mxu0 0.0
    %4439 = vmatprep.subr.mxu0 0.0
    %4440 = vmatpush1.msra.mxu0 0.0
    %4441 = vmatprep.subr.mxu0 0.0
    %4442 = vmatpush1.msra.mxu0 0.0
    %4443 = vmatprep.subr.mxu0 0.0
    %4444 = vmatpush1.msra.mxu0 0.0
    %4445 = vmatprep.mubr.f32.mxu0 0.0
    %4446 = vmatmul.mubr.f32.gmra.mrb[0].mxu0 %v746
    %v4447 = vpop.f32.mrb[0].mxu0
    %v4448 = vadd.f32 0.0, %v4447
    %v4449 = vpop.f32.mrb[0].mxu0
    %4450 = vdwg.mxu0
    %v4451 = vsel %vm147, %v3234, 0
    %v4453 = vsel %vm147, %v3235, 0
    %4455 = vmatprep.subr.mxu0 0.0
    %4456 = vmatpush1.msra.mxu0 %v25
    %4457 = vmatprep.subr.mxu0 0.0
    %4458 = vmatpush1.msra.mxu0 %v26
    %4459 = vmatprep.subr.mxu0 0.0
    %4460 = vmatpush1.msra.mxu0 0.0
    %4461 = vmatprep.subr.mxu0 0.0
    %4462 = vmatpush1.msra.mxu0 0.0
    %4463 = vmatprep.subr.mxu0 0.0
    %4464 = vmatpush1.msra.mxu0 0.0
    %4465 = vmatprep.subr.mxu0 0.0
    %4466 = vmatpush1.msra.mxu0 0.0
    %4467 = vmatprep.subr.mxu0 0.0
    %4468 = vmatpush1.msra.mxu0 0.0
    %4469 = vmatprep.subr.mxu0 0.0
    %4470 = vmatpush1.msra.mxu0 0.0
    %4471 = vmatprep.subr.mxu0 0.0
    %4472 = vmatpush1.msra.mxu0 0.0
    %4473 = vmatprep.subr.mxu0 0.0
    %4474 = vmatpush1.msra.mxu0 0.0
    %4475 = vmatprep.subr.mxu0 0.0
    %4476 = vmatpush1.msra.mxu0 0.0
    %4477 = vmatprep.subr.mxu0 0.0
    %4478 = vmatpush1.msra.mxu0 0.0
    %4479 = vmatprep.subr.mxu0 0.0
    %4480 = vmatpush1.msra.mxu0 0.0
    %4481 = vmatprep.subr.mxu0 0.0
    %4482 = vmatpush1.msra.mxu0 0.0
    %4483 = vmatprep.subr.mxu0 0.0
    %4484 = vmatpush1.msra.mxu0 0.0
    %4485 = vmatprep.subr.mxu0 0.0
    %4486 = vmatpush1.msra.mxu0 0.0
    %4487 = vmatprep.subr.mxu0 0.0
    %4488 = vmatpush1.msra.mxu0 0.0
    %4489 = vmatprep.subr.mxu0 0.0
    %4490 = vmatpush1.msra.mxu0 0.0
    %4491 = vmatprep.subr.mxu0 0.0
    %4492 = vmatpush1.msra.mxu0 0.0
    %4493 = vmatprep.subr.mxu0 0.0
    %4494 = vmatpush1.msra.mxu0 0.0
    %4495 = vmatprep.subr.mxu0 0.0
    %4496 = vmatpush1.msra.mxu0 0.0
    %4497 = vmatprep.subr.mxu0 0.0
    %4498 = vmatpush1.msra.mxu0 0.0
    %4499 = vmatprep.subr.mxu0 0.0
    %4500 = vmatpush1.msra.mxu0 0.0
    %4501 = vmatprep.subr.mxu0 0.0
    %4502 = vmatpush1.msra.mxu0 0.0
    %4503 = vmatprep.subr.mxu0 0.0
    %4504 = vmatpush1.msra.mxu0 0.0
    %4505 = vmatprep.subr.mxu0 0.0
    %4506 = vmatpush1.msra.mxu0 0.0
    %4507 = vmatprep.subr.mxu0 0.0
    %4508 = vmatpush1.msra.mxu0 0.0
    %4509 = vmatprep.subr.mxu0 0.0
    %4510 = vmatpush1.msra.mxu0 0.0
    %4511 = vmatprep.subr.mxu0 0.0
    %4512 = vmatpush1.msra.mxu0 0.0
    %4513 = vmatprep.subr.mxu0 0.0
    %4514 = vmatpush1.msra.mxu0 0.0
    %4515 = vmatprep.subr.mxu0 0.0
    %4516 = vmatpush1.msra.mxu0 0.0
    %4517 = vmatprep.subr.mxu0 0.0
    %4518 = vmatpush1.msra.mxu0 0.0
    %4519 = vmatprep.mubr.f32.mxu0 0.0
    %4520 = vmatmul.mubr.f32.gmra.mrb[0].mxu0 %v4451
    %v4521 = vpop.f32.mrb[0].mxu0
    %v4522 = vadd.f32 0.0, %v4521
    %v4523 = vpop.f32.mrb[0].mxu0
    %4524 = vmatprep.mubr.f32.mxu0 0.0
    %4525 = vmatmul.mubr.f32.gmra.mrb[0].mxu0 %v4453
    %v4526 = vpop.f32.mrb[0].mxu0
    %v4527 = vadd.f32 0.0, %v4526
    %v4528 = vpop.f32.mrb[0].mxu0
    %4529 = vdwg.mxu0
    %4530 = vmatprep.subr.mxu0 0.0
    %4531 = vmatpush1.msra.mxu0 %v4522
    %4532 = vmatprep.subr.mxu0 0.0
    %4533 = vmatpush1.msra.mxu0 %v4527
    %4534 = vmatprep.subr.mxu0 0.0
    %4535 = vmatpush1.msra.mxu0 0.0
    %4536 = vmatprep.subr.mxu0 0.0
    %4537 = vmatpush1.msra.mxu0 0.0
    %4538 = vmatprep.subr.mxu0 0.0
    %4539 = vmatpush1.msra.mxu0 0.0
    %4540 = vmatprep.subr.mxu0 0.0
    %4541 = vmatpush1.msra.mxu0 0.0
    %4542 = vmatprep.subr.mxu0 0.0
    %4543 = vmatpush1.msra.mxu0 0.0
    %4544 = vmatprep.subr.mxu0 0.0
    %4545 = vmatpush1.msra.mxu0 0.0
    %4546 = vmatprep.subr.mxu0 0.0
    %4547 = vmatpush1.msra.mxu0 0.0
    %4548 = vmatprep.subr.mxu0 0.0
    %4549 = vmatpush1.msra.mxu0 0.0
    %4550 = vmatprep.subr.mxu0 0.0
    %4551 = vmatpush1.msra.mxu0 0.0
    %4552 = vmatprep.subr.mxu0 0.0
    %4553 = vmatpush1.msra.mxu0 0.0
    %4554 = vmatprep.subr.mxu0 0.0
    %4555 = vmatpush1.msra.mxu0 0.0
    %4556 = vmatprep.subr.mxu0 0.0
    %4557 = vmatpush1.msra.mxu0 0.0
    %4558 = vmatprep.subr.mxu0 0.0
    %4559 = vmatpush1.msra.mxu0 0.0
    %4560 = vmatprep.subr.mxu0 0.0
    %4561 = vmatpush1.msra.mxu0 0.0
    %4562 = vmatprep.subr.mxu0 0.0
    %4563 = vmatpush1.msra.mxu0 0.0
    %4564 = vmatprep.subr.mxu0 0.0
    %4565 = vmatpush1.msra.mxu0 0.0
    %4566 = vmatprep.subr.mxu0 0.0
    %4567 = vmatpush1.msra.mxu0 0.0
    %4568 = vmatprep.subr.mxu0 0.0
    %4569 = vmatpush1.msra.mxu0 0.0
    %4570 = vmatprep.subr.mxu0 0.0
    %4571 = vmatpush1.msra.mxu0 0.0
    %4572 = vmatprep.subr.mxu0 0.0
    %4573 = vmatpush1.msra.mxu0 0.0
    %4574 = vmatprep.subr.mxu0 0.0
    %4575 = vmatpush1.msra.mxu0 0.0
    %4576 = vmatprep.subr.mxu0 0.0
    %4577 = vmatpush1.msra.mxu0 0.0
    %4578 = vmatprep.subr.mxu0 0.0
    %4579 = vmatpush1.msra.mxu0 0.0
    %4580 = vmatprep.subr.mxu0 0.0
    %4581 = vmatpush1.msra.mxu0 0.0
    %4582 = vmatprep.subr.mxu0 0.0
    %4583 = vmatpush1.msra.mxu0 0.0
    %4584 = vmatprep.subr.mxu0 0.0
    %4585 = vmatpush1.msra.mxu0 0.0
    %4586 = vmatprep.subr.mxu0 0.0
    %4587 = vmatpush1.msra.mxu0 0.0
    %4588 = vmatprep.subr.mxu0 0.0
    %4589 = vmatpush1.msra.mxu0 0.0
    %4590 = vmatprep.subr.mxu0 0.0
    %4591 = vmatpush1.msra.mxu0 0.0
    %4592 = vmatprep.subr.mxu0 0.0
    %4593 = vmatpush1.msra.mxu0 0.0
    %4594 = vmatprep.mubr.f32.mxu0 0.0
    %4595 = vmatmul.mubr.f32.gmra.mrb[0].mxu0 %v746
    %v4596 = vpop.f32.mrb[0].mxu0
    %v4597 = vadd.f32 0.0, %v4596
    %v4598 = vpop.f32.mrb[0].mxu0
    %4599 = vdwg.mxu0
    %v4600 = vsel %vm147, %v3237, 0
    %v4602 = vsel %vm147, %v3238, 0
    %4604 = vmatprep.subr.mxu0 0.0
    %4605 = vmatpush1.msra.mxu0 %v25
    %4606 = vmatprep.subr.mxu0 0.0
    %4607 = vmatpush1.msra.mxu0 %v26
    %4608 = vmatprep.subr.mxu0 0.0
    %4609 = vmatpush1.msra.mxu0 0.0
    %4610 = vmatprep.subr.mxu0 0.0
    %4611 = vmatpush1.msra.mxu0 0.0
    %4612 = vmatprep.subr.mxu0 0.0
    %4613 = vmatpush1.msra.mxu0 0.0
    %4614 = vmatprep.subr.mxu0 0.0
    %4615 = vmatpush1.msra.mxu0 0.0
    %4616 = vmatprep.subr.mxu0 0.0
    %4617 = vmatpush1.msra.mxu0 0.0
    %4618 = vmatprep.subr.mxu0 0.0
    %4619 = vmatpush1.msra.mxu0 0.0
    %4620 = vmatprep.subr.mxu0 0.0
    %4621 = vmatpush1.msra.mxu0 0.0
    %4622 = vmatprep.subr.mxu0 0.0
    %4623 = vmatpush1.msra.mxu0 0.0
    %4624 = vmatprep.subr.mxu0 0.0
    %4625 = vmatpush1.msra.mxu0 0.0
    %4626 = vmatprep.subr.mxu0 0.0
    %4627 = vmatpush1.msra.mxu0 0.0
    %4628 = vmatprep.subr.mxu0 0.0
    %4629 = vmatpush1.msra.mxu0 0.0
    %4630 = vmatprep.subr.mxu0 0.0
    %4631 = vmatpush1.msra.mxu0 0.0
    %4632 = vmatprep.subr.mxu0 0.0
    %4633 = vmatpush1.msra.mxu0 0.0
    %4634 = vmatprep.subr.mxu0 0.0
    %4635 = vmatpush1.msra.mxu0 0.0
    %4636 = vmatprep.subr.mxu0 0.0
    %4637 = vmatpush1.msra.mxu0 0.0
    %4638 = vmatprep.subr.mxu0 0.0
    %4639 = vmatpush1.msra.mxu0 0.0
    %4640 = vmatprep.subr.mxu0 0.0
    %4641 = vmatpush1.msra.mxu0 0.0
    %4642 = vmatprep.subr.mxu0 0.0
    %4643 = vmatpush1.msra.mxu0 0.0
    %4644 = vmatprep.subr.mxu0 0.0
    %4645 = vmatpush1.msra.mxu0 0.0
    %4646 = vmatprep.subr.mxu0 0.0
    %4647 = vmatpush1.msra.mxu0 0.0
    %4648 = vmatprep.subr.mxu0 0.0
    %4649 = vmatpush1.msra.mxu0 0.0
    %4650 = vmatprep.subr.mxu0 0.0
    %4651 = vmatpush1.msra.mxu0 0.0
    %4652 = vmatprep.subr.mxu0 0.0
    %4653 = vmatpush1.msra.mxu0 0.0
    %4654 = vmatprep.subr.mxu0 0.0
    %4655 = vmatpush1.msra.mxu0 0.0
    %4656 = vmatprep.subr.mxu0 0.0
    %4657 = vmatpush1.msra.mxu0 0.0
    %4658 = vmatprep.subr.mxu0 0.0
    %4659 = vmatpush1.msra.mxu0 0.0
    %4660 = vmatprep.subr.mxu0 0.0
    %4661 = vmatpush1.msra.mxu0 0.0
    %4662 = vmatprep.subr.mxu0 0.0
    %4663 = vmatpush1.msra.mxu0 0.0
    %4664 = vmatprep.subr.mxu0 0.0
    %4665 = vmatpush1.msra.mxu0 0.0
    %4666 = vmatprep.subr.mxu0 0.0
    %4667 = vmatpush1.msra.mxu0 0.0
    %4668 = vmatprep.mubr.f32.mxu0 0.0
    %4669 = vmatmul.mubr.f32.gmra.mrb[0].mxu0 %v4600
    %v4670 = vpop.f32.mrb[0].mxu0
    %v4671 = vadd.f32 0.0, %v4670
    %v4672 = vpop.f32.mrb[0].mxu0
    %4673 = vmatprep.mubr.f32.mxu0 0.0
    %4674 = vmatmul.mubr.f32.gmra.mrb[0].mxu0 %v4602
    %v4675 = vpop.f32.mrb[0].mxu0
    %v4676 = vadd.f32 0.0, %v4675
    %v4677 = vpop.f32.mrb[0].mxu0
    %4678 = vdwg.mxu0
    %4679 = vmatprep.subr.mxu0 0.0
    %4680 = vmatpush1.msra.mxu0 %v4671
    %4681 = vmatprep.subr.mxu0 0.0
    %4682 = vmatpush1.msra.mxu0 %v4676
    %4683 = vmatprep.subr.mxu0 0.0
    %4684 = vmatpush1.msra.mxu0 0.0
    %4685 = vmatprep.subr.mxu0 0.0
    %4686 = vmatpush1.msra.mxu0 0.0
    %4687 = vmatprep.subr.mxu0 0.0
    %4688 = vmatpush1.msra.mxu0 0.0
    %4689 = vmatprep.subr.mxu0 0.0
    %4690 = vmatpush1.msra.mxu0 0.0
    %4691 = vmatprep.subr.mxu0 0.0
    %4692 = vmatpush1.msra.mxu0 0.0
    %4693 = vmatprep.subr.mxu0 0.0
    %4694 = vmatpush1.msra.mxu0 0.0
    %4695 = vmatprep.subr.mxu0 0.0
    %4696 = vmatpush1.msra.mxu0 0.0
    %4697 = vmatprep.subr.mxu0 0.0
    %4698 = vmatpush1.msra.mxu0 0.0
    %4699 = vmatprep.subr.mxu0 0.0
    %4700 = vmatpush1.msra.mxu0 0.0
    %4701 = vmatprep.subr.mxu0 0.0
    %4702 = vmatpush1.msra.mxu0 0.0
    %4703 = vmatprep.subr.mxu0 0.0
    %4704 = vmatpush1.msra.mxu0 0.0
    %4705 = vmatprep.subr.mxu0 0.0
    %4706 = vmatpush1.msra.mxu0 0.0
    %4707 = vmatprep.subr.mxu0 0.0
    %4708 = vmatpush1.msra.mxu0 0.0
    %4709 = vmatprep.subr.mxu0 0.0
    %4710 = vmatpush1.msra.mxu0 0.0
    %4711 = vmatprep.subr.mxu0 0.0
    %4712 = vmatpush1.msra.mxu0 0.0
    %4713 = vmatprep.subr.mxu0 0.0
    %4714 = vmatpush1.msra.mxu0 0.0
    %4715 = vmatprep.subr.mxu0 0.0
    %4716 = vmatpush1.msra.mxu0 0.0
    %4717 = vmatprep.subr.mxu0 0.0
    %4718 = vmatpush1.msra.mxu0 0.0
    %4719 = vmatprep.subr.mxu0 0.0
    %4720 = vmatpush1.msra.mxu0 0.0
    %4721 = vmatprep.subr.mxu0 0.0
    %4722 = vmatpush1.msra.mxu0 0.0
    %4723 = vmatprep.subr.mxu0 0.0
    %4724 = vmatpush1.msra.mxu0 0.0
    %4725 = vmatprep.subr.mxu0 0.0
    %4726 = vmatpush1.msra.mxu0 0.0
    %4727 = vmatprep.subr.mxu0 0.0
    %4728 = vmatpush1.msra.mxu0 0.0
    %4729 = vmatprep.subr.mxu0 0.0
    %4730 = vmatpush1.msra.mxu0 0.0
    %4731 = vmatprep.subr.mxu0 0.0
    %4732 = vmatpush1.msra.mxu0 0.0
    %4733 = vmatprep.subr.mxu0 0.0
    %4734 = vmatpush1.msra.mxu0 0.0
    %4735 = vmatprep.subr.mxu0 0.0
    %4736 = vmatpush1.msra.mxu0 0.0
    %4737 = vmatprep.subr.mxu0 0.0
    %4738 = vmatpush1.msra.mxu0 0.0
    %4739 = vmatprep.subr.mxu0 0.0
    %4740 = vmatpush1.msra.mxu0 0.0
    %4741 = vmatprep.subr.mxu0 0.0
    %4742 = vmatpush1.msra.mxu0 0.0
    %4743 = vmatprep.mubr.f32.mxu0 0.0
    %4744 = vmatmul.mubr.f32.gmra.mrb[0].mxu0 %v746
    %v4745 = vpop.f32.mrb[0].mxu0
    %v4746 = vadd.f32 0.0, %v4745
    %v4747 = vpop.f32.mrb[0].mxu0
    %4748 = vdwg.mxu0
    %v4750 = vrot.slane %v4001, 7
    %v4752 = vsub.f32 %v4001, %v4750
    %v4753 = vmul.f32 %v4752, 0.5
    %v4754 = vtanh.pop %v4753
    %v4755 = vmul.f32 %v4754, %v4754
    %v4757 = vrot.slane %v4150, 7
    %v4759 = vsub.f32 %v4150, %v4757
    %v4760 = vmul.f32 %v4759, 0.5
    %v4761 = vtanh.pop %v4760
    %v4762 = vmul.f32 %v4761, %v4761
    %v4764 = vrot.slane %v4299, 7
    %v4766 = vsub.f32 %v4299, %v4764
    %v4767 = vmul.f32 %v4766, 0.5
    %v4768 = vtanh.pop %v4767
    %v4769 = vmul.f32 %v4768, %v4768
    %v4771 = vrot.slane %v4448, 7
    %v4773 = vsub.f32 %v4448, %v4771
    %v4774 = vmul.f32 %v4773, 0.5
    %v4775 = vtanh.pop %v4774
    %v4776 = vmul.f32 %v4775, %v4775
    %v4778 = vrot.slane %v4597, 7
    %v4780 = vsub.f32 %v4597, %v4778
    %v4781 = vmul.f32 %v4780, 0.5
    %v4782 = vtanh.pop %v4781
    %v4783 = vmul.f32 %v4782, %v4782
    %v4785 = vrot.slane %v4746, 7
    %v4787 = vsub.f32 %v4746, %v4785
    %v4788 = vmul.f32 %v4787, 0.5
    %v4789 = vtanh.pop %v4788
    %v4790 = vmul.f32 %v4789, %v4789
    %v4791 = vmul.f32 %v4755, %v4776
    %v4793 = vrot.slane %v4791, 1
    %v4795 = vsel %vm1609, %v4793, 0.0
    %4796 = vadd.xlane.f32.xlu0 %v4795
    %v4797 = vpop.xlane.xlu0 %4796
    %v4798 = vrot.slane %v4797, 4
    %v4799 = vadd.f32 %v4797, %v4798
    %v4800 = vrot.slane %v4799, 2
    %v4801 = vadd.f32 %v4799, %v4800
    %v4802 = vrot.slane %v4801, 1
    %v4803 = vadd.f32 %v4801, %v4802
    %s4804 = vtos %v4803
    %s4805 = sadd.s32 %s3351, 18
    %s4806 = scalar_lea.smem [#allocation2], %s4805
    %4807 = sst [smem:[%s4806]] %s4804
    %v4808 = vmul.f32 %v4762, %v4776
    %v4810 = vrot.slane %v4808, 1
    %v4812 = vsel %vm1609, %v4810, 0.0
    %4813 = vadd.xlane.f32.xlu0 %v4812
    %v4814 = vpop.xlane.xlu0 %4813
    %v4815 = vrot.slane %v4814, 4
    %v4816 = vadd.f32 %v4814, %v4815
    %v4817 = vrot.slane %v4816, 2
    %v4818 = vadd.f32 %v4816, %v4817
    %v4819 = vrot.slane %v4818, 1
    %v4820 = vadd.f32 %v4818, %v4819
    %s4821 = vtos %v4820
    %s4822 = sadd.s32 %s3351, 19
    %s4823 = scalar_lea.smem [#allocation2], %s4822
    %4824 = sst [smem:[%s4823]] %s4821
    %v4825 = vmul.f32 %v4769, %v4776
    %v4827 = vrot.slane %v4825, 1
    %v4829 = vsel %vm1609, %v4827, 0.0
    %4830 = vadd.xlane.f32.xlu0 %v4829
    %v4831 = vpop.xlane.xlu0 %4830
    %v4832 = vrot.slane %v4831, 4
    %v4833 = vadd.f32 %v4831, %v4832
    %v4834 = vrot.slane %v4833, 2
    %v4835 = vadd.f32 %v4833, %v4834
    %v4836 = vrot.slane %v4835, 1
    %v4837 = vadd.f32 %v4835, %v4836
    %s4838 = vtos %v4837
    %s4839 = sadd.s32 %s3351, 20
    %s4840 = scalar_lea.smem [#allocation2], %s4839
    %4841 = sst [smem:[%s4840]] %s4838
    %v4842 = vmul.f32 %v4755, %v4783
    %v4844 = vrot.slane %v4842, 1
    %v4846 = vsel %vm1609, %v4844, 0.0
    %4847 = vadd.xlane.f32.xlu0 %v4846
    %v4848 = vpop.xlane.xlu0 %4847
    %v4849 = vrot.slane %v4848, 4
    %v4850 = vadd.f32 %v4848, %v4849
    %v4851 = vrot.slane %v4850, 2
    %v4852 = vadd.f32 %v4850, %v4851
    %v4853 = vrot.slane %v4852, 1
    %v4854 = vadd.f32 %v4852, %v4853
    %s4855 = vtos %v4854
    %s4856 = sadd.s32 %s3351, 21
    %s4857 = scalar_lea.smem [#allocation2], %s4856
    %4858 = sst [smem:[%s4857]] %s4855
    %v4859 = vmul.f32 %v4762, %v4783
    %v4861 = vrot.slane %v4859, 1
    %v4863 = vsel %vm1609, %v4861, 0.0
    %4864 = vadd.xlane.f32.xlu0 %v4863
    %v4865 = vpop.xlane.xlu0 %4864
    %v4866 = vrot.slane %v4865, 4
    %v4867 = vadd.f32 %v4865, %v4866
    %v4868 = vrot.slane %v4867, 2
    %v4869 = vadd.f32 %v4867, %v4868
    %v4870 = vrot.slane %v4869, 1
    %v4871 = vadd.f32 %v4869, %v4870
    %s4872 = vtos %v4871
    %s4873 = sadd.s32 %s3351, 22
    %s4874 = scalar_lea.smem [#allocation2], %s4873
    %4875 = sst [smem:[%s4874]] %s4872
    %v4876 = vmul.f32 %v4769, %v4783
    %v4878 = vrot.slane %v4876, 1
    %v4880 = vsel %vm1609, %v4878, 0.0
    %4881 = vadd.xlane.f32.xlu0 %v4880
    %v4882 = vpop.xlane.xlu0 %4881
    %v4883 = vrot.slane %v4882, 4
    %v4884 = vadd.f32 %v4882, %v4883
    %v4885 = vrot.slane %v4884, 2
    %v4886 = vadd.f32 %v4884, %v4885
    %v4887 = vrot.slane %v4886, 1
    %v4888 = vadd.f32 %v4886, %v4887
    %s4889 = vtos %v4888
    %s4890 = sadd.s32 %s3351, 23
    %s4891 = scalar_lea.smem [#allocation2], %s4890
    %4892 = sst [smem:[%s4891]] %s4889
    %v4893 = vmul.f32 %v4755, %v4790
    %v4895 = vrot.slane %v4893, 1
    %v4897 = vsel %vm1609, %v4895, 0.0
    %4898 = vadd.xlane.f32.xlu0 %v4897
    %v4899 = vpop.xlane.xlu0 %4898
    %v4900 = vrot.slane %v4899, 4
    %v4901 = vadd.f32 %v4899, %v4900
    %v4902 = vrot.slane %v4901, 2
    %v4903 = vadd.f32 %v4901, %v4902
    %v4904 = vrot.slane %v4903, 1
    %v4905 = vadd.f32 %v4903, %v4904
    %s4906 = vtos %v4905
    %s4907 = sadd.s32 %s3351, 24
    %s4908 = scalar_lea.smem [#allocation2], %s4907
    %4909 = sst [smem:[%s4908]] %s4906
    %v4910 = vmul.f32 %v4762, %v4790
    %v4912 = vrot.slane %v4910, 1
    %v4914 = vsel %vm1609, %v4912, 0.0
    %4915 = vadd.xlane.f32.xlu0 %v4914
    %v4916 = vpop.xlane.xlu0 %4915
    %v4917 = vrot.slane %v4916, 4
    %v4918 = vadd.f32 %v4916, %v4917
    %v4919 = vrot.slane %v4918, 2
    %v4920 = vadd.f32 %v4918, %v4919
    %v4921 = vrot.slane %v4920, 1
    %v4922 = vadd.f32 %v4920, %v4921
    %s4923 = vtos %v4922
    %s4924 = sadd.s32 %s3351, 25
    %s4925 = scalar_lea.smem [#allocation2], %s4924
    %4926 = sst [smem:[%s4925]] %s4923
    %v4927 = vmul.f32 %v4769, %v4790
    %v4929 = vrot.slane %v4927, 1
    %v4931 = vsel %vm1609, %v4929, 0.0
    %4932 = vadd.xlane.f32.xlu0 %v4931
    %v4933 = vpop.xlane.xlu0 %4932
    %v4934 = vrot.slane %v4933, 4
    %v4935 = vadd.f32 %v4933, %v4934
    %v4936 = vrot.slane %v4935, 2
    %v4937 = vadd.f32 %v4935, %v4936
    %v4938 = vrot.slane %v4937, 1
    %v4939 = vadd.f32 %v4937, %v4938
    %s4940 = vtos %v4939
    %s4941 = sadd.s32 %s3351, 26
    %s4942 = scalar_lea.smem [#allocation2], %s4941
    %4943 = sst [smem:[%s4942]] %s4940
    %4944 = vrot.lane.b32.xlu0 %v4001, 1
    %v4945 = vpop.permute.xlu0 %4944
    %v4947 = vsub.f32 %v4001, %v4945
    %v4948 = vmul.f32 %v4947, 0.5
    %v4949 = vtanh.pop %v4948
    %v4950 = vmul.f32 %v4949, %v4949
    %4951 = vrot.lane.b32.xlu0 %v4150, 1
    %v4952 = vpop.permute.xlu0 %4951
    %v4954 = vsub.f32 %v4150, %v4952
    %v4955 = vmul.f32 %v4954, 0.5
    %v4956 = vtanh.pop %v4955
    %v4957 = vmul.f32 %v4956, %v4956
    %4958 = vrot.lane.b32.xlu0 %v4299, 1
    %v4959 = vpop.permute.xlu0 %4958
    %v4961 = vsub.f32 %v4299, %v4959
    %v4962 = vmul.f32 %v4961, 0.5
    %v4963 = vtanh.pop %v4962
    %v4964 = vmul.f32 %v4963, %v4963
    %4965 = vrot.lane.b32.xlu0 %v4448, 1
    %v4966 = vpop.permute.xlu0 %4965
    %v4968 = vsub.f32 %v4448, %v4966
    %v4969 = vmul.f32 %v4968, 0.5
    %v4970 = vtanh.pop %v4969
    %v4971 = vmul.f32 %v4970, %v4970
    %4972 = vrot.lane.b32.xlu0 %v4597, 1
    %v4973 = vpop.permute.xlu0 %4972
    %v4975 = vsub.f32 %v4597, %v4973
    %v4976 = vmul.f32 %v4975, 0.5
    %v4977 = vtanh.pop %v4976
    %v4978 = vmul.f32 %v4977, %v4977
    %4979 = vrot.lane.b32.xlu0 %v4746, 1
    %v4980 = vpop.permute.xlu0 %4979
    %v4982 = vsub.f32 %v4746, %v4980
    %v4983 = vmul.f32 %v4982, 0.5
    %v4984 = vtanh.pop %v4983
    %v4985 = vmul.f32 %v4984, %v4984
    %v4986 = vmul.f32 %v4950, %v4971
    %4988 = vrot.lane.b32.xlu0 %v4986, 127
    %v4989 = vpop.permute.xlu0 %4988
    %v4991 = vsel %vm1806, %v4989, 0.0
    %4992 = vadd.xlane.f32.xlu0 %v4991
    %v4993 = vpop.xlane.xlu0 %4992
    %v4994 = vrot.slane %v4993, 4
    %v4995 = vadd.f32 %v4993, %v4994
    %v4996 = vrot.slane %v4995, 2
    %v4997 = vadd.f32 %v4995, %v4996
    %v4998 = vrot.slane %v4997, 1
    %v4999 = vadd.f32 %v4997, %v4998
    %s5000 = vtos %v4999
    %s5001 = sadd.s32 %s3351, 27
    %s5002 = scalar_lea.smem [#allocation2], %s5001
    %5003 = sst [smem:[%s5002]] %s5000
    %v5004 = vmul.f32 %v4957, %v4971
    %5006 = vrot.lane.b32.xlu0 %v5004, 127
    %v5007 = vpop.permute.xlu0 %5006
    %v5009 = vsel %vm1806, %v5007, 0.0
    %5010 = vadd.xlane.f32.xlu0 %v5009
    %v5011 = vpop.xlane.xlu0 %5010
    %v5012 = vrot.slane %v5011, 4
    %v5013 = vadd.f32 %v5011, %v5012
    %v5014 = vrot.slane %v5013, 2
    %v5015 = vadd.f32 %v5013, %v5014
    %v5016 = vrot.slane %v5015, 1
    %v5017 = vadd.f32 %v5015, %v5016
    %s5018 = vtos %v5017
    %s5019 = sadd.s32 %s3351, 28
    %s5020 = scalar_lea.smem [#allocation2], %s5019
    %5021 = sst [smem:[%s5020]] %s5018
    %v5022 = vmul.f32 %v4964, %v4971
    %5024 = vrot.lane.b32.xlu0 %v5022, 127
    %v5025 = vpop.permute.xlu0 %5024
    %v5027 = vsel %vm1806, %v5025, 0.0
    %5028 = vadd.xlane.f32.xlu0 %v5027
    %v5029 = vpop.xlane.xlu0 %5028
    %v5030 = vrot.slane %v5029, 4
    %v5031 = vadd.f32 %v5029, %v5030
    %v5032 = vrot.slane %v5031, 2
    %v5033 = vadd.f32 %v5031, %v5032
    %v5034 = vrot.slane %v5033, 1
    %v5035 = vadd.f32 %v5033, %v5034
    %s5036 = vtos %v5035
    %s5037 = sadd.s32 %s3351, 29
    %s5038 = scalar_lea.smem [#allocation2], %s5037
    %5039 = sst [smem:[%s5038]] %s5036
    %v5040 = vmul.f32 %v4950, %v4978
    %5042 = vrot.lane.b32.xlu0 %v5040, 127
    %v5043 = vpop.permute.xlu0 %5042
    %v5045 = vsel %vm1806, %v5043, 0.0
    %5046 = vadd.xlane.f32.xlu0 %v5045
    %v5047 = vpop.xlane.xlu0 %5046
    %v5048 = vrot.slane %v5047, 4
    %v5049 = vadd.f32 %v5047, %v5048
    %v5050 = vrot.slane %v5049, 2
    %v5051 = vadd.f32 %v5049, %v5050
    %v5052 = vrot.slane %v5051, 1
    %v5053 = vadd.f32 %v5051, %v5052
    %s5054 = vtos %v5053
    %s5055 = sadd.s32 %s3351, 30
    %s5056 = scalar_lea.smem [#allocation2], %s5055
    %5057 = sst [smem:[%s5056]] %s5054
    %v5058 = vmul.f32 %v4957, %v4978
    %5060 = vrot.lane.b32.xlu0 %v5058, 127
    %v5061 = vpop.permute.xlu0 %5060
    %v5063 = vsel %vm1806, %v5061, 0.0
    %5064 = vadd.xlane.f32.xlu0 %v5063
    %v5065 = vpop.xlane.xlu0 %5064
    %v5066 = vrot.slane %v5065, 4
    %v5067 = vadd.f32 %v5065, %v5066
    %v5068 = vrot.slane %v5067, 2
    %v5069 = vadd.f32 %v5067, %v5068
    %v5070 = vrot.slane %v5069, 1
    %v5071 = vadd.f32 %v5069, %v5070
    %s5072 = vtos %v5071
    %s5073 = sadd.s32 %s3351, 31
    %s5074 = scalar_lea.smem [#allocation2], %s5073
    %5075 = sst [smem:[%s5074]] %s5072
    %v5076 = vmul.f32 %v4964, %v4978
    %5078 = vrot.lane.b32.xlu0 %v5076, 127
    %v5079 = vpop.permute.xlu0 %5078
    %v5081 = vsel %vm1806, %v5079, 0.0
    %5082 = vadd.xlane.f32.xlu0 %v5081
    %v5083 = vpop.xlane.xlu0 %5082
    %v5084 = vrot.slane %v5083, 4
    %v5085 = vadd.f32 %v5083, %v5084
    %v5086 = vrot.slane %v5085, 2
    %v5087 = vadd.f32 %v5085, %v5086
    %v5088 = vrot.slane %v5087, 1
    %v5089 = vadd.f32 %v5087, %v5088
    %s5090 = vtos %v5089
    %s5091 = sadd.s32 %s3351, 32
    %s5092 = scalar_lea.smem [#allocation2], %s5091
    %5093 = sst [smem:[%s5092]] %s5090
    %v5094 = vmul.f32 %v4950, %v4985
    %5096 = vrot.lane.b32.xlu0 %v5094, 127
    %v5097 = vpop.permute.xlu0 %5096
    %v5099 = vsel %vm1806, %v5097, 0.0
    %5100 = vadd.xlane.f32.xlu0 %v5099
    %v5101 = vpop.xlane.xlu0 %5100
    %v5102 = vrot.slane %v5101, 4
    %v5103 = vadd.f32 %v5101, %v5102
    %v5104 = vrot.slane %v5103, 2
    %v5105 = vadd.f32 %v5103, %v5104
    %v5106 = vrot.slane %v5105, 1
    %v5107 = vadd.f32 %v5105, %v5106
    %s5108 = vtos %v5107
    %s5109 = sadd.s32 %s3351, 33
    %s5110 = scalar_lea.smem [#allocation2], %s5109
    %5111 = sst [smem:[%s5110]] %s5108
    %v5112 = vmul.f32 %v4957, %v4985
    %5114 = vrot.lane.b32.xlu0 %v5112, 127
    %v5115 = vpop.permute.xlu0 %5114
    %v5117 = vsel %vm1806, %v5115, 0.0
    %5118 = vadd.xlane.f32.xlu0 %v5117
    %v5119 = vpop.xlane.xlu0 %5118
    %v5120 = vrot.slane %v5119, 4
    %v5121 = vadd.f32 %v5119, %v5120
    %v5122 = vrot.slane %v5121, 2
    %v5123 = vadd.f32 %v5121, %v5122
    %v5124 = vrot.slane %v5123, 1
    %v5125 = vadd.f32 %v5123, %v5124
    %s5126 = vtos %v5125
    %s5127 = sadd.s32 %s3351, 34
    %s5128 = scalar_lea.smem [#allocation2], %s5127
    %5129 = sst [smem:[%s5128]] %s5126
    %v5130 = vmul.f32 %v4964, %v4985
    %5132 = vrot.lane.b32.xlu0 %v5130, 127
    %v5133 = vpop.permute.xlu0 %5132
    %v5135 = vsel %vm1806, %v5133, 0.0
    %5136 = vadd.xlane.f32.xlu0 %v5135
    %v5137 = vpop.xlane.xlu0 %5136
    %v5138 = vrot.slane %v5137, 4
    %v5139 = vadd.f32 %v5137, %v5138
    %v5140 = vrot.slane %v5139, 2
    %v5141 = vadd.f32 %v5139, %v5140
    %v5142 = vrot.slane %v5141, 1
    %v5143 = vadd.f32 %v5141, %v5142
    %s5144 = vtos %v5143
    %s5145 = sadd.s32 %s3351, 35
    %s5146 = scalar_lea.smem [#allocation2], %s5145
    %5147 = sst [smem:[%s5146]] %s5144
    %v5148 = vsel %vm1964, %v4001, 0
    %5150 = vmatprep.subr.mxu0 0.0
    %5151 = vmatpush1.msra.mxu0 %v28
    %5152 = vmatprep.subr.mxu0 0.0
    %5153 = vmatpush1.msra.mxu0 0.0
    %5154 = vmatprep.subr.mxu0 0.0
    %5155 = vmatpush1.msra.mxu0 0.0
    %5156 = vmatprep.subr.mxu0 0.0
    %5157 = vmatpush1.msra.mxu0 0.0
    %5158 = vmatprep.subr.mxu0 0.0
    %5159 = vmatpush1.msra.mxu0 0.0
    %5160 = vmatprep.subr.mxu0 0.0
    %5161 = vmatpush1.msra.mxu0 0.0
    %5162 = vmatprep.subr.mxu0 0.0
    %5163 = vmatpush1.msra.mxu0 0.0
    %5164 = vmatprep.subr.mxu0 0.0
    %5165 = vmatpush1.msra.mxu0 0.0
    %5166 = vmatprep.subr.mxu0 0.0
    %5167 = vmatpush1.msra.mxu0 0.0
    %5168 = vmatprep.subr.mxu0 0.0
    %5169 = vmatpush1.msra.mxu0 0.0
    %5170 = vmatprep.subr.mxu0 0.0
    %5171 = vmatpush1.msra.mxu0 0.0
    %5172 = vmatprep.subr.mxu0 0.0
    %5173 = vmatpush1.msra.mxu0 0.0
    %5174 = vmatprep.subr.mxu0 0.0
    %5175 = vmatpush1.msra.mxu0 0.0
    %5176 = vmatprep.subr.mxu0 0.0
    %5177 = vmatpush1.msra.mxu0 0.0
    %5178 = vmatprep.subr.mxu0 0.0
    %5179 = vmatpush1.msra.mxu0 0.0
    %5180 = vmatprep.subr.mxu0 0.0
    %5181 = vmatpush1.msra.mxu0 0.0
    %5182 = vmatprep.subr.mxu0 0.0
    %5183 = vmatpush1.msra.mxu0 0.0
    %5184 = vmatprep.subr.mxu0 0.0
    %5185 = vmatpush1.msra.mxu0 0.0
    %5186 = vmatprep.subr.mxu0 0.0
    %5187 = vmatpush1.msra.mxu0 0.0
    %5188 = vmatprep.subr.mxu0 0.0
    %5189 = vmatpush1.msra.mxu0 0.0
    %5190 = vmatprep.subr.mxu0 0.0
    %5191 = vmatpush1.msra.mxu0 0.0
    %5192 = vmatprep.subr.mxu0 0.0
    %5193 = vmatpush1.msra.mxu0 0.0
    %5194 = vmatprep.subr.mxu0 0.0
    %5195 = vmatpush1.msra.mxu0 0.0
    %5196 = vmatprep.subr.mxu0 0.0
    %5197 = vmatpush1.msra.mxu0 0.0
    %5198 = vmatprep.subr.mxu0 0.0
    %5199 = vmatpush1.msra.mxu0 0.0
    %5200 = vmatprep.subr.mxu0 0.0
    %5201 = vmatpush1.msra.mxu0 0.0
    %5202 = vmatprep.subr.mxu0 0.0
    %5203 = vmatpush1.msra.mxu0 0.0
    %5204 = vmatprep.subr.mxu0 0.0
    %5205 = vmatpush1.msra.mxu0 0.0
    %5206 = vmatprep.subr.mxu0 0.0
    %5207 = vmatpush1.msra.mxu0 0.0
    %5208 = vmatprep.subr.mxu0 0.0
    %5209 = vmatpush1.msra.mxu0 0.0
    %5210 = vmatprep.subr.mxu0 0.0
    %5211 = vmatpush1.msra.mxu0 0.0
    %5212 = vmatprep.subr.mxu0 0.0
    %5213 = vmatpush1.msra.mxu0 0.0
    %5214 = vmatprep.mubr.f32.mxu0 0.0
    %5215 = vmatmul.mubr.f32.gmra.mrb[0].mxu0 %v5148
    %v5216 = vpop.f32.mrb[0].mxu0
    %v5217 = vadd.f32 0.0, %v5216
    %v5218 = vpop.f32.mrb[0].mxu0
    %5219 = vdwg.mxu0
    %5220 = vmatprep.subr.mxu0 0.0
    %5221 = vmatpush1.msra.mxu0 %v5217
    %5222 = vmatprep.subr.mxu0 0.0
    %5223 = vmatpush1.msra.mxu0 0.0
    %5224 = vmatprep.subr.mxu0 0.0
    %5225 = vmatpush1.msra.mxu0 0.0
    %5226 = vmatprep.subr.mxu0 0.0
    %5227 = vmatpush1.msra.mxu0 0.0
    %5228 = vmatprep.subr.mxu0 0.0
    %5229 = vmatpush1.msra.mxu0 0.0
    %5230 = vmatprep.subr.mxu0 0.0
    %5231 = vmatpush1.msra.mxu0 0.0
    %5232 = vmatprep.subr.mxu0 0.0
    %5233 = vmatpush1.msra.mxu0 0.0
    %5234 = vmatprep.subr.mxu0 0.0
    %5235 = vmatpush1.msra.mxu0 0.0
    %5236 = vmatprep.subr.mxu0 0.0
    %5237 = vmatpush1.msra.mxu0 0.0
    %5238 = vmatprep.subr.mxu0 0.0
    %5239 = vmatpush1.msra.mxu0 0.0
    %5240 = vmatprep.subr.mxu0 0.0
    %5241 = vmatpush1.msra.mxu0 0.0
    %5242 = vmatprep.subr.mxu0 0.0
    %5243 = vmatpush1.msra.mxu0 0.0
    %5244 = vmatprep.subr.mxu0 0.0
    %5245 = vmatpush1.msra.mxu0 0.0
    %5246 = vmatprep.subr.mxu0 0.0
    %5247 = vmatpush1.msra.mxu0 0.0
    %5248 = vmatprep.subr.mxu0 0.0
    %5249 = vmatpush1.msra.mxu0 0.0
    %5250 = vmatprep.subr.mxu0 0.0
    %5251 = vmatpush1.msra.mxu0 0.0
    %5252 = vmatprep.subr.mxu0 0.0
    %5253 = vmatpush1.msra.mxu0 0.0
    %5254 = vmatprep.subr.mxu0 0.0
    %5255 = vmatpush1.msra.mxu0 0.0
    %5256 = vmatprep.subr.mxu0 0.0
    %5257 = vmatpush1.msra.mxu0 0.0
    %5258 = vmatprep.subr.mxu0 0.0
    %5259 = vmatpush1.msra.mxu0 0.0
    %5260 = vmatprep.subr.mxu0 0.0
    %5261 = vmatpush1.msra.mxu0 0.0
    %5262 = vmatprep.subr.mxu0 0.0
    %5263 = vmatpush1.msra.mxu0 0.0
    %5264 = vmatprep.subr.mxu0 0.0
    %5265 = vmatpush1.msra.mxu0 0.0
    %5266 = vmatprep.subr.mxu0 0.0
    %5267 = vmatpush1.msra.mxu0 0.0
    %5268 = vmatprep.subr.mxu0 0.0
    %5269 = vmatpush1.msra.mxu0 0.0
    %5270 = vmatprep.subr.mxu0 0.0
    %5271 = vmatpush1.msra.mxu0 0.0
    %5272 = vmatprep.subr.mxu0 0.0
    %5273 = vmatpush1.msra.mxu0 0.0
    %5274 = vmatprep.subr.mxu0 0.0
    %5275 = vmatpush1.msra.mxu0 0.0
    %5276 = vmatprep.subr.mxu0 0.0
    %5277 = vmatpush1.msra.mxu0 0.0
    %5278 = vmatprep.subr.mxu0 0.0
    %5279 = vmatpush1.msra.mxu0 0.0
    %5280 = vmatprep.subr.mxu0 0.0
    %5281 = vmatpush1.msra.mxu0 0.0
    %5282 = vmatprep.subr.mxu0 0.0
    %5283 = vmatpush1.msra.mxu0 0.0
    %5284 = vmatprep.mubr.f32.mxu0 0.0
    %5285 = vmatmul.mubr.f32.gmra.mrb[0].mxu0 %v2038
    %v5286 = vpop.f32.mrb[0].mxu0
    %v5287 = vadd.f32 0.0, %v5286
    %v5288 = vpop.f32.mrb[0].mxu0
    %5289 = vdwg.mxu0
    %v5290 = vsel %vm1964, %v4150, 0
    %5292 = vmatprep.subr.mxu0 0.0
    %5293 = vmatpush1.msra.mxu0 %v28
    %5294 = vmatprep.subr.mxu0 0.0
    %5295 = vmatpush1.msra.mxu0 0.0
    %5296 = vmatprep.subr.mxu0 0.0
    %5297 = vmatpush1.msra.mxu0 0.0
    %5298 = vmatprep.subr.mxu0 0.0
    %5299 = vmatpush1.msra.mxu0 0.0
    %5300 = vmatprep.subr.mxu0 0.0
    %5301 = vmatpush1.msra.mxu0 0.0
    %5302 = vmatprep.subr.mxu0 0.0
    %5303 = vmatpush1.msra.mxu0 0.0
    %5304 = vmatprep.subr.mxu0 0.0
    %5305 = vmatpush1.msra.mxu0 0.0
    %5306 = vmatprep.subr.mxu0 0.0
    %5307 = vmatpush1.msra.mxu0 0.0
    %5308 = vmatprep.subr.mxu0 0.0
    %5309 = vmatpush1.msra.mxu0 0.0
    %5310 = vmatprep.subr.mxu0 0.0
    %5311 = vmatpush1.msra.mxu0 0.0
    %5312 = vmatprep.subr.mxu0 0.0
    %5313 = vmatpush1.msra.mxu0 0.0
    %5314 = vmatprep.subr.mxu0 0.0
    %5315 = vmatpush1.msra.mxu0 0.0
    %5316 = vmatprep.subr.mxu0 0.0
    %5317 = vmatpush1.msra.mxu0 0.0
    %5318 = vmatprep.subr.mxu0 0.0
    %5319 = vmatpush1.msra.mxu0 0.0
    %5320 = vmatprep.subr.mxu0 0.0
    %5321 = vmatpush1.msra.mxu0 0.0
    %5322 = vmatprep.subr.mxu0 0.0
    %5323 = vmatpush1.msra.mxu0 0.0
    %5324 = vmatprep.subr.mxu0 0.0
    %5325 = vmatpush1.msra.mxu0 0.0
    %5326 = vmatprep.subr.mxu0 0.0
    %5327 = vmatpush1.msra.mxu0 0.0
    %5328 = vmatprep.subr.mxu0 0.0
    %5329 = vmatpush1.msra.mxu0 0.0
    %5330 = vmatprep.subr.mxu0 0.0
    %5331 = vmatpush1.msra.mxu0 0.0
    %5332 = vmatprep.subr.mxu0 0.0
    %5333 = vmatpush1.msra.mxu0 0.0
    %5334 = vmatprep.subr.mxu0 0.0
    %5335 = vmatpush1.msra.mxu0 0.0
    %5336 = vmatprep.subr.mxu0 0.0
    %5337 = vmatpush1.msra.mxu0 0.0
    %5338 = vmatprep.subr.mxu0 0.0
    %5339 = vmatpush1.msra.mxu0 0.0
    %5340 = vmatprep.subr.mxu0 0.0
    %5341 = vmatpush1.msra.mxu0 0.0
    %5342 = vmatprep.subr.mxu0 0.0
    %5343 = vmatpush1.msra.mxu0 0.0
    %5344 = vmatprep.subr.mxu0 0.0
    %5345 = vmatpush1.msra.mxu0 0.0
    %5346 = vmatprep.subr.mxu0 0.0
    %5347 = vmatpush1.msra.mxu0 0.0
    %5348 = vmatprep.subr.mxu0 0.0
    %5349 = vmatpush1.msra.mxu0 0.0
    %5350 = vmatprep.subr.mxu0 0.0
    %5351 = vmatpush1.msra.mxu0 0.0
    %5352 = vmatprep.subr.mxu0 0.0
    %5353 = vmatpush1.msra.mxu0 0.0
    %5354 = vmatprep.subr.mxu0 0.0
    %5355 = vmatpush1.msra.mxu0 0.0
    %5356 = vmatprep.mubr.f32.mxu0 0.0
    %5357 = vmatmul.mubr.f32.gmra.mrb[0].mxu0 %v5290
    %v5358 = vpop.f32.mrb[0].mxu0
    %v5359 = vadd.f32 0.0, %v5358
    %v5360 = vpop.f32.mrb[0].mxu0
    %5361 = vdwg.mxu0
    %5362 = vmatprep.subr.mxu0 0.0
    %5363 = vmatpush1.msra.mxu0 %v5359
    %5364 = vmatprep.subr.mxu0 0.0
    %5365 = vmatpush1.msra.mxu0 0.0
    %5366 = vmatprep.subr.mxu0 0.0
    %5367 = vmatpush1.msra.mxu0 0.0
    %5368 = vmatprep.subr.mxu0 0.0
    %5369 = vmatpush1.msra.mxu0 0.0
    %5370 = vmatprep.subr.mxu0 0.0
    %5371 = vmatpush1.msra.mxu0 0.0
    %5372 = vmatprep.subr.mxu0 0.0
    %5373 = vmatpush1.msra.mxu0 0.0
    %5374 = vmatprep.subr.mxu0 0.0
    %5375 = vmatpush1.msra.mxu0 0.0
    %5376 = vmatprep.subr.mxu0 0.0
    %5377 = vmatpush1.msra.mxu0 0.0
    %5378 = vmatprep.subr.mxu0 0.0
    %5379 = vmatpush1.msra.mxu0 0.0
    %5380 = vmatprep.subr.mxu0 0.0
    %5381 = vmatpush1.msra.mxu0 0.0
    %5382 = vmatprep.subr.mxu0 0.0
    %5383 = vmatpush1.msra.mxu0 0.0
    %5384 = vmatprep.subr.mxu0 0.0
    %5385 = vmatpush1.msra.mxu0 0.0
    %5386 = vmatprep.subr.mxu0 0.0
    %5387 = vmatpush1.msra.mxu0 0.0
    %5388 = vmatprep.subr.mxu0 0.0
    %5389 = vmatpush1.msra.mxu0 0.0
    %5390 = vmatprep.subr.mxu0 0.0
    %5391 = vmatpush1.msra.mxu0 0.0
    %5392 = vmatprep.subr.mxu0 0.0
    %5393 = vmatpush1.msra.mxu0 0.0
    %5394 = vmatprep.subr.mxu0 0.0
    %5395 = vmatpush1.msra.mxu0 0.0
    %5396 = vmatprep.subr.mxu0 0.0
    %5397 = vmatpush1.msra.mxu0 0.0
    %5398 = vmatprep.subr.mxu0 0.0
    %5399 = vmatpush1.msra.mxu0 0.0
    %5400 = vmatprep.subr.mxu0 0.0
    %5401 = vmatpush1.msra.mxu0 0.0
    %5402 = vmatprep.subr.mxu0 0.0
    %5403 = vmatpush1.msra.mxu0 0.0
    %5404 = vmatprep.subr.mxu0 0.0
    %5405 = vmatpush1.msra.mxu0 0.0
    %5406 = vmatprep.subr.mxu0 0.0
    %5407 = vmatpush1.msra.mxu0 0.0
    %5408 = vmatprep.subr.mxu0 0.0
    %5409 = vmatpush1.msra.mxu0 0.0
    %5410 = vmatprep.subr.mxu0 0.0
    %5411 = vmatpush1.msra.mxu0 0.0
    %5412 = vmatprep.subr.mxu0 0.0
    %5413 = vmatpush1.msra.mxu0 0.0
    %5414 = vmatprep.subr.mxu0 0.0
    %5415 = vmatpush1.msra.mxu0 0.0
    %5416 = vmatprep.subr.mxu0 0.0
    %5417 = vmatpush1.msra.mxu0 0.0
    %5418 = vmatprep.subr.mxu0 0.0
    %5419 = vmatpush1.msra.mxu0 0.0
    %5420 = vmatprep.subr.mxu0 0.0
    %5421 = vmatpush1.msra.mxu0 0.0
    %5422 = vmatprep.subr.mxu0 0.0
    %5423 = vmatpush1.msra.mxu0 0.0
    %5424 = vmatprep.subr.mxu0 0.0
    %5425 = vmatpush1.msra.mxu0 0.0
    %5426 = vmatprep.mubr.f32.mxu0 0.0
    %5427 = vmatmul.mubr.f32.gmra.mrb[0].mxu0 %v2038
    %v5428 = vpop.f32.mrb[0].mxu0
    %v5429 = vadd.f32 0.0, %v5428
    %v5430 = vpop.f32.mrb[0].mxu0
    %5431 = vdwg.mxu0
    %v5432 = vsel %vm1964, %v4299, 0
    %5434 = vmatprep.subr.mxu0 0.0
    %5435 = vmatpush1.msra.mxu0 %v28
    %5436 = vmatprep.subr.mxu0 0.0
    %5437 = vmatpush1.msra.mxu0 0.0
    %5438 = vmatprep.subr.mxu0 0.0
    %5439 = vmatpush1.msra.mxu0 0.0
    %5440 = vmatprep.subr.mxu0 0.0
    %5441 = vmatpush1.msra.mxu0 0.0
    %5442 = vmatprep.subr.mxu0 0.0
    %5443 = vmatpush1.msra.mxu0 0.0
    %5444 = vmatprep.subr.mxu0 0.0
    %5445 = vmatpush1.msra.mxu0 0.0
    %5446 = vmatprep.subr.mxu0 0.0
    %5447 = vmatpush1.msra.mxu0 0.0
    %5448 = vmatprep.subr.mxu0 0.0
    %5449 = vmatpush1.msra.mxu0 0.0
    %5450 = vmatprep.subr.mxu0 0.0
    %5451 = vmatpush1.msra.mxu0 0.0
    %5452 = vmatprep.subr.mxu0 0.0
    %5453 = vmatpush1.msra.mxu0 0.0
    %5454 = vmatprep.subr.mxu0 0.0
    %5455 = vmatpush1.msra.mxu0 0.0
    %5456 = vmatprep.subr.mxu0 0.0
    %5457 = vmatpush1.msra.mxu0 0.0
    %5458 = vmatprep.subr.mxu0 0.0
    %5459 = vmatpush1.msra.mxu0 0.0
    %5460 = vmatprep.subr.mxu0 0.0
    %5461 = vmatpush1.msra.mxu0 0.0
    %5462 = vmatprep.subr.mxu0 0.0
    %5463 = vmatpush1.msra.mxu0 0.0
    %5464 = vmatprep.subr.mxu0 0.0
    %5465 = vmatpush1.msra.mxu0 0.0
    %5466 = vmatprep.subr.mxu0 0.0
    %5467 = vmatpush1.msra.mxu0 0.0
    %5468 = vmatprep.subr.mxu0 0.0
    %5469 = vmatpush1.msra.mxu0 0.0
    %5470 = vmatprep.subr.mxu0 0.0
    %5471 = vmatpush1.msra.mxu0 0.0
    %5472 = vmatprep.subr.mxu0 0.0
    %5473 = vmatpush1.msra.mxu0 0.0
    %5474 = vmatprep.subr.mxu0 0.0
    %5475 = vmatpush1.msra.mxu0 0.0
    %5476 = vmatprep.subr.mxu0 0.0
    %5477 = vmatpush1.msra.mxu0 0.0
    %5478 = vmatprep.subr.mxu0 0.0
    %5479 = vmatpush1.msra.mxu0 0.0
    %5480 = vmatprep.subr.mxu0 0.0
    %5481 = vmatpush1.msra.mxu0 0.0
    %5482 = vmatprep.subr.mxu0 0.0
    %5483 = vmatpush1.msra.mxu0 0.0
    %5484 = vmatprep.subr.mxu0 0.0
    %5485 = vmatpush1.msra.mxu0 0.0
    %5486 = vmatprep.subr.mxu0 0.0
    %5487 = vmatpush1.msra.mxu0 0.0
    %5488 = vmatprep.subr.mxu0 0.0
    %5489 = vmatpush1.msra.mxu0 0.0
    %5490 = vmatprep.subr.mxu0 0.0
    %5491 = vmatpush1.msra.mxu0 0.0
    %5492 = vmatprep.subr.mxu0 0.0
    %5493 = vmatpush1.msra.mxu0 0.0
    %5494 = vmatprep.subr.mxu0 0.0
    %5495 = vmatpush1.msra.mxu0 0.0
    %5496 = vmatprep.subr.mxu0 0.0
    %5497 = vmatpush1.msra.mxu0 0.0
    %5498 = vmatprep.mubr.f32.mxu0 0.0
    %5499 = vmatmul.mubr.f32.gmra.mrb[0].mxu0 %v5432
    %v5500 = vpop.f32.mrb[0].mxu0
    %v5501 = vadd.f32 0.0, %v5500
    %v5502 = vpop.f32.mrb[0].mxu0
    %5503 = vdwg.mxu0
    %5504 = vmatprep.subr.mxu0 0.0
    %5505 = vmatpush1.msra.mxu0 %v5501
    %5506 = vmatprep.subr.mxu0 0.0
    %5507 = vmatpush1.msra.mxu0 0.0
    %5508 = vmatprep.subr.mxu0 0.0
    %5509 = vmatpush1.msra.mxu0 0.0
    %5510 = vmatprep.subr.mxu0 0.0
    %5511 = vmatpush1.msra.mxu0 0.0
    %5512 = vmatprep.subr.mxu0 0.0
    %5513 = vmatpush1.msra.mxu0 0.0
    %5514 = vmatprep.subr.mxu0 0.0
    %5515 = vmatpush1.msra.mxu0 0.0
    %5516 = vmatprep.subr.mxu0 0.0
    %5517 = vmatpush1.msra.mxu0 0.0
    %5518 = vmatprep.subr.mxu0 0.0
    %5519 = vmatpush1.msra.mxu0 0.0
    %5520 = vmatprep.subr.mxu0 0.0
    %5521 = vmatpush1.msra.mxu0 0.0
    %5522 = vmatprep.subr.mxu0 0.0
    %5523 = vmatpush1.msra.mxu0 0.0
    %5524 = vmatprep.subr.mxu0 0.0
    %5525 = vmatpush1.msra.mxu0 0.0
    %5526 = vmatprep.subr.mxu0 0.0
    %5527 = vmatpush1.msra.mxu0 0.0
    %5528 = vmatprep.subr.mxu0 0.0
    %5529 = vmatpush1.msra.mxu0 0.0
    %5530 = vmatprep.subr.mxu0 0.0
    %5531 = vmatpush1.msra.mxu0 0.0
    %5532 = vmatprep.subr.mxu0 0.0
    %5533 = vmatpush1.msra.mxu0 0.0
    %5534 = vmatprep.subr.mxu0 0.0
    %5535 = vmatpush1.msra.mxu0 0.0
    %5536 = vmatprep.subr.mxu0 0.0
    %5537 = vmatpush1.msra.mxu0 0.0
    %5538 = vmatprep.subr.mxu0 0.0
    %5539 = vmatpush1.msra.mxu0 0.0
    %5540 = vmatprep.subr.mxu0 0.0
    %5541 = vmatpush1.msra.mxu0 0.0
    %5542 = vmatprep.subr.mxu0 0.0
    %5543 = vmatpush1.msra.mxu0 0.0
    %5544 = vmatprep.subr.mxu0 0.0
    %5545 = vmatpush1.msra.mxu0 0.0
    %5546 = vmatprep.subr.mxu0 0.0
    %5547 = vmatpush1.msra.mxu0 0.0
    %5548 = vmatprep.subr.mxu0 0.0
    %5549 = vmatpush1.msra.mxu0 0.0
    %5550 = vmatprep.subr.mxu0 0.0
    %5551 = vmatpush1.msra.mxu0 0.0
    %5552 = vmatprep.subr.mxu0 0.0
    %5553 = vmatpush1.msra.mxu0 0.0
    %5554 = vmatprep.subr.mxu0 0.0
    %5555 = vmatpush1.msra.mxu0 0.0
    %5556 = vmatprep.subr.mxu0 0.0
    %5557 = vmatpush1.msra.mxu0 0.0
    %5558 = vmatprep.subr.mxu0 0.0
    %5559 = vmatpush1.msra.mxu0 0.0
    %5560 = vmatprep.subr.mxu0 0.0
    %5561 = vmatpush1.msra.mxu0 0.0
    %5562 = vmatprep.subr.mxu0 0.0
    %5563 = vmatpush1.msra.mxu0 0.0
    %5564 = vmatprep.subr.mxu0 0.0
    %5565 = vmatpush1.msra.mxu0 0.0
    %5566 = vmatprep.subr.mxu0 0.0
    %5567 = vmatpush1.msra.mxu0 0.0
    %5568 = vmatprep.mubr.f32.mxu0 0.0
    %5569 = vmatmul.mubr.f32.gmra.mrb[0].mxu0 %v2038
    %v5570 = vpop.f32.mrb[0].mxu0
    %v5571 = vadd.f32 0.0, %v5570
    %v5572 = vpop.f32.mrb[0].mxu0
    %5573 = vdwg.mxu0
    %v5574 = vsel %vm1964, %v4448, 0
    %5576 = vmatprep.subr.mxu0 0.0
    %5577 = vmatpush1.msra.mxu0 %v28
    %5578 = vmatprep.subr.mxu0 0.0
    %5579 = vmatpush1.msra.mxu0 0.0
    %5580 = vmatprep.subr.mxu0 0.0
    %5581 = vmatpush1.msra.mxu0 0.0
    %5582 = vmatprep.subr.mxu0 0.0
    %5583 = vmatpush1.msra.mxu0 0.0
    %5584 = vmatprep.subr.mxu0 0.0
    %5585 = vmatpush1.msra.mxu0 0.0
    %5586 = vmatprep.subr.mxu0 0.0
    %5587 = vmatpush1.msra.mxu0 0.0
    %5588 = vmatprep.subr.mxu0 0.0
    %5589 = vmatpush1.msra.mxu0 0.0
    %5590 = vmatprep.subr.mxu0 0.0
    %5591 = vmatpush1.msra.mxu0 0.0
    %5592 = vmatprep.subr.mxu0 0.0
    %5593 = vmatpush1.msra.mxu0 0.0
    %5594 = vmatprep.subr.mxu0 0.0
    %5595 = vmatpush1.msra.mxu0 0.0
    %5596 = vmatprep.subr.mxu0 0.0
    %5597 = vmatpush1.msra.mxu0 0.0
    %5598 = vmatprep.subr.mxu0 0.0
    %5599 = vmatpush1.msra.mxu0 0.0
    %5600 = vmatprep.subr.mxu0 0.0
    %5601 = vmatpush1.msra.mxu0 0.0
    %5602 = vmatprep.subr.mxu0 0.0
    %5603 = vmatpush1.msra.mxu0 0.0
    %5604 = vmatprep.subr.mxu0 0.0
    %5605 = vmatpush1.msra.mxu0 0.0
    %5606 = vmatprep.subr.mxu0 0.0
    %5607 = vmatpush1.msra.mxu0 0.0
    %5608 = vmatprep.subr.mxu0 0.0
    %5609 = vmatpush1.msra.mxu0 0.0
    %5610 = vmatprep.subr.mxu0 0.0
    %5611 = vmatpush1.msra.mxu0 0.0
    %5612 = vmatprep.subr.mxu0 0.0
    %5613 = vmatpush1.msra.mxu0 0.0
    %5614 = vmatprep.subr.mxu0 0.0
    %5615 = vmatpush1.msra.mxu0 0.0
    %5616 = vmatprep.subr.mxu0 0.0
    %5617 = vmatpush1.msra.mxu0 0.0
    %5618 = vmatprep.subr.mxu0 0.0
    %5619 = vmatpush1.msra.mxu0 0.0
    %5620 = vmatprep.subr.mxu0 0.0
    %5621 = vmatpush1.msra.mxu0 0.0
    %5622 = vmatprep.subr.mxu0 0.0
    %5623 = vmatpush1.msra.mxu0 0.0
    %5624 = vmatprep.subr.mxu0 0.0
    %5625 = vmatpush1.msra.mxu0 0.0
    %5626 = vmatprep.subr.mxu0 0.0
    %5627 = vmatpush1.msra.mxu0 0.0
    %5628 = vmatprep.subr.mxu0 0.0
    %5629 = vmatpush1.msra.mxu0 0.0
    %5630 = vmatprep.subr.mxu0 0.0
    %5631 = vmatpush1.msra.mxu0 0.0
    %5632 = vmatprep.subr.mxu0 0.0
    %5633 = vmatpush1.msra.mxu0 0.0
    %5634 = vmatprep.subr.mxu0 0.0
    %5635 = vmatpush1.msra.mxu0 0.0
    %5636 = vmatprep.subr.mxu0 0.0
    %5637 = vmatpush1.msra.mxu0 0.0
    %5638 = vmatprep.subr.mxu0 0.0
    %5639 = vmatpush1.msra.mxu0 0.0
    %5640 = vmatprep.mubr.f32.mxu0 0.0
    %5641 = vmatmul.mubr.f32.gmra.mrb[0].mxu0 %v5574
    %v5642 = vpop.f32.mrb[0].mxu0
    %v5643 = vadd.f32 0.0, %v5642
    %v5644 = vpop.f32.mrb[0].mxu0
    %5645 = vdwg.mxu0
    %5646 = vmatprep.subr.mxu0 0.0
    %5647 = vmatpush1.msra.mxu0 %v5643
    %5648 = vmatprep.subr.mxu0 0.0
    %5649 = vmatpush1.msra.mxu0 0.0
    %5650 = vmatprep.subr.mxu0 0.0
    %5651 = vmatpush1.msra.mxu0 0.0
    %5652 = vmatprep.subr.mxu0 0.0
    %5653 = vmatpush1.msra.mxu0 0.0
    %5654 = vmatprep.subr.mxu0 0.0
    %5655 = vmatpush1.msra.mxu0 0.0
    %5656 = vmatprep.subr.mxu0 0.0
    %5657 = vmatpush1.msra.mxu0 0.0
    %5658 = vmatprep.subr.mxu0 0.0
    %5659 = vmatpush1.msra.mxu0 0.0
    %5660 = vmatprep.subr.mxu0 0.0
    %5661 = vmatpush1.msra.mxu0 0.0
    %5662 = vmatprep.subr.mxu0 0.0
    %5663 = vmatpush1.msra.mxu0 0.0
    %5664 = vmatprep.subr.mxu0 0.0
    %5665 = vmatpush1.msra.mxu0 0.0
    %5666 = vmatprep.subr.mxu0 0.0
    %5667 = vmatpush1.msra.mxu0 0.0
    %5668 = vmatprep.subr.mxu0 0.0
    %5669 = vmatpush1.msra.mxu0 0.0
    %5670 = vmatprep.subr.mxu0 0.0
    %5671 = vmatpush1.msra.mxu0 0.0
    %5672 = vmatprep.subr.mxu0 0.0
    %5673 = vmatpush1.msra.mxu0 0.0
    %5674 = vmatprep.subr.mxu0 0.0
    %5675 = vmatpush1.msra.mxu0 0.0
    %5676 = vmatprep.subr.mxu0 0.0
    %5677 = vmatpush1.msra.mxu0 0.0
    %5678 = vmatprep.subr.mxu0 0.0
    %5679 = vmatpush1.msra.mxu0 0.0
    %5680 = vmatprep.subr.mxu0 0.0
    %5681 = vmatpush1.msra.mxu0 0.0
    %5682 = vmatprep.subr.mxu0 0.0
    %5683 = vmatpush1.msra.mxu0 0.0
    %5684 = vmatprep.subr.mxu0 0.0
    %5685 = vmatpush1.msra.mxu0 0.0
    %5686 = vmatprep.subr.mxu0 0.0
    %5687 = vmatpush1.msra.mxu0 0.0
    %5688 = vmatprep.subr.mxu0 0.0
    %5689 = vmatpush1.msra.mxu0 0.0
    %5690 = vmatprep.subr.mxu0 0.0
    %5691 = vmatpush1.msra.mxu0 0.0
    %5692 = vmatprep.subr.mxu0 0.0
    %5693 = vmatpush1.msra.mxu0 0.0
    %5694 = vmatprep.subr.mxu0 0.0
    %5695 = vmatpush1.msra.mxu0 0.0
    %5696 = vmatprep.subr.mxu0 0.0
    %5697 = vmatpush1.msra.mxu0 0.0
    %5698 = vmatprep.subr.mxu0 0.0
    %5699 = vmatpush1.msra.mxu0 0.0
    %5700 = vmatprep.subr.mxu0 0.0
    %5701 = vmatpush1.msra.mxu0 0.0
    %5702 = vmatprep.subr.mxu0 0.0
    %5703 = vmatpush1.msra.mxu0 0.0
    %5704 = vmatprep.subr.mxu0 0.0
    %5705 = vmatpush1.msra.mxu0 0.0
    %5706 = vmatprep.subr.mxu0 0.0
    %5707 = vmatpush1.msra.mxu0 0.0
    %5708 = vmatprep.subr.mxu0 0.0
    %5709 = vmatpush1.msra.mxu0 0.0
    %5710 = vmatprep.mubr.f32.mxu0 0.0
    %5711 = vmatmul.mubr.f32.gmra.mrb[0].mxu0 %v2038
    %v5712 = vpop.f32.mrb[0].mxu0
    %v5713 = vadd.f32 0.0, %v5712
    %v5714 = vpop.f32.mrb[0].mxu0
    %5715 = vdwg.mxu0
    %v5716 = vsel %vm1964, %v4597, 0
    %5718 = vmatprep.subr.mxu0 0.0
    %5719 = vmatpush1.msra.mxu0 %v28
    %5720 = vmatprep.subr.mxu0 0.0
    %5721 = vmatpush1.msra.mxu0 0.0
    %5722 = vmatprep.subr.mxu0 0.0
    %5723 = vmatpush1.msra.mxu0 0.0
    %5724 = vmatprep.subr.mxu0 0.0
    %5725 = vmatpush1.msra.mxu0 0.0
    %5726 = vmatprep.subr.mxu0 0.0
    %5727 = vmatpush1.msra.mxu0 0.0
    %5728 = vmatprep.subr.mxu0 0.0
    %5729 = vmatpush1.msra.mxu0 0.0
    %5730 = vmatprep.subr.mxu0 0.0
    %5731 = vmatpush1.msra.mxu0 0.0
    %5732 = vmatprep.subr.mxu0 0.0
    %5733 = vmatpush1.msra.mxu0 0.0
    %5734 = vmatprep.subr.mxu0 0.0
    %5735 = vmatpush1.msra.mxu0 0.0
    %5736 = vmatprep.subr.mxu0 0.0
    %5737 = vmatpush1.msra.mxu0 0.0
    %5738 = vmatprep.subr.mxu0 0.0
    %5739 = vmatpush1.msra.mxu0 0.0
    %5740 = vmatprep.subr.mxu0 0.0
    %5741 = vmatpush1.msra.mxu0 0.0
    %5742 = vmatprep.subr.mxu0 0.0
    %5743 = vmatpush1.msra.mxu0 0.0
    %5744 = vmatprep.subr.mxu0 0.0
    %5745 = vmatpush1.msra.mxu0 0.0
    %5746 = vmatprep.subr.mxu0 0.0
    %5747 = vmatpush1.msra.mxu0 0.0
    %5748 = vmatprep.subr.mxu0 0.0
    %5749 = vmatpush1.msra.mxu0 0.0
    %5750 = vmatprep.subr.mxu0 0.0
    %5751 = vmatpush1.msra.mxu0 0.0
    %5752 = vmatprep.subr.mxu0 0.0
    %5753 = vmatpush1.msra.mxu0 0.0
    %5754 = vmatprep.subr.mxu0 0.0
    %5755 = vmatpush1.msra.mxu0 0.0
    %5756 = vmatprep.subr.mxu0 0.0
    %5757 = vmatpush1.msra.mxu0 0.0
    %5758 = vmatprep.subr.mxu0 0.0
    %5759 = vmatpush1.msra.mxu0 0.0
    %5760 = vmatprep.subr.mxu0 0.0
    %5761 = vmatpush1.msra.mxu0 0.0
    %5762 = vmatprep.subr.mxu0 0.0
    %5763 = vmatpush1.msra.mxu0 0.0
    %5764 = vmatprep.subr.mxu0 0.0
    %5765 = vmatpush1.msra.mxu0 0.0
    %5766 = vmatprep.subr.mxu0 0.0
    %5767 = vmatpush1.msra.mxu0 0.0
    %5768 = vmatprep.subr.mxu0 0.0
    %5769 = vmatpush1.msra.mxu0 0.0
    %5770 = vmatprep.subr.mxu0 0.0
    %5771 = vmatpush1.msra.mxu0 0.0
    %5772 = vmatprep.subr.mxu0 0.0
    %5773 = vmatpush1.msra.mxu0 0.0
    %5774 = vmatprep.subr.mxu0 0.0
    %5775 = vmatpush1.msra.mxu0 0.0
    %5776 = vmatprep.subr.mxu0 0.0
    %5777 = vmatpush1.msra.mxu0 0.0
    %5778 = vmatprep.subr.mxu0 0.0
    %5779 = vmatpush1.msra.mxu0 0.0
    %5780 = vmatprep.subr.mxu0 0.0
    %5781 = vmatpush1.msra.mxu0 0.0
    %5782 = vmatprep.mubr.f32.mxu0 0.0
    %5783 = vmatmul.mubr.f32.gmra.mrb[0].mxu0 %v5716
    %v5784 = vpop.f32.mrb[0].mxu0
    %v5785 = vadd.f32 0.0, %v5784
    %v5786 = vpop.f32.mrb[0].mxu0
    %5787 = vdwg.mxu0
    %5788 = vmatprep.subr.mxu0 0.0
    %5789 = vmatpush1.msra.mxu0 %v5785
    %5790 = vmatprep.subr.mxu0 0.0
    %5791 = vmatpush1.msra.mxu0 0.0
    %5792 = vmatprep.subr.mxu0 0.0
    %5793 = vmatpush1.msra.mxu0 0.0
    %5794 = vmatprep.subr.mxu0 0.0
    %5795 = vmatpush1.msra.mxu0 0.0
    %5796 = vmatprep.subr.mxu0 0.0
    %5797 = vmatpush1.msra.mxu0 0.0
    %5798 = vmatprep.subr.mxu0 0.0
    %5799 = vmatpush1.msra.mxu0 0.0
    %5800 = vmatprep.subr.mxu0 0.0
    %5801 = vmatpush1.msra.mxu0 0.0
    %5802 = vmatprep.subr.mxu0 0.0
    %5803 = vmatpush1.msra.mxu0 0.0
    %5804 = vmatprep.subr.mxu0 0.0
    %5805 = vmatpush1.msra.mxu0 0.0
    %5806 = vmatprep.subr.mxu0 0.0
    %5807 = vmatpush1.msra.mxu0 0.0
    %5808 = vmatprep.subr.mxu0 0.0
    %5809 = vmatpush1.msra.mxu0 0.0
    %5810 = vmatprep.subr.mxu0 0.0
    %5811 = vmatpush1.msra.mxu0 0.0
    %5812 = vmatprep.subr.mxu0 0.0
    %5813 = vmatpush1.msra.mxu0 0.0
    %5814 = vmatprep.subr.mxu0 0.0
    %5815 = vmatpush1.msra.mxu0 0.0
    %5816 = vmatprep.subr.mxu0 0.0
    %5817 = vmatpush1.msra.mxu0 0.0
    %5818 = vmatprep.subr.mxu0 0.0
    %5819 = vmatpush1.msra.mxu0 0.0
    %5820 = vmatprep.subr.mxu0 0.0
    %5821 = vmatpush1.msra.mxu0 0.0
    %5822 = vmatprep.subr.mxu0 0.0
    %5823 = vmatpush1.msra.mxu0 0.0
    %5824 = vmatprep.subr.mxu0 0.0
    %5825 = vmatpush1.msra.mxu0 0.0
    %5826 = vmatprep.subr.mxu0 0.0
    %5827 = vmatpush1.msra.mxu0 0.0
    %5828 = vmatprep.subr.mxu0 0.0
    %5829 = vmatpush1.msra.mxu0 0.0
    %5830 = vmatprep.subr.mxu0 0.0
    %5831 = vmatpush1.msra.mxu0 0.0
    %5832 = vmatprep.subr.mxu0 0.0
    %5833 = vmatpush1.msra.mxu0 0.0
    %5834 = vmatprep.subr.mxu0 0.0
    %5835 = vmatpush1.msra.mxu0 0.0
    %5836 = vmatprep.subr.mxu0 0.0
    %5837 = vmatpush1.msra.mxu0 0.0
    %5838 = vmatprep.subr.mxu0 0.0
    %5839 = vmatpush1.msra.mxu0 0.0
    %5840 = vmatprep.subr.mxu0 0.0
    %5841 = vmatpush1.msra.mxu0 0.0
    %5842 = vmatprep.subr.mxu0 0.0
    %5843 = vmatpush1.msra.mxu0 0.0
    %5844 = vmatprep.subr.mxu0 0.0
    %5845 = vmatpush1.msra.mxu0 0.0
    %5846 = vmatprep.subr.mxu0 0.0
    %5847 = vmatpush1.msra.mxu0 0.0
    %5848 = vmatprep.subr.mxu0 0.0
    %5849 = vmatpush1.msra.mxu0 0.0
    %5850 = vmatprep.subr.mxu0 0.0
    %5851 = vmatpush1.msra.mxu0 0.0
    %5852 = vmatprep.mubr.f32.mxu0 0.0
    %5853 = vmatmul.mubr.f32.gmra.mrb[0].mxu0 %v2038
    %v5854 = vpop.f32.mrb[0].mxu0
    %v5855 = vadd.f32 0.0, %v5854
    %v5856 = vpop.f32.mrb[0].mxu0
    %5857 = vdwg.mxu0
    %v5858 = vsel %vm1964, %v4746, 0
    %5860 = vmatprep.subr.mxu0 0.0
    %5861 = vmatpush1.msra.mxu0 %v28
    %5862 = vmatprep.subr.mxu0 0.0
    %5863 = vmatpush1.msra.mxu0 0.0
    %5864 = vmatprep.subr.mxu0 0.0
    %5865 = vmatpush1.msra.mxu0 0.0
    %5866 = vmatprep.subr.mxu0 0.0
    %5867 = vmatpush1.msra.mxu0 0.0
    %5868 = vmatprep.subr.mxu0 0.0
    %5869 = vmatpush1.msra.mxu0 0.0
    %5870 = vmatprep.subr.mxu0 0.0
    %5871 = vmatpush1.msra.mxu0 0.0
    %5872 = vmatprep.subr.mxu0 0.0
    %5873 = vmatpush1.msra.mxu0 0.0
    %5874 = vmatprep.subr.mxu0 0.0
    %5875 = vmatpush1.msra.mxu0 0.0
    %5876 = vmatprep.subr.mxu0 0.0
    %5877 = vmatpush1.msra.mxu0 0.0
    %5878 = vmatprep.subr.mxu0 0.0
    %5879 = vmatpush1.msra.mxu0 0.0
    %5880 = vmatprep.subr.mxu0 0.0
    %5881 = vmatpush1.msra.mxu0 0.0
    %5882 = vmatprep.subr.mxu0 0.0
    %5883 = vmatpush1.msra.mxu0 0.0
    %5884 = vmatprep.subr.mxu0 0.0
    %5885 = vmatpush1.msra.mxu0 0.0
    %5886 = vmatprep.subr.mxu0 0.0
    %5887 = vmatpush1.msra.mxu0 0.0
    %5888 = vmatprep.subr.mxu0 0.0
    %5889 = vmatpush1.msra.mxu0 0.0
    %5890 = vmatprep.subr.mxu0 0.0
    %5891 = vmatpush1.msra.mxu0 0.0
    %5892 = vmatprep.subr.mxu0 0.0
    %5893 = vmatpush1.msra.mxu0 0.0
    %5894 = vmatprep.subr.mxu0 0.0
    %5895 = vmatpush1.msra.mxu0 0.0
    %5896 = vmatprep.subr.mxu0 0.0
    %5897 = vmatpush1.msra.mxu0 0.0
    %5898 = vmatprep.subr.mxu0 0.0
    %5899 = vmatpush1.msra.mxu0 0.0
    %5900 = vmatprep.subr.mxu0 0.0
    %5901 = vmatpush1.msra.mxu0 0.0
    %5902 = vmatprep.subr.mxu0 0.0
    %5903 = vmatpush1.msra.mxu0 0.0
    %5904 = vmatprep.subr.mxu0 0.0
    %5905 = vmatpush1.msra.mxu0 0.0
    %5906 = vmatprep.subr.mxu0 0.0
    %5907 = vmatpush1.msra.mxu0 0.0
    %5908 = vmatprep.subr.mxu0 0.0
    %5909 = vmatpush1.msra.mxu0 0.0
    %5910 = vmatprep.subr.mxu0 0.0
    %5911 = vmatpush1.msra.mxu0 0.0
    %5912 = vmatprep.subr.mxu0 0.0
    %5913 = vmatpush1.msra.mxu0 0.0
    %5914 = vmatprep.subr.mxu0 0.0
    %5915 = vmatpush1.msra.mxu0 0.0
    %5916 = vmatprep.subr.mxu0 0.0
    %5917 = vmatpush1.msra.mxu0 0.0
    %5918 = vmatprep.subr.mxu0 0.0
    %5919 = vmatpush1.msra.mxu0 0.0
    %5920 = vmatprep.subr.mxu0 0.0
    %5921 = vmatpush1.msra.mxu0 0.0
    %5922 = vmatprep.subr.mxu0 0.0
    %5923 = vmatpush1.msra.mxu0 0.0
    %5924 = vmatprep.mubr.f32.mxu0 0.0
    %5925 = vmatmul.mubr.f32.gmra.mrb[0].mxu0 %v5858
    %v5926 = vpop.f32.mrb[0].mxu0
    %v5927 = vadd.f32 0.0, %v5926
    %v5928 = vpop.f32.mrb[0].mxu0
    %5929 = vdwg.mxu0
    %5930 = vmatprep.subr.mxu0 0.0
    %5931 = vmatpush1.msra.mxu0 %v5927
    %5932 = vmatprep.subr.mxu0 0.0
    %5933 = vmatpush1.msra.mxu0 0.0
    %5934 = vmatprep.subr.mxu0 0.0
    %5935 = vmatpush1.msra.mxu0 0.0
    %5936 = vmatprep.subr.mxu0 0.0
    %5937 = vmatpush1.msra.mxu0 0.0
    %5938 = vmatprep.subr.mxu0 0.0
    %5939 = vmatpush1.msra.mxu0 0.0
    %5940 = vmatprep.subr.mxu0 0.0
    %5941 = vmatpush1.msra.mxu0 0.0
    %5942 = vmatprep.subr.mxu0 0.0
    %5943 = vmatpush1.msra.mxu0 0.0
    %5944 = vmatprep.subr.mxu0 0.0
    %5945 = vmatpush1.msra.mxu0 0.0
    %5946 = vmatprep.subr.mxu0 0.0
    %5947 = vmatpush1.msra.mxu0 0.0
    %5948 = vmatprep.subr.mxu0 0.0
    %5949 = vmatpush1.msra.mxu0 0.0
    %5950 = vmatprep.subr.mxu0 0.0
    %5951 = vmatpush1.msra.mxu0 0.0
    %5952 = vmatprep.subr.mxu0 0.0
    %5953 = vmatpush1.msra.mxu0 0.0
    %5954 = vmatprep.subr.mxu0 0.0
    %5955 = vmatpush1.msra.mxu0 0.0
    %5956 = vmatprep.subr.mxu0 0.0
    %5957 = vmatpush1.msra.mxu0 0.0
    %5958 = vmatprep.subr.mxu0 0.0
    %5959 = vmatpush1.msra.mxu0 0.0
    %5960 = vmatprep.subr.mxu0 0.0
    %5961 = vmatpush1.msra.mxu0 0.0
    %5962 = vmatprep.subr.mxu0 0.0
    %5963 = vmatpush1.msra.mxu0 0.0
    %5964 = vmatprep.subr.mxu0 0.0
    %5965 = vmatpush1.msra.mxu0 0.0
    %5966 = vmatprep.subr.mxu0 0.0
    %5967 = vmatpush1.msra.mxu0 0.0
    %5968 = vmatprep.subr.mxu0 0.0
    %5969 = vmatpush1.msra.mxu0 0.0
    %5970 = vmatprep.subr.mxu0 0.0
    %5971 = vmatpush1.msra.mxu0 0.0
    %5972 = vmatprep.subr.mxu0 0.0
    %5973 = vmatpush1.msra.mxu0 0.0
    %5974 = vmatprep.subr.mxu0 0.0
    %5975 = vmatpush1.msra.mxu0 0.0
    %5976 = vmatprep.subr.mxu0 0.0
    %5977 = vmatpush1.msra.mxu0 0.0
    %5978 = vmatprep.subr.mxu0 0.0
    %5979 = vmatpush1.msra.mxu0 0.0
    %5980 = vmatprep.subr.mxu0 0.0
    %5981 = vmatpush1.msra.mxu0 0.0
    %5982 = vmatprep.subr.mxu0 0.0
    %5983 = vmatpush1.msra.mxu0 0.0
    %5984 = vmatprep.subr.mxu0 0.0
    %5985 = vmatpush1.msra.mxu0 0.0
    %5986 = vmatprep.subr.mxu0 0.0
    %5987 = vmatpush1.msra.mxu0 0.0
    %5988 = vmatprep.subr.mxu0 0.0
    %5989 = vmatpush1.msra.mxu0 0.0
    %5990 = vmatprep.subr.mxu0 0.0
    %5991 = vmatpush1.msra.mxu0 0.0
    %5992 = vmatprep.subr.mxu0 0.0
    %5993 = vmatpush1.msra.mxu0 0.0
    %5994 = vmatprep.mubr.f32.mxu0 0.0
    %5995 = vmatmul.mubr.f32.gmra.mrb[0].mxu0 %v2038
    %v5996 = vpop.f32.mrb[0].mxu0
    %v5997 = vadd.f32 0.0, %v5996
    %v5998 = vpop.f32.mrb[0].mxu0
    %5999 = vdwg.mxu0
    %v6001 = vrot.slane %v5287, 7
    %v6003 = vsub.f32 %v5287, %v6001
    %v6004 = vmul.f32 %v6003, 0.5
    %v6005 = vtanh.pop %v6004
    %v6006 = vmul.f32 %v6005, %v6005
    %v6008 = vrot.slane %v5429, 7
    %v6010 = vsub.f32 %v5429, %v6008
    %v6011 = vmul.f32 %v6010, 0.5
    %v6012 = vtanh.pop %v6011
    %v6013 = vmul.f32 %v6012, %v6012
    %v6015 = vrot.slane %v5571, 7
    %v6017 = vsub.f32 %v5571, %v6015
    %v6018 = vmul.f32 %v6017, 0.5
    %v6019 = vtanh.pop %v6018
    %v6020 = vmul.f32 %v6019, %v6019
    %v6022 = vrot.slane %v5713, 7
    %v6024 = vsub.f32 %v5713, %v6022
    %v6025 = vmul.f32 %v6024, 0.5
    %v6026 = vtanh.pop %v6025
    %v6027 = vmul.f32 %v6026, %v6026
    %v6029 = vrot.slane %v5855, 7
    %v6031 = vsub.f32 %v5855, %v6029
    %v6032 = vmul.f32 %v6031, 0.5
    %v6033 = vtanh.pop %v6032
    %v6034 = vmul.f32 %v6033, %v6033
    %v6036 = vrot.slane %v5997, 7
    %v6038 = vsub.f32 %v5997, %v6036
    %v6039 = vmul.f32 %v6038, 0.5
    %v6040 = vtanh.pop %v6039
    %v6041 = vmul.f32 %v6040, %v6040
    %v6042 = vmul.f32 %v6006, %v6027
    %v6044 = vrot.slane %v6042, 1
    %v6046 = vsel %vm2866, %v6044, 0.0
    %6047 = vadd.xlane.f32.xlu0 %v6046
    %v6048 = vpop.xlane.xlu0 %6047
    %v6049 = vrot.slane %v6048, 4
    %v6050 = vadd.f32 %v6048, %v6049
    %v6051 = vrot.slane %v6050, 2
    %v6052 = vadd.f32 %v6050, %v6051
    %v6053 = vrot.slane %v6052, 1
    %v6054 = vadd.f32 %v6052, %v6053
    %s6055 = vtos %v6054
    %s6056 = sadd.s32 %s3351, 36
    %s6057 = scalar_lea.smem [#allocation2], %s6056
    %6058 = sst [smem:[%s6057]] %s6055
    %v6059 = vmul.f32 %v6013, %v6027
    %v6061 = vrot.slane %v6059, 1
    %v6063 = vsel %vm2866, %v6061, 0.0
    %6064 = vadd.xlane.f32.xlu0 %v6063
    %v6065 = vpop.xlane.xlu0 %6064
    %v6066 = vrot.slane %v6065, 4
    %v6067 = vadd.f32 %v6065, %v6066
    %v6068 = vrot.slane %v6067, 2
    %v6069 = vadd.f32 %v6067, %v6068
    %v6070 = vrot.slane %v6069, 1
    %v6071 = vadd.f32 %v6069, %v6070
    %s6072 = vtos %v6071
    %s6073 = sadd.s32 %s3351, 37
    %s6074 = scalar_lea.smem [#allocation2], %s6073
    %6075 = sst [smem:[%s6074]] %s6072
    %v6076 = vmul.f32 %v6020, %v6027
    %v6078 = vrot.slane %v6076, 1
    %v6080 = vsel %vm2866, %v6078, 0.0
    %6081 = vadd.xlane.f32.xlu0 %v6080
    %v6082 = vpop.xlane.xlu0 %6081
    %v6083 = vrot.slane %v6082, 4
    %v6084 = vadd.f32 %v6082, %v6083
    %v6085 = vrot.slane %v6084, 2
    %v6086 = vadd.f32 %v6084, %v6085
    %v6087 = vrot.slane %v6086, 1
    %v6088 = vadd.f32 %v6086, %v6087
    %s6089 = vtos %v6088
    %s6090 = sadd.s32 %s3351, 38
    %s6091 = scalar_lea.smem [#allocation2], %s6090
    %6092 = sst [smem:[%s6091]] %s6089
    %v6093 = vmul.f32 %v6006, %v6034
    %v6095 = vrot.slane %v6093, 1
    %v6097 = vsel %vm2866, %v6095, 0.0
    %6098 = vadd.xlane.f32.xlu0 %v6097
    %v6099 = vpop.xlane.xlu0 %6098
    %v6100 = vrot.slane %v6099, 4
    %v6101 = vadd.f32 %v6099, %v6100
    %v6102 = vrot.slane %v6101, 2
    %v6103 = vadd.f32 %v6101, %v6102
    %v6104 = vrot.slane %v6103, 1
    %v6105 = vadd.f32 %v6103, %v6104
    %s6106 = vtos %v6105
    %s6107 = sadd.s32 %s3351, 39
    %s6108 = scalar_lea.smem [#allocation2], %s6107
    %6109 = sst [smem:[%s6108]] %s6106
    %v6110 = vmul.f32 %v6013, %v6034
    %v6112 = vrot.slane %v6110, 1
    %v6114 = vsel %vm2866, %v6112, 0.0
    %6115 = vadd.xlane.f32.xlu0 %v6114
    %v6116 = vpop.xlane.xlu0 %6115
    %v6117 = vrot.slane %v6116, 4
    %v6118 = vadd.f32 %v6116, %v6117
    %v6119 = vrot.slane %v6118, 2
    %v6120 = vadd.f32 %v6118, %v6119
    %v6121 = vrot.slane %v6120, 1
    %v6122 = vadd.f32 %v6120, %v6121
    %s6123 = vtos %v6122
    %s6124 = sadd.s32 %s3351, 40
    %s6125 = scalar_lea.smem [#allocation2], %s6124
    %6126 = sst [smem:[%s6125]] %s6123
    %v6127 = vmul.f32 %v6020, %v6034
    %v6129 = vrot.slane %v6127, 1
    %v6131 = vsel %vm2866, %v6129, 0.0
    %6132 = vadd.xlane.f32.xlu0 %v6131
    %v6133 = vpop.xlane.xlu0 %6132
    %v6134 = vrot.slane %v6133, 4
    %v6135 = vadd.f32 %v6133, %v6134
    %v6136 = vrot.slane %v6135, 2
    %v6137 = vadd.f32 %v6135, %v6136
    %v6138 = vrot.slane %v6137, 1
    %v6139 = vadd.f32 %v6137, %v6138
    %s6140 = vtos %v6139
    %s6141 = sadd.s32 %s3351, 41
    %s6142 = scalar_lea.smem [#allocation2], %s6141
    %6143 = sst [smem:[%s6142]] %s6140
    %v6144 = vmul.f32 %v6006, %v6041
    %v6146 = vrot.slane %v6144, 1
    %v6148 = vsel %vm2866, %v6146, 0.0
    %6149 = vadd.xlane.f32.xlu0 %v6148
    %v6150 = vpop.xlane.xlu0 %6149
    %v6151 = vrot.slane %v6150, 4
    %v6152 = vadd.f32 %v6150, %v6151
    %v6153 = vrot.slane %v6152, 2
    %v6154 = vadd.f32 %v6152, %v6153
    %v6155 = vrot.slane %v6154, 1
    %v6156 = vadd.f32 %v6154, %v6155
    %s6157 = vtos %v6156
    %s6158 = sadd.s32 %s3351, 42
    %s6159 = scalar_lea.smem [#allocation2], %s6158
    %6160 = sst [smem:[%s6159]] %s6157
    %v6161 = vmul.f32 %v6013, %v6041
    %v6163 = vrot.slane %v6161, 1
    %v6165 = vsel %vm2866, %v6163, 0.0
    %6166 = vadd.xlane.f32.xlu0 %v6165
    %v6167 = vpop.xlane.xlu0 %6166
    %v6168 = vrot.slane %v6167, 4
    %v6169 = vadd.f32 %v6167, %v6168
    %v6170 = vrot.slane %v6169, 2
    %v6171 = vadd.f32 %v6169, %v6170
    %v6172 = vrot.slane %v6171, 1
    %v6173 = vadd.f32 %v6171, %v6172
    %s6174 = vtos %v6173
    %s6175 = sadd.s32 %s3351, 43
    %s6176 = scalar_lea.smem [#allocation2], %s6175
    %6177 = sst [smem:[%s6176]] %s6174
    %v6178 = vmul.f32 %v6020, %v6041
    %v6180 = vrot.slane %v6178, 1
    %v6182 = vsel %vm2866, %v6180, 0.0
    %6183 = vadd.xlane.f32.xlu0 %v6182
    %v6184 = vpop.xlane.xlu0 %6183
    %v6185 = vrot.slane %v6184, 4
    %v6186 = vadd.f32 %v6184, %v6185
    %v6187 = vrot.slane %v6186, 2
    %v6188 = vadd.f32 %v6186, %v6187
    %v6189 = vrot.slane %v6188, 1
    %v6190 = vadd.f32 %v6188, %v6189
    %s6191 = vtos %v6190
    %s6192 = sadd.s32 %s3351, 44
    %s6193 = scalar_lea.smem [#allocation2], %s6192
    %6194 = sst [smem:[%s6193]] %s6191
    %6195 = vrot.lane.b32.xlu0 %v5287, 1
    %v6196 = vpop.permute.xlu0 %6195
    %v6198 = vsub.f32 %v5287, %v6196
    %v6199 = vmul.f32 %v6198, 0.5
    %v6200 = vtanh.pop %v6199
    %v6201 = vmul.f32 %v6200, %v6200
    %6202 = vrot.lane.b32.xlu0 %v5429, 1
    %v6203 = vpop.permute.xlu0 %6202
    %v6205 = vsub.f32 %v5429, %v6203
    %v6206 = vmul.f32 %v6205, 0.5
    %v6207 = vtanh.pop %v6206
    %v6208 = vmul.f32 %v6207, %v6207
    %6209 = vrot.lane.b32.xlu0 %v5571, 1
    %v6210 = vpop.permute.xlu0 %6209
    %v6212 = vsub.f32 %v5571, %v6210
    %v6213 = vmul.f32 %v6212, 0.5
    %v6214 = vtanh.pop %v6213
    %v6215 = vmul.f32 %v6214, %v6214
    %6216 = vrot.lane.b32.xlu0 %v5713, 1
    %v6217 = vpop.permute.xlu0 %6216
    %v6219 = vsub.f32 %v5713, %v6217
    %v6220 = vmul.f32 %v6219, 0.5
    %v6221 = vtanh.pop %v6220
    %v6222 = vmul.f32 %v6221, %v6221
    %6223 = vrot.lane.b32.xlu0 %v5855, 1
    %v6224 = vpop.permute.xlu0 %6223
    %v6226 = vsub.f32 %v5855, %v6224
    %v6227 = vmul.f32 %v6226, 0.5
    %v6228 = vtanh.pop %v6227
    %v6229 = vmul.f32 %v6228, %v6228
    %6230 = vrot.lane.b32.xlu0 %v5997, 1
    %v6231 = vpop.permute.xlu0 %6230
    %v6233 = vsub.f32 %v5997, %v6231
    %v6234 = vmul.f32 %v6233, 0.5
    %v6235 = vtanh.pop %v6234
    %v6236 = vmul.f32 %v6235, %v6235
    %v6237 = vmul.f32 %v6201, %v6222
    %6239 = vrot.lane.b32.xlu0 %v6237, 127
    %v6240 = vpop.permute.xlu0 %6239
    %v6242 = vsel %vm3063, %v6240, 0.0
    %6243 = vadd.xlane.f32.xlu0 %v6242
    %v6244 = vpop.xlane.xlu0 %6243
    %v6245 = vrot.slane %v6244, 4
    %v6246 = vadd.f32 %v6244, %v6245
    %v6247 = vrot.slane %v6246, 2
    %v6248 = vadd.f32 %v6246, %v6247
    %v6249 = vrot.slane %v6248, 1
    %v6250 = vadd.f32 %v6248, %v6249
    %s6251 = vtos %v6250
    %s6252 = sadd.s32 %s3351, 45
    %s6253 = scalar_lea.smem [#allocation2], %s6252
    %6254 = sst [smem:[%s6253]] %s6251
    %v6255 = vmul.f32 %v6208, %v6222
    %6257 = vrot.lane.b32.xlu0 %v6255, 127
    %v6258 = vpop.permute.xlu0 %6257
    %v6260 = vsel %vm3063, %v6258, 0.0
    %6261 = vadd.xlane.f32.xlu0 %v6260
    %v6262 = vpop.xlane.xlu0 %6261
    %v6263 = vrot.slane %v6262, 4
    %v6264 = vadd.f32 %v6262, %v6263
    %v6265 = vrot.slane %v6264, 2
    %v6266 = vadd.f32 %v6264, %v6265
    %v6267 = vrot.slane %v6266, 1
    %v6268 = vadd.f32 %v6266, %v6267
    %s6269 = vtos %v6268
    %s6270 = sadd.s32 %s3351, 46
    %s6271 = scalar_lea.smem [#allocation2], %s6270
    %6272 = sst [smem:[%s6271]] %s6269
    %v6273 = vmul.f32 %v6215, %v6222
    %6275 = vrot.lane.b32.xlu0 %v6273, 127
    %v6276 = vpop.permute.xlu0 %6275
    %v6278 = vsel %vm3063, %v6276, 0.0
    %6279 = vadd.xlane.f32.xlu0 %v6278
    %v6280 = vpop.xlane.xlu0 %6279
    %v6281 = vrot.slane %v6280, 4
    %v6282 = vadd.f32 %v6280, %v6281
    %v6283 = vrot.slane %v6282, 2
    %v6284 = vadd.f32 %v6282, %v6283
    %v6285 = vrot.slane %v6284, 1
    %v6286 = vadd.f32 %v6284, %v6285
    %s6287 = vtos %v6286
    %s6288 = sadd.s32 %s3351, 47
    %s6289 = scalar_lea.smem [#allocation2], %s6288
    %6290 = sst [smem:[%s6289]] %s6287
    %v6291 = vmul.f32 %v6201, %v6229
    %6293 = vrot.lane.b32.xlu0 %v6291, 127
    %v6294 = vpop.permute.xlu0 %6293
    %v6296 = vsel %vm3063, %v6294, 0.0
    %6297 = vadd.xlane.f32.xlu0 %v6296
    %v6298 = vpop.xlane.xlu0 %6297
    %v6299 = vrot.slane %v6298, 4
    %v6300 = vadd.f32 %v6298, %v6299
    %v6301 = vrot.slane %v6300, 2
    %v6302 = vadd.f32 %v6300, %v6301
    %v6303 = vrot.slane %v6302, 1
    %v6304 = vadd.f32 %v6302, %v6303
    %s6305 = vtos %v6304
    %s6306 = sadd.s32 %s3351, 48
    %s6307 = scalar_lea.smem [#allocation2], %s6306
    %6308 = sst [smem:[%s6307]] %s6305
    %v6309 = vmul.f32 %v6208, %v6229
    %6311 = vrot.lane.b32.xlu0 %v6309, 127
    %v6312 = vpop.permute.xlu0 %6311
    %v6314 = vsel %vm3063, %v6312, 0.0
    %6315 = vadd.xlane.f32.xlu0 %v6314
    %v6316 = vpop.xlane.xlu0 %6315
    %v6317 = vrot.slane %v6316, 4
    %v6318 = vadd.f32 %v6316, %v6317
    %v6319 = vrot.slane %v6318, 2
    %v6320 = vadd.f32 %v6318, %v6319
    %v6321 = vrot.slane %v6320, 1
    %v6322 = vadd.f32 %v6320, %v6321
    %s6323 = vtos %v6322
    %s6324 = sadd.s32 %s3351, 49
    %s6325 = scalar_lea.smem [#allocation2], %s6324
    %6326 = sst [smem:[%s6325]] %s6323
    %v6327 = vmul.f32 %v6215, %v6229
    %6329 = vrot.lane.b32.xlu0 %v6327, 127
    %v6330 = vpop.permute.xlu0 %6329
    %v6332 = vsel %vm3063, %v6330, 0.0
    %6333 = vadd.xlane.f32.xlu0 %v6332
    %v6334 = vpop.xlane.xlu0 %6333
    %v6335 = vrot.slane %v6334, 4
    %v6336 = vadd.f32 %v6334, %v6335
    %v6337 = vrot.slane %v6336, 2
    %v6338 = vadd.f32 %v6336, %v6337
    %v6339 = vrot.slane %v6338, 1
    %v6340 = vadd.f32 %v6338, %v6339
    %s6341 = vtos %v6340
    %s6342 = sadd.s32 %s3351, 50
    %s6343 = scalar_lea.smem [#allocation2], %s6342
    %6344 = sst [smem:[%s6343]] %s6341
    %v6345 = vmul.f32 %v6201, %v6236
    %6347 = vrot.lane.b32.xlu0 %v6345, 127
    %v6348 = vpop.permute.xlu0 %6347
    %v6350 = vsel %vm3063, %v6348, 0.0
    %6351 = vadd.xlane.f32.xlu0 %v6350
    %v6352 = vpop.xlane.xlu0 %6351
    %v6353 = vrot.slane %v6352, 4
    %v6354 = vadd.f32 %v6352, %v6353
    %v6355 = vrot.slane %v6354, 2
    %v6356 = vadd.f32 %v6354, %v6355
    %v6357 = vrot.slane %v6356, 1
    %v6358 = vadd.f32 %v6356, %v6357
    %s6359 = vtos %v6358
    %s6360 = sadd.s32 %s3351, 51
    %s6361 = scalar_lea.smem [#allocation2], %s6360
    %6362 = sst [smem:[%s6361]] %s6359
    %v6363 = vmul.f32 %v6208, %v6236
    %6365 = vrot.lane.b32.xlu0 %v6363, 127
    %v6366 = vpop.permute.xlu0 %6365
    %v6368 = vsel %vm3063, %v6366, 0.0
    %6369 = vadd.xlane.f32.xlu0 %v6368
    %v6370 = vpop.xlane.xlu0 %6369
    %v6371 = vrot.slane %v6370, 4
    %v6372 = vadd.f32 %v6370, %v6371
    %v6373 = vrot.slane %v6372, 2
    %v6374 = vadd.f32 %v6372, %v6373
    %v6375 = vrot.slane %v6374, 1
    %v6376 = vadd.f32 %v6374, %v6375
    %s6377 = vtos %v6376
    %s6378 = sadd.s32 %s3351, 52
    %s6379 = scalar_lea.smem [#allocation2], %s6378
    %6380 = sst [smem:[%s6379]] %s6377
    %v6381 = vmul.f32 %v6215, %v6236
    %6383 = vrot.lane.b32.xlu0 %v6381, 127
    %v6384 = vpop.permute.xlu0 %6383
    %v6386 = vsel %vm3063, %v6384, 0.0
    %6387 = vadd.xlane.f32.xlu0 %v6386
    %v6388 = vpop.xlane.xlu0 %6387
    %v6389 = vrot.slane %v6388, 4
    %v6390 = vadd.f32 %v6388, %v6389
    %v6391 = vrot.slane %v6390, 2
    %v6392 = vadd.f32 %v6390, %v6391
    %v6393 = vrot.slane %v6392, 1
    %v6394 = vadd.f32 %v6392, %v6393
    %s6395 = vtos %v6394
    %s6396 = sadd.s32 %s3351, 53
    %s6397 = scalar_lea.smem [#allocation2], %s6396
    %6398 = sst [smem:[%s6397]] %s6395
    // Predicated region
    $region26: #{exclusion_loss.1} parent=1 // pred_check
      _
    $region27: #{exclusion_loss.1} parent=1 // pred_check_branch
      %6400 = sbr.rel (0) target = $region29
    $region28: #{exclusion_loss.1} parent=1 // pred_region
      %s6402 = ssub.s32 32, 32
      %6403 = vsyncadd [#allocation3], %s6402
      %s6405 = sshll.u32 %s6, 4
      %s6406 = int_to_ptr.vmem [resolvable:$true] %s6405
      %6408 = dma.smem_to_vmem [#allocation2], 32, %s6406, [#allocation3]
    $region29: #{exclusion_loss.1} parent=1 // pred_fallthru
      _
    // Predicated region
    $region30: #{exclusion_loss.1} parent=1 // pred_check
      _
    $region31: #{exclusion_loss.1} parent=1 // pred_check_branch
      %6410 = sbr.rel (0) target = $region33
    $region32: #{exclusion_loss.1} parent=1 // pred_region
      %6411 = dma.done [#allocation3], 32
    $region33: #{exclusion_loss.1} parent=1 // pred_fallthru
      _
    %6412 = sfence
    %6413 = vsyncpa [#allocation3], 1

</llo_original>
